<compile_context>
chip_gen: v6e
topology: v6e:2x2x1
jax: 0.10.0
libtpu: 0.0.40
codegen_flags: <defaults>
</compile_context>

<pallas_src>
import functools

import jax
import jax.numpy as jnp
from jax.experimental import pallas as pl
from jax.experimental.pallas import tpu as pltpu


# ----------------------------------------------------------------------------
# Small helpers
# ----------------------------------------------------------------------------
def _pick_lane_tile(n, max_t=1024):
    """Largest lane tile (multiple of 128, <= max_t) that divides n, else n."""
    if n <= max_t:
        return n
    for t in range(max_t, 127, -128):
        if n % t == 0:
            return t
    return n


# ----------------------------------------------------------------------------
# Pallas kernels
# ----------------------------------------------------------------------------
def _linear_kernel(w_ref, b_ref, x_ref, o_ref, *, leaky_slope=None):
    # w: (Cout, K) f32, b: (Cout, 1) f32, x: (K, TL) bf16, o: (Cout, TL) f32
    y = jnp.dot(w_ref[...].astype(jnp.bfloat16), x_ref[...],
                preferred_element_type=jnp.float32)
    y = y + b_ref[...]
    if leaky_slope is not None:
        y = jnp.where(y >= 0, y, leaky_slope * y)
    o_ref[...] = y


def linear_all(w, b, x_kl, leaky_slope=None):
    """y = act(w @ x + b).  w:(Cout,K), b:(Cout,), x_kl:(K, L) with batch in L."""
    Cout, K = w.shape
    L = x_kl.shape[1]
    TL = _pick_lane_tile(L)
    kern = functools.partial(_linear_kernel, leaky_slope=leaky_slope)
    cost = pl.CostEstimate(
        flops=2 * Cout * K * L,
        transcendentals=0,
        bytes_accessed=int(Cout * K * 4 + Cout * 4 + K * L * 2 + Cout * L * 4))
    return pl.pallas_call(
        kern,
        out_shape=jax.ShapeDtypeStruct((Cout, L), jnp.float32),
        grid=(L // TL,),
        in_specs=[
            pl.BlockSpec((Cout, K), lambda t: (0, 0)),
            pl.BlockSpec((Cout, 1), lambda t: (0, 0)),
            pl.BlockSpec((K, TL), lambda t: (0, t)),
        ],
        out_specs=pl.BlockSpec((Cout, TL), lambda t: (0, t)),
        compiler_params=pltpu.CompilerParams(dimension_semantics=("parallel",)),
        cost_estimate=cost,
    )(w.astype(jnp.float32), b.reshape(Cout, 1).astype(jnp.float32),
      x_kl.astype(jnp.bfloat16))


def _group_conv_kernel(w_ref, b_ref, x_ref, o_ref, *, leaky_slope):
    # w: (1, Cg, K9) f32, b: (1, Cg, 1) f32, x: (1, K9, TL) bf16, o: (1, Cg, TL) f32
    y = jnp.dot(w_ref[0].astype(jnp.bfloat16), x_ref[0],
                preferred_element_type=jnp.float32)
    y = y + b_ref[0]
    o_ref[0] = jnp.where(y >= 0, y, leaky_slope * y)


def _attn_core_kernel(w_ref, x_ref, m_ref, r_ref, o_ref, *, scale):
    # w: (1, P, K)  raw matching patches (f32), K = C*9
    # x: (1, K, TQ) im2col tile of the query feature map (bf16)
    # m: (1, P, 1)  binary hole mask per patch (f32)
    # r: (1, K, P)  recon patches (transposed, pre-scaled by 0.25) (bf16)
    # o: (1, K, TQ) "col" output tile (col2im done outside)
    w = w_ref[0]
    mm = m_ref[0]                                                   # (P, 1)
    sumsq = jnp.sum(w * w, axis=1, keepdims=True)                   # (P, 1)
    inv_norm = jax.lax.rsqrt(jnp.maximum(sumsq, 1e-8))              # == 1/max(sqrt,1e-4)
    # fold mask and softmax scale into the normalized patches (exact):
    wn = w * (inv_norm * (mm * scale))
    s = jnp.dot(wn.astype(jnp.bfloat16), x_ref[0],
                preferred_element_type=jnp.float32)                 # (P, TQ)
    s = s - jnp.max(s, axis=0, keepdims=True)                       # softmax over P
    e = jnp.exp(s)
    p = e * pl.reciprocal(jnp.sum(e, axis=0, keepdims=True), approx=True)
    p = jnp.maximum(p * mm, 1e-8)                                   # mask + clamp(min=1e-8)
    o_ref[0] = jnp.dot(r_ref[0], p.astype(jnp.bfloat16),
                       preferred_element_type=jnp.float32)


def attn_core_batched(w_p, xcol, mm, r_t, scale):
    B, P, K = w_p.shape
    HW = xcol.shape[2]
    Pr = r_t.shape[2]
    TQ = _pick_lane_tile(HW, max_t=1024)
    kern = functools.partial(_attn_core_kernel, scale=scale)
    cost = pl.CostEstimate(
        flops=int(4 * B * P * K * HW),
        transcendentals=int(B * P * HW),
        bytes_accessed=int(B * (P * K * 4 + K * HW * 2 + P * 4 + K * Pr * 2 + K * HW * 4)))
    return pl.pallas_call(
        kern,
        out_shape=jax.ShapeDtypeStruct((B, K, HW), jnp.float32),
        grid=(B, HW // TQ),
        in_specs=[
            pl.BlockSpec((1, P, K), lambda b, t: (b, 0, 0)),
            pl.BlockSpec((1, K, TQ), lambda b, t: (b, 0, t)),
            pl.BlockSpec((1, P, 1), lambda b, t: (b, 0, 0)),
            pl.BlockSpec((1, K, Pr), lambda b, t: (b, 0, 0)),
        ],
        out_specs=pl.BlockSpec((1, K, TQ), lambda b, t: (b, 0, t)),
        compiler_params=pltpu.CompilerParams(
            dimension_semantics=("parallel", "parallel")),
        cost_estimate=cost,
    )(w_p.astype(jnp.float32), xcol.astype(jnp.bfloat16),
      mm.astype(jnp.float32), r_t.astype(jnp.bfloat16))


# ----------------------------------------------------------------------------
# JAX glue (data movement only)
# ----------------------------------------------------------------------------
def to_kl(x_bkl):
    # (B, K, HW) -> (K, B*HW): fold batch into the lane dimension.
    B, K, HW = x_bkl.shape
    return jnp.transpose(x_bkl, (1, 0, 2)).reshape(K, B * HW)


def conv1x1_fused(x, wbs):
    """Apply several 1x1 convs that read the same input with ONE pallas_call.

    wbs: list of (w (Cout_i, Cin, 1, 1), b (Cout_i,)).  Returns list of
    (B, Cout_i, H, W) outputs in the same order.
    """
    B, C, H, W = x.shape
    x_kl = jnp.transpose(x, (1, 0, 2, 3)).reshape(C, B * H * W)
    w_stack = jnp.concatenate([w.reshape(w.shape[0], C) for (w, _) in wbs], axis=0)
    b_stack = jnp.concatenate([b for (_, b) in wbs], axis=0)
    y = linear_all(w_stack, b_stack, x_kl)                     # (sum Cout, B*HW)
    outs, off = [], 0
    for (w, _) in wbs:
        co = w.shape[0]
        outs.append(y[off:off + co].reshape(co, B, H, W).transpose(1, 0, 2, 3))
        off += co
    return outs


def extract_patches_jax(x, ksize=3):
    # matches torch extract_patches(...).view(B, H*W, C, k, k)
    B, C, H, W = x.shape
    pad = 0 if ksize == 1 else 1
    xp = jnp.pad(x, ((0, 0), (0, 0), (pad, pad), (pad, pad)))
    taps = [xp[:, :, ky:ky + H, kx:kx + W]
            for ky in range(ksize) for kx in range(ksize)]
    p = jnp.stack(taps, axis=-1).reshape(B, C, H, W, ksize, ksize)
    p = jnp.transpose(p, (0, 2, 3, 1, 4, 5))
    return p.reshape(B, H * W, C, ksize, ksize)


def im2col3(x, dilation=1):
    # conv2d with 3x3 kernel, stride 1, padding = dilation
    B, C, H, W = x.shape
    d = dilation
    xp = jnp.pad(x, ((0, 0), (0, 0), (d, d), (d, d)))
    taps = [xp[:, :, ky * d:ky * d + H, kx * d:kx * d + W]
            for ky in range(3) for kx in range(3)]
    return jnp.stack(taps, axis=2).reshape(B, C * 9, H * W)


def col2im3(col, C, H, W):
    # inverse of im2col for conv_transpose2d(stride=1, padding=1)
    # TODO(synk): keep col2im as XLA shifted scatter-adds; an in-kernel roll+mask
    #             epilogue would avoid one HBM pass but is left out for clarity.
    B = col.shape[0]
    c = col.reshape(B, C, 3, 3, H, W)
    out = jnp.zeros((B, C, H + 2, W + 2), jnp.float32)
    for ky in range(3):
        for kx in range(3):
            out = out.at[:, :, ky:ky + H, kx:kx + W].add(c[:, :, ky, kx])
    return out[:, :, 1:1 + H, 1:1 + W]


def interp_bilinear_ac(x, out_h, out_w):
    # F.interpolate(mode='bilinear', align_corners=True)
    B, C, H, W = x.shape
    ys = jnp.arange(out_h) * ((H - 1) / (out_h - 1)) if out_h > 1 else jnp.zeros((out_h,))
    xs = jnp.arange(out_w) * ((W - 1) / (out_w - 1)) if out_w > 1 else jnp.zeros((out_w,))
    y0 = jnp.floor(ys).astype(jnp.int32)
    y1 = jnp.minimum(y0 + 1, H - 1)
    wy = (ys - y0).astype(x.dtype)
    x0 = jnp.floor(xs).astype(jnp.int32)
    x1 = jnp.minimum(x0 + 1, W - 1)
    wx = (xs - x0).astype(x.dtype)
    r0 = x[:, :, y0, :]
    r1 = x[:, :, y1, :]
    row = r0 * (1 - wy)[None, None, :, None] + r1 * wy[None, None, :, None]
    c0 = row[:, :, :, x0]
    c1 = row[:, :, :, x1]
    return c0 * (1 - wx)[None, None, None, :] + c1 * wx[None, None, None, :]


def interp_nearest(x, out_h, out_w):
    B, C, H, W = x.shape
    yi = jnp.minimum(jnp.floor(jnp.arange(out_h) * (H / out_h)).astype(jnp.int32), H - 1)
    xi = jnp.minimum(jnp.floor(jnp.arange(out_w) * (W / out_w)).astype(jnp.int32), W - 1)
    return x[:, :, yi, :][:, :, :, xi]


def mask_mm(mask):
    # (B,1,Hm,Wm) -> (B, Hm*Wm, 1), mm = (mean over 3x3 patch > 0.5)
    mp = extract_patches_jax(mask, 3)               # (B, P, 1, 3, 3)
    m = mp.mean(axis=(2, 3, 4))
    return (m > 0.5).astype(jnp.float32)[..., None]


# ----------------------------------------------------------------------------
# Module forward passes
# ----------------------------------------------------------------------------
def atn_core(query, match_feat, recon_feat, mask_hw, scale):
    """Shared AtnConv / AtnConv2 core.

    query:      (B, C, Hq, Wq)  feature map correlated against the patches
    match_feat: (B, C, Hp, Wp)  P = Hp*Wp matching patches (normalized in-kernel)
    recon_feat: (B, C, Hr, Wr)  reconstruction patches (Hr*Wr must equal P)
    mask_hw:    (B, 1, Hp, Wp)
    returns     (B, C, Hq, Wq)  == conv_transpose2d(softmax-attention, patches)/4
    """
    B, C, Hq, Wq = query.shape
    _, _, Hp, Wp = match_feat.shape
    P = Hp * Wp
    w_p = extract_patches_jax(match_feat).reshape(B, P, C * 9)
    r_p = extract_patches_jax(recon_feat).reshape(
        B, recon_feat.shape[2] * recon_feat.shape[3], C * 9)
    r_t = jnp.transpose(r_p, (0, 2, 1)) * 0.25      # fold the trailing /4.0
    mm = mask_mm(mask_hw)                           # (B, P, 1)
    xcol = im2col3(query)                           # (B, C*9, Hq*Wq)
    col = attn_core_batched(w_p, xcol, mm, r_t, scale)
    return col2im3(col, C, Hq, Wq)


def group_convs_fused(conv_params, x, leaky_slope=0.2):
    """All dilated 3x3 group convs (+LeakyReLU) in ONE pallas_call, grid=(G, lane)."""
    B, C, H, W = x.shape
    G = len(conv_params)
    Cg = conv_params[0][0].shape[0]
    K9 = C * 9
    L = B * H * W
    TL = _pick_lane_tile(L)
    xcols = jnp.stack([to_kl(im2col3(x, d)) for (_, _, d) in conv_params], axis=0)
    w_stack = jnp.stack([w.reshape(Cg, K9) for (w, _, _) in conv_params], axis=0)
    b_stack = jnp.stack([b.reshape(Cg, 1) for (_, b, _) in conv_params], axis=0)
    kern = functools.partial(_group_conv_kernel, leaky_slope=leaky_slope)
    cost = pl.CostEstimate(
        flops=2 * G * Cg * K9 * L,
        transcendentals=0,
        bytes_accessed=int(G * (Cg * K9 * 4 + Cg * 4 + K9 * L * 2 + Cg * L * 4)))
    y = pl.pallas_call(
        kern,
        out_shape=jax.ShapeDtypeStruct((G, Cg, L), jnp.float32),
        grid=(G, L // TL),
        in_specs=[
            pl.BlockSpec((1, Cg, K9), lambda g, t: (g, 0, 0)),
            pl.BlockSpec((1, Cg, 1), lambda g, t: (g, 0, 0)),
            pl.BlockSpec((1, K9, TL), lambda g, t: (g, 0, t)),
        ],
        out_specs=pl.BlockSpec((1, Cg, TL), lambda g, t: (g, 0, t)),
        compiler_params=pltpu.CompilerParams(
            dimension_semantics=("parallel", "parallel")),
        cost_estimate=cost,
    )(w_stack.astype(jnp.float32), b_stack.astype(jnp.float32),
      xcols.astype(jnp.bfloat16))
    return y.reshape(G, Cg, B, H, W).transpose(2, 0, 1, 3, 4).reshape(B, G * Cg, H, W)


def attn_forward(params, x1, x2, mask, softmax_scale=10.0):
    residual = x1
    p1, p2 = params['attn1'], params['attn2']

    # ---- fused 1x1 projections: one pallas_call per shared input ----
    # attn1.rw and attn2.rw both read x1
    q1, r2 = conv1x1_fused(x1, [(p1['rw_w'], p1['rw_b']), (p2['rw_w'], p2['rw_b'])])
    # attn1.f / attn1.w read the 32x32-resized x2
    x2r = interp_bilinear_ac(x2, 32, 32)
    wm1, rwm1 = conv1x1_fused(x2r, [(p1['f_w'], p1['f_b']), (p1['w_w'], p1['w_b'])])
    # attn2.f / attn2.w read x2
    q2, wm2 = conv1x1_fused(x2, [(p2['f_w'], p2['f_b']), (p2['w_w'], p2['w_b'])])

    # ---- AtnConv: query=rw(x1), match=f(x2_32), recon=w(x2_32), mask @ 32x32 ----
    a1 = atn_core(q1, wm1, rwm1, interp_nearest(mask, 32, 32), softmax_scale)
    # ---- AtnConv2: query=f(x2), match=w(x2), recon=rw(x1), mask @ x2 res ----
    a2 = atn_core(q2, wm2, r2, mask, softmax_scale)

    attn = jnp.concatenate([a1, a2], axis=1)
    y = group_convs_fused(params['convs'], attn)
    return y + residual


# ----------------------------------------------------------------------------
# Deterministic parameter init (synthetic, matches module shapes)
# ----------------------------------------------------------------------------
def init_params(key, in_ch=8, out_ch=8, groups=4, rates=(1, 2, 4, 8)):
    half = out_ch // 2
    keys = iter(jax.random.split(key, 40))

    def conv_w(cout, cin, k):
        return jax.random.normal(next(keys), (cout, cin, k, k), jnp.float32) * 0.1

    def conv_b(cout):
        return jax.random.normal(next(keys), (cout,), jnp.float32) * 0.05

    def atn():
        return {
            'rw_w': conv_w(half, in_ch, 1), 'rw_b': conv_b(half),
            'f_w': conv_w(half, in_ch, 1), 'f_b': conv_b(half),
            'w_w': conv_w(half, in_ch, 1), 'w_b': conv_b(half),
        }

    convs = []
    for i in range(groups):
        convs.append((conv_w(out_ch // groups, in_ch, 3),
                      conv_b(out_ch // groups), rates[i]))
    return {'attn1': atn(), 'attn2': atn(), 'convs': convs}


if __name__ == "__main__":
    key = jax.random.PRNGKey(0)
    k1, k2, k3, kp = jax.random.split(key, 4)
    B, C, H, W = 2, 8, 16, 16              # small shapes; residual needs in_ch == out_ch
    x1 = jax.random.normal(k1, (B, C, H, W), jnp.float32)
    x2 = jax.random.normal(k2, (B, C, H, W), jnp.float32)
    mask = (jax.random.uniform(k3, (B, 1, H, W)) > 0.5).astype(jnp.float32)
    params = init_params(kp, in_ch=C, out_ch=C, groups=4)

    fwd = jax.jit(lambda a, b, m: attn_forward(params, a, b, m))
    y = fwd(x1, x2, mask)
    jax.block_until_ready(y)
    assert y.shape == (B, C, H, W) and y.dtype == jnp.float32
    assert bool(jnp.all(jnp.isfinite(y)))
    print("KERNEL_OK")
</pallas_src>

<mosaic_0001>
module attributes {stable_mosaic.version = 11 : i64} {
  func.func @_linear_kernel(%arg0: i32, %arg1: memref<8x8xf32, #tpu.memory_space<vmem>>, %arg2: memref<8x1xf32, #tpu.memory_space<vmem>>, %arg3: memref<8x1024xbf16, #tpu.memory_space<vmem>>, %arg4: memref<8x1024xf32, #tpu.memory_space<vmem>>) attributes {dimension_semantics = [#tpu.dimension_semantics<parallel>], iteration_bounds = array<i64: 2>, scalar_prefetch = 0 : i64, scratch_operands = 0 : i64, tpu.core_type = #tpu.core_type<tc>, window_params = [{pipeline_mode = #tpu.pipeline_mode<synchronous>, transform_indices = @transform_0, window_bounds = array<i64: 8, 8>}, {pipeline_mode = #tpu.pipeline_mode<synchronous>, transform_indices = @transform_1, window_bounds = array<i64: 8, 1>}, {transform_indices = @transform_2, window_bounds = array<i64: 8, 1024>}, {transform_indices = @transform_3, window_bounds = array<i64: 8, 1024>}]} {
    %c0 = arith.constant 0 : index
    %c0_0 = arith.constant 0 : index
    %0 = vector.load %arg1[%c0, %c0_0] : memref<8x8xf32, #tpu.memory_space<vmem>>, vector<8x8xf32>
    %1 = arith.truncf %0 : vector<8x8xf32> to vector<8x8xbf16>
    %c0_1 = arith.constant 0 : index
    %c0_2 = arith.constant 0 : index
    %2 = vector.load %arg3[%c0_1, %c0_2] : memref<8x1024xbf16, #tpu.memory_space<vmem>>, vector<8x1024xbf16>
    %cst = arith.constant dense<0.000000e+00> : vector<8x1024xf32>
    %3 = tpu.matmul %1, %2, %cst {dimension_numbers = #tpu.dot_dimension_numbers<[1], [0], [0], [1], [0, 0, 1, 1], [], []>} : vector<8x8xbf16>, vector<8x1024xbf16>, vector<8x1024xf32> -> vector<8x1024xf32>
    %c0_3 = arith.constant 0 : index
    %c0_4 = arith.constant 0 : index
    %4 = vector.load %arg2[%c0_3, %c0_4] : memref<8x1xf32, #tpu.memory_space<vmem>>, vector<8x1xf32>
    %5 = vector.broadcast %4 : vector<8x1xf32> to vector<8x1024xf32>
    %6 = arith.addf %3, %5 : vector<8x1024xf32>
    %c0_5 = arith.constant 0 : index
    %c0_6 = arith.constant 0 : index
    %7 = vector.load %arg4[%c0_5, %c0_6] : memref<8x1024xf32, #tpu.memory_space<vmem>>, vector<8x1024xf32>
    tpu.vector_store %arg4[%c0_5, %c0_6], %6 {strides = array<i32>} : memref<8x1024xf32, #tpu.memory_space<vmem>>, vector<8x1024xf32>,
    return
  }
  func.func @transform_0(%arg0: i32) -> (i32, i32) {
    %c0_i32 = arith.constant 0 : i32
    %c0_i32_0 = arith.constant 0 : i32
    %c0_i32_1 = arith.constant 0 : i32
    return %c0_i32, %c0_i32_0 : i32, i32
  }
  func.func @transform_1(%arg0: i32) -> (i32, i32) {
    %c0_i32 = arith.constant 0 : i32
    %c0_i32_0 = arith.constant 0 : i32
    %c0_i32_1 = arith.constant 0 : i32
    return %c0_i32, %c0_i32_0 : i32, i32
  }
  func.func @transform_2(%arg0: i32) -> (i32, i32) {
    %c0_i32 = arith.constant 0 : i32
    %c0_i32_0 = arith.constant 0 : i32
    return %c0_i32, %arg0 : i32, i32
  }
  func.func @transform_3(%arg0: i32) -> (i32, i32) {
    %c0_i32 = arith.constant 0 : i32
    %c0_i32_0 = arith.constant 0 : i32
    return %c0_i32, %arg0 : i32, i32
  }
}

module attributes {stable_mosaic.version = 11 : i64} {
  func.func @_linear_kernel(%arg0: i32, %arg1: memref<8x8xf32, #tpu.memory_space<vmem>>, %arg2: memref<8x1xf32, #tpu.memory_space<vmem>>, %arg3: memref<8x512xbf16, #tpu.memory_space<vmem>>, %arg4: memref<8x512xf32, #tpu.memory_space<vmem>>) attributes {dimension_semantics = [#tpu.dimension_semantics<parallel>], iteration_bounds = array<i64: 1>, scalar_prefetch = 0 : i64, scratch_operands = 0 : i64, tpu.core_type = #tpu.core_type<tc>, window_params = [{pipeline_mode = #tpu.pipeline_mode<synchronous>, transform_indices = @transform_0, window_bounds = array<i64: 8, 8>}, {pipeline_mode = #tpu.pipeline_mode<synchronous>, transform_indices = @transform_1, window_bounds = array<i64: 8, 1>}, {transform_indices = @transform_2, window_bounds = array<i64: 8, 512>}, {transform_indices = @transform_3, window_bounds = array<i64: 8, 512>}]} {
    %c0 = arith.constant 0 : index
    %c0_0 = arith.constant 0 : index
    %0 = vector.load %arg1[%c0, %c0_0] : memref<8x8xf32, #tpu.memory_space<vmem>>, vector<8x8xf32>
    %1 = arith.truncf %0 : vector<8x8xf32> to vector<8x8xbf16>
    %c0_1 = arith.constant 0 : index
    %c0_2 = arith.constant 0 : index
    %2 = vector.load %arg3[%c0_1, %c0_2] : memref<8x512xbf16, #tpu.memory_space<vmem>>, vector<8x512xbf16>
    %cst = arith.constant dense<0.000000e+00> : vector<8x512xf32>
    %3 = tpu.matmul %1, %2, %cst {dimension_numbers = #tpu.dot_dimension_numbers<[1], [0], [0], [1], [0, 0, 1, 1], [], []>} : vector<8x8xbf16>, vector<8x512xbf16>, vector<8x512xf32> -> vector<8x512xf32>
    %c0_3 = arith.constant 0 : index
    %c0_4 = arith.constant 0 : index
    %4 = vector.load %arg2[%c0_3, %c0_4] : memref<8x1xf32, #tpu.memory_space<vmem>>, vector<8x1xf32>
    %5 = vector.broadcast %4 : vector<8x1xf32> to vector<8x512xf32>
    %6 = arith.addf %3, %5 : vector<8x512xf32>
    %c0_5 = arith.constant 0 : index
    %c0_6 = arith.constant 0 : index
    %7 = vector.load %arg4[%c0_5, %c0_6] : memref<8x512xf32, #tpu.memory_space<vmem>>, vector<8x512xf32>
    tpu.vector_store %arg4[%c0_5, %c0_6], %6 {strides = array<i32>} : memref<8x512xf32, #tpu.memory_space<vmem>>, vector<8x512xf32>,
    return
  }
  func.func @transform_0(%arg0: i32) -> (i32, i32) {
    %c0_i32 = arith.constant 0 : i32
    %c0_i32_0 = arith.constant 0 : i32
    %c0_i32_1 = arith.constant 0 : i32
    return %c0_i32, %c0_i32_0 : i32, i32
  }
  func.func @transform_1(%arg0: i32) -> (i32, i32) {
    %c0_i32 = arith.constant 0 : i32
    %c0_i32_0 = arith.constant 0 : i32
    %c0_i32_1 = arith.constant 0 : i32
    return %c0_i32, %c0_i32_0 : i32, i32
  }
  func.func @transform_2(%arg0: i32) -> (i32, i32) {
    %c0_i32 = arith.constant 0 : i32
    %c0_i32_0 = arith.constant 0 : i32
    return %c0_i32, %arg0 : i32, i32
  }
  func.func @transform_3(%arg0: i32) -> (i32, i32) {
    %c0_i32 = arith.constant 0 : i32
    %c0_i32_0 = arith.constant 0 : i32
    return %c0_i32, %arg0 : i32, i32
  }
}

module attributes {stable_mosaic.version = 11 : i64} {
  func.func @_attn_core_kernel(%arg0: i32, %arg1: i32, %arg2: memref<1x1024x36xf32, #tpu.memory_space<vmem>>, %arg3: memref<1x36x256xbf16, #tpu.memory_space<vmem>>, %arg4: memref<1x1024x1xf32, #tpu.memory_space<vmem>>, %arg5: memref<1x36x1024xbf16, #tpu.memory_space<vmem>>, %arg6: memref<1x36x256xf32, #tpu.memory_space<vmem>>) attributes {dimension_semantics = [#tpu.dimension_semantics<parallel>, #tpu.dimension_semantics<parallel>], iteration_bounds = array<i64: 2, 1>, scalar_prefetch = 0 : i64, scratch_operands = 0 : i64, tpu.core_type = #tpu.core_type<tc>, window_params = [{transform_indices = @transform_0, window_bounds = array<i64: 1, 1024, 36>}, {transform_indices = @transform_1, window_bounds = array<i64: 1, 36, 256>}, {transform_indices = @transform_2, window_bounds = array<i64: 1, 1024, 1>}, {transform_indices = @transform_3, window_bounds = array<i64: 1, 36, 1024>}, {transform_indices = @transform_4, window_bounds = array<i64: 1, 36, 256>}]} {
    %c0 = arith.constant 0 : index
    %c0_0 = arith.constant 0 : index
    %c0_1 = arith.constant 0 : index
    %0 = vector.load %arg2[%c0, %c0_0, %c0_1] : memref<1x1024x36xf32, #tpu.memory_space<vmem>>, vector<1x1024x36xf32>
    %1 = vector.shape_cast %0 : vector<1x1024x36xf32> to vector<1024x36xf32>
    %c0_2 = arith.constant 0 : index
    %c0_3 = arith.constant 0 : index
    %c0_4 = arith.constant 0 : index
    %2 = vector.load %arg4[%c0_2, %c0_3, %c0_4] : memref<1x1024x1xf32, #tpu.memory_space<vmem>>, vector<1x1024x1xf32>
    %3 = vector.shape_cast %2 : vector<1x1024x1xf32> to vector<1024x1xf32>
    %4 = arith.mulf %1, %1 : vector<1024x36xf32>
    %cst = arith.constant dense<0.000000e+00> : vector<1024xf32>
    %5 = vector.multi_reduction <add>, %4, %cst [1] : vector<1024x36xf32> to vector<1024xf32>
    %6 = vector.shape_cast %5 : vector<1024xf32> to vector<1024x1xf32>
    %cst_5 = arith.constant 9.99999993E-9 : f32
    %7 = vector.broadcast %cst_5 : f32 to vector<1024x1xf32>
    %8 = arith.maximumf %6, %7 : vector<1024x1xf32>
    %9 = math.rsqrt %8 : vector<1024x1xf32>
    %cst_6 = arith.constant 1.000000e+01 : f32
    %10 = vector.broadcast %cst_6 : f32 to vector<1024x1xf32>
    %11 = arith.mulf %3, %10 : vector<1024x1xf32>
    %12 = arith.mulf %9, %11 : vector<1024x1xf32>
    %13 = vector.broadcast %12 : vector<1024x1xf32> to vector<1024x36xf32>
    %14 = arith.mulf %1, %13 : vector<1024x36xf32>
    %15 = arith.truncf %14 : vector<1024x36xf32> to vector<1024x36xbf16>
    %c0_7 = arith.constant 0 : index
    %c0_8 = arith.constant 0 : index
    %c0_9 = arith.constant 0 : index
    %16 = vector.load %arg3[%c0_7, %c0_8, %c0_9] : memref<1x36x256xbf16, #tpu.memory_space<vmem>>, vector<1x36x256xbf16>
    %17 = vector.shape_cast %16 : vector<1x36x256xbf16> to vector<36x256xbf16>
    %cst_10 = arith.constant dense<0.000000e+00> : vector<1024x256xf32>
    %18 = tpu.matmul %15, %17, %cst_10 {dimension_numbers = #tpu.dot_dimension_numbers<[1], [0], [0], [1], [0, 0, 1, 1], [], []>} : vector<1024x36xbf16>, vector<36x256xbf16>, vector<1024x256xf32> -> vector<1024x256xf32>
    %cst_11 = arith.constant dense<0xFF800000> : vector<256xf32>
    %19 = vector.multi_reduction <maximumf>, %18, %cst_11 [0] : vector<1024x256xf32> to vector<256xf32>
    %20 = vector.shape_cast %19 : vector<256xf32> to vector<1x256xf32>
    %21 = vector.broadcast %20 : vector<1x256xf32> to vector<1024x256xf32>
    %22 = arith.subf %18, %21 : vector<1024x256xf32>
    %23 = math.exp %22 : vector<1024x256xf32>
    %cst_12 = arith.constant dense<0.000000e+00> : vector<256xf32>
    %24 = vector.multi_reduction <add>, %23, %cst_12 [0] : vector<1024x256xf32> to vector<256xf32>
    %25 = vector.shape_cast %24 : vector<256xf32> to vector<1x256xf32>
    %26 = tpu.reciprocal %25 {approx = true} : vector<1x256xf32> -> vector<1x256xf32>
    %27 = vector.broadcast %26 : vector<1x256xf32> to vector<1024x256xf32>
    %28 = arith.mulf %23, %27 : vector<1024x256xf32>
    %29 = vector.broadcast %3 : vector<1024x1xf32> to vector<1024x256xf32>
    %30 = arith.mulf %28, %29 : vector<1024x256xf32>
    %cst_13 = arith.constant 9.99999993E-9 : f32
    %31 = vector.broadcast %cst_13 : f32 to vector<1024x256xf32>
    %32 = arith.maximumf %30, %31 : vector<1024x256xf32>
    %c0_14 = arith.constant 0 : index
    %c0_15 = arith.constant 0 : index
    %c0_16 = arith.constant 0 : index
    %33 = vector.load %arg5[%c0_14, %c0_15, %c0_16] : memref<1x36x1024xbf16, #tpu.memory_space<vmem>>, vector<1x36x1024xbf16>
    %34 = vector.shape_cast %33 : vector<1x36x1024xbf16> to vector<36x1024xbf16>
    %35 = arith.truncf %32 : vector<1024x256xf32> to vector<1024x256xbf16>
    %cst_17 = arith.constant dense<0.000000e+00> : vector<36x256xf32>
    %36 = tpu.matmul %34, %35, %cst_17 {dimension_numbers = #tpu.dot_dimension_numbers<[1], [0], [0], [1], [0, 0, 1, 1], [], []>} : vector<36x1024xbf16>, vector<1024x256xbf16>, vector<36x256xf32> -> vector<36x256xf32>
    %c0_18 = arith.constant 0 : index
    %c0_19 = arith.constant 0 : index
    %c0_20 = arith.constant 0 : index
    %37 = vector.load %arg6[%c0_18, %c0_19, %c0_20] : memref<1x36x256xf32, #tpu.memory_space<vmem>>, vector<1x36x256xf32>
    %38 = vector.shape_cast %37 : vector<1x36x256xf32> to vector<36x256xf32>
    %39 = vector.shape_cast %36 : vector<36x256xf32> to vector<1x36x256xf32>
    tpu.vector_store %arg6[%c0_18, %c0_19, %c0_20], %39 {strides = array<i32>} : memref<1x36x256xf32, #tpu.memory_space<vmem>>, vector<1x36x256xf32>,
    return
  }
  func.func @transform_0(%arg0: i32, %arg1: i32) -> (i32, i32, i32) {
    %c0_i32 = arith.constant 0 : i32
    %c0_i32_0 = arith.constant 0 : i32
    %c0_i32_1 = arith.constant 0 : i32
    return %arg0, %c0_i32, %c0_i32_0 : i32, i32, i32
  }
  func.func @transform_1(%arg0: i32, %arg1: i32) -> (i32, i32, i32) {
    %c0_i32 = arith.constant 0 : i32
    %c0_i32_0 = arith.constant 0 : i32
    return %arg0, %c0_i32, %arg1 : i32, i32, i32
  }
  func.func @transform_2(%arg0: i32, %arg1: i32) -> (i32, i32, i32) {
    %c0_i32 = arith.constant 0 : i32
    %c0_i32_0 = arith.constant 0 : i32
    %c0_i32_1 = arith.constant 0 : i32
    return %arg0, %c0_i32, %c0_i32_0 : i32, i32, i32
  }
  func.func @transform_3(%arg0: i32, %arg1: i32) -> (i32, i32, i32) {
    %c0_i32 = arith.constant 0 : i32
    %c0_i32_0 = arith.constant 0 : i32
    %c0_i32_1 = arith.constant 0 : i32
    return %arg0, %c0_i32, %c0_i32_0 : i32, i32, i32
  }
  func.func @transform_4(%arg0: i32, %arg1: i32) -> (i32, i32, i32) {
    %c0_i32 = arith.constant 0 : i32
    %c0_i32_0 = arith.constant 0 : i32
    return %arg0, %c0_i32, %arg1 : i32, i32, i32
  }
}

module attributes {stable_mosaic.version = 11 : i64} {
  func.func @_attn_core_kernel(%arg0: i32, %arg1: i32, %arg2: memref<1x256x36xf32, #tpu.memory_space<vmem>>, %arg3: memref<1x36x256xbf16, #tpu.memory_space<vmem>>, %arg4: memref<1x256x1xf32, #tpu.memory_space<vmem>>, %arg5: memref<1x36x256xbf16, #tpu.memory_space<vmem>>, %arg6: memref<1x36x256xf32, #tpu.memory_space<vmem>>) attributes {dimension_semantics = [#tpu.dimension_semantics<parallel>, #tpu.dimension_semantics<parallel>], iteration_bounds = array<i64: 2, 1>, scalar_prefetch = 0 : i64, scratch_operands = 0 : i64, tpu.core_type = #tpu.core_type<tc>, window_params = [{transform_indices = @transform_0, window_bounds = array<i64: 1, 256, 36>}, {transform_indices = @transform_1, window_bounds = array<i64: 1, 36, 256>}, {transform_indices = @transform_2, window_bounds = array<i64: 1, 256, 1>}, {transform_indices = @transform_3, window_bounds = array<i64: 1, 36, 256>}, {transform_indices = @transform_4, window_bounds = array<i64: 1, 36, 256>}]} {
    %c0 = arith.constant 0 : index
    %c0_0 = arith.constant 0 : index
    %c0_1 = arith.constant 0 : index
    %0 = vector.load %arg2[%c0, %c0_0, %c0_1] : memref<1x256x36xf32, #tpu.memory_space<vmem>>, vector<1x256x36xf32>
    %1 = vector.shape_cast %0 : vector<1x256x36xf32> to vector<256x36xf32>
    %c0_2 = arith.constant 0 : index
    %c0_3 = arith.constant 0 : index
    %c0_4 = arith.constant 0 : index
    %2 = vector.load %arg4[%c0_2, %c0_3, %c0_4] : memref<1x256x1xf32, #tpu.memory_space<vmem>>, vector<1x256x1xf32>
    %3 = vector.shape_cast %2 : vector<1x256x1xf32> to vector<256x1xf32>
    %4 = arith.mulf %1, %1 : vector<256x36xf32>
    %cst = arith.constant dense<0.000000e+00> : vector<256xf32>
    %5 = vector.multi_reduction <add>, %4, %cst [1] : vector<256x36xf32> to vector<256xf32>
    %6 = vector.shape_cast %5 : vector<256xf32> to vector<256x1xf32>
    %cst_5 = arith.constant 9.99999993E-9 : f32
    %7 = vector.broadcast %cst_5 : f32 to vector<256x1xf32>
    %8 = arith.maximumf %6, %7 : vector<256x1xf32>
    %9 = math.rsqrt %8 : vector<256x1xf32>
    %cst_6 = arith.constant 1.000000e+01 : f32
    %10 = vector.broadcast %cst_6 : f32 to vector<256x1xf32>
    %11 = arith.mulf %3, %10 : vector<256x1xf32>
    %12 = arith.mulf %9, %11 : vector<256x1xf32>
    %13 = vector.broadcast %12 : vector<256x1xf32> to vector<256x36xf32>
    %14 = arith.mulf %1, %13 : vector<256x36xf32>
    %15 = arith.truncf %14 : vector<256x36xf32> to vector<256x36xbf16>
    %c0_7 = arith.constant 0 : index
    %c0_8 = arith.constant 0 : index
    %c0_9 = arith.constant 0 : index
    %16 = vector.load %arg3[%c0_7, %c0_8, %c0_9] : memref<1x36x256xbf16, #tpu.memory_space<vmem>>, vector<1x36x256xbf16>
    %17 = vector.shape_cast %16 : vector<1x36x256xbf16> to vector<36x256xbf16>
    %cst_10 = arith.constant dense<0.000000e+00> : vector<256x256xf32>
    %18 = tpu.matmul %15, %17, %cst_10 {dimension_numbers = #tpu.dot_dimension_numbers<[1], [0], [0], [1], [0, 0, 1, 1], [], []>} : vector<256x36xbf16>, vector<36x256xbf16>, vector<256x256xf32> -> vector<256x256xf32>
    %cst_11 = arith.constant dense<0xFF800000> : vector<256xf32>
    %19 = vector.multi_reduction <maximumf>, %18, %cst_11 [0] : vector<256x256xf32> to vector<256xf32>
    %20 = vector.shape_cast %19 : vector<256xf32> to vector<1x256xf32>
    %21 = vector.broadcast %20 : vector<1x256xf32> to vector<256x256xf32>
    %22 = arith.subf %18, %21 : vector<256x256xf32>
    %23 = math.exp %22 : vector<256x256xf32>
    %cst_12 = arith.constant dense<0.000000e+00> : vector<256xf32>
    %24 = vector.multi_reduction <add>, %23, %cst_12 [0] : vector<256x256xf32> to vector<256xf32>
    %25 = vector.shape_cast %24 : vector<256xf32> to vector<1x256xf32>
    %26 = tpu.reciprocal %25 {approx = true} : vector<1x256xf32> -> vector<1x256xf32>
    %27 = vector.broadcast %26 : vector<1x256xf32> to vector<256x256xf32>
    %28 = arith.mulf %23, %27 : vector<256x256xf32>
    %29 = vector.broadcast %3 : vector<256x1xf32> to vector<256x256xf32>
    %30 = arith.mulf %28, %29 : vector<256x256xf32>
    %cst_13 = arith.constant 9.99999993E-9 : f32
    %31 = vector.broadcast %cst_13 : f32 to vector<256x256xf32>
    %32 = arith.maximumf %30, %31 : vector<256x256xf32>
    %c0_14 = arith.constant 0 : index
    %c0_15 = arith.constant 0 : index
    %c0_16 = arith.constant 0 : index
    %33 = vector.load %arg5[%c0_14, %c0_15, %c0_16] : memref<1x36x256xbf16, #tpu.memory_space<vmem>>, vector<1x36x256xbf16>
    %34 = vector.shape_cast %33 : vector<1x36x256xbf16> to vector<36x256xbf16>
    %35 = arith.truncf %32 : vector<256x256xf32> to vector<256x256xbf16>
    %cst_17 = arith.constant dense<0.000000e+00> : vector<36x256xf32>
    %36 = tpu.matmul %34, %35, %cst_17 {dimension_numbers = #tpu.dot_dimension_numbers<[1], [0], [0], [1], [0, 0, 1, 1], [], []>} : vector<36x256xbf16>, vector<256x256xbf16>, vector<36x256xf32> -> vector<36x256xf32>
    %c0_18 = arith.constant 0 : index
    %c0_19 = arith.constant 0 : index
    %c0_20 = arith.constant 0 : index
    %37 = vector.load %arg6[%c0_18, %c0_19, %c0_20] : memref<1x36x256xf32, #tpu.memory_space<vmem>>, vector<1x36x256xf32>
    %38 = vector.shape_cast %37 : vector<1x36x256xf32> to vector<36x256xf32>
    %39 = vector.shape_cast %36 : vector<36x256xf32> to vector<1x36x256xf32>
    tpu.vector_store %arg6[%c0_18, %c0_19, %c0_20], %39 {strides = array<i32>} : memref<1x36x256xf32, #tpu.memory_space<vmem>>, vector<1x36x256xf32>,
    return
  }
  func.func @transform_0(%arg0: i32, %arg1: i32) -> (i32, i32, i32) {
    %c0_i32 = arith.constant 0 : i32
    %c0_i32_0 = arith.constant 0 : i32
    %c0_i32_1 = arith.constant 0 : i32
    return %arg0, %c0_i32, %c0_i32_0 : i32, i32, i32
  }
  func.func @transform_1(%arg0: i32, %arg1: i32) -> (i32, i32, i32) {
    %c0_i32 = arith.constant 0 : i32
    %c0_i32_0 = arith.constant 0 : i32
    return %arg0, %c0_i32, %arg1 : i32, i32, i32
  }
  func.func @transform_2(%arg0: i32, %arg1: i32) -> (i32, i32, i32) {
    %c0_i32 = arith.constant 0 : i32
    %c0_i32_0 = arith.constant 0 : i32
    %c0_i32_1 = arith.constant 0 : i32
    return %arg0, %c0_i32, %c0_i32_0 : i32, i32, i32
  }
  func.func @transform_3(%arg0: i32, %arg1: i32) -> (i32, i32, i32) {
    %c0_i32 = arith.constant 0 : i32
    %c0_i32_0 = arith.constant 0 : i32
    %c0_i32_1 = arith.constant 0 : i32
    return %arg0, %c0_i32, %c0_i32_0 : i32, i32, i32
  }
  func.func @transform_4(%arg0: i32, %arg1: i32) -> (i32, i32, i32) {
    %c0_i32 = arith.constant 0 : i32
    %c0_i32_0 = arith.constant 0 : i32
    return %arg0, %c0_i32, %arg1 : i32, i32, i32
  }
}

module attributes {stable_mosaic.version = 11 : i64} {
  func.func @_group_conv_kernel(%arg0: i32, %arg1: i32, %arg2: memref<1x2x72xf32, #tpu.memory_space<vmem>>, %arg3: memref<1x2x1xf32, #tpu.memory_space<vmem>>, %arg4: memref<1x72x512xbf16, #tpu.memory_space<vmem>>, %arg5: memref<1x2x512xf32, #tpu.memory_space<vmem>>) attributes {dimension_semantics = [#tpu.dimension_semantics<parallel>, #tpu.dimension_semantics<parallel>], iteration_bounds = array<i64: 4, 1>, scalar_prefetch = 0 : i64, scratch_operands = 0 : i64, tpu.core_type = #tpu.core_type<tc>, window_params = [{transform_indices = @transform_0, window_bounds = array<i64: 1, 2, 72>}, {transform_indices = @transform_1, window_bounds = array<i64: 1, 2, 1>}, {transform_indices = @transform_2, window_bounds = array<i64: 1, 72, 512>}, {transform_indices = @transform_3, window_bounds = array<i64: 1, 2, 512>}]} {
    %c0 = arith.constant 0 : index
    %c0_0 = arith.constant 0 : index
    %c0_1 = arith.constant 0 : index
    %0 = vector.load %arg2[%c0, %c0_0, %c0_1] : memref<1x2x72xf32, #tpu.memory_space<vmem>>, vector<1x2x72xf32>
    %1 = vector.shape_cast %0 : vector<1x2x72xf32> to vector<2x72xf32>
    %2 = arith.truncf %1 : vector<2x72xf32> to vector<2x72xbf16>
    %c0_2 = arith.constant 0 : index
    %c0_3 = arith.constant 0 : index
    %c0_4 = arith.constant 0 : index
    %3 = vector.load %arg4[%c0_2, %c0_3, %c0_4] : memref<1x72x512xbf16, #tpu.memory_space<vmem>>, vector<1x72x512xbf16>
    %4 = vector.shape_cast %3 : vector<1x72x512xbf16> to vector<72x512xbf16>
    %cst = arith.constant dense<0.000000e+00> : vector<2x512xf32>
    %5 = tpu.matmul %2, %4, %cst {dimension_numbers = #tpu.dot_dimension_numbers<[1], [0], [0], [1], [0, 0, 1, 1], [], []>} : vector<2x72xbf16>, vector<72x512xbf16>, vector<2x512xf32> -> vector<2x512xf32>
    %c0_5 = arith.constant 0 : index
    %c0_6 = arith.constant 0 : index
    %c0_7 = arith.constant 0 : index
    %6 = vector.load %arg3[%c0_5, %c0_6, %c0_7] : memref<1x2x1xf32, #tpu.memory_space<vmem>>, vector<1x2x1xf32>
    %7 = vector.shape_cast %6 : vector<1x2x1xf32> to vector<2x1xf32>
    %8 = vector.broadcast %7 : vector<2x1xf32> to vector<2x512xf32>
    %9 = arith.addf %5, %8 : vector<2x512xf32>
    %cst_8 = arith.constant 0.000000e+00 : f32
    %10 = vector.broadcast %cst_8 : f32 to vector<2x512xf32>
    %11 = arith.cmpf oge, %9, %10 : vector<2x512xf32>
    %cst_9 = arith.constant 2.000000e-01 : f32
    %12 = vector.broadcast %cst_9 : f32 to vector<2x512xf32>
    %13 = arith.mulf %12, %9 : vector<2x512xf32>
    %14 = arith.select %11, %9, %13 : vector<2x512xi1>, vector<2x512xf32>
    %c0_10 = arith.constant 0 : index
    %c0_11 = arith.constant 0 : index
    %c0_12 = arith.constant 0 : index
    %15 = vector.load %arg5[%c0_10, %c0_11, %c0_12] : memref<1x2x512xf32, #tpu.memory_space<vmem>>, vector<1x2x512xf32>
    %16 = vector.shape_cast %15 : vector<1x2x512xf32> to vector<2x512xf32>
    %17 = vector.shape_cast %14 : vector<2x512xf32> to vector<1x2x512xf32>
    tpu.vector_store %arg5[%c0_10, %c0_11, %c0_12], %17 {strides = array<i32>} : memref<1x2x512xf32, #tpu.memory_space<vmem>>, vector<1x2x512xf32>,
    return
  }
  func.func @transform_0(%arg0: i32, %arg1: i32) -> (i32, i32, i32) {
    %c0_i32 = arith.constant 0 : i32
    %c0_i32_0 = arith.constant 0 : i32
    %c0_i32_1 = arith.constant 0 : i32
    return %arg0, %c0_i32, %c0_i32_0 : i32, i32, i32
  }
  func.func @transform_1(%arg0: i32, %arg1: i32) -> (i32, i32, i32) {
    %c0_i32 = arith.constant 0 : i32
    %c0_i32_0 = arith.constant 0 : i32
    %c0_i32_1 = arith.constant 0 : i32
    return %arg0, %c0_i32, %c0_i32_0 : i32, i32, i32
  }
  func.func @transform_2(%arg0: i32, %arg1: i32) -> (i32, i32, i32) {
    %c0_i32 = arith.constant 0 : i32
    %c0_i32_0 = arith.constant 0 : i32
    return %arg0, %c0_i32, %arg1 : i32, i32, i32
  }
  func.func @transform_3(%arg0: i32, %arg1: i32) -> (i32, i32, i32) {
    %c0_i32 = arith.constant 0 : i32
    %c0_i32_0 = arith.constant 0 : i32
    return %arg0, %c0_i32, %arg1 : i32, i32, i32
  }
}

</mosaic_0001>

<llo_original>
// kernel: _lambda_.7
$region0: #{_lambda_.7}
  #allocation0 [shape = 'u32[]', space=smem, size = 0x4, offset = 0x4, fixed_abs, tag = 'smem constant byte address 0x4 - core index']
  #allocation1 [shape = 'u32[144,128]{1,0:T(1,128)}', space=vmem, size = 0x12000, scoped, tag = 'internal scratch']
  %s0 = inlined_call_operand.vmem [shape: f32[8,8], index: 0, kind: input, shape index: {}]
  %s1 = inlined_call_operand.vmem [shape: f32[8,1], index: 1, kind: input, shape index: {}]
  %s2 = inlined_call_operand.vmem [shape: bf16[8,2048], index: 2, kind: input, shape index: {}]
  %s3 = inlined_call_operand.vmem [shape: f32[8,2048], index: 3, kind: output, shape index: {}]
  %s4 = sld [smem:[#allocation0]]
  $region45: #{_lambda_.7} parent=0
    _
  %s6 = ssub.s32 1, %s4
  %s7 = scalar_select 0, %s6, %s4
  loop: start=0, step=1, limit=4
  $region2: #{_lambda_.7} parent=0 // loop_pre_header
    _
  $region3: #{_lambda_.7} parent=0 // loop_header
    %s9 = sphi 0, %s13
    %p10 = scmp.ge.s32.totalorder %s9, 4
    %s17 = sphi 0, %s17
    %s19 = sphi 0, %s17
    %s20 = sphi 0, %s19
    %s34 = sphi 0, %s20
    %s38 = sphi 0, %s38
    %s40 = sphi 0, %s38
    %s41 = sphi 0, %s40
    %s55 = sphi 0, %s41
    %s61 = sphi 0, %s63
    %s64 = sphi 0, %s61
    %s65 = sphi 0, %s64
    %s81 = sphi 0, %s65
    %s87 = sphi 0, %s89
    %s90 = sphi 0, %s87
    %s91 = sphi 0, %s90
    %s107 = sphi 0, %s91
  $region4: #{_lambda_.7} parent=0 // loop_header_branch
    %12 = sbr.rel (%p10) target = $region8
  $region5: #{_lambda_.7} parent=0 // loop_body
    %s14 = ssub.s32 %s9, 1
    %s15 = ssub.s32 %s9, 2
    %s16 = sadd.s32 %s9, 1
    %s18 = sadd.s32 %s17, 1
    %p21 = scmp.eq.s32.totalorder %s9, 1
    %p22 = scmp.ne.s32.totalorder %s17, %s19
    %p23 = scmp.eq.s32.totalorder %s9, 0
    %p24 = por %p22, %p23
    %p25 = scmp.ne.s32.totalorder %s17, %s19
    %p26 = scmp.eq.s32.totalorder %s14, 1
    %p27 = por %p25, %p26
    %p28 = scmp.ne.s32.totalorder %s19, %s20
    %p29 = scmp.eq.s32.totalorder %s14, 0
    %p30 = por %p28, %p29
    %p31 = scmp.ne.s32.totalorder %s19, %s20
    %p32 = scmp.eq.s32.totalorder %s15, 1
    %p33 = por %p31, %p32
    %p35 = scmp.ne.s32.totalorder %s20, %s34
    %p36 = scmp.eq.s32.totalorder %s15, 0
    %p37 = por %p35, %p36
    %s39 = sadd.s32 %s38, 1
    %p42 = scmp.eq.s32.totalorder %s9, 1
    %p43 = scmp.ne.s32.totalorder %s38, %s40
    %p44 = scmp.eq.s32.totalorder %s9, 0
    %p45 = por %p43, %p44
    %p46 = scmp.ne.s32.totalorder %s38, %s40
    %p47 = scmp.eq.s32.totalorder %s14, 1
    %p48 = por %p46, %p47
    %p49 = scmp.ne.s32.totalorder %s40, %s41
    %p50 = scmp.eq.s32.totalorder %s14, 0
    %p51 = por %p49, %p50
    %p52 = scmp.ne.s32.totalorder %s40, %s41
    %p53 = scmp.eq.s32.totalorder %s15, 1
    %p54 = por %p52, %p53
    %p56 = scmp.ne.s32.totalorder %s41, %s55
    %p57 = scmp.eq.s32.totalorder %s15, 0
    %p58 = por %p56, %p57
    %s59 = ssub.s32 %s9, %s16
    %p60 = scmp.eq.s32.totalorder %s59, 0
    %s62 = sadd.s32 %s61, 1
    %s63 = scalar_select %p60, %s61, %s62
    %p66 = pneg %p60
    %p67 = scmp.eq.s32.totalorder %s9, 1
    %p68 = por %p66, %p67
    %p69 = scmp.ne.s32.totalorder %s61, %s64
    %p70 = scmp.eq.s32.totalorder %s9, 0
    %p71 = por %p69, %p70
    %p72 = scmp.ne.s32.totalorder %s61, %s64
    %p73 = scmp.eq.s32.totalorder %s14, 1
    %p74 = por %p72, %p73
    %p75 = scmp.ne.s32.totalorder %s64, %s65
    %p76 = scmp.eq.s32.totalorder %s14, 0
    %p77 = por %p75, %p76
    %p78 = scmp.ne.s32.totalorder %s64, %s65
    %p79 = scmp.eq.s32.totalorder %s15, 1
    %p80 = por %p78, %p79
    %p82 = scmp.ne.s32.totalorder %s65, %s81
    %p83 = scmp.eq.s32.totalorder %s15, 0
    %p84 = por %p82, %p83
    %s85 = ssub.s32 %s9, %s16
    %p86 = scmp.eq.s32.totalorder %s85, 0
    %s88 = sadd.s32 %s87, 1
    %s89 = scalar_select %p86, %s87, %s88
    %p92 = pneg %p86
    %p93 = scmp.eq.s32.totalorder %s9, 1
    %p94 = por %p92, %p93
    %p95 = scmp.ne.s32.totalorder %s87, %s90
    %p96 = scmp.eq.s32.totalorder %s9, 0
    %p97 = por %p95, %p96
    %p98 = scmp.ne.s32.totalorder %s87, %s90
    %p99 = scmp.eq.s32.totalorder %s14, 1
    %p100 = por %p98, %p99
    %p101 = scmp.ne.s32.totalorder %s90, %s91
    %p102 = scmp.eq.s32.totalorder %s14, 0
    %p103 = por %p101, %p102
    %p104 = scmp.ne.s32.totalorder %s90, %s91
    %p105 = scmp.eq.s32.totalorder %s15, 1
    %p106 = por %p104, %p105
    %p108 = scmp.ne.s32.totalorder %s91, %s107
    %p109 = scmp.eq.s32.totalorder %s15, 0
    %p110 = por %p108, %p109
    %p111 = scmp.le.s32.totalorder 1, %s9
    %p112 = scmp.lt.s32.totalorder %s9, 3
    %p113 = pnand %p111, %p112
    %p114 = pneg %p113
    // Predicated region
    $region9: #{_lambda_.7} parent=5 // pred_check
      _
    $region10: #{_lambda_.7} parent=5 // pred_check_branch
      %116 = sbr.rel (%p113) target = $region12
    $region11: #{_lambda_.7} parent=5 // pred_region
      %s117 = ssub.s32 %s9, 1
      // Predicated region
      $region13: #{_lambda_.7} parent=11 // pred_check
        %p118 = pneg %p30
      $region14: #{_lambda_.7} parent=11 // pred_check_branch
        %120 = sbr.rel (%p118) target = $region16
      $region15: #{_lambda_.7} parent=11 // pred_region
        _
      $region16: #{_lambda_.7} parent=11 // pred_fallthru
        _
      // Predicated region
      $region17: #{_lambda_.7} parent=11 // pred_check
        %p121 = pneg %p51
      $region18: #{_lambda_.7} parent=11 // pred_check_branch
        %123 = sbr.rel (%p121) target = $region20
      $region19: #{_lambda_.7} parent=11 // pred_region
        _
      $region20: #{_lambda_.7} parent=11 // pred_fallthru
        _
    $region12: #{_lambda_.7} parent=5 // pred_fallthru
      _
    %p124 = scmp.lt.s32.totalorder %s9, 2
    // Predicated region
    $region21: #{_lambda_.7} parent=5 // pred_check
      %p125 = pneg %p124
    $region22: #{_lambda_.7} parent=5 // pred_check_branch
      %127 = sbr.rel (%p125) target = $region24
    $region23: #{_lambda_.7} parent=5 // pred_region
      // Predicated region
      $region25: #{_lambda_.7} parent=23 // pred_check
        %p128 = pneg %p71
      $region26: #{_lambda_.7} parent=23 // pred_check_branch
        %130 = sbr.rel (%p128) target = $region28
      $region27: #{_lambda_.7} parent=23 // pred_region
        %s131 = smul.u32 8, %s9
        %p132 = scmp.lt.s32.totalorder %s131, 15
        %s133 = scalar_select %p132, %s131, 15
        %s134 = smul.addr %s133, 4
        %s135 = scalar_lea.vmem %s2, %s134
        %s136 = smul.u32 8, %s9
      $region28: #{_lambda_.7} parent=23 // pred_fallthru
        _
    $region24: #{_lambda_.7} parent=5 // pred_fallthru
      _
    %p137 = scmp.le.s32.totalorder 1, %s9
    %p138 = scmp.lt.s32.totalorder %s9, 3
    %p139 = pnand %p137, %p138
    %p140 = pneg %p139
    // Predicated region
    $region29: #{_lambda_.7} parent=5 // pred_check
      _
    $region30: #{_lambda_.7} parent=5 // pred_check_branch
      %142 = sbr.rel (%p139) target = $region32
    $region31: #{_lambda_.7} parent=5 // pred_region
      %s143 = ssub.s32 %s9, 1
      %p144 = pneg %p30
      %p145 = pneg %p27
      %p146 = pneg %p51
      %p147 = pneg %p48
      %s148 = smul.u32 8, %s14
      %p149 = scmp.lt.s32.totalorder %s148, 15
      %s150 = scalar_select %p149, %s148, 15
      %s151 = smul.addr %s150, 4
      %s152 = scalar_lea.vmem %s2, %s151
      %p153 = pneg %p77
      %p154 = pneg %p74
      %p155 = pneg %p103
      %p156 = pneg %p100
      %s157 = smul.u32 8, %s14
      %p158 = scmp.lt.s32.totalorder %s157, 15
      %s159 = scalar_select %p158, %s157, 15
      %s160 = smul.addr %s159, 8
      %s161 = scalar_lea.vmem %s3, %s160
      %s162 = smul.u32 8, %s14
      %p163 = scmp.lt.s32.totalorder %s162, 15
      %s164 = scalar_select %p163, %s162, 15
      %s165 = smul.addr %s164, 4
      %s166 = scalar_lea.vmem %s2, %s165
      %s167 = smul.u32 8, %s14
      %s168 = smul.u32 8, %s14
      %p169 = scmp.lt.s32.totalorder %s168, 15
      %s170 = scalar_select %p169, %s168, 15
      %s171 = smul.addr %s170, 8
      %s172 = scalar_lea.vmem %s3, %s171
      %s173 = smul.u32 8, %s14
      %v175 = vld [vmem:[%s0] sm:$0xff]
      %v176 = vpack.c.bf16 %v175, %v175
      %v177 = vld [vmem:[%s166] sm:$0xff]
      %v178 = vld [vmem:[%s166 + $0x8] sm:$0xff]
      %v179 = vld [vmem:[%s166 + $0x10] sm:$0xff]
      %v180 = vld [vmem:[%s166 + $0x18] sm:$0xff]
      %v181 = vld [vmem:[%s1] sm:$0xff]
      %183 = vset.pattern.permute.xlu0 0
      %184 = vperm.xlu0 %183, %v181
      %v185 = vpop.permute.xlu0 %184
      %v191 = vunpack.c.l.b16 %v177
      %v192 = vunpack.c.h.b16 %v177
      %v193 = vunpack.c.l.b16 %v178
      %v194 = vunpack.c.h.b16 %v178
      %v195 = vunpack.c.l.b16 %v179
      %v196 = vunpack.c.h.b16 %v179
      %v197 = vunpack.c.l.b16 %v180
      %v198 = vunpack.c.h.b16 %v180
      %v199 = vpack.c.b16 %v191, %v191
      %v200 = vpack.c.b16 %v192, %v192
      %v201 = vpack.c.b16 %v193, %v193
      %v202 = vpack.c.b16 %v194, %v194
      %v203 = vpack.c.b16 %v195, %v195
      %v204 = vpack.c.b16 %v196, %v196
      %v205 = vpack.c.b16 %v197, %v197
      %v206 = vpack.c.b16 %v198, %v198
      %vm207 = vcmask 64512
      %v209 = vsel %vm207, %v176, 0
      %vm211 = vcmask 1043456
      %v213 = vsel %vm211, %v199, 0
      %v216 = vsel %vm211, %v200, 0
      %v219 = vsel %vm211, %v201, 0
      %v222 = vsel %vm211, %v202, 0
      %v225 = vsel %vm211, %v203, 0
      %v228 = vsel %vm211, %v204, 0
      %v231 = vsel %vm211, %v205, 0
      %v234 = vsel %vm211, %v206, 0
      %236 = vmatprep.subr.bf16.mxu0 0
      %237 = vmatpush1.bf16.msra.mxu0 0
      %238 = vmatprep.subr.bf16.mxu0 0
      %239 = vmatpush1.bf16.msra.mxu0 0
      %240 = vmatprep.subr.bf16.mxu0 0
      %241 = vmatpush1.bf16.msra.mxu0 0
      %242 = vmatprep.subr.bf16.mxu0 0
      %243 = vmatpush1.bf16.msra.mxu0 0
      %244 = vmatprep.subr.bf16.mxu0 0
      %245 = vmatpush1.bf16.msra.mxu0 0
      %246 = vmatprep.subr.bf16.mxu0 0
      %247 = vmatpush1.bf16.msra.mxu0 0
      %248 = vmatprep.subr.bf16.mxu0 0
      %249 = vmatpush1.bf16.msra.mxu0 0
      %250 = vmatprep.subr.bf16.mxu0 %v216
      %251 = vmatpush1.bf16.msra.mxu0 %v213
      %252 = vmatprep.subr.bf16.mxu0 0
      %253 = vmatpush2.bf16.msra.mxu0 0
      %254 = vmatprep.subr.bf16.mxu0 0
      %255 = vmatpush2.bf16.msra.mxu0 0
      %256 = vmatprep.subr.bf16.mxu0 0
      %257 = vmatpush2.bf16.msra.mxu0 0
      %258 = vmatprep.subr.bf16.mxu0 0
      %259 = vmatpush2.bf16.msra.mxu0 0
      %260 = vmatprep.subr.bf16.mxu0 0
      %261 = vmatpush2.bf16.msra.mxu0 0
      %262 = vmatprep.subr.bf16.mxu0 0
      %263 = vmatpush2.bf16.msra.mxu0 0
      %264 = vmatprep.subr.bf16.mxu0 0
      %265 = vmatpush2.bf16.msra.mxu0 0
      %266 = vmatprep.subr.bf16.mxu0 0
      %267 = vmatpush2.bf16.msra.mxu0 0
      %268 = vmatprep.mubr.bf16.mxu0 0
      %269 = vmatmul.mubr.bf16.gmra.mxu0 %v209
      %v270 = vpop.f32.mrf.mxu0
      %v271 = vadd.f32 %v185, %v270
      %v272 = vpop.f32.mrf.mxu0
      %v273 = vadd.f32 %v185, %v272
      %v274 = vpop.f32.mrf.mxu0
      %v275 = vpop.f32.mrf.mxu0
      %276 = vdwg.mxu0
      %277 = vmatprep.subr.bf16.mxu0 0
      %278 = vmatpush1.bf16.msra.mxu0 0
      %279 = vmatprep.subr.bf16.mxu0 0
      %280 = vmatpush1.bf16.msra.mxu0 0
      %281 = vmatprep.subr.bf16.mxu0 0
      %282 = vmatpush1.bf16.msra.mxu0 0
      %283 = vmatprep.subr.bf16.mxu0 0
      %284 = vmatpush1.bf16.msra.mxu0 0
      %285 = vmatprep.subr.bf16.mxu0 0
      %286 = vmatpush1.bf16.msra.mxu0 0
      %287 = vmatprep.subr.bf16.mxu0 0
      %288 = vmatpush1.bf16.msra.mxu0 0
      %289 = vmatprep.subr.bf16.mxu0 0
      %290 = vmatpush1.bf16.msra.mxu0 0
      %291 = vmatprep.subr.bf16.mxu0 %v222
      %292 = vmatpush1.bf16.msra.mxu0 %v219
      %293 = vmatprep.subr.bf16.mxu0 0
      %294 = vmatpush2.bf16.msra.mxu0 0
      %295 = vmatprep.subr.bf16.mxu0 0
      %296 = vmatpush2.bf16.msra.mxu0 0
      %297 = vmatprep.subr.bf16.mxu0 0
      %298 = vmatpush2.bf16.msra.mxu0 0
      %299 = vmatprep.subr.bf16.mxu0 0
      %300 = vmatpush2.bf16.msra.mxu0 0
      %301 = vmatprep.subr.bf16.mxu0 0
      %302 = vmatpush2.bf16.msra.mxu0 0
      %303 = vmatprep.subr.bf16.mxu0 0
      %304 = vmatpush2.bf16.msra.mxu0 0
      %305 = vmatprep.subr.bf16.mxu0 0
      %306 = vmatpush2.bf16.msra.mxu0 0
      %307 = vmatprep.subr.bf16.mxu0 0
      %308 = vmatpush2.bf16.msra.mxu0 0
      %309 = vmatprep.mubr.bf16.mxu0 0
      %310 = vmatmul.mubr.bf16.gmra.mxu0 %v209
      %v311 = vpop.f32.mrf.mxu0
      %v312 = vadd.f32 %v185, %v311
      %v313 = vpop.f32.mrf.mxu0
      %v314 = vadd.f32 %v185, %v313
      %v315 = vpop.f32.mrf.mxu0
      %v316 = vpop.f32.mrf.mxu0
      %317 = vdwg.mxu0
      %318 = vmatprep.subr.bf16.mxu0 0
      %319 = vmatpush1.bf16.msra.mxu0 0
      %320 = vmatprep.subr.bf16.mxu0 0
      %321 = vmatpush1.bf16.msra.mxu0 0
      %322 = vmatprep.subr.bf16.mxu0 0
      %323 = vmatpush1.bf16.msra.mxu0 0
      %324 = vmatprep.subr.bf16.mxu0 0
      %325 = vmatpush1.bf16.msra.mxu0 0
      %326 = vmatprep.subr.bf16.mxu0 0
      %327 = vmatpush1.bf16.msra.mxu0 0
      %328 = vmatprep.subr.bf16.mxu0 0
      %329 = vmatpush1.bf16.msra.mxu0 0
      %330 = vmatprep.subr.bf16.mxu0 0
      %331 = vmatpush1.bf16.msra.mxu0 0
      %332 = vmatprep.subr.bf16.mxu0 %v228
      %333 = vmatpush1.bf16.msra.mxu0 %v225
      %334 = vmatprep.subr.bf16.mxu0 0
      %335 = vmatpush2.bf16.msra.mxu0 0
      %336 = vmatprep.subr.bf16.mxu0 0
      %337 = vmatpush2.bf16.msra.mxu0 0
      %338 = vmatprep.subr.bf16.mxu0 0
      %339 = vmatpush2.bf16.msra.mxu0 0
      %340 = vmatprep.subr.bf16.mxu0 0
      %341 = vmatpush2.bf16.msra.mxu0 0
      %342 = vmatprep.subr.bf16.mxu0 0
      %343 = vmatpush2.bf16.msra.mxu0 0
      %344 = vmatprep.subr.bf16.mxu0 0
      %345 = vmatpush2.bf16.msra.mxu0 0
      %346 = vmatprep.subr.bf16.mxu0 0
      %347 = vmatpush2.bf16.msra.mxu0 0
      %348 = vmatprep.subr.bf16.mxu0 0
      %349 = vmatpush2.bf16.msra.mxu0 0
      %350 = vmatprep.mubr.bf16.mxu0 0
      %351 = vmatmul.mubr.bf16.gmra.mxu0 %v209
      %v352 = vpop.f32.mrf.mxu0
      %v353 = vadd.f32 %v185, %v352
      %v354 = vpop.f32.mrf.mxu0
      %v355 = vadd.f32 %v185, %v354
      %v356 = vpop.f32.mrf.mxu0
      %v357 = vpop.f32.mrf.mxu0
      %358 = vdwg.mxu0
      %359 = vmatprep.subr.bf16.mxu0 0
      %360 = vmatpush1.bf16.msra.mxu0 0
      %361 = vmatprep.subr.bf16.mxu0 0
      %362 = vmatpush1.bf16.msra.mxu0 0
      %363 = vmatprep.subr.bf16.mxu0 0
      %364 = vmatpush1.bf16.msra.mxu0 0
      %365 = vmatprep.subr.bf16.mxu0 0
      %366 = vmatpush1.bf16.msra.mxu0 0
      %367 = vmatprep.subr.bf16.mxu0 0
      %368 = vmatpush1.bf16.msra.mxu0 0
      %369 = vmatprep.subr.bf16.mxu0 0
      %370 = vmatpush1.bf16.msra.mxu0 0
      %371 = vmatprep.subr.bf16.mxu0 0
      %372 = vmatpush1.bf16.msra.mxu0 0
      %373 = vmatprep.subr.bf16.mxu0 %v234
      %374 = vmatpush1.bf16.msra.mxu0 %v231
      %375 = vmatprep.subr.bf16.mxu0 0
      %376 = vmatpush2.bf16.msra.mxu0 0
      %377 = vmatprep.subr.bf16.mxu0 0
      %378 = vmatpush2.bf16.msra.mxu0 0
      %379 = vmatprep.subr.bf16.mxu0 0
      %380 = vmatpush2.bf16.msra.mxu0 0
      %381 = vmatprep.subr.bf16.mxu0 0
      %382 = vmatpush2.bf16.msra.mxu0 0
      %383 = vmatprep.subr.bf16.mxu0 0
      %384 = vmatpush2.bf16.msra.mxu0 0
      %385 = vmatprep.subr.bf16.mxu0 0
      %386 = vmatpush2.bf16.msra.mxu0 0
      %387 = vmatprep.subr.bf16.mxu0 0
      %388 = vmatpush2.bf16.msra.mxu0 0
      %389 = vmatprep.subr.bf16.mxu0 0
      %390 = vmatpush2.bf16.msra.mxu0 0
      %391 = vmatprep.mubr.bf16.mxu0 0
      %392 = vmatmul.mubr.bf16.gmra.mxu0 %v209
      %v393 = vpop.f32.mrf.mxu0
      %v394 = vadd.f32 %v185, %v393
      %v395 = vpop.f32.mrf.mxu0
      %v396 = vadd.f32 %v185, %v395
      %v397 = vpop.f32.mrf.mxu0
      %v398 = vpop.f32.mrf.mxu0
      %399 = vdwg.mxu0
      %400 = vst [vmem:[%s172] sm:$0xff] %v271
      %401 = vst [vmem:[%s172 + $0x8] sm:$0xff] %v273
      %402 = vst [vmem:[%s172 + $0x10] sm:$0xff] %v312
      %403 = vst [vmem:[%s172 + $0x18] sm:$0xff] %v314
      %404 = vst [vmem:[%s172 + $0x20] sm:$0xff] %v353
      %405 = vst [vmem:[%s172 + $0x28] sm:$0xff] %v355
      %406 = vst [vmem:[%s172 + $0x30] sm:$0xff] %v394
      %407 = vst [vmem:[%s172 + $0x38] sm:$0xff] %v396
      %s408 = smul.u32 8, %s14
      %p409 = scmp.lt.s32.totalorder %s408, 15
      %s410 = scalar_select %p409, %s408, 15
      %s411 = smul.addr %s410, 8
      %s412 = scalar_lea.vmem %s3, %s411
      // Predicated region
      $region33: #{_lambda_.7} parent=31 // pred_check
        %p413 = pneg %p100
      $region34: #{_lambda_.7} parent=31 // pred_check_branch
        %415 = sbr.rel (%p413) target = $region36
      $region35: #{_lambda_.7} parent=31 // pred_region
        %s416 = smul.u32 8, %s14
      $region36: #{_lambda_.7} parent=31 // pred_fallthru
        _
    $region32: #{_lambda_.7} parent=5 // pred_fallthru
      _
    %p417 = scmp.le.s32.totalorder 2, %s9
    // Predicated region
    $region37: #{_lambda_.7} parent=5 // pred_check
      %p418 = pneg %p417
    $region38: #{_lambda_.7} parent=5 // pred_check_branch
      %420 = sbr.rel (%p418) target = $region40
    $region39: #{_lambda_.7} parent=5 // pred_region
      %s421 = ssub.s32 %s9, 2
      // Predicated region
      $region41: #{_lambda_.7} parent=39 // pred_check
        %p422 = pneg %p106
      $region42: #{_lambda_.7} parent=39 // pred_check_branch
        %424 = sbr.rel (%p422) target = $region44
      $region43: #{_lambda_.7} parent=39 // pred_region
        %s425 = smul.u32 8, %s15
        %p426 = scmp.lt.s32.totalorder %s425, 15
        %s427 = scalar_select %p426, %s425, 15
        %s428 = smul.addr %s427, 8
        %s429 = scalar_lea.vmem %s3, %s428
      $region44: #{_lambda_.7} parent=39 // pred_fallthru
        _
    $region40: #{_lambda_.7} parent=5 // pred_fallthru
      _
  $region6: #{_lambda_.7} parent=0 // loop_footer
    %s13 = sadd.s32 1, %s9
  $region7: #{_lambda_.7} parent=0 // loop_footer_branch
    %8 = sbr.rel target = $region3
  $region8: #{_lambda_.7} parent=0 // loop_exit
    _

// kernel: _lambda_.6
$region0: #{_lambda_.6}
  #allocation0 [shape = 'u32[]', space=smem, size = 0x4, offset = 0x4, fixed_abs, tag = 'smem constant byte address 0x4 - core index']
  #allocation1 [shape = 'u32[144,128]{1,0:T(1,128)}', space=vmem, size = 0x12000, scoped, tag = 'internal scratch']
  %s0 = inlined_call_operand.vmem [shape: f32[8,8], index: 0, kind: input, shape index: {}]
  %s1 = inlined_call_operand.vmem [shape: f32[8,1], index: 1, kind: input, shape index: {}]
  %s2 = inlined_call_operand.vmem [shape: bf16[8,512], index: 2, kind: input, shape index: {}]
  %s3 = inlined_call_operand.vmem [shape: f32[8,512], index: 3, kind: output, shape index: {}]
  %s4 = sld [smem:[#allocation0]]
  $region22: #{_lambda_.6} parent=0
    _
  %s6 = ssub.s32 1, %s4
  %s7 = scalar_select 0, %s6, %s4
  // Predicated region
  $region2: #{_lambda_.6} parent=0 // pred_check
    _
  $region3: #{_lambda_.6} parent=0 // pred_check_branch
    %9 = sbr.rel (0) target = $region5
  $region4: #{_lambda_.6} parent=0 // pred_region
    _
  $region5: #{_lambda_.6} parent=0 // pred_fallthru
    _
  // Predicated region
  $region6: #{_lambda_.6} parent=0 // pred_check
    _
  $region7: #{_lambda_.6} parent=0 // pred_check_branch
    %11 = sbr.rel (0) target = $region9
  $region8: #{_lambda_.6} parent=0 // pred_region
    _
  $region9: #{_lambda_.6} parent=0 // pred_fallthru
    _
  // Predicated region
  $region10: #{_lambda_.6} parent=0 // pred_check
    _
  $region11: #{_lambda_.6} parent=0 // pred_check_branch
    %13 = sbr.rel (0) target = $region13
  $region12: #{_lambda_.6} parent=0 // pred_region
    _
  $region13: #{_lambda_.6} parent=0 // pred_fallthru
    _
  %v15 = vld [vmem:[%s0] sm:$0xff]
  %v16 = vpack.c.bf16 %v15, %v15
  %v17 = vld [vmem:[%s2] sm:$0xff]
  %v18 = vld [vmem:[%s2 + $0x8] sm:$0xff]
  %v19 = vld [vmem:[%s1] sm:$0xff]
  %21 = vset.pattern.permute.xlu0 0
  %22 = vperm.xlu0 %21, %v19
  %v23 = vpop.permute.xlu0 %22
  %v27 = vunpack.c.l.b16 %v17
  %v28 = vunpack.c.h.b16 %v17
  %v29 = vunpack.c.l.b16 %v18
  %v30 = vunpack.c.h.b16 %v18
  %v31 = vpack.c.b16 %v27, %v27
  %v32 = vpack.c.b16 %v28, %v28
  %v33 = vpack.c.b16 %v29, %v29
  %v34 = vpack.c.b16 %v30, %v30
  %vm35 = vcmask 64512
  %v37 = vsel %vm35, %v16, 0
  %vm39 = vcmask 1043456
  %v41 = vsel %vm39, %v31, 0
  %v44 = vsel %vm39, %v32, 0
  %v47 = vsel %vm39, %v33, 0
  %v50 = vsel %vm39, %v34, 0
  %52 = vmatprep.subr.bf16.mxu0 0
  %53 = vmatpush1.bf16.msra.mxu0 0
  %54 = vmatprep.subr.bf16.mxu0 0
  %55 = vmatpush1.bf16.msra.mxu0 0
  %56 = vmatprep.subr.bf16.mxu0 0
  %57 = vmatpush1.bf16.msra.mxu0 0
  %58 = vmatprep.subr.bf16.mxu0 0
  %59 = vmatpush1.bf16.msra.mxu0 0
  %60 = vmatprep.subr.bf16.mxu0 0
  %61 = vmatpush1.bf16.msra.mxu0 0
  %62 = vmatprep.subr.bf16.mxu0 0
  %63 = vmatpush1.bf16.msra.mxu0 0
  %64 = vmatprep.subr.bf16.mxu0 0
  %65 = vmatpush1.bf16.msra.mxu0 0
  %66 = vmatprep.subr.bf16.mxu0 %v44
  %67 = vmatpush1.bf16.msra.mxu0 %v41
  %68 = vmatprep.subr.bf16.mxu0 0
  %69 = vmatpush2.bf16.msra.mxu0 0
  %70 = vmatprep.subr.bf16.mxu0 0
  %71 = vmatpush2.bf16.msra.mxu0 0
  %72 = vmatprep.subr.bf16.mxu0 0
  %73 = vmatpush2.bf16.msra.mxu0 0
  %74 = vmatprep.subr.bf16.mxu0 0
  %75 = vmatpush2.bf16.msra.mxu0 0
  %76 = vmatprep.subr.bf16.mxu0 0
  %77 = vmatpush2.bf16.msra.mxu0 0
  %78 = vmatprep.subr.bf16.mxu0 0
  %79 = vmatpush2.bf16.msra.mxu0 0
  %80 = vmatprep.subr.bf16.mxu0 0
  %81 = vmatpush2.bf16.msra.mxu0 0
  %82 = vmatprep.subr.bf16.mxu0 0
  %83 = vmatpush2.bf16.msra.mxu0 0
  %84 = vmatprep.mubr.bf16.mxu0 0
  %85 = vmatmul.mubr.bf16.gmra.mxu0 %v37
  %v86 = vpop.f32.mrf.mxu0
  %v87 = vadd.f32 %v23, %v86
  %v88 = vpop.f32.mrf.mxu0
  %v89 = vadd.f32 %v23, %v88
  %v90 = vpop.f32.mrf.mxu0
  %v91 = vpop.f32.mrf.mxu0
  %92 = vdwg.mxu0
  %93 = vmatprep.subr.bf16.mxu0 0
  %94 = vmatpush1.bf16.msra.mxu0 0
  %95 = vmatprep.subr.bf16.mxu0 0
  %96 = vmatpush1.bf16.msra.mxu0 0
  %97 = vmatprep.subr.bf16.mxu0 0
  %98 = vmatpush1.bf16.msra.mxu0 0
  %99 = vmatprep.subr.bf16.mxu0 0
  %100 = vmatpush1.bf16.msra.mxu0 0
  %101 = vmatprep.subr.bf16.mxu0 0
  %102 = vmatpush1.bf16.msra.mxu0 0
  %103 = vmatprep.subr.bf16.mxu0 0
  %104 = vmatpush1.bf16.msra.mxu0 0
  %105 = vmatprep.subr.bf16.mxu0 0
  %106 = vmatpush1.bf16.msra.mxu0 0
  %107 = vmatprep.subr.bf16.mxu0 %v50
  %108 = vmatpush1.bf16.msra.mxu0 %v47
  %109 = vmatprep.subr.bf16.mxu0 0
  %110 = vmatpush2.bf16.msra.mxu0 0
  %111 = vmatprep.subr.bf16.mxu0 0
  %112 = vmatpush2.bf16.msra.mxu0 0
  %113 = vmatprep.subr.bf16.mxu0 0
  %114 = vmatpush2.bf16.msra.mxu0 0
  %115 = vmatprep.subr.bf16.mxu0 0
  %116 = vmatpush2.bf16.msra.mxu0 0
  %117 = vmatprep.subr.bf16.mxu0 0
  %118 = vmatpush2.bf16.msra.mxu0 0
  %119 = vmatprep.subr.bf16.mxu0 0
  %120 = vmatpush2.bf16.msra.mxu0 0
  %121 = vmatprep.subr.bf16.mxu0 0
  %122 = vmatpush2.bf16.msra.mxu0 0
  %123 = vmatprep.subr.bf16.mxu0 0
  %124 = vmatpush2.bf16.msra.mxu0 0
  %125 = vmatprep.mubr.bf16.mxu0 0
  %126 = vmatmul.mubr.bf16.gmra.mxu0 %v37
  %v127 = vpop.f32.mrf.mxu0
  %v128 = vadd.f32 %v23, %v127
  %v129 = vpop.f32.mrf.mxu0
  %v130 = vadd.f32 %v23, %v129
  %v131 = vpop.f32.mrf.mxu0
  %v132 = vpop.f32.mrf.mxu0
  %133 = vdwg.mxu0
  %134 = vst [vmem:[%s3] sm:$0xff] %v87
  %135 = vst [vmem:[%s3 + $0x8] sm:$0xff] %v89
  %136 = vst [vmem:[%s3 + $0x10] sm:$0xff] %v128
  %137 = vst [vmem:[%s3 + $0x18] sm:$0xff] %v130
  // Predicated region
  $region14: #{_lambda_.6} parent=0 // pred_check
    _
  $region15: #{_lambda_.6} parent=0 // pred_check_branch
    %139 = sbr.rel (0) target = $region17
  $region16: #{_lambda_.6} parent=0 // pred_region
    _
  $region17: #{_lambda_.6} parent=0 // pred_fallthru
    _
  // Predicated region
  $region18: #{_lambda_.6} parent=0 // pred_check
    _
  $region19: #{_lambda_.6} parent=0 // pred_check_branch
    %141 = sbr.rel (0) target = $region21
  $region20: #{_lambda_.6} parent=0 // pred_region
    _
  $region21: #{_lambda_.6} parent=0 // pred_fallthru
    _

// kernel: _lambda_.9
$region0: #{_lambda_.9}
  #allocation0 [shape = 'u32[]', space=smem, size = 0x4, offset = 0x4, fixed_abs, tag = 'smem constant byte address 0x4 - core index']
  #allocation1 [shape = 'u32[144,128]{1,0:T(1,128)}', space=vmem, size = 0x12000, scoped, tag = 'internal scratch']
  %s0 = inlined_call_operand.vmem [shape: f32[2,1024,36], index: 0, kind: input, shape index: {}]
  %s1 = inlined_call_operand.vmem [shape: bf16[2,36,256], index: 1, kind: input, shape index: {}]
  %s2 = inlined_call_operand.vmem [shape: f32[2,1024,1], index: 2, kind: input, shape index: {}]
  %s3 = inlined_call_operand.vmem [shape: bf16[2,36,1024], index: 3, kind: input, shape index: {}]
  %s4 = inlined_call_operand.vmem [shape: f32[2,36,256], index: 4, kind: output, shape index: {}]
  %s5 = sld [smem:[#allocation0]]
  $region49: #{_lambda_.9} parent=0
    _
  %s7 = ssub.s32 1, %s5
  %s8 = scalar_select 0, %s7, %s5
  loop: start=0, step=1, limit=4
  $region2: #{_lambda_.9} parent=0 // loop_pre_header
    _
  $region3: #{_lambda_.9} parent=0 // loop_header
    %s10 = sphi 0, %s14
    %p11 = scmp.ge.s32.totalorder %s10, 4
    %s17 = sphi 0, %s29
    %s18 = sphi 0, %s25
    %s19 = sphi 0, %s17
    %s20 = sphi 0, %s18
    %s21 = sphi 0, %s19
    %s22 = sphi 0, %s20
    %s32 = sphi 0, %s34
    %s35 = sphi 0, %s32
    %s36 = sphi 0, %s35
    %s52 = sphi 0, %s36
    %s60 = sphi 0, %s62
    %s63 = sphi 0, %s60
    %s64 = sphi 0, %s63
    %s80 = sphi 0, %s64
    %s86 = sphi 0, %s88
    %s89 = sphi 0, %s86
    %s90 = sphi 0, %s89
    %s106 = sphi 0, %s90
    %s112 = sphi 0, %s114
    %s115 = sphi 0, %s112
    %s116 = sphi 0, %s115
    %s132 = sphi 0, %s116
    %s140 = sphi 0, %s142
    %s143 = sphi 0, %s140
    %s144 = sphi 0, %s143
    %s160 = sphi 0, %s144
  $region4: #{_lambda_.9} parent=0 // loop_header_branch
    %13 = sbr.rel (%p11) target = $region8
  $region5: #{_lambda_.9} parent=0 // loop_body
    %s15 = ssub.s32 %s10, 1
    %s16 = ssub.s32 %s10, 2
    %s23 = sadd.s32 1, %s18
    %p24 = scmp.ge.s32.totalorder %s23, 1
    %s25 = scalar_select %p24, 0, %s23
    %s26 = sadd.s32 1, %s17
    %s27 = scalar_select %p24, %s26, %s17
    %p28 = scmp.ge.s32.totalorder %s27, 2
    %s29 = scalar_select %p28, 0, %s27
    %s30 = ssub.s32 %s17, %s29
    %p31 = scmp.eq.s32.totalorder %s30, 0
    %s33 = sadd.s32 %s32, 1
    %s34 = scalar_select %p31, %s32, %s33
    %p37 = pneg %p31
    %p38 = scmp.eq.s32.totalorder %s10, 1
    %p39 = por %p37, %p38
    %p40 = scmp.ne.s32.totalorder %s32, %s35
    %p41 = scmp.eq.s32.totalorder %s10, 0
    %p42 = por %p40, %p41
    %p43 = scmp.ne.s32.totalorder %s32, %s35
    %p44 = scmp.eq.s32.totalorder %s15, 1
    %p45 = por %p43, %p44
    %p46 = scmp.ne.s32.totalorder %s35, %s36
    %p47 = scmp.eq.s32.totalorder %s15, 0
    %p48 = por %p46, %p47
    %p49 = scmp.ne.s32.totalorder %s35, %s36
    %p50 = scmp.eq.s32.totalorder %s16, 1
    %p51 = por %p49, %p50
    %p53 = scmp.ne.s32.totalorder %s36, %s52
    %p54 = scmp.eq.s32.totalorder %s16, 0
    %p55 = por %p53, %p54
    %s56 = ssub.s32 %s17, %s29
    %s57 = ssub.s32 %s18, %s25
    %s58 = sor.u32 %s56, %s57
    %p59 = scmp.eq.s32.totalorder %s58, 0
    %s61 = sadd.s32 %s60, 1
    %s62 = scalar_select %p59, %s60, %s61
    %p65 = pneg %p59
    %p66 = scmp.eq.s32.totalorder %s10, 1
    %p67 = por %p65, %p66
    %p68 = scmp.ne.s32.totalorder %s60, %s63
    %p69 = scmp.eq.s32.totalorder %s10, 0
    %p70 = por %p68, %p69
    %p71 = scmp.ne.s32.totalorder %s60, %s63
    %p72 = scmp.eq.s32.totalorder %s15, 1
    %p73 = por %p71, %p72
    %p74 = scmp.ne.s32.totalorder %s63, %s64
    %p75 = scmp.eq.s32.totalorder %s15, 0
    %p76 = por %p74, %p75
    %p77 = scmp.ne.s32.totalorder %s63, %s64
    %p78 = scmp.eq.s32.totalorder %s16, 1
    %p79 = por %p77, %p78
    %p81 = scmp.ne.s32.totalorder %s64, %s80
    %p82 = scmp.eq.s32.totalorder %s16, 0
    %p83 = por %p81, %p82
    %s84 = ssub.s32 %s17, %s29
    %p85 = scmp.eq.s32.totalorder %s84, 0
    %s87 = sadd.s32 %s86, 1
    %s88 = scalar_select %p85, %s86, %s87
    %p91 = pneg %p85
    %p92 = scmp.eq.s32.totalorder %s10, 1
    %p93 = por %p91, %p92
    %p94 = scmp.ne.s32.totalorder %s86, %s89
    %p95 = scmp.eq.s32.totalorder %s10, 0
    %p96 = por %p94, %p95
    %p97 = scmp.ne.s32.totalorder %s86, %s89
    %p98 = scmp.eq.s32.totalorder %s15, 1
    %p99 = por %p97, %p98
    %p100 = scmp.ne.s32.totalorder %s89, %s90
    %p101 = scmp.eq.s32.totalorder %s15, 0
    %p102 = por %p100, %p101
    %p103 = scmp.ne.s32.totalorder %s89, %s90
    %p104 = scmp.eq.s32.totalorder %s16, 1
    %p105 = por %p103, %p104
    %p107 = scmp.ne.s32.totalorder %s90, %s106
    %p108 = scmp.eq.s32.totalorder %s16, 0
    %p109 = por %p107, %p108
    %s110 = ssub.s32 %s17, %s29
    %p111 = scmp.eq.s32.totalorder %s110, 0
    %s113 = sadd.s32 %s112, 1
    %s114 = scalar_select %p111, %s112, %s113
    %p117 = pneg %p111
    %p118 = scmp.eq.s32.totalorder %s10, 1
    %p119 = por %p117, %p118
    %p120 = scmp.ne.s32.totalorder %s112, %s115
    %p121 = scmp.eq.s32.totalorder %s10, 0
    %p122 = por %p120, %p121
    %p123 = scmp.ne.s32.totalorder %s112, %s115
    %p124 = scmp.eq.s32.totalorder %s15, 1
    %p125 = por %p123, %p124
    %p126 = scmp.ne.s32.totalorder %s115, %s116
    %p127 = scmp.eq.s32.totalorder %s15, 0
    %p128 = por %p126, %p127
    %p129 = scmp.ne.s32.totalorder %s115, %s116
    %p130 = scmp.eq.s32.totalorder %s16, 1
    %p131 = por %p129, %p130
    %p133 = scmp.ne.s32.totalorder %s116, %s132
    %p134 = scmp.eq.s32.totalorder %s16, 0
    %p135 = por %p133, %p134
    %s136 = ssub.s32 %s17, %s29
    %s137 = ssub.s32 %s18, %s25
    %s138 = sor.u32 %s136, %s137
    %p139 = scmp.eq.s32.totalorder %s138, 0
    %s141 = sadd.s32 %s140, 1
    %s142 = scalar_select %p139, %s140, %s141
    %p145 = pneg %p139
    %p146 = scmp.eq.s32.totalorder %s10, 1
    %p147 = por %p145, %p146
    %p148 = scmp.ne.s32.totalorder %s140, %s143
    %p149 = scmp.eq.s32.totalorder %s10, 0
    %p150 = por %p148, %p149
    %p151 = scmp.ne.s32.totalorder %s140, %s143
    %p152 = scmp.eq.s32.totalorder %s15, 1
    %p153 = por %p151, %p152
    %p154 = scmp.ne.s32.totalorder %s143, %s144
    %p155 = scmp.eq.s32.totalorder %s15, 0
    %p156 = por %p154, %p155
    %p157 = scmp.ne.s32.totalorder %s143, %s144
    %p158 = scmp.eq.s32.totalorder %s16, 1
    %p159 = por %p157, %p158
    %p161 = scmp.ne.s32.totalorder %s144, %s160
    %p162 = scmp.eq.s32.totalorder %s16, 0
    %p163 = por %p161, %p162
    %p164 = scmp.le.s32.totalorder 1, %s10
    %p165 = scmp.lt.s32.totalorder %s10, 3
    %p166 = pnand %p164, %p165
    %p167 = pneg %p166
    // Predicated region
    $region9: #{_lambda_.9} parent=5 // pred_check
      _
    $region10: #{_lambda_.9} parent=5 // pred_check_branch
      %169 = sbr.rel (%p166) target = $region12
    $region11: #{_lambda_.9} parent=5 // pred_region
      %s170 = ssub.s32 %s10, 1
    $region12: #{_lambda_.9} parent=5 // pred_fallthru
      _
    %p171 = scmp.lt.s32.totalorder %s10, 2
    // Predicated region
    $region13: #{_lambda_.9} parent=5 // pred_check
      %p172 = pneg %p171
    $region14: #{_lambda_.9} parent=5 // pred_check_branch
      %174 = sbr.rel (%p172) target = $region16
    $region15: #{_lambda_.9} parent=5 // pred_region
      // Predicated region
      $region17: #{_lambda_.9} parent=15 // pred_check
        %p175 = pneg %p42
      $region18: #{_lambda_.9} parent=15 // pred_check_branch
        %177 = sbr.rel (%p175) target = $region20
      $region19: #{_lambda_.9} parent=15 // pred_region
        %p178 = scmp.lt.s32.totalorder %s17, 1
        %s179 = scalar_select %p178, %s17, 1
        %s180 = smul.addr %s179, 128
        %s181 = smul.addr %s180, 8
        %s182 = scalar_lea.vmem %s0, %s181
      $region20: #{_lambda_.9} parent=15 // pred_fallthru
        _
      // Predicated region
      $region21: #{_lambda_.9} parent=15 // pred_check
        %p183 = pneg %p70
      $region22: #{_lambda_.9} parent=15 // pred_check_branch
        %185 = sbr.rel (%p183) target = $region24
      $region23: #{_lambda_.9} parent=15 // pred_region
        %s186 = smul.u32 2, %s18
        %p187 = scmp.lt.s32.totalorder %s17, 1
        %s188 = scalar_select %p187, %s17, 1
        %p189 = scmp.lt.s32.totalorder %s186, 1
        %s190 = scalar_select %p189, %s186, 1
        %s191 = smul.addr %s188, 10
        %s192 = sadd.s32 %s190, %s191
        %s193 = smul.addr %s192, 4
        %s194 = scalar_lea.vmem %s1, %s193
        %s195 = smul.u32 2, %s18
      $region24: #{_lambda_.9} parent=15 // pred_fallthru
        _
      // Predicated region
      $region25: #{_lambda_.9} parent=15 // pred_check
        %p196 = pneg %p96
      $region26: #{_lambda_.9} parent=15 // pred_check_branch
        %198 = sbr.rel (%p196) target = $region28
      $region27: #{_lambda_.9} parent=15 // pred_region
        %p199 = scmp.lt.s32.totalorder %s17, 1
        %s200 = scalar_select %p199, %s17, 1
        %s201 = smul.addr %s200, 128
        %s202 = smul.addr %s201, 8
        %s203 = scalar_lea.vmem %s2, %s202
      $region28: #{_lambda_.9} parent=15 // pred_fallthru
        _
      // Predicated region
      $region29: #{_lambda_.9} parent=15 // pred_check
        %p204 = pneg %p122
      $region30: #{_lambda_.9} parent=15 // pred_check_branch
        %206 = sbr.rel (%p204) target = $region32
      $region31: #{_lambda_.9} parent=15 // pred_region
        %p207 = scmp.lt.s32.totalorder %s17, 1
        %s208 = scalar_select %p207, %s17, 1
        %s209 = smul.addr %s208, 40
        %s210 = smul.addr %s209, 4
        %s211 = scalar_lea.vmem %s3, %s210
      $region32: #{_lambda_.9} parent=15 // pred_fallthru
        _
    $region16: #{_lambda_.9} parent=5 // pred_fallthru
      _
    %p212 = scmp.le.s32.totalorder 1, %s10
    %p213 = scmp.lt.s32.totalorder %s10, 3
    %p214 = pnand %p212, %p213
    %p215 = pneg %p214
    // Predicated region
    $region33: #{_lambda_.9} parent=5 // pred_check
      _
    $region34: #{_lambda_.9} parent=5 // pred_check_branch
      %217 = sbr.rel (%p214) target = $region36
    $region35: #{_lambda_.9} parent=5 // pred_region
      %s218 = ssub.s32 %s10, 1
      %p219 = scmp.lt.s32.totalorder %s19, 1
      %s220 = scalar_select %p219, %s19, 1
      %s221 = smul.addr %s220, 128
      %s222 = smul.addr %s221, 8
      %s223 = scalar_lea.vmem %s0, %s222
      %p224 = pneg %p48
      %p225 = pneg %p45
      %s226 = smul.u32 2, %s20
      %p227 = scmp.lt.s32.totalorder %s19, 1
      %s228 = scalar_select %p227, %s19, 1
      %p229 = scmp.lt.s32.totalorder %s226, 1
      %s230 = scalar_select %p229, %s226, 1
      %s231 = smul.addr %s228, 10
      %s232 = sadd.s32 %s230, %s231
      %s233 = smul.addr %s232, 4
      %s234 = scalar_lea.vmem %s1, %s233
      %p235 = pneg %p76
      %p236 = pneg %p73
      %p237 = scmp.lt.s32.totalorder %s19, 1
      %s238 = scalar_select %p237, %s19, 1
      %s239 = smul.addr %s238, 128
      %s240 = smul.addr %s239, 8
      %s241 = scalar_lea.vmem %s2, %s240
      %p242 = pneg %p102
      %p243 = pneg %p99
      %p244 = scmp.lt.s32.totalorder %s19, 1
      %s245 = scalar_select %p244, %s19, 1
      %s246 = smul.addr %s245, 40
      %s247 = smul.addr %s246, 4
      %s248 = scalar_lea.vmem %s3, %s247
      %p249 = pneg %p128
      %p250 = pneg %p125
      %p251 = pneg %p156
      %p252 = pneg %p153
      %s253 = smul.u32 2, %s20
      %p254 = scmp.lt.s32.totalorder %s19, 1
      %s255 = scalar_select %p254, %s19, 1
      %p256 = scmp.lt.s32.totalorder %s253, 1
      %s257 = scalar_select %p256, %s253, 1
      %s258 = smul.addr %s255, 10
      %s259 = sadd.s32 %s257, %s258
      %s260 = smul.addr %s259, 8
      %s261 = scalar_lea.vmem %s4, %s260
      %p262 = scmp.lt.s32.totalorder %s19, 1
      %s263 = scalar_select %p262, %s19, 1
      %s264 = smul.addr %s263, 128
      %s265 = smul.addr %s264, 8
      %s266 = scalar_lea.vmem %s0, %s265
      %s267 = smul.u32 2, %s20
      %p268 = scmp.lt.s32.totalorder %s19, 1
      %s269 = scalar_select %p268, %s19, 1
      %p270 = scmp.lt.s32.totalorder %s267, 1
      %s271 = scalar_select %p270, %s267, 1
      %s272 = smul.addr %s269, 10
      %s273 = sadd.s32 %s271, %s272
      %s274 = smul.addr %s273, 4
      %s275 = scalar_lea.vmem %s1, %s274
      %s276 = smul.u32 2, %s20
      %p277 = scmp.lt.s32.totalorder %s19, 1
      %s278 = scalar_select %p277, %s19, 1
      %s279 = smul.addr %s278, 128
      %s280 = smul.addr %s279, 8
      %s281 = scalar_lea.vmem %s2, %s280
      %p282 = scmp.lt.s32.totalorder %s19, 1
      %s283 = scalar_select %p282, %s19, 1
      %s284 = smul.addr %s283, 40
      %s285 = smul.addr %s284, 4
      %s286 = scalar_lea.vmem %s3, %s285
      %s287 = smul.u32 2, %s20
      %p288 = scmp.lt.s32.totalorder %s19, 1
      %s289 = scalar_select %p288, %s19, 1
      %p290 = scmp.lt.s32.totalorder %s287, 1
      %s291 = scalar_select %p290, %s287, 1
      %s292 = smul.addr %s289, 10
      %s293 = sadd.s32 %s291, %s292
      %s294 = smul.addr %s293, 8
      %s295 = scalar_lea.vmem %s4, %s294
      %s296 = smul.u32 2, %s20
      %v298 = vld [vmem:[%s266] sm:$0xff]
      %v299 = vld [vmem:[%s266 + $0x8] sm:$0xff]
      %v300 = vld [vmem:[%s266 + $0x10] sm:$0xff]
      %v301 = vld [vmem:[%s266 + $0x18] sm:$0xff]
      %v302 = vld [vmem:[%s266 + $0x20] sm:$0xff]
      %v303 = vld [vmem:[%s266 + $0x28] sm:$0xff]
      %v304 = vld [vmem:[%s266 + $0x30] sm:$0xff]
      %v305 = vld [vmem:[%s266 + $0x38] sm:$0xff]
      %v306 = vld [vmem:[%s266 + $0x40] sm:$0xff]
      %v307 = vld [vmem:[%s266 + $0x48] sm:$0xff]
      %v308 = vld [vmem:[%s266 + $0x50] sm:$0xff]
      %v309 = vld [vmem:[%s266 + $0x58] sm:$0xff]
      %v310 = vld [vmem:[%s266 + $0x60] sm:$0xff]
      %v311 = vld [vmem:[%s266 + $0x68] sm:$0xff]
      %v312 = vld [vmem:[%s266 + $0x70] sm:$0xff]
      %v313 = vld [vmem:[%s266 + $0x78] sm:$0xff]
      %v314 = vld [vmem:[%s266 + $0x80] sm:$0xff]
      %v315 = vld [vmem:[%s266 + $0x88] sm:$0xff]
      %v316 = vld [vmem:[%s266 + $0x90] sm:$0xff]
      %v317 = vld [vmem:[%s266 + $0x98] sm:$0xff]
      %v318 = vld [vmem:[%s266 + $0xa0] sm:$0xff]
      %v319 = vld [vmem:[%s266 + $0xa8] sm:$0xff]
      %v320 = vld [vmem:[%s266 + $0xb0] sm:$0xff]
      %v321 = vld [vmem:[%s266 + $0xb8] sm:$0xff]
      %v322 = vld [vmem:[%s266 + $0xc0] sm:$0xff]
      %v323 = vld [vmem:[%s266 + $0xc8] sm:$0xff]
      %v324 = vld [vmem:[%s266 + $0xd0] sm:$0xff]
      %v325 = vld [vmem:[%s266 + $0xd8] sm:$0xff]
      %v326 = vld [vmem:[%s266 + $0xe0] sm:$0xff]
      %v327 = vld [vmem:[%s266 + $0xe8] sm:$0xff]
      %v328 = vld [vmem:[%s266 + $0xf0] sm:$0xff]
      %v329 = vld [vmem:[%s266 + $0xf8] sm:$0xff]
      %v330 = vld [vmem:[%s266 + $0x100] sm:$0xff]
      %v331 = vld [vmem:[%s266 + $0x108] sm:$0xff]
      %v332 = vld [vmem:[%s266 + $0x110] sm:$0xff]
      %v333 = vld [vmem:[%s266 + $0x118] sm:$0xff]
      %v334 = vld [vmem:[%s266 + $0x120] sm:$0xff]
      %v335 = vld [vmem:[%s266 + $0x128] sm:$0xff]
      %v336 = vld [vmem:[%s266 + $0x130] sm:$0xff]
      %v337 = vld [vmem:[%s266 + $0x138] sm:$0xff]
      %v338 = vld [vmem:[%s266 + $0x140] sm:$0xff]
      %v339 = vld [vmem:[%s266 + $0x148] sm:$0xff]
      %v340 = vld [vmem:[%s266 + $0x150] sm:$0xff]
      %v341 = vld [vmem:[%s266 + $0x158] sm:$0xff]
      %v342 = vld [vmem:[%s266 + $0x160] sm:$0xff]
      %v343 = vld [vmem:[%s266 + $0x168] sm:$0xff]
      %v344 = vld [vmem:[%s266 + $0x170] sm:$0xff]
      %v345 = vld [vmem:[%s266 + $0x178] sm:$0xff]
      %v346 = vld [vmem:[%s266 + $0x180] sm:$0xff]
      %v347 = vld [vmem:[%s266 + $0x188] sm:$0xff]
      %v348 = vld [vmem:[%s266 + $0x190] sm:$0xff]
      %v349 = vld [vmem:[%s266 + $0x198] sm:$0xff]
      %v350 = vld [vmem:[%s266 + $0x1a0] sm:$0xff]
      %v351 = vld [vmem:[%s266 + $0x1a8] sm:$0xff]
      %v352 = vld [vmem:[%s266 + $0x1b0] sm:$0xff]
      %v353 = vld [vmem:[%s266 + $0x1b8] sm:$0xff]
      %v354 = vld [vmem:[%s266 + $0x1c0] sm:$0xff]
      %v355 = vld [vmem:[%s266 + $0x1c8] sm:$0xff]
      %v356 = vld [vmem:[%s266 + $0x1d0] sm:$0xff]
      %v357 = vld [vmem:[%s266 + $0x1d8] sm:$0xff]
      %v358 = vld [vmem:[%s266 + $0x1e0] sm:$0xff]
      %v359 = vld [vmem:[%s266 + $0x1e8] sm:$0xff]
      %v360 = vld [vmem:[%s266 + $0x1f0] sm:$0xff]
      %v361 = vld [vmem:[%s266 + $0x1f8] sm:$0xff]
      %v362 = vld [vmem:[%s266 + $0x200] sm:$0xff]
      %v363 = vld [vmem:[%s266 + $0x208] sm:$0xff]
      %v364 = vld [vmem:[%s266 + $0x210] sm:$0xff]
      %v365 = vld [vmem:[%s266 + $0x218] sm:$0xff]
      %v366 = vld [vmem:[%s266 + $0x220] sm:$0xff]
      %v367 = vld [vmem:[%s266 + $0x228] sm:$0xff]
      %v368 = vld [vmem:[%s266 + $0x230] sm:$0xff]
      %v369 = vld [vmem:[%s266 + $0x238] sm:$0xff]
      %v370 = vld [vmem:[%s266 + $0x240] sm:$0xff]
      %v371 = vld [vmem:[%s266 + $0x248] sm:$0xff]
      %v372 = vld [vmem:[%s266 + $0x250] sm:$0xff]
      %v373 = vld [vmem:[%s266 + $0x258] sm:$0xff]
      %v374 = vld [vmem:[%s266 + $0x260] sm:$0xff]
      %v375 = vld [vmem:[%s266 + $0x268] sm:$0xff]
      %v376 = vld [vmem:[%s266 + $0x270] sm:$0xff]
      %v377 = vld [vmem:[%s266 + $0x278] sm:$0xff]
      %v378 = vld [vmem:[%s266 + $0x280] sm:$0xff]
      %v379 = vld [vmem:[%s266 + $0x288] sm:$0xff]
      %v380 = vld [vmem:[%s266 + $0x290] sm:$0xff]
      %v381 = vld [vmem:[%s266 + $0x298] sm:$0xff]
      %v382 = vld [vmem:[%s266 + $0x2a0] sm:$0xff]
      %v383 = vld [vmem:[%s266 + $0x2a8] sm:$0xff]
      %v384 = vld [vmem:[%s266 + $0x2b0] sm:$0xff]
      %v385 = vld [vmem:[%s266 + $0x2b8] sm:$0xff]
      %v386 = vld [vmem:[%s266 + $0x2c0] sm:$0xff]
      %v387 = vld [vmem:[%s266 + $0x2c8] sm:$0xff]
      %v388 = vld [vmem:[%s266 + $0x2d0] sm:$0xff]
      %v389 = vld [vmem:[%s266 + $0x2d8] sm:$0xff]
      %v390 = vld [vmem:[%s266 + $0x2e0] sm:$0xff]
      %v391 = vld [vmem:[%s266 + $0x2e8] sm:$0xff]
      %v392 = vld [vmem:[%s266 + $0x2f0] sm:$0xff]
      %v393 = vld [vmem:[%s266 + $0x2f8] sm:$0xff]
      %v394 = vld [vmem:[%s266 + $0x300] sm:$0xff]
      %v395 = vld [vmem:[%s266 + $0x308] sm:$0xff]
      %v396 = vld [vmem:[%s266 + $0x310] sm:$0xff]
      %v397 = vld [vmem:[%s266 + $0x318] sm:$0xff]
      %v398 = vld [vmem:[%s266 + $0x320] sm:$0xff]
      %v399 = vld [vmem:[%s266 + $0x328] sm:$0xff]
      %v400 = vld [vmem:[%s266 + $0x330] sm:$0xff]
      %v401 = vld [vmem:[%s266 + $0x338] sm:$0xff]
      %v402 = vld [vmem:[%s266 + $0x340] sm:$0xff]
      %v403 = vld [vmem:[%s266 + $0x348] sm:$0xff]
      %v404 = vld [vmem:[%s266 + $0x350] sm:$0xff]
      %v405 = vld [vmem:[%s266 + $0x358] sm:$0xff]
      %v406 = vld [vmem:[%s266 + $0x360] sm:$0xff]
      %v407 = vld [vmem:[%s266 + $0x368] sm:$0xff]
      %v408 = vld [vmem:[%s266 + $0x370] sm:$0xff]
      %v409 = vld [vmem:[%s266 + $0x378] sm:$0xff]
      %v410 = vld [vmem:[%s266 + $0x380] sm:$0xff]
      %v411 = vld [vmem:[%s266 + $0x388] sm:$0xff]
      %v412 = vld [vmem:[%s266 + $0x390] sm:$0xff]
      %v413 = vld [vmem:[%s266 + $0x398] sm:$0xff]
      %v414 = vld [vmem:[%s266 + $0x3a0] sm:$0xff]
      %v415 = vld [vmem:[%s266 + $0x3a8] sm:$0xff]
      %v416 = vld [vmem:[%s266 + $0x3b0] sm:$0xff]
      %v417 = vld [vmem:[%s266 + $0x3b8] sm:$0xff]
      %v418 = vld [vmem:[%s266 + $0x3c0] sm:$0xff]
      %v419 = vld [vmem:[%s266 + $0x3c8] sm:$0xff]
      %v420 = vld [vmem:[%s266 + $0x3d0] sm:$0xff]
      %v421 = vld [vmem:[%s266 + $0x3d8] sm:$0xff]
      %v422 = vld [vmem:[%s266 + $0x3e0] sm:$0xff]
      %v423 = vld [vmem:[%s266 + $0x3e8] sm:$0xff]
      %v424 = vld [vmem:[%s266 + $0x3f0] sm:$0xff]
      %v425 = vld [vmem:[%s266 + $0x3f8] sm:$0xff]
      %v426 = vld [vmem:[%s281] sm:$0xff]
      %v427 = vld [vmem:[%s281 + $0x8] sm:$0xff]
      %v428 = vld [vmem:[%s281 + $0x10] sm:$0xff]
      %v429 = vld [vmem:[%s281 + $0x18] sm:$0xff]
      %v430 = vld [vmem:[%s281 + $0x20] sm:$0xff]
      %v431 = vld [vmem:[%s281 + $0x28] sm:$0xff]
      %v432 = vld [vmem:[%s281 + $0x30] sm:$0xff]
      %v433 = vld [vmem:[%s281 + $0x38] sm:$0xff]
      %v434 = vld [vmem:[%s281 + $0x40] sm:$0xff]
      %v435 = vld [vmem:[%s281 + $0x48] sm:$0xff]
      %v436 = vld [vmem:[%s281 + $0x50] sm:$0xff]
      %v437 = vld [vmem:[%s281 + $0x58] sm:$0xff]
      %v438 = vld [vmem:[%s281 + $0x60] sm:$0xff]
      %v439 = vld [vmem:[%s281 + $0x68] sm:$0xff]
      %v440 = vld [vmem:[%s281 + $0x70] sm:$0xff]
      %v441 = vld [vmem:[%s281 + $0x78] sm:$0xff]
      %v442 = vld [vmem:[%s281 + $0x80] sm:$0xff]
      %v443 = vld [vmem:[%s281 + $0x88] sm:$0xff]
      %v444 = vld [vmem:[%s281 + $0x90] sm:$0xff]
      %v445 = vld [vmem:[%s281 + $0x98] sm:$0xff]
      %v446 = vld [vmem:[%s281 + $0xa0] sm:$0xff]
      %v447 = vld [vmem:[%s281 + $0xa8] sm:$0xff]
      %v448 = vld [vmem:[%s281 + $0xb0] sm:$0xff]
      %v449 = vld [vmem:[%s281 + $0xb8] sm:$0xff]
      %v450 = vld [vmem:[%s281 + $0xc0] sm:$0xff]
      %v451 = vld [vmem:[%s281 + $0xc8] sm:$0xff]
      %v452 = vld [vmem:[%s281 + $0xd0] sm:$0xff]
      %v453 = vld [vmem:[%s281 + $0xd8] sm:$0xff]
      %v454 = vld [vmem:[%s281 + $0xe0] sm:$0xff]
      %v455 = vld [vmem:[%s281 + $0xe8] sm:$0xff]
      %v456 = vld [vmem:[%s281 + $0xf0] sm:$0xff]
      %v457 = vld [vmem:[%s281 + $0xf8] sm:$0xff]
      %v458 = vld [vmem:[%s281 + $0x100] sm:$0xff]
      %v459 = vld [vmem:[%s281 + $0x108] sm:$0xff]
      %v460 = vld [vmem:[%s281 + $0x110] sm:$0xff]
      %v461 = vld [vmem:[%s281 + $0x118] sm:$0xff]
      %v462 = vld [vmem:[%s281 + $0x120] sm:$0xff]
      %v463 = vld [vmem:[%s281 + $0x128] sm:$0xff]
      %v464 = vld [vmem:[%s281 + $0x130] sm:$0xff]
      %v465 = vld [vmem:[%s281 + $0x138] sm:$0xff]
      %v466 = vld [vmem:[%s281 + $0x140] sm:$0xff]
      %v467 = vld [vmem:[%s281 + $0x148] sm:$0xff]
      %v468 = vld [vmem:[%s281 + $0x150] sm:$0xff]
      %v469 = vld [vmem:[%s281 + $0x158] sm:$0xff]
      %v470 = vld [vmem:[%s281 + $0x160] sm:$0xff]
      %v471 = vld [vmem:[%s281 + $0x168] sm:$0xff]
      %v472 = vld [vmem:[%s281 + $0x170] sm:$0xff]
      %v473 = vld [vmem:[%s281 + $0x178] sm:$0xff]
      %v474 = vld [vmem:[%s281 + $0x180] sm:$0xff]
      %v475 = vld [vmem:[%s281 + $0x188] sm:$0xff]
      %v476 = vld [vmem:[%s281 + $0x190] sm:$0xff]
      %v477 = vld [vmem:[%s281 + $0x198] sm:$0xff]
      %v478 = vld [vmem:[%s281 + $0x1a0] sm:$0xff]
      %v479 = vld [vmem:[%s281 + $0x1a8] sm:$0xff]
      %v480 = vld [vmem:[%s281 + $0x1b0] sm:$0xff]
      %v481 = vld [vmem:[%s281 + $0x1b8] sm:$0xff]
      %v482 = vld [vmem:[%s281 + $0x1c0] sm:$0xff]
      %v483 = vld [vmem:[%s281 + $0x1c8] sm:$0xff]
      %v484 = vld [vmem:[%s281 + $0x1d0] sm:$0xff]
      %v485 = vld [vmem:[%s281 + $0x1d8] sm:$0xff]
      %v486 = vld [vmem:[%s281 + $0x1e0] sm:$0xff]
      %v487 = vld [vmem:[%s281 + $0x1e8] sm:$0xff]
      %v488 = vld [vmem:[%s281 + $0x1f0] sm:$0xff]
      %v489 = vld [vmem:[%s281 + $0x1f8] sm:$0xff]
      %v490 = vld [vmem:[%s281 + $0x200] sm:$0xff]
      %v491 = vld [vmem:[%s281 + $0x208] sm:$0xff]
      %v492 = vld [vmem:[%s281 + $0x210] sm:$0xff]
      %v493 = vld [vmem:[%s281 + $0x218] sm:$0xff]
      %v494 = vld [vmem:[%s281 + $0x220] sm:$0xff]
      %v495 = vld [vmem:[%s281 + $0x228] sm:$0xff]
      %v496 = vld [vmem:[%s281 + $0x230] sm:$0xff]
      %v497 = vld [vmem:[%s281 + $0x238] sm:$0xff]
      %v498 = vld [vmem:[%s281 + $0x240] sm:$0xff]
      %v499 = vld [vmem:[%s281 + $0x248] sm:$0xff]
      %v500 = vld [vmem:[%s281 + $0x250] sm:$0xff]
      %v501 = vld [vmem:[%s281 + $0x258] sm:$0xff]
      %v502 = vld [vmem:[%s281 + $0x260] sm:$0xff]
      %v503 = vld [vmem:[%s281 + $0x268] sm:$0xff]
      %v504 = vld [vmem:[%s281 + $0x270] sm:$0xff]
      %v505 = vld [vmem:[%s281 + $0x278] sm:$0xff]
      %v506 = vld [vmem:[%s281 + $0x280] sm:$0xff]
      %v507 = vld [vmem:[%s281 + $0x288] sm:$0xff]
      %v508 = vld [vmem:[%s281 + $0x290] sm:$0xff]
      %v509 = vld [vmem:[%s281 + $0x298] sm:$0xff]
      %v510 = vld [vmem:[%s281 + $0x2a0] sm:$0xff]
      %v511 = vld [vmem:[%s281 + $0x2a8] sm:$0xff]
      %v512 = vld [vmem:[%s281 + $0x2b0] sm:$0xff]
      %v513 = vld [vmem:[%s281 + $0x2b8] sm:$0xff]
      %v514 = vld [vmem:[%s281 + $0x2c0] sm:$0xff]
      %v515 = vld [vmem:[%s281 + $0x2c8] sm:$0xff]
      %v516 = vld [vmem:[%s281 + $0x2d0] sm:$0xff]
      %v517 = vld [vmem:[%s281 + $0x2d8] sm:$0xff]
      %v518 = vld [vmem:[%s281 + $0x2e0] sm:$0xff]
      %v519 = vld [vmem:[%s281 + $0x2e8] sm:$0xff]
      %v520 = vld [vmem:[%s281 + $0x2f0] sm:$0xff]
      %v521 = vld [vmem:[%s281 + $0x2f8] sm:$0xff]
      %v522 = vld [vmem:[%s281 + $0x300] sm:$0xff]
      %v523 = vld [vmem:[%s281 + $0x308] sm:$0xff]
      %v524 = vld [vmem:[%s281 + $0x310] sm:$0xff]
      %v525 = vld [vmem:[%s281 + $0x318] sm:$0xff]
      %v526 = vld [vmem:[%s281 + $0x320] sm:$0xff]
      %v527 = vld [vmem:[%s281 + $0x328] sm:$0xff]
      %v528 = vld [vmem:[%s281 + $0x330] sm:$0xff]
      %v529 = vld [vmem:[%s281 + $0x338] sm:$0xff]
      %v530 = vld [vmem:[%s281 + $0x340] sm:$0xff]
      %v531 = vld [vmem:[%s281 + $0x348] sm:$0xff]
      %v532 = vld [vmem:[%s281 + $0x350] sm:$0xff]
      %v533 = vld [vmem:[%s281 + $0x358] sm:$0xff]
      %v534 = vld [vmem:[%s281 + $0x360] sm:$0xff]
      %v535 = vld [vmem:[%s281 + $0x368] sm:$0xff]
      %v536 = vld [vmem:[%s281 + $0x370] sm:$0xff]
      %v537 = vld [vmem:[%s281 + $0x378] sm:$0xff]
      %v538 = vld [vmem:[%s281 + $0x380] sm:$0xff]
      %v539 = vld [vmem:[%s281 + $0x388] sm:$0xff]
      %v540 = vld [vmem:[%s281 + $0x390] sm:$0xff]
      %v541 = vld [vmem:[%s281 + $0x398] sm:$0xff]
      %v542 = vld [vmem:[%s281 + $0x3a0] sm:$0xff]
      %v543 = vld [vmem:[%s281 + $0x3a8] sm:$0xff]
      %v544 = vld [vmem:[%s281 + $0x3b0] sm:$0xff]
      %v545 = vld [vmem:[%s281 + $0x3b8] sm:$0xff]
      %v546 = vld [vmem:[%s281 + $0x3c0] sm:$0xff]
      %v547 = vld [vmem:[%s281 + $0x3c8] sm:$0xff]
      %v548 = vld [vmem:[%s281 + $0x3d0] sm:$0xff]
      %v549 = vld [vmem:[%s281 + $0x3d8] sm:$0xff]
      %v550 = vld [vmem:[%s281 + $0x3e0] sm:$0xff]
      %v551 = vld [vmem:[%s281 + $0x3e8] sm:$0xff]
      %v552 = vld [vmem:[%s281 + $0x3f0] sm:$0xff]
      %v553 = vld [vmem:[%s281 + $0x3f8] sm:$0xff]
      %v554 = vmul.f32 %v298, %v298
      %v555 = vmul.f32 %v299, %v299
      %v556 = vmul.f32 %v300, %v300
      %v557 = vmul.f32 %v301, %v301
      %v558 = vmul.f32 %v302, %v302
      %v559 = vmul.f32 %v303, %v303
      %v560 = vmul.f32 %v304, %v304
      %v561 = vmul.f32 %v305, %v305
      %v562 = vmul.f32 %v306, %v306
      %v563 = vmul.f32 %v307, %v307
      %v564 = vmul.f32 %v308, %v308
      %v565 = vmul.f32 %v309, %v309
      %v566 = vmul.f32 %v310, %v310
      %v567 = vmul.f32 %v311, %v311
      %v568 = vmul.f32 %v312, %v312
      %v569 = vmul.f32 %v313, %v313
      %v570 = vmul.f32 %v314, %v314
      %v571 = vmul.f32 %v315, %v315
      %v572 = vmul.f32 %v316, %v316
      %v573 = vmul.f32 %v317, %v317
      %v574 = vmul.f32 %v318, %v318
      %v575 = vmul.f32 %v319, %v319
      %v576 = vmul.f32 %v320, %v320
      %v577 = vmul.f32 %v321, %v321
      %v578 = vmul.f32 %v322, %v322
      %v579 = vmul.f32 %v323, %v323
      %v580 = vmul.f32 %v324, %v324
      %v581 = vmul.f32 %v325, %v325
      %v582 = vmul.f32 %v326, %v326
      %v583 = vmul.f32 %v327, %v327
      %v584 = vmul.f32 %v328, %v328
      %v585 = vmul.f32 %v329, %v329
      %v586 = vmul.f32 %v330, %v330
      %v587 = vmul.f32 %v331, %v331
      %v588 = vmul.f32 %v332, %v332
      %v589 = vmul.f32 %v333, %v333
      %v590 = vmul.f32 %v334, %v334
      %v591 = vmul.f32 %v335, %v335
      %v592 = vmul.f32 %v336, %v336
      %v593 = vmul.f32 %v337, %v337
      %v594 = vmul.f32 %v338, %v338
      %v595 = vmul.f32 %v339, %v339
      %v596 = vmul.f32 %v340, %v340
      %v597 = vmul.f32 %v341, %v341
      %v598 = vmul.f32 %v342, %v342
      %v599 = vmul.f32 %v343, %v343
      %v600 = vmul.f32 %v344, %v344
      %v601 = vmul.f32 %v345, %v345
      %v602 = vmul.f32 %v346, %v346
      %v603 = vmul.f32 %v347, %v347
      %v604 = vmul.f32 %v348, %v348
      %v605 = vmul.f32 %v349, %v349
      %v606 = vmul.f32 %v350, %v350
      %v607 = vmul.f32 %v351, %v351
      %v608 = vmul.f32 %v352, %v352
      %v609 = vmul.f32 %v353, %v353
      %v610 = vmul.f32 %v354, %v354
      %v611 = vmul.f32 %v355, %v355
      %v612 = vmul.f32 %v356, %v356
      %v613 = vmul.f32 %v357, %v357
      %v614 = vmul.f32 %v358, %v358
      %v615 = vmul.f32 %v359, %v359
      %v616 = vmul.f32 %v360, %v360
      %v617 = vmul.f32 %v361, %v361
      %v618 = vmul.f32 %v362, %v362
      %v619 = vmul.f32 %v363, %v363
      %v620 = vmul.f32 %v364, %v364
      %v621 = vmul.f32 %v365, %v365
      %v622 = vmul.f32 %v366, %v366
      %v623 = vmul.f32 %v367, %v367
      %v624 = vmul.f32 %v368, %v368
      %v625 = vmul.f32 %v369, %v369
      %v626 = vmul.f32 %v370, %v370
      %v627 = vmul.f32 %v371, %v371
      %v628 = vmul.f32 %v372, %v372
      %v629 = vmul.f32 %v373, %v373
      %v630 = vmul.f32 %v374, %v374
      %v631 = vmul.f32 %v375, %v375
      %v632 = vmul.f32 %v376, %v376
      %v633 = vmul.f32 %v377, %v377
      %v634 = vmul.f32 %v378, %v378
      %v635 = vmul.f32 %v379, %v379
      %v636 = vmul.f32 %v380, %v380
      %v637 = vmul.f32 %v381, %v381
      %v638 = vmul.f32 %v382, %v382
      %v639 = vmul.f32 %v383, %v383
      %v640 = vmul.f32 %v384, %v384
      %v641 = vmul.f32 %v385, %v385
      %v642 = vmul.f32 %v386, %v386
      %v643 = vmul.f32 %v387, %v387
      %v644 = vmul.f32 %v388, %v388
      %v645 = vmul.f32 %v389, %v389
      %v646 = vmul.f32 %v390, %v390
      %v647 = vmul.f32 %v391, %v391
      %v648 = vmul.f32 %v392, %v392
      %v649 = vmul.f32 %v393, %v393
      %v650 = vmul.f32 %v394, %v394
      %v651 = vmul.f32 %v395, %v395
      %v652 = vmul.f32 %v396, %v396
      %v653 = vmul.f32 %v397, %v397
      %v654 = vmul.f32 %v398, %v398
      %v655 = vmul.f32 %v399, %v399
      %v656 = vmul.f32 %v400, %v400
      %v657 = vmul.f32 %v401, %v401
      %v658 = vmul.f32 %v402, %v402
      %v659 = vmul.f32 %v403, %v403
      %v660 = vmul.f32 %v404, %v404
      %v661 = vmul.f32 %v405, %v405
      %v662 = vmul.f32 %v406, %v406
      %v663 = vmul.f32 %v407, %v407
      %v664 = vmul.f32 %v408, %v408
      %v665 = vmul.f32 %v409, %v409
      %v666 = vmul.f32 %v410, %v410
      %v667 = vmul.f32 %v411, %v411
      %v668 = vmul.f32 %v412, %v412
      %v669 = vmul.f32 %v413, %v413
      %v670 = vmul.f32 %v414, %v414
      %v671 = vmul.f32 %v415, %v415
      %v672 = vmul.f32 %v416, %v416
      %v673 = vmul.f32 %v417, %v417
      %v674 = vmul.f32 %v418, %v418
      %v675 = vmul.f32 %v419, %v419
      %v676 = vmul.f32 %v420, %v420
      %v677 = vmul.f32 %v421, %v421
      %v678 = vmul.f32 %v422, %v422
      %v679 = vmul.f32 %v423, %v423
      %v680 = vmul.f32 %v424, %v424
      %v681 = vmul.f32 %v425, %v425
      %vm682 = vcmask 293888
      %v683 = vsel %vm682, %v554, 0.0
      %684 = vadd.xlane.f32.xlu0 %v683
      %v685 = vpop.xlane.xlu0 %684
      %v686 = vsel %vm682, %v555, 0.0
      %687 = vadd.xlane.f32.xlu0 %v686
      %v688 = vpop.xlane.xlu0 %687
      %v689 = vsel %vm682, %v556, 0.0
      %690 = vadd.xlane.f32.xlu0 %v689
      %v691 = vpop.xlane.xlu0 %690
      %v692 = vsel %vm682, %v557, 0.0
      %693 = vadd.xlane.f32.xlu0 %v692
      %v694 = vpop.xlane.xlu0 %693
      %v695 = vsel %vm682, %v558, 0.0
      %696 = vadd.xlane.f32.xlu0 %v695
      %v697 = vpop.xlane.xlu0 %696
      %v698 = vsel %vm682, %v559, 0.0
      %699 = vadd.xlane.f32.xlu0 %v698
      %v700 = vpop.xlane.xlu0 %699
      %v701 = vsel %vm682, %v560, 0.0
      %702 = vadd.xlane.f32.xlu0 %v701
      %v703 = vpop.xlane.xlu0 %702
      %v704 = vsel %vm682, %v561, 0.0
      %705 = vadd.xlane.f32.xlu0 %v704
      %v706 = vpop.xlane.xlu0 %705
      %v707 = vsel %vm682, %v562, 0.0
      %708 = vadd.xlane.f32.xlu0 %v707
      %v709 = vpop.xlane.xlu0 %708
      %v710 = vsel %vm682, %v563, 0.0
      %711 = vadd.xlane.f32.xlu0 %v710
      %v712 = vpop.xlane.xlu0 %711
      %v713 = vsel %vm682, %v564, 0.0
      %714 = vadd.xlane.f32.xlu0 %v713
      %v715 = vpop.xlane.xlu0 %714
      %v716 = vsel %vm682, %v565, 0.0
      %717 = vadd.xlane.f32.xlu0 %v716
      %v718 = vpop.xlane.xlu0 %717
      %v719 = vsel %vm682, %v566, 0.0
      %720 = vadd.xlane.f32.xlu0 %v719
      %v721 = vpop.xlane.xlu0 %720
      %v722 = vsel %vm682, %v567, 0.0
      %723 = vadd.xlane.f32.xlu0 %v722
      %v724 = vpop.xlane.xlu0 %723
      %v725 = vsel %vm682, %v568, 0.0
      %726 = vadd.xlane.f32.xlu0 %v725
      %v727 = vpop.xlane.xlu0 %726
      %v728 = vsel %vm682, %v569, 0.0
      %729 = vadd.xlane.f32.xlu0 %v728
      %v730 = vpop.xlane.xlu0 %729
      %v731 = vsel %vm682, %v570, 0.0
      %732 = vadd.xlane.f32.xlu0 %v731
      %v733 = vpop.xlane.xlu0 %732
      %v734 = vsel %vm682, %v571, 0.0
      %735 = vadd.xlane.f32.xlu0 %v734
      %v736 = vpop.xlane.xlu0 %735
      %v737 = vsel %vm682, %v572, 0.0
      %738 = vadd.xlane.f32.xlu0 %v737
      %v739 = vpop.xlane.xlu0 %738
      %v740 = vsel %vm682, %v573, 0.0
      %741 = vadd.xlane.f32.xlu0 %v740
      %v742 = vpop.xlane.xlu0 %741
      %v743 = vsel %vm682, %v574, 0.0
      %744 = vadd.xlane.f32.xlu0 %v743
      %v745 = vpop.xlane.xlu0 %744
      %v746 = vsel %vm682, %v575, 0.0
      %747 = vadd.xlane.f32.xlu0 %v746
      %v748 = vpop.xlane.xlu0 %747
      %v749 = vsel %vm682, %v576, 0.0
      %750 = vadd.xlane.f32.xlu0 %v749
      %v751 = vpop.xlane.xlu0 %750
      %v752 = vsel %vm682, %v577, 0.0
      %753 = vadd.xlane.f32.xlu0 %v752
      %v754 = vpop.xlane.xlu0 %753
      %v755 = vsel %vm682, %v578, 0.0
      %756 = vadd.xlane.f32.xlu0 %v755
      %v757 = vpop.xlane.xlu0 %756
      %v758 = vsel %vm682, %v579, 0.0
      %759 = vadd.xlane.f32.xlu0 %v758
      %v760 = vpop.xlane.xlu0 %759
      %v761 = vsel %vm682, %v580, 0.0
      %762 = vadd.xlane.f32.xlu0 %v761
      %v763 = vpop.xlane.xlu0 %762
      %v764 = vsel %vm682, %v581, 0.0
      %765 = vadd.xlane.f32.xlu0 %v764
      %v766 = vpop.xlane.xlu0 %765
      %v767 = vsel %vm682, %v582, 0.0
      %768 = vadd.xlane.f32.xlu0 %v767
      %v769 = vpop.xlane.xlu0 %768
      %v770 = vsel %vm682, %v583, 0.0
      %771 = vadd.xlane.f32.xlu0 %v770
      %v772 = vpop.xlane.xlu0 %771
      %v773 = vsel %vm682, %v584, 0.0
      %774 = vadd.xlane.f32.xlu0 %v773
      %v775 = vpop.xlane.xlu0 %774
      %v776 = vsel %vm682, %v585, 0.0
      %777 = vadd.xlane.f32.xlu0 %v776
      %v778 = vpop.xlane.xlu0 %777
      %v779 = vsel %vm682, %v586, 0.0
      %780 = vadd.xlane.f32.xlu0 %v779
      %v781 = vpop.xlane.xlu0 %780
      %v782 = vsel %vm682, %v587, 0.0
      %783 = vadd.xlane.f32.xlu0 %v782
      %v784 = vpop.xlane.xlu0 %783
      %v785 = vsel %vm682, %v588, 0.0
      %786 = vadd.xlane.f32.xlu0 %v785
      %v787 = vpop.xlane.xlu0 %786
      %v788 = vsel %vm682, %v589, 0.0
      %789 = vadd.xlane.f32.xlu0 %v788
      %v790 = vpop.xlane.xlu0 %789
      %v791 = vsel %vm682, %v590, 0.0
      %792 = vadd.xlane.f32.xlu0 %v791
      %v793 = vpop.xlane.xlu0 %792
      %v794 = vsel %vm682, %v591, 0.0
      %795 = vadd.xlane.f32.xlu0 %v794
      %v796 = vpop.xlane.xlu0 %795
      %v797 = vsel %vm682, %v592, 0.0
      %798 = vadd.xlane.f32.xlu0 %v797
      %v799 = vpop.xlane.xlu0 %798
      %v800 = vsel %vm682, %v593, 0.0
      %801 = vadd.xlane.f32.xlu0 %v800
      %v802 = vpop.xlane.xlu0 %801
      %v803 = vsel %vm682, %v594, 0.0
      %804 = vadd.xlane.f32.xlu0 %v803
      %v805 = vpop.xlane.xlu0 %804
      %v806 = vsel %vm682, %v595, 0.0
      %807 = vadd.xlane.f32.xlu0 %v806
      %v808 = vpop.xlane.xlu0 %807
      %v809 = vsel %vm682, %v596, 0.0
      %810 = vadd.xlane.f32.xlu0 %v809
      %v811 = vpop.xlane.xlu0 %810
      %v812 = vsel %vm682, %v597, 0.0
      %813 = vadd.xlane.f32.xlu0 %v812
      %v814 = vpop.xlane.xlu0 %813
      %v815 = vsel %vm682, %v598, 0.0
      %816 = vadd.xlane.f32.xlu0 %v815
      %v817 = vpop.xlane.xlu0 %816
      %v818 = vsel %vm682, %v599, 0.0
      %819 = vadd.xlane.f32.xlu0 %v818
      %v820 = vpop.xlane.xlu0 %819
      %v821 = vsel %vm682, %v600, 0.0
      %822 = vadd.xlane.f32.xlu0 %v821
      %v823 = vpop.xlane.xlu0 %822
      %v824 = vsel %vm682, %v601, 0.0
      %825 = vadd.xlane.f32.xlu0 %v824
      %v826 = vpop.xlane.xlu0 %825
      %v827 = vsel %vm682, %v602, 0.0
      %828 = vadd.xlane.f32.xlu0 %v827
      %v829 = vpop.xlane.xlu0 %828
      %v830 = vsel %vm682, %v603, 0.0
      %831 = vadd.xlane.f32.xlu0 %v830
      %v832 = vpop.xlane.xlu0 %831
      %v833 = vsel %vm682, %v604, 0.0
      %834 = vadd.xlane.f32.xlu0 %v833
      %v835 = vpop.xlane.xlu0 %834
      %v836 = vsel %vm682, %v605, 0.0
      %837 = vadd.xlane.f32.xlu0 %v836
      %v838 = vpop.xlane.xlu0 %837
      %v839 = vsel %vm682, %v606, 0.0
      %840 = vadd.xlane.f32.xlu0 %v839
      %v841 = vpop.xlane.xlu0 %840
      %v842 = vsel %vm682, %v607, 0.0
      %843 = vadd.xlane.f32.xlu0 %v842
      %v844 = vpop.xlane.xlu0 %843
      %v845 = vsel %vm682, %v608, 0.0
      %846 = vadd.xlane.f32.xlu0 %v845
      %v847 = vpop.xlane.xlu0 %846
      %v848 = vsel %vm682, %v609, 0.0
      %849 = vadd.xlane.f32.xlu0 %v848
      %v850 = vpop.xlane.xlu0 %849
      %v851 = vsel %vm682, %v610, 0.0
      %852 = vadd.xlane.f32.xlu0 %v851
      %v853 = vpop.xlane.xlu0 %852
      %v854 = vsel %vm682, %v611, 0.0
      %855 = vadd.xlane.f32.xlu0 %v854
      %v856 = vpop.xlane.xlu0 %855
      %v857 = vsel %vm682, %v612, 0.0
      %858 = vadd.xlane.f32.xlu0 %v857
      %v859 = vpop.xlane.xlu0 %858
      %v860 = vsel %vm682, %v613, 0.0
      %861 = vadd.xlane.f32.xlu0 %v860
      %v862 = vpop.xlane.xlu0 %861
      %v863 = vsel %vm682, %v614, 0.0
      %864 = vadd.xlane.f32.xlu0 %v863
      %v865 = vpop.xlane.xlu0 %864
      %v866 = vsel %vm682, %v615, 0.0
      %867 = vadd.xlane.f32.xlu0 %v866
      %v868 = vpop.xlane.xlu0 %867
      %v869 = vsel %vm682, %v616, 0.0
      %870 = vadd.xlane.f32.xlu0 %v869
      %v871 = vpop.xlane.xlu0 %870
      %v872 = vsel %vm682, %v617, 0.0
      %873 = vadd.xlane.f32.xlu0 %v872
      %v874 = vpop.xlane.xlu0 %873
      %v875 = vsel %vm682, %v618, 0.0
      %876 = vadd.xlane.f32.xlu0 %v875
      %v877 = vpop.xlane.xlu0 %876
      %v878 = vsel %vm682, %v619, 0.0
      %879 = vadd.xlane.f32.xlu0 %v878
      %v880 = vpop.xlane.xlu0 %879
      %v881 = vsel %vm682, %v620, 0.0
      %882 = vadd.xlane.f32.xlu0 %v881
      %v883 = vpop.xlane.xlu0 %882
      %v884 = vsel %vm682, %v621, 0.0
      %885 = vadd.xlane.f32.xlu0 %v884
      %v886 = vpop.xlane.xlu0 %885
      %v887 = vsel %vm682, %v622, 0.0
      %888 = vadd.xlane.f32.xlu0 %v887
      %v889 = vpop.xlane.xlu0 %888
      %v890 = vsel %vm682, %v623, 0.0
      %891 = vadd.xlane.f32.xlu0 %v890
      %v892 = vpop.xlane.xlu0 %891
      %v893 = vsel %vm682, %v624, 0.0
      %894 = vadd.xlane.f32.xlu0 %v893
      %v895 = vpop.xlane.xlu0 %894
      %v896 = vsel %vm682, %v625, 0.0
      %897 = vadd.xlane.f32.xlu0 %v896
      %v898 = vpop.xlane.xlu0 %897
      %v899 = vsel %vm682, %v626, 0.0
      %900 = vadd.xlane.f32.xlu0 %v899
      %v901 = vpop.xlane.xlu0 %900
      %v902 = vsel %vm682, %v627, 0.0
      %903 = vadd.xlane.f32.xlu0 %v902
      %v904 = vpop.xlane.xlu0 %903
      %v905 = vsel %vm682, %v628, 0.0
      %906 = vadd.xlane.f32.xlu0 %v905
      %v907 = vpop.xlane.xlu0 %906
      %v908 = vsel %vm682, %v629, 0.0
      %909 = vadd.xlane.f32.xlu0 %v908
      %v910 = vpop.xlane.xlu0 %909
      %v911 = vsel %vm682, %v630, 0.0
      %912 = vadd.xlane.f32.xlu0 %v911
      %v913 = vpop.xlane.xlu0 %912
      %v914 = vsel %vm682, %v631, 0.0
      %915 = vadd.xlane.f32.xlu0 %v914
      %v916 = vpop.xlane.xlu0 %915
      %v917 = vsel %vm682, %v632, 0.0
      %918 = vadd.xlane.f32.xlu0 %v917
      %v919 = vpop.xlane.xlu0 %918
      %v920 = vsel %vm682, %v633, 0.0
      %921 = vadd.xlane.f32.xlu0 %v920
      %v922 = vpop.xlane.xlu0 %921
      %v923 = vsel %vm682, %v634, 0.0
      %924 = vadd.xlane.f32.xlu0 %v923
      %v925 = vpop.xlane.xlu0 %924
      %v926 = vsel %vm682, %v635, 0.0
      %927 = vadd.xlane.f32.xlu0 %v926
      %v928 = vpop.xlane.xlu0 %927
      %v929 = vsel %vm682, %v636, 0.0
      %930 = vadd.xlane.f32.xlu0 %v929
      %v931 = vpop.xlane.xlu0 %930
      %v932 = vsel %vm682, %v637, 0.0
      %933 = vadd.xlane.f32.xlu0 %v932
      %v934 = vpop.xlane.xlu0 %933
      %v935 = vsel %vm682, %v638, 0.0
      %936 = vadd.xlane.f32.xlu0 %v935
      %v937 = vpop.xlane.xlu0 %936
      %v938 = vsel %vm682, %v639, 0.0
      %939 = vadd.xlane.f32.xlu0 %v938
      %v940 = vpop.xlane.xlu0 %939
      %v941 = vsel %vm682, %v640, 0.0
      %942 = vadd.xlane.f32.xlu0 %v941
      %v943 = vpop.xlane.xlu0 %942
      %v944 = vsel %vm682, %v641, 0.0
      %945 = vadd.xlane.f32.xlu0 %v944
      %v946 = vpop.xlane.xlu0 %945
      %v947 = vsel %vm682, %v642, 0.0
      %948 = vadd.xlane.f32.xlu0 %v947
      %v949 = vpop.xlane.xlu0 %948
      %v950 = vsel %vm682, %v643, 0.0
      %951 = vadd.xlane.f32.xlu0 %v950
      %v952 = vpop.xlane.xlu0 %951
      %v953 = vsel %vm682, %v644, 0.0
      %954 = vadd.xlane.f32.xlu0 %v953
      %v955 = vpop.xlane.xlu0 %954
      %v956 = vsel %vm682, %v645, 0.0
      %957 = vadd.xlane.f32.xlu0 %v956
      %v958 = vpop.xlane.xlu0 %957
      %v959 = vsel %vm682, %v646, 0.0
      %960 = vadd.xlane.f32.xlu0 %v959
      %v961 = vpop.xlane.xlu0 %960
      %v962 = vsel %vm682, %v647, 0.0
      %963 = vadd.xlane.f32.xlu0 %v962
      %v964 = vpop.xlane.xlu0 %963
      %v965 = vsel %vm682, %v648, 0.0
      %966 = vadd.xlane.f32.xlu0 %v965
      %v967 = vpop.xlane.xlu0 %966
      %v968 = vsel %vm682, %v649, 0.0
      %969 = vadd.xlane.f32.xlu0 %v968
      %v970 = vpop.xlane.xlu0 %969
      %v971 = vsel %vm682, %v650, 0.0
      %972 = vadd.xlane.f32.xlu0 %v971
      %v973 = vpop.xlane.xlu0 %972
      %v974 = vsel %vm682, %v651, 0.0
      %975 = vadd.xlane.f32.xlu0 %v974
      %v976 = vpop.xlane.xlu0 %975
      %v977 = vsel %vm682, %v652, 0.0
      %978 = vadd.xlane.f32.xlu0 %v977
      %v979 = vpop.xlane.xlu0 %978
      %v980 = vsel %vm682, %v653, 0.0
      %981 = vadd.xlane.f32.xlu0 %v980
      %v982 = vpop.xlane.xlu0 %981
      %v983 = vsel %vm682, %v654, 0.0
      %984 = vadd.xlane.f32.xlu0 %v983
      %v985 = vpop.xlane.xlu0 %984
      %v986 = vsel %vm682, %v655, 0.0
      %987 = vadd.xlane.f32.xlu0 %v986
      %v988 = vpop.xlane.xlu0 %987
      %v989 = vsel %vm682, %v656, 0.0
      %990 = vadd.xlane.f32.xlu0 %v989
      %v991 = vpop.xlane.xlu0 %990
      %v992 = vsel %vm682, %v657, 0.0
      %993 = vadd.xlane.f32.xlu0 %v992
      %v994 = vpop.xlane.xlu0 %993
      %v995 = vsel %vm682, %v658, 0.0
      %996 = vadd.xlane.f32.xlu0 %v995
      %v997 = vpop.xlane.xlu0 %996
      %v998 = vsel %vm682, %v659, 0.0
      %999 = vadd.xlane.f32.xlu0 %v998
      %v1000 = vpop.xlane.xlu0 %999
      %v1001 = vsel %vm682, %v660, 0.0
      %1002 = vadd.xlane.f32.xlu0 %v1001
      %v1003 = vpop.xlane.xlu0 %1002
      %v1004 = vsel %vm682, %v661, 0.0
      %1005 = vadd.xlane.f32.xlu0 %v1004
      %v1006 = vpop.xlane.xlu0 %1005
      %v1007 = vsel %vm682, %v662, 0.0
      %1008 = vadd.xlane.f32.xlu0 %v1007
      %v1009 = vpop.xlane.xlu0 %1008
      %v1010 = vsel %vm682, %v663, 0.0
      %1011 = vadd.xlane.f32.xlu0 %v1010
      %v1012 = vpop.xlane.xlu0 %1011
      %v1013 = vsel %vm682, %v664, 0.0
      %1014 = vadd.xlane.f32.xlu0 %v1013
      %v1015 = vpop.xlane.xlu0 %1014
      %v1016 = vsel %vm682, %v665, 0.0
      %1017 = vadd.xlane.f32.xlu0 %v1016
      %v1018 = vpop.xlane.xlu0 %1017
      %v1019 = vsel %vm682, %v666, 0.0
      %1020 = vadd.xlane.f32.xlu0 %v1019
      %v1021 = vpop.xlane.xlu0 %1020
      %v1022 = vsel %vm682, %v667, 0.0
      %1023 = vadd.xlane.f32.xlu0 %v1022
      %v1024 = vpop.xlane.xlu0 %1023
      %v1025 = vsel %vm682, %v668, 0.0
      %1026 = vadd.xlane.f32.xlu0 %v1025
      %v1027 = vpop.xlane.xlu0 %1026
      %v1028 = vsel %vm682, %v669, 0.0
      %1029 = vadd.xlane.f32.xlu0 %v1028
      %v1030 = vpop.xlane.xlu0 %1029
      %v1031 = vsel %vm682, %v670, 0.0
      %1032 = vadd.xlane.f32.xlu0 %v1031
      %v1033 = vpop.xlane.xlu0 %1032
      %v1034 = vsel %vm682, %v671, 0.0
      %1035 = vadd.xlane.f32.xlu0 %v1034
      %v1036 = vpop.xlane.xlu0 %1035
      %v1037 = vsel %vm682, %v672, 0.0
      %1038 = vadd.xlane.f32.xlu0 %v1037
      %v1039 = vpop.xlane.xlu0 %1038
      %v1040 = vsel %vm682, %v673, 0.0
      %1041 = vadd.xlane.f32.xlu0 %v1040
      %v1042 = vpop.xlane.xlu0 %1041
      %v1043 = vsel %vm682, %v674, 0.0
      %1044 = vadd.xlane.f32.xlu0 %v1043
      %v1045 = vpop.xlane.xlu0 %1044
      %v1046 = vsel %vm682, %v675, 0.0
      %1047 = vadd.xlane.f32.xlu0 %v1046
      %v1048 = vpop.xlane.xlu0 %1047
      %v1049 = vsel %vm682, %v676, 0.0
      %1050 = vadd.xlane.f32.xlu0 %v1049
      %v1051 = vpop.xlane.xlu0 %1050
      %v1052 = vsel %vm682, %v677, 0.0
      %1053 = vadd.xlane.f32.xlu0 %v1052
      %v1054 = vpop.xlane.xlu0 %1053
      %v1055 = vsel %vm682, %v678, 0.0
      %1056 = vadd.xlane.f32.xlu0 %v1055
      %v1057 = vpop.xlane.xlu0 %1056
      %v1058 = vsel %vm682, %v679, 0.0
      %1059 = vadd.xlane.f32.xlu0 %v1058
      %v1060 = vpop.xlane.xlu0 %1059
      %v1061 = vsel %vm682, %v680, 0.0
      %1062 = vadd.xlane.f32.xlu0 %v1061
      %v1063 = vpop.xlane.xlu0 %1062
      %v1064 = vsel %vm682, %v681, 0.0
      %1065 = vadd.xlane.f32.xlu0 %v1064
      %v1066 = vpop.xlane.xlu0 %1065
      %v1067 = vmax.f32 %v685, 1e-08
      %v1068 = vmax.f32 %v688, 1e-08
      %v1069 = vmax.f32 %v691, 1e-08
      %v1070 = vmax.f32 %v694, 1e-08
      %v1071 = vmax.f32 %v697, 1e-08
      %v1072 = vmax.f32 %v700, 1e-08
      %v1073 = vmax.f32 %v703, 1e-08
      %v1074 = vmax.f32 %v706, 1e-08
      %v1075 = vmax.f32 %v709, 1e-08
      %v1076 = vmax.f32 %v712, 1e-08
      %v1077 = vmax.f32 %v715, 1e-08
      %v1078 = vmax.f32 %v718, 1e-08
      %v1079 = vmax.f32 %v721, 1e-08
      %v1080 = vmax.f32 %v724, 1e-08
      %v1081 = vmax.f32 %v727, 1e-08
      %v1082 = vmax.f32 %v730, 1e-08
      %v1083 = vmax.f32 %v733, 1e-08
      %v1084 = vmax.f32 %v736, 1e-08
      %v1085 = vmax.f32 %v739, 1e-08
      %v1086 = vmax.f32 %v742, 1e-08
      %v1087 = vmax.f32 %v745, 1e-08
      %v1088 = vmax.f32 %v748, 1e-08
      %v1089 = vmax.f32 %v751, 1e-08
      %v1090 = vmax.f32 %v754, 1e-08
      %v1091 = vmax.f32 %v757, 1e-08
      %v1092 = vmax.f32 %v760, 1e-08
      %v1093 = vmax.f32 %v763, 1e-08
      %v1094 = vmax.f32 %v766, 1e-08
      %v1095 = vmax.f32 %v769, 1e-08
      %v1096 = vmax.f32 %v772, 1e-08
      %v1097 = vmax.f32 %v775, 1e-08
      %v1098 = vmax.f32 %v778, 1e-08
      %v1099 = vmax.f32 %v781, 1e-08
      %v1100 = vmax.f32 %v784, 1e-08
      %v1101 = vmax.f32 %v787, 1e-08
      %v1102 = vmax.f32 %v790, 1e-08
      %v1103 = vmax.f32 %v793, 1e-08
      %v1104 = vmax.f32 %v796, 1e-08
      %v1105 = vmax.f32 %v799, 1e-08
      %v1106 = vmax.f32 %v802, 1e-08
      %v1107 = vmax.f32 %v805, 1e-08
      %v1108 = vmax.f32 %v808, 1e-08
      %v1109 = vmax.f32 %v811, 1e-08
      %v1110 = vmax.f32 %v814, 1e-08
      %v1111 = vmax.f32 %v817, 1e-08
      %v1112 = vmax.f32 %v820, 1e-08
      %v1113 = vmax.f32 %v823, 1e-08
      %v1114 = vmax.f32 %v826, 1e-08
      %v1115 = vmax.f32 %v829, 1e-08
      %v1116 = vmax.f32 %v832, 1e-08
      %v1117 = vmax.f32 %v835, 1e-08
      %v1118 = vmax.f32 %v838, 1e-08
      %v1119 = vmax.f32 %v841, 1e-08
      %v1120 = vmax.f32 %v844, 1e-08
      %v1121 = vmax.f32 %v847, 1e-08
      %v1122 = vmax.f32 %v850, 1e-08
      %v1123 = vmax.f32 %v853, 1e-08
      %v1124 = vmax.f32 %v856, 1e-08
      %v1125 = vmax.f32 %v859, 1e-08
      %v1126 = vmax.f32 %v862, 1e-08
      %v1127 = vmax.f32 %v865, 1e-08
      %v1128 = vmax.f32 %v868, 1e-08
      %v1129 = vmax.f32 %v871, 1e-08
      %v1130 = vmax.f32 %v874, 1e-08
      %v1131 = vmax.f32 %v877, 1e-08
      %v1132 = vmax.f32 %v880, 1e-08
      %v1133 = vmax.f32 %v883, 1e-08
      %v1134 = vmax.f32 %v886, 1e-08
      %v1135 = vmax.f32 %v889, 1e-08
      %v1136 = vmax.f32 %v892, 1e-08
      %v1137 = vmax.f32 %v895, 1e-08
      %v1138 = vmax.f32 %v898, 1e-08
      %v1139 = vmax.f32 %v901, 1e-08
      %v1140 = vmax.f32 %v904, 1e-08
      %v1141 = vmax.f32 %v907, 1e-08
      %v1142 = vmax.f32 %v910, 1e-08
      %v1143 = vmax.f32 %v913, 1e-08
      %v1144 = vmax.f32 %v916, 1e-08
      %v1145 = vmax.f32 %v919, 1e-08
      %v1146 = vmax.f32 %v922, 1e-08
      %v1147 = vmax.f32 %v925, 1e-08
      %v1148 = vmax.f32 %v928, 1e-08
      %v1149 = vmax.f32 %v931, 1e-08
      %v1150 = vmax.f32 %v934, 1e-08
      %v1151 = vmax.f32 %v937, 1e-08
      %v1152 = vmax.f32 %v940, 1e-08
      %v1153 = vmax.f32 %v943, 1e-08
      %v1154 = vmax.f32 %v946, 1e-08
      %v1155 = vmax.f32 %v949, 1e-08
      %v1156 = vmax.f32 %v952, 1e-08
      %v1157 = vmax.f32 %v955, 1e-08
      %v1158 = vmax.f32 %v958, 1e-08
      %v1159 = vmax.f32 %v961, 1e-08
      %v1160 = vmax.f32 %v964, 1e-08
      %v1161 = vmax.f32 %v967, 1e-08
      %v1162 = vmax.f32 %v970, 1e-08
      %v1163 = vmax.f32 %v973, 1e-08
      %v1164 = vmax.f32 %v976, 1e-08
      %v1165 = vmax.f32 %v979, 1e-08
      %v1166 = vmax.f32 %v982, 1e-08
      %v1167 = vmax.f32 %v985, 1e-08
      %v1168 = vmax.f32 %v988, 1e-08
      %v1169 = vmax.f32 %v991, 1e-08
      %v1170 = vmax.f32 %v994, 1e-08
      %v1171 = vmax.f32 %v997, 1e-08
      %v1172 = vmax.f32 %v1000, 1e-08
      %v1173 = vmax.f32 %v1003, 1e-08
      %v1174 = vmax.f32 %v1006, 1e-08
      %v1175 = vmax.f32 %v1009, 1e-08
      %v1176 = vmax.f32 %v1012, 1e-08
      %v1177 = vmax.f32 %v1015, 1e-08
      %v1178 = vmax.f32 %v1018, 1e-08
      %v1179 = vmax.f32 %v1021, 1e-08
      %v1180 = vmax.f32 %v1024, 1e-08
      %v1181 = vmax.f32 %v1027, 1e-08
      %v1182 = vmax.f32 %v1030, 1e-08
      %v1183 = vmax.f32 %v1033, 1e-08
      %v1184 = vmax.f32 %v1036, 1e-08
      %v1185 = vmax.f32 %v1039, 1e-08
      %v1186 = vmax.f32 %v1042, 1e-08
      %v1187 = vmax.f32 %v1045, 1e-08
      %v1188 = vmax.f32 %v1048, 1e-08
      %v1189 = vmax.f32 %v1051, 1e-08
      %v1190 = vmax.f32 %v1054, 1e-08
      %v1191 = vmax.f32 %v1057, 1e-08
      %v1192 = vmax.f32 %v1060, 1e-08
      %v1193 = vmax.f32 %v1063, 1e-08
      %v1194 = vmax.f32 %v1066, 1e-08
      %v1195 = vrsqrt.pop %v1067
      %v1196 = vrsqrt.pop %v1068
      %v1197 = vrsqrt.pop %v1069
      %v1198 = vrsqrt.pop %v1070
      %v1199 = vrsqrt.pop %v1071
      %v1200 = vrsqrt.pop %v1072
      %v1201 = vrsqrt.pop %v1073
      %v1202 = vrsqrt.pop %v1074
      %v1203 = vrsqrt.pop %v1075
      %v1204 = vrsqrt.pop %v1076
      %v1205 = vrsqrt.pop %v1077
      %v1206 = vrsqrt.pop %v1078
      %v1207 = vrsqrt.pop %v1079
      %v1208 = vrsqrt.pop %v1080
      %v1209 = vrsqrt.pop %v1081
      %v1210 = vrsqrt.pop %v1082
      %v1211 = vrsqrt.pop %v1083
      %v1212 = vrsqrt.pop %v1084
      %v1213 = vrsqrt.pop %v1085
      %v1214 = vrsqrt.pop %v1086
      %v1215 = vrsqrt.pop %v1087
      %v1216 = vrsqrt.pop %v1088
      %v1217 = vrsqrt.pop %v1089
      %v1218 = vrsqrt.pop %v1090
      %v1219 = vrsqrt.pop %v1091
      %v1220 = vrsqrt.pop %v1092
      %v1221 = vrsqrt.pop %v1093
      %v1222 = vrsqrt.pop %v1094
      %v1223 = vrsqrt.pop %v1095
      %v1224 = vrsqrt.pop %v1096
      %v1225 = vrsqrt.pop %v1097
      %v1226 = vrsqrt.pop %v1098
      %v1227 = vrsqrt.pop %v1099
      %v1228 = vrsqrt.pop %v1100
      %v1229 = vrsqrt.pop %v1101
      %v1230 = vrsqrt.pop %v1102
      %v1231 = vrsqrt.pop %v1103
      %v1232 = vrsqrt.pop %v1104
      %v1233 = vrsqrt.pop %v1105
      %v1234 = vrsqrt.pop %v1106
      %v1235 = vrsqrt.pop %v1107
      %v1236 = vrsqrt.pop %v1108
      %v1237 = vrsqrt.pop %v1109
      %v1238 = vrsqrt.pop %v1110
      %v1239 = vrsqrt.pop %v1111
      %v1240 = vrsqrt.pop %v1112
      %v1241 = vrsqrt.pop %v1113
      %v1242 = vrsqrt.pop %v1114
      %v1243 = vrsqrt.pop %v1115
      %v1244 = vrsqrt.pop %v1116
      %v1245 = vrsqrt.pop %v1117
      %v1246 = vrsqrt.pop %v1118
      %v1247 = vrsqrt.pop %v1119
      %v1248 = vrsqrt.pop %v1120
      %v1249 = vrsqrt.pop %v1121
      %v1250 = vrsqrt.pop %v1122
      %v1251 = vrsqrt.pop %v1123
      %v1252 = vrsqrt.pop %v1124
      %v1253 = vrsqrt.pop %v1125
      %v1254 = vrsqrt.pop %v1126
      %v1255 = vrsqrt.pop %v1127
      %v1256 = vrsqrt.pop %v1128
      %v1257 = vrsqrt.pop %v1129
      %v1258 = vrsqrt.pop %v1130
      %v1259 = vrsqrt.pop %v1131
      %v1260 = vrsqrt.pop %v1132
      %v1261 = vrsqrt.pop %v1133
      %v1262 = vrsqrt.pop %v1134
      %v1263 = vrsqrt.pop %v1135
      %v1264 = vrsqrt.pop %v1136
      %v1265 = vrsqrt.pop %v1137
      %v1266 = vrsqrt.pop %v1138
      %v1267 = vrsqrt.pop %v1139
      %v1268 = vrsqrt.pop %v1140
      %v1269 = vrsqrt.pop %v1141
      %v1270 = vrsqrt.pop %v1142
      %v1271 = vrsqrt.pop %v1143
      %v1272 = vrsqrt.pop %v1144
      %v1273 = vrsqrt.pop %v1145
      %v1274 = vrsqrt.pop %v1146
      %v1275 = vrsqrt.pop %v1147
      %v1276 = vrsqrt.pop %v1148
      %v1277 = vrsqrt.pop %v1149
      %v1278 = vrsqrt.pop %v1150
      %v1279 = vrsqrt.pop %v1151
      %v1280 = vrsqrt.pop %v1152
      %v1281 = vrsqrt.pop %v1153
      %v1282 = vrsqrt.pop %v1154
      %v1283 = vrsqrt.pop %v1155
      %v1284 = vrsqrt.pop %v1156
      %v1285 = vrsqrt.pop %v1157
      %v1286 = vrsqrt.pop %v1158
      %v1287 = vrsqrt.pop %v1159
      %v1288 = vrsqrt.pop %v1160
      %v1289 = vrsqrt.pop %v1161
      %v1290 = vrsqrt.pop %v1162
      %v1291 = vrsqrt.pop %v1163
      %v1292 = vrsqrt.pop %v1164
      %v1293 = vrsqrt.pop %v1165
      %v1294 = vrsqrt.pop %v1166
      %v1295 = vrsqrt.pop %v1167
      %v1296 = vrsqrt.pop %v1168
      %v1297 = vrsqrt.pop %v1169
      %v1298 = vrsqrt.pop %v1170
      %v1299 = vrsqrt.pop %v1171
      %v1300 = vrsqrt.pop %v1172
      %v1301 = vrsqrt.pop %v1173
      %v1302 = vrsqrt.pop %v1174
      %v1303 = vrsqrt.pop %v1175
      %v1304 = vrsqrt.pop %v1176
      %v1305 = vrsqrt.pop %v1177
      %v1306 = vrsqrt.pop %v1178
      %v1307 = vrsqrt.pop %v1179
      %v1308 = vrsqrt.pop %v1180
      %v1309 = vrsqrt.pop %v1181
      %v1310 = vrsqrt.pop %v1182
      %v1311 = vrsqrt.pop %v1183
      %v1312 = vrsqrt.pop %v1184
      %v1313 = vrsqrt.pop %v1185
      %v1314 = vrsqrt.pop %v1186
      %v1315 = vrsqrt.pop %v1187
      %v1316 = vrsqrt.pop %v1188
      %v1317 = vrsqrt.pop %v1189
      %v1318 = vrsqrt.pop %v1190
      %v1319 = vrsqrt.pop %v1191
      %v1320 = vrsqrt.pop %v1192
      %v1321 = vrsqrt.pop %v1193
      %v1322 = vrsqrt.pop %v1194
      %v1323 = vmul.f32 %v426, 10.0
      %v1324 = vmul.f32 %v427, 10.0
      %v1325 = vmul.f32 %v428, 10.0
      %v1326 = vmul.f32 %v429, 10.0
      %v1327 = vmul.f32 %v430, 10.0
      %v1328 = vmul.f32 %v431, 10.0
      %v1329 = vmul.f32 %v432, 10.0
      %v1330 = vmul.f32 %v433, 10.0
      %v1331 = vmul.f32 %v434, 10.0
      %v1332 = vmul.f32 %v435, 10.0
      %v1333 = vmul.f32 %v436, 10.0
      %v1334 = vmul.f32 %v437, 10.0
      %v1335 = vmul.f32 %v438, 10.0
      %v1336 = vmul.f32 %v439, 10.0
      %v1337 = vmul.f32 %v440, 10.0
      %v1338 = vmul.f32 %v441, 10.0
      %v1339 = vmul.f32 %v442, 10.0
      %v1340 = vmul.f32 %v443, 10.0
      %v1341 = vmul.f32 %v444, 10.0
      %v1342 = vmul.f32 %v445, 10.0
      %v1343 = vmul.f32 %v446, 10.0
      %v1344 = vmul.f32 %v447, 10.0
      %v1345 = vmul.f32 %v448, 10.0
      %v1346 = vmul.f32 %v449, 10.0
      %v1347 = vmul.f32 %v450, 10.0
      %v1348 = vmul.f32 %v451, 10.0
      %v1349 = vmul.f32 %v452, 10.0
      %v1350 = vmul.f32 %v453, 10.0
      %v1351 = vmul.f32 %v454, 10.0
      %v1352 = vmul.f32 %v455, 10.0
      %v1353 = vmul.f32 %v456, 10.0
      %v1354 = vmul.f32 %v457, 10.0
      %v1355 = vmul.f32 %v458, 10.0
      %v1356 = vmul.f32 %v459, 10.0
      %v1357 = vmul.f32 %v460, 10.0
      %v1358 = vmul.f32 %v461, 10.0
      %v1359 = vmul.f32 %v462, 10.0
      %v1360 = vmul.f32 %v463, 10.0
      %v1361 = vmul.f32 %v464, 10.0
      %v1362 = vmul.f32 %v465, 10.0
      %v1363 = vmul.f32 %v466, 10.0
      %v1364 = vmul.f32 %v467, 10.0
      %v1365 = vmul.f32 %v468, 10.0
      %v1366 = vmul.f32 %v469, 10.0
      %v1367 = vmul.f32 %v470, 10.0
      %v1368 = vmul.f32 %v471, 10.0
      %v1369 = vmul.f32 %v472, 10.0
      %v1370 = vmul.f32 %v473, 10.0
      %v1371 = vmul.f32 %v474, 10.0
      %v1372 = vmul.f32 %v475, 10.0
      %v1373 = vmul.f32 %v476, 10.0
      %v1374 = vmul.f32 %v477, 10.0
      %v1375 = vmul.f32 %v478, 10.0
      %v1376 = vmul.f32 %v479, 10.0
      %v1377 = vmul.f32 %v480, 10.0
      %v1378 = vmul.f32 %v481, 10.0
      %v1379 = vmul.f32 %v482, 10.0
      %v1380 = vmul.f32 %v483, 10.0
      %v1381 = vmul.f32 %v484, 10.0
      %v1382 = vmul.f32 %v485, 10.0
      %v1383 = vmul.f32 %v486, 10.0
      %v1384 = vmul.f32 %v487, 10.0
      %v1385 = vmul.f32 %v488, 10.0
      %v1386 = vmul.f32 %v489, 10.0
      %v1387 = vmul.f32 %v490, 10.0
      %v1388 = vmul.f32 %v491, 10.0
      %v1389 = vmul.f32 %v492, 10.0
      %v1390 = vmul.f32 %v493, 10.0
      %v1391 = vmul.f32 %v494, 10.0
      %v1392 = vmul.f32 %v495, 10.0
      %v1393 = vmul.f32 %v496, 10.0
      %v1394 = vmul.f32 %v497, 10.0
      %v1395 = vmul.f32 %v498, 10.0
      %v1396 = vmul.f32 %v499, 10.0
      %v1397 = vmul.f32 %v500, 10.0
      %v1398 = vmul.f32 %v501, 10.0
      %v1399 = vmul.f32 %v502, 10.0
      %v1400 = vmul.f32 %v503, 10.0
      %v1401 = vmul.f32 %v504, 10.0
      %v1402 = vmul.f32 %v505, 10.0
      %v1403 = vmul.f32 %v506, 10.0
      %v1404 = vmul.f32 %v507, 10.0
      %v1405 = vmul.f32 %v508, 10.0
      %v1406 = vmul.f32 %v509, 10.0
      %v1407 = vmul.f32 %v510, 10.0
      %v1408 = vmul.f32 %v511, 10.0
      %v1409 = vmul.f32 %v512, 10.0
      %v1410 = vmul.f32 %v513, 10.0
      %v1411 = vmul.f32 %v514, 10.0
      %v1412 = vmul.f32 %v515, 10.0
      %v1413 = vmul.f32 %v516, 10.0
      %v1414 = vmul.f32 %v517, 10.0
      %v1415 = vmul.f32 %v518, 10.0
      %v1416 = vmul.f32 %v519, 10.0
      %v1417 = vmul.f32 %v520, 10.0
      %v1418 = vmul.f32 %v521, 10.0
      %v1419 = vmul.f32 %v522, 10.0
      %v1420 = vmul.f32 %v523, 10.0
      %v1421 = vmul.f32 %v524, 10.0
      %v1422 = vmul.f32 %v525, 10.0
      %v1423 = vmul.f32 %v526, 10.0
      %v1424 = vmul.f32 %v527, 10.0
      %v1425 = vmul.f32 %v528, 10.0
      %v1426 = vmul.f32 %v529, 10.0
      %v1427 = vmul.f32 %v530, 10.0
      %v1428 = vmul.f32 %v531, 10.0
      %v1429 = vmul.f32 %v532, 10.0
      %v1430 = vmul.f32 %v533, 10.0
      %v1431 = vmul.f32 %v534, 10.0
      %v1432 = vmul.f32 %v535, 10.0
      %v1433 = vmul.f32 %v536, 10.0
      %v1434 = vmul.f32 %v537, 10.0
      %v1435 = vmul.f32 %v538, 10.0
      %v1436 = vmul.f32 %v539, 10.0
      %v1437 = vmul.f32 %v540, 10.0
      %v1438 = vmul.f32 %v541, 10.0
      %v1439 = vmul.f32 %v542, 10.0
      %v1440 = vmul.f32 %v543, 10.0
      %v1441 = vmul.f32 %v544, 10.0
      %v1442 = vmul.f32 %v545, 10.0
      %v1443 = vmul.f32 %v546, 10.0
      %v1444 = vmul.f32 %v547, 10.0
      %v1445 = vmul.f32 %v548, 10.0
      %v1446 = vmul.f32 %v549, 10.0
      %v1447 = vmul.f32 %v550, 10.0
      %v1448 = vmul.f32 %v551, 10.0
      %v1449 = vmul.f32 %v552, 10.0
      %v1450 = vmul.f32 %v553, 10.0
      %v1451 = vmul.f32 %v1195, %v1323
      %v1452 = vmul.f32 %v1196, %v1324
      %v1453 = vmul.f32 %v1197, %v1325
      %v1454 = vmul.f32 %v1198, %v1326
      %v1455 = vmul.f32 %v1199, %v1327
      %v1456 = vmul.f32 %v1200, %v1328
      %v1457 = vmul.f32 %v1201, %v1329
      %v1458 = vmul.f32 %v1202, %v1330
      %v1459 = vmul.f32 %v1203, %v1331
      %v1460 = vmul.f32 %v1204, %v1332
      %v1461 = vmul.f32 %v1205, %v1333
      %v1462 = vmul.f32 %v1206, %v1334
      %v1463 = vmul.f32 %v1207, %v1335
      %v1464 = vmul.f32 %v1208, %v1336
      %v1465 = vmul.f32 %v1209, %v1337
      %v1466 = vmul.f32 %v1210, %v1338
      %v1467 = vmul.f32 %v1211, %v1339
      %v1468 = vmul.f32 %v1212, %v1340
      %v1469 = vmul.f32 %v1213, %v1341
      %v1470 = vmul.f32 %v1214, %v1342
      %v1471 = vmul.f32 %v1215, %v1343
      %v1472 = vmul.f32 %v1216, %v1344
      %v1473 = vmul.f32 %v1217, %v1345
      %v1474 = vmul.f32 %v1218, %v1346
      %v1475 = vmul.f32 %v1219, %v1347
      %v1476 = vmul.f32 %v1220, %v1348
      %v1477 = vmul.f32 %v1221, %v1349
      %v1478 = vmul.f32 %v1222, %v1350
      %v1479 = vmul.f32 %v1223, %v1351
      %v1480 = vmul.f32 %v1224, %v1352
      %v1481 = vmul.f32 %v1225, %v1353
      %v1482 = vmul.f32 %v1226, %v1354
      %v1483 = vmul.f32 %v1227, %v1355
      %v1484 = vmul.f32 %v1228, %v1356
      %v1485 = vmul.f32 %v1229, %v1357
      %v1486 = vmul.f32 %v1230, %v1358
      %v1487 = vmul.f32 %v1231, %v1359
      %v1488 = vmul.f32 %v1232, %v1360
      %v1489 = vmul.f32 %v1233, %v1361
      %v1490 = vmul.f32 %v1234, %v1362
      %v1491 = vmul.f32 %v1235, %v1363
      %v1492 = vmul.f32 %v1236, %v1364
      %v1493 = vmul.f32 %v1237, %v1365
      %v1494 = vmul.f32 %v1238, %v1366
      %v1495 = vmul.f32 %v1239, %v1367
      %v1496 = vmul.f32 %v1240, %v1368
      %v1497 = vmul.f32 %v1241, %v1369
      %v1498 = vmul.f32 %v1242, %v1370
      %v1499 = vmul.f32 %v1243, %v1371
      %v1500 = vmul.f32 %v1244, %v1372
      %v1501 = vmul.f32 %v1245, %v1373
      %v1502 = vmul.f32 %v1246, %v1374
      %v1503 = vmul.f32 %v1247, %v1375
      %v1504 = vmul.f32 %v1248, %v1376
      %v1505 = vmul.f32 %v1249, %v1377
      %v1506 = vmul.f32 %v1250, %v1378
      %v1507 = vmul.f32 %v1251, %v1379
      %v1508 = vmul.f32 %v1252, %v1380
      %v1509 = vmul.f32 %v1253, %v1381
      %v1510 = vmul.f32 %v1254, %v1382
      %v1511 = vmul.f32 %v1255, %v1383
      %v1512 = vmul.f32 %v1256, %v1384
      %v1513 = vmul.f32 %v1257, %v1385
      %v1514 = vmul.f32 %v1258, %v1386
      %v1515 = vmul.f32 %v1259, %v1387
      %v1516 = vmul.f32 %v1260, %v1388
      %v1517 = vmul.f32 %v1261, %v1389
      %v1518 = vmul.f32 %v1262, %v1390
      %v1519 = vmul.f32 %v1263, %v1391
      %v1520 = vmul.f32 %v1264, %v1392
      %v1521 = vmul.f32 %v1265, %v1393
      %v1522 = vmul.f32 %v1266, %v1394
      %v1523 = vmul.f32 %v1267, %v1395
      %v1524 = vmul.f32 %v1268, %v1396
      %v1525 = vmul.f32 %v1269, %v1397
      %v1526 = vmul.f32 %v1270, %v1398
      %v1527 = vmul.f32 %v1271, %v1399
      %v1528 = vmul.f32 %v1272, %v1400
      %v1529 = vmul.f32 %v1273, %v1401
      %v1530 = vmul.f32 %v1274, %v1402
      %v1531 = vmul.f32 %v1275, %v1403
      %v1532 = vmul.f32 %v1276, %v1404
      %v1533 = vmul.f32 %v1277, %v1405
      %v1534 = vmul.f32 %v1278, %v1406
      %v1535 = vmul.f32 %v1279, %v1407
      %v1536 = vmul.f32 %v1280, %v1408
      %v1537 = vmul.f32 %v1281, %v1409
      %v1538 = vmul.f32 %v1282, %v1410
      %v1539 = vmul.f32 %v1283, %v1411
      %v1540 = vmul.f32 %v1284, %v1412
      %v1541 = vmul.f32 %v1285, %v1413
      %v1542 = vmul.f32 %v1286, %v1414
      %v1543 = vmul.f32 %v1287, %v1415
      %v1544 = vmul.f32 %v1288, %v1416
      %v1545 = vmul.f32 %v1289, %v1417
      %v1546 = vmul.f32 %v1290, %v1418
      %v1547 = vmul.f32 %v1291, %v1419
      %v1548 = vmul.f32 %v1292, %v1420
      %v1549 = vmul.f32 %v1293, %v1421
      %v1550 = vmul.f32 %v1294, %v1422
      %v1551 = vmul.f32 %v1295, %v1423
      %v1552 = vmul.f32 %v1296, %v1424
      %v1553 = vmul.f32 %v1297, %v1425
      %v1554 = vmul.f32 %v1298, %v1426
      %v1555 = vmul.f32 %v1299, %v1427
      %v1556 = vmul.f32 %v1300, %v1428
      %v1557 = vmul.f32 %v1301, %v1429
      %v1558 = vmul.f32 %v1302, %v1430
      %v1559 = vmul.f32 %v1303, %v1431
      %v1560 = vmul.f32 %v1304, %v1432
      %v1561 = vmul.f32 %v1305, %v1433
      %v1562 = vmul.f32 %v1306, %v1434
      %v1563 = vmul.f32 %v1307, %v1435
      %v1564 = vmul.f32 %v1308, %v1436
      %v1565 = vmul.f32 %v1309, %v1437
      %v1566 = vmul.f32 %v1310, %v1438
      %v1567 = vmul.f32 %v1311, %v1439
      %v1568 = vmul.f32 %v1312, %v1440
      %v1569 = vmul.f32 %v1313, %v1441
      %v1570 = vmul.f32 %v1314, %v1442
      %v1571 = vmul.f32 %v1315, %v1443
      %v1572 = vmul.f32 %v1316, %v1444
      %v1573 = vmul.f32 %v1317, %v1445
      %v1574 = vmul.f32 %v1318, %v1446
      %v1575 = vmul.f32 %v1319, %v1447
      %v1576 = vmul.f32 %v1320, %v1448
      %v1577 = vmul.f32 %v1321, %v1449
      %v1578 = vmul.f32 %v1322, %v1450
      %1580 = vset.pattern.permute.xlu0 0
      %1581 = vperm.xlu0 %1580, %v1451
      %v1582 = vpop.permute.xlu0 %1581
      %1585 = vset.pattern.permute.xlu0 0
      %1586 = vperm.xlu0 %1585, %v1452
      %v1587 = vpop.permute.xlu0 %1586
      %1590 = vset.pattern.permute.xlu0 0
      %1591 = vperm.xlu0 %1590, %v1453
      %v1592 = vpop.permute.xlu0 %1591
      %1595 = vset.pattern.permute.xlu0 0
      %1596 = vperm.xlu0 %1595, %v1454
      %v1597 = vpop.permute.xlu0 %1596
      %1600 = vset.pattern.permute.xlu0 0
      %1601 = vperm.xlu0 %1600, %v1455
      %v1602 = vpop.permute.xlu0 %1601
      %1605 = vset.pattern.permute.xlu0 0
      %1606 = vperm.xlu0 %1605, %v1456
      %v1607 = vpop.permute.xlu0 %1606
      %1610 = vset.pattern.permute.xlu0 0
      %1611 = vperm.xlu0 %1610, %v1457
      %v1612 = vpop.permute.xlu0 %1611
      %1615 = vset.pattern.permute.xlu0 0
      %1616 = vperm.xlu0 %1615, %v1458
      %v1617 = vpop.permute.xlu0 %1616
      %1620 = vset.pattern.permute.xlu0 0
      %1621 = vperm.xlu0 %1620, %v1459
      %v1622 = vpop.permute.xlu0 %1621
      %1625 = vset.pattern.permute.xlu0 0
      %1626 = vperm.xlu0 %1625, %v1460
      %v1627 = vpop.permute.xlu0 %1626
      %1630 = vset.pattern.permute.xlu0 0
      %1631 = vperm.xlu0 %1630, %v1461
      %v1632 = vpop.permute.xlu0 %1631
      %1635 = vset.pattern.permute.xlu0 0
      %1636 = vperm.xlu0 %1635, %v1462
      %v1637 = vpop.permute.xlu0 %1636
      %1640 = vset.pattern.permute.xlu0 0
      %1641 = vperm.xlu0 %1640, %v1463
      %v1642 = vpop.permute.xlu0 %1641
      %1645 = vset.pattern.permute.xlu0 0
      %1646 = vperm.xlu0 %1645, %v1464
      %v1647 = vpop.permute.xlu0 %1646
      %1650 = vset.pattern.permute.xlu0 0
      %1651 = vperm.xlu0 %1650, %v1465
      %v1652 = vpop.permute.xlu0 %1651
      %1655 = vset.pattern.permute.xlu0 0
      %1656 = vperm.xlu0 %1655, %v1466
      %v1657 = vpop.permute.xlu0 %1656
      %1660 = vset.pattern.permute.xlu0 0
      %1661 = vperm.xlu0 %1660, %v1467
      %v1662 = vpop.permute.xlu0 %1661
      %1665 = vset.pattern.permute.xlu0 0
      %1666 = vperm.xlu0 %1665, %v1468
      %v1667 = vpop.permute.xlu0 %1666
      %1670 = vset.pattern.permute.xlu0 0
      %1671 = vperm.xlu0 %1670, %v1469
      %v1672 = vpop.permute.xlu0 %1671
      %1675 = vset.pattern.permute.xlu0 0
      %1676 = vperm.xlu0 %1675, %v1470
      %v1677 = vpop.permute.xlu0 %1676
      %1680 = vset.pattern.permute.xlu0 0
      %1681 = vperm.xlu0 %1680, %v1471
      %v1682 = vpop.permute.xlu0 %1681
      %1685 = vset.pattern.permute.xlu0 0
      %1686 = vperm.xlu0 %1685, %v1472
      %v1687 = vpop.permute.xlu0 %1686
      %1690 = vset.pattern.permute.xlu0 0
      %1691 = vperm.xlu0 %1690, %v1473
      %v1692 = vpop.permute.xlu0 %1691
      %1695 = vset.pattern.permute.xlu0 0
      %1696 = vperm.xlu0 %1695, %v1474
      %v1697 = vpop.permute.xlu0 %1696
      %1700 = vset.pattern.permute.xlu0 0
      %1701 = vperm.xlu0 %1700, %v1475
      %v1702 = vpop.permute.xlu0 %1701
      %1705 = vset.pattern.permute.xlu0 0
      %1706 = vperm.xlu0 %1705, %v1476
      %v1707 = vpop.permute.xlu0 %1706
      %1710 = vset.pattern.permute.xlu0 0
      %1711 = vperm.xlu0 %1710, %v1477
      %v1712 = vpop.permute.xlu0 %1711
      %1715 = vset.pattern.permute.xlu0 0
      %1716 = vperm.xlu0 %1715, %v1478
      %v1717 = vpop.permute.xlu0 %1716
      %1720 = vset.pattern.permute.xlu0 0
      %1721 = vperm.xlu0 %1720, %v1479
      %v1722 = vpop.permute.xlu0 %1721
      %1725 = vset.pattern.permute.xlu0 0
      %1726 = vperm.xlu0 %1725, %v1480
      %v1727 = vpop.permute.xlu0 %1726
      %1730 = vset.pattern.permute.xlu0 0
      %1731 = vperm.xlu0 %1730, %v1481
      %v1732 = vpop.permute.xlu0 %1731
      %1735 = vset.pattern.permute.xlu0 0
      %1736 = vperm.xlu0 %1735, %v1482
      %v1737 = vpop.permute.xlu0 %1736
      %1740 = vset.pattern.permute.xlu0 0
      %1741 = vperm.xlu0 %1740, %v1483
      %v1742 = vpop.permute.xlu0 %1741
      %1745 = vset.pattern.permute.xlu0 0
      %1746 = vperm.xlu0 %1745, %v1484
      %v1747 = vpop.permute.xlu0 %1746
      %1750 = vset.pattern.permute.xlu0 0
      %1751 = vperm.xlu0 %1750, %v1485
      %v1752 = vpop.permute.xlu0 %1751
      %1755 = vset.pattern.permute.xlu0 0
      %1756 = vperm.xlu0 %1755, %v1486
      %v1757 = vpop.permute.xlu0 %1756
      %1760 = vset.pattern.permute.xlu0 0
      %1761 = vperm.xlu0 %1760, %v1487
      %v1762 = vpop.permute.xlu0 %1761
      %1765 = vset.pattern.permute.xlu0 0
      %1766 = vperm.xlu0 %1765, %v1488
      %v1767 = vpop.permute.xlu0 %1766
      %1770 = vset.pattern.permute.xlu0 0
      %1771 = vperm.xlu0 %1770, %v1489
      %v1772 = vpop.permute.xlu0 %1771
      %1775 = vset.pattern.permute.xlu0 0
      %1776 = vperm.xlu0 %1775, %v1490
      %v1777 = vpop.permute.xlu0 %1776
      %1780 = vset.pattern.permute.xlu0 0
      %1781 = vperm.xlu0 %1780, %v1491
      %v1782 = vpop.permute.xlu0 %1781
      %1785 = vset.pattern.permute.xlu0 0
      %1786 = vperm.xlu0 %1785, %v1492
      %v1787 = vpop.permute.xlu0 %1786
      %1790 = vset.pattern.permute.xlu0 0
      %1791 = vperm.xlu0 %1790, %v1493
      %v1792 = vpop.permute.xlu0 %1791
      %1795 = vset.pattern.permute.xlu0 0
      %1796 = vperm.xlu0 %1795, %v1494
      %v1797 = vpop.permute.xlu0 %1796
      %1800 = vset.pattern.permute.xlu0 0
      %1801 = vperm.xlu0 %1800, %v1495
      %v1802 = vpop.permute.xlu0 %1801
      %1805 = vset.pattern.permute.xlu0 0
      %1806 = vperm.xlu0 %1805, %v1496
      %v1807 = vpop.permute.xlu0 %1806
      %1810 = vset.pattern.permute.xlu0 0
      %1811 = vperm.xlu0 %1810, %v1497
      %v1812 = vpop.permute.xlu0 %1811
      %1815 = vset.pattern.permute.xlu0 0
      %1816 = vperm.xlu0 %1815, %v1498
      %v1817 = vpop.permute.xlu0 %1816
      %1820 = vset.pattern.permute.xlu0 0
      %1821 = vperm.xlu0 %1820, %v1499
      %v1822 = vpop.permute.xlu0 %1821
      %1825 = vset.pattern.permute.xlu0 0
      %1826 = vperm.xlu0 %1825, %v1500
      %v1827 = vpop.permute.xlu0 %1826
      %1830 = vset.pattern.permute.xlu0 0
      %1831 = vperm.xlu0 %1830, %v1501
      %v1832 = vpop.permute.xlu0 %1831
      %1835 = vset.pattern.permute.xlu0 0
      %1836 = vperm.xlu0 %1835, %v1502
      %v1837 = vpop.permute.xlu0 %1836
      %1840 = vset.pattern.permute.xlu0 0
      %1841 = vperm.xlu0 %1840, %v1503
      %v1842 = vpop.permute.xlu0 %1841
      %1845 = vset.pattern.permute.xlu0 0
      %1846 = vperm.xlu0 %1845, %v1504
      %v1847 = vpop.permute.xlu0 %1846
      %1850 = vset.pattern.permute.xlu0 0
      %1851 = vperm.xlu0 %1850, %v1505
      %v1852 = vpop.permute.xlu0 %1851
      %1855 = vset.pattern.permute.xlu0 0
      %1856 = vperm.xlu0 %1855, %v1506
      %v1857 = vpop.permute.xlu0 %1856
      %1860 = vset.pattern.permute.xlu0 0
      %1861 = vperm.xlu0 %1860, %v1507
      %v1862 = vpop.permute.xlu0 %1861
      %1865 = vset.pattern.permute.xlu0 0
      %1866 = vperm.xlu0 %1865, %v1508
      %v1867 = vpop.permute.xlu0 %1866
      %1870 = vset.pattern.permute.xlu0 0
      %1871 = vperm.xlu0 %1870, %v1509
      %v1872 = vpop.permute.xlu0 %1871
      %1875 = vset.pattern.permute.xlu0 0
      %1876 = vperm.xlu0 %1875, %v1510
      %v1877 = vpop.permute.xlu0 %1876
      %1880 = vset.pattern.permute.xlu0 0
      %1881 = vperm.xlu0 %1880, %v1511
      %v1882 = vpop.permute.xlu0 %1881
      %1885 = vset.pattern.permute.xlu0 0
      %1886 = vperm.xlu0 %1885, %v1512
      %v1887 = vpop.permute.xlu0 %1886
      %1890 = vset.pattern.permute.xlu0 0
      %1891 = vperm.xlu0 %1890, %v1513
      %v1892 = vpop.permute.xlu0 %1891
      %1895 = vset.pattern.permute.xlu0 0
      %1896 = vperm.xlu0 %1895, %v1514
      %v1897 = vpop.permute.xlu0 %1896
      %1900 = vset.pattern.permute.xlu0 0
      %1901 = vperm.xlu0 %1900, %v1515
      %v1902 = vpop.permute.xlu0 %1901
      %1905 = vset.pattern.permute.xlu0 0
      %1906 = vperm.xlu0 %1905, %v1516
      %v1907 = vpop.permute.xlu0 %1906
      %1910 = vset.pattern.permute.xlu0 0
      %1911 = vperm.xlu0 %1910, %v1517
      %v1912 = vpop.permute.xlu0 %1911
      %1915 = vset.pattern.permute.xlu0 0
      %1916 = vperm.xlu0 %1915, %v1518
      %v1917 = vpop.permute.xlu0 %1916
      %1920 = vset.pattern.permute.xlu0 0
      %1921 = vperm.xlu0 %1920, %v1519
      %v1922 = vpop.permute.xlu0 %1921
      %1925 = vset.pattern.permute.xlu0 0
      %1926 = vperm.xlu0 %1925, %v1520
      %v1927 = vpop.permute.xlu0 %1926
      %1930 = vset.pattern.permute.xlu0 0
      %1931 = vperm.xlu0 %1930, %v1521
      %v1932 = vpop.permute.xlu0 %1931
      %1935 = vset.pattern.permute.xlu0 0
      %1936 = vperm.xlu0 %1935, %v1522
      %v1937 = vpop.permute.xlu0 %1936
      %1940 = vset.pattern.permute.xlu0 0
      %1941 = vperm.xlu0 %1940, %v1523
      %v1942 = vpop.permute.xlu0 %1941
      %1945 = vset.pattern.permute.xlu0 0
      %1946 = vperm.xlu0 %1945, %v1524
      %v1947 = vpop.permute.xlu0 %1946
      %1950 = vset.pattern.permute.xlu0 0
      %1951 = vperm.xlu0 %1950, %v1525
      %v1952 = vpop.permute.xlu0 %1951
      %1955 = vset.pattern.permute.xlu0 0
      %1956 = vperm.xlu0 %1955, %v1526
      %v1957 = vpop.permute.xlu0 %1956
      %1960 = vset.pattern.permute.xlu0 0
      %1961 = vperm.xlu0 %1960, %v1527
      %v1962 = vpop.permute.xlu0 %1961
      %1965 = vset.pattern.permute.xlu0 0
      %1966 = vperm.xlu0 %1965, %v1528
      %v1967 = vpop.permute.xlu0 %1966
      %1970 = vset.pattern.permute.xlu0 0
      %1971 = vperm.xlu0 %1970, %v1529
      %v1972 = vpop.permute.xlu0 %1971
      %1975 = vset.pattern.permute.xlu0 0
      %1976 = vperm.xlu0 %1975, %v1530
      %v1977 = vpop.permute.xlu0 %1976
      %1980 = vset.pattern.permute.xlu0 0
      %1981 = vperm.xlu0 %1980, %v1531
      %v1982 = vpop.permute.xlu0 %1981
      %1985 = vset.pattern.permute.xlu0 0
      %1986 = vperm.xlu0 %1985, %v1532
      %v1987 = vpop.permute.xlu0 %1986
      %1990 = vset.pattern.permute.xlu0 0
      %1991 = vperm.xlu0 %1990, %v1533
      %v1992 = vpop.permute.xlu0 %1991
      %1995 = vset.pattern.permute.xlu0 0
      %1996 = vperm.xlu0 %1995, %v1534
      %v1997 = vpop.permute.xlu0 %1996
      %2000 = vset.pattern.permute.xlu0 0
      %2001 = vperm.xlu0 %2000, %v1535
      %v2002 = vpop.permute.xlu0 %2001
      %2005 = vset.pattern.permute.xlu0 0
      %2006 = vperm.xlu0 %2005, %v1536
      %v2007 = vpop.permute.xlu0 %2006
      %2010 = vset.pattern.permute.xlu0 0
      %2011 = vperm.xlu0 %2010, %v1537
      %v2012 = vpop.permute.xlu0 %2011
      %2015 = vset.pattern.permute.xlu0 0
      %2016 = vperm.xlu0 %2015, %v1538
      %v2017 = vpop.permute.xlu0 %2016
      %2020 = vset.pattern.permute.xlu0 0
      %2021 = vperm.xlu0 %2020, %v1539
      %v2022 = vpop.permute.xlu0 %2021
      %2025 = vset.pattern.permute.xlu0 0
      %2026 = vperm.xlu0 %2025, %v1540
      %v2027 = vpop.permute.xlu0 %2026
      %2030 = vset.pattern.permute.xlu0 0
      %2031 = vperm.xlu0 %2030, %v1541
      %v2032 = vpop.permute.xlu0 %2031
      %2035 = vset.pattern.permute.xlu0 0
      %2036 = vperm.xlu0 %2035, %v1542
      %v2037 = vpop.permute.xlu0 %2036
      %2040 = vset.pattern.permute.xlu0 0
      %2041 = vperm.xlu0 %2040, %v1543
      %v2042 = vpop.permute.xlu0 %2041
      %2045 = vset.pattern.permute.xlu0 0
      %2046 = vperm.xlu0 %2045, %v1544
      %v2047 = vpop.permute.xlu0 %2046
      %2050 = vset.pattern.permute.xlu0 0
      %2051 = vperm.xlu0 %2050, %v1545
      %v2052 = vpop.permute.xlu0 %2051
      %2055 = vset.pattern.permute.xlu0 0
      %2056 = vperm.xlu0 %2055, %v1546
      %v2057 = vpop.permute.xlu0 %2056
      %2060 = vset.pattern.permute.xlu0 0
      %2061 = vperm.xlu0 %2060, %v1547
      %v2062 = vpop.permute.xlu0 %2061
      %2065 = vset.pattern.permute.xlu0 0
      %2066 = vperm.xlu0 %2065, %v1548
      %v2067 = vpop.permute.xlu0 %2066
      %2070 = vset.pattern.permute.xlu0 0
      %2071 = vperm.xlu0 %2070, %v1549
      %v2072 = vpop.permute.xlu0 %2071
      %2075 = vset.pattern.permute.xlu0 0
      %2076 = vperm.xlu0 %2075, %v1550
      %v2077 = vpop.permute.xlu0 %2076
      %2080 = vset.pattern.permute.xlu0 0
      %2081 = vperm.xlu0 %2080, %v1551
      %v2082 = vpop.permute.xlu0 %2081
      %2085 = vset.pattern.permute.xlu0 0
      %2086 = vperm.xlu0 %2085, %v1552
      %v2087 = vpop.permute.xlu0 %2086
      %2090 = vset.pattern.permute.xlu0 0
      %2091 = vperm.xlu0 %2090, %v1553
      %v2092 = vpop.permute.xlu0 %2091
      %2095 = vset.pattern.permute.xlu0 0
      %2096 = vperm.xlu0 %2095, %v1554
      %v2097 = vpop.permute.xlu0 %2096
      %2100 = vset.pattern.permute.xlu0 0
      %2101 = vperm.xlu0 %2100, %v1555
      %v2102 = vpop.permute.xlu0 %2101
      %2105 = vset.pattern.permute.xlu0 0
      %2106 = vperm.xlu0 %2105, %v1556
      %v2107 = vpop.permute.xlu0 %2106
      %2110 = vset.pattern.permute.xlu0 0
      %2111 = vperm.xlu0 %2110, %v1557
      %v2112 = vpop.permute.xlu0 %2111
      %2115 = vset.pattern.permute.xlu0 0
      %2116 = vperm.xlu0 %2115, %v1558
      %v2117 = vpop.permute.xlu0 %2116
      %2120 = vset.pattern.permute.xlu0 0
      %2121 = vperm.xlu0 %2120, %v1559
      %v2122 = vpop.permute.xlu0 %2121
      %2125 = vset.pattern.permute.xlu0 0
      %2126 = vperm.xlu0 %2125, %v1560
      %v2127 = vpop.permute.xlu0 %2126
      %2130 = vset.pattern.permute.xlu0 0
      %2131 = vperm.xlu0 %2130, %v1561
      %v2132 = vpop.permute.xlu0 %2131
      %2135 = vset.pattern.permute.xlu0 0
      %2136 = vperm.xlu0 %2135, %v1562
      %v2137 = vpop.permute.xlu0 %2136
      %2140 = vset.pattern.permute.xlu0 0
      %2141 = vperm.xlu0 %2140, %v1563
      %v2142 = vpop.permute.xlu0 %2141
      %2145 = vset.pattern.permute.xlu0 0
      %2146 = vperm.xlu0 %2145, %v1564
      %v2147 = vpop.permute.xlu0 %2146
      %2150 = vset.pattern.permute.xlu0 0
      %2151 = vperm.xlu0 %2150, %v1565
      %v2152 = vpop.permute.xlu0 %2151
      %2155 = vset.pattern.permute.xlu0 0
      %2156 = vperm.xlu0 %2155, %v1566
      %v2157 = vpop.permute.xlu0 %2156
      %2160 = vset.pattern.permute.xlu0 0
      %2161 = vperm.xlu0 %2160, %v1567
      %v2162 = vpop.permute.xlu0 %2161
      %2165 = vset.pattern.permute.xlu0 0
      %2166 = vperm.xlu0 %2165, %v1568
      %v2167 = vpop.permute.xlu0 %2166
      %2170 = vset.pattern.permute.xlu0 0
      %2171 = vperm.xlu0 %2170, %v1569
      %v2172 = vpop.permute.xlu0 %2171
      %2175 = vset.pattern.permute.xlu0 0
      %2176 = vperm.xlu0 %2175, %v1570
      %v2177 = vpop.permute.xlu0 %2176
      %2180 = vset.pattern.permute.xlu0 0
      %2181 = vperm.xlu0 %2180, %v1571
      %v2182 = vpop.permute.xlu0 %2181
      %2185 = vset.pattern.permute.xlu0 0
      %2186 = vperm.xlu0 %2185, %v1572
      %v2187 = vpop.permute.xlu0 %2186
      %2190 = vset.pattern.permute.xlu0 0
      %2191 = vperm.xlu0 %2190, %v1573
      %v2192 = vpop.permute.xlu0 %2191
      %2195 = vset.pattern.permute.xlu0 0
      %2196 = vperm.xlu0 %2195, %v1574
      %v2197 = vpop.permute.xlu0 %2196
      %2200 = vset.pattern.permute.xlu0 0
      %2201 = vperm.xlu0 %2200, %v1575
      %v2202 = vpop.permute.xlu0 %2201
      %2205 = vset.pattern.permute.xlu0 0
      %2206 = vperm.xlu0 %2205, %v1576
      %v2207 = vpop.permute.xlu0 %2206
      %2210 = vset.pattern.permute.xlu0 0
      %2211 = vperm.xlu0 %2210, %v1577
      %v2212 = vpop.permute.xlu0 %2211
      %2215 = vset.pattern.permute.xlu0 0
      %2216 = vperm.xlu0 %2215, %v1578
      %v2217 = vpop.permute.xlu0 %2216
      %v2219 = vmul.f32 %v298, %v1582
      %v2220 = vmul.f32 %v299, %v1587
      %v2221 = vmul.f32 %v300, %v1592
      %v2222 = vmul.f32 %v301, %v1597
      %v2223 = vmul.f32 %v302, %v1602
      %v2224 = vmul.f32 %v303, %v1607
      %v2225 = vmul.f32 %v304, %v1612
      %v2226 = vmul.f32 %v305, %v1617
      %v2227 = vmul.f32 %v306, %v1622
      %v2228 = vmul.f32 %v307, %v1627
      %v2229 = vmul.f32 %v308, %v1632
      %v2230 = vmul.f32 %v309, %v1637
      %v2231 = vmul.f32 %v310, %v1642
      %v2232 = vmul.f32 %v311, %v1647
      %v2233 = vmul.f32 %v312, %v1652
      %v2234 = vmul.f32 %v313, %v1657
      %v2235 = vmul.f32 %v314, %v1662
      %v2236 = vmul.f32 %v315, %v1667
      %v2237 = vmul.f32 %v316, %v1672
      %v2238 = vmul.f32 %v317, %v1677
      %v2239 = vmul.f32 %v318, %v1682
      %v2240 = vmul.f32 %v319, %v1687
      %v2241 = vmul.f32 %v320, %v1692
      %v2242 = vmul.f32 %v321, %v1697
      %v2243 = vmul.f32 %v322, %v1702
      %v2244 = vmul.f32 %v323, %v1707
      %v2245 = vmul.f32 %v324, %v1712
      %v2246 = vmul.f32 %v325, %v1717
      %v2247 = vmul.f32 %v326, %v1722
      %v2248 = vmul.f32 %v327, %v1727
      %v2249 = vmul.f32 %v328, %v1732
      %v2250 = vmul.f32 %v329, %v1737
      %v2251 = vmul.f32 %v330, %v1742
      %v2252 = vmul.f32 %v331, %v1747
      %v2253 = vmul.f32 %v332, %v1752
      %v2254 = vmul.f32 %v333, %v1757
      %v2255 = vmul.f32 %v334, %v1762
      %v2256 = vmul.f32 %v335, %v1767
      %v2257 = vmul.f32 %v336, %v1772
      %v2258 = vmul.f32 %v337, %v1777
      %v2259 = vmul.f32 %v338, %v1782
      %v2260 = vmul.f32 %v339, %v1787
      %v2261 = vmul.f32 %v340, %v1792
      %v2262 = vmul.f32 %v341, %v1797
      %v2263 = vmul.f32 %v342, %v1802
      %v2264 = vmul.f32 %v343, %v1807
      %v2265 = vmul.f32 %v344, %v1812
      %v2266 = vmul.f32 %v345, %v1817
      %v2267 = vmul.f32 %v346, %v1822
      %v2268 = vmul.f32 %v347, %v1827
      %v2269 = vmul.f32 %v348, %v1832
      %v2270 = vmul.f32 %v349, %v1837
      %v2271 = vmul.f32 %v350, %v1842
      %v2272 = vmul.f32 %v351, %v1847
      %v2273 = vmul.f32 %v352, %v1852
      %v2274 = vmul.f32 %v353, %v1857
      %v2275 = vmul.f32 %v354, %v1862
      %v2276 = vmul.f32 %v355, %v1867
      %v2277 = vmul.f32 %v356, %v1872
      %v2278 = vmul.f32 %v357, %v1877
      %v2279 = vmul.f32 %v358, %v1882
      %v2280 = vmul.f32 %v359, %v1887
      %v2281 = vmul.f32 %v360, %v1892
      %v2282 = vmul.f32 %v361, %v1897
      %v2283 = vmul.f32 %v362, %v1902
      %v2284 = vmul.f32 %v363, %v1907
      %v2285 = vmul.f32 %v364, %v1912
      %v2286 = vmul.f32 %v365, %v1917
      %v2287 = vmul.f32 %v366, %v1922
      %v2288 = vmul.f32 %v367, %v1927
      %v2289 = vmul.f32 %v368, %v1932
      %v2290 = vmul.f32 %v369, %v1937
      %v2291 = vmul.f32 %v370, %v1942
      %v2292 = vmul.f32 %v371, %v1947
      %v2293 = vmul.f32 %v372, %v1952
      %v2294 = vmul.f32 %v373, %v1957
      %v2295 = vmul.f32 %v374, %v1962
      %v2296 = vmul.f32 %v375, %v1967
      %v2297 = vmul.f32 %v376, %v1972
      %v2298 = vmul.f32 %v377, %v1977
      %v2299 = vmul.f32 %v378, %v1982
      %v2300 = vmul.f32 %v379, %v1987
      %v2301 = vmul.f32 %v380, %v1992
      %v2302 = vmul.f32 %v381, %v1997
      %v2303 = vmul.f32 %v382, %v2002
      %v2304 = vmul.f32 %v383, %v2007
      %v2305 = vmul.f32 %v384, %v2012
      %v2306 = vmul.f32 %v385, %v2017
      %v2307 = vmul.f32 %v386, %v2022
      %v2308 = vmul.f32 %v387, %v2027
      %v2309 = vmul.f32 %v388, %v2032
      %v2310 = vmul.f32 %v389, %v2037
      %v2311 = vmul.f32 %v390, %v2042
      %v2312 = vmul.f32 %v391, %v2047
      %v2313 = vmul.f32 %v392, %v2052
      %v2314 = vmul.f32 %v393, %v2057
      %v2315 = vmul.f32 %v394, %v2062
      %v2316 = vmul.f32 %v395, %v2067
      %v2317 = vmul.f32 %v396, %v2072
      %v2318 = vmul.f32 %v397, %v2077
      %v2319 = vmul.f32 %v398, %v2082
      %v2320 = vmul.f32 %v399, %v2087
      %v2321 = vmul.f32 %v400, %v2092
      %v2322 = vmul.f32 %v401, %v2097
      %v2323 = vmul.f32 %v402, %v2102
      %v2324 = vmul.f32 %v403, %v2107
      %v2325 = vmul.f32 %v404, %v2112
      %v2326 = vmul.f32 %v405, %v2117
      %v2327 = vmul.f32 %v406, %v2122
      %v2328 = vmul.f32 %v407, %v2127
      %v2329 = vmul.f32 %v408, %v2132
      %v2330 = vmul.f32 %v409, %v2137
      %v2331 = vmul.f32 %v410, %v2142
      %v2332 = vmul.f32 %v411, %v2147
      %v2333 = vmul.f32 %v412, %v2152
      %v2334 = vmul.f32 %v413, %v2157
      %v2335 = vmul.f32 %v414, %v2162
      %v2336 = vmul.f32 %v415, %v2167
      %v2337 = vmul.f32 %v416, %v2172
      %v2338 = vmul.f32 %v417, %v2177
      %v2339 = vmul.f32 %v418, %v2182
      %v2340 = vmul.f32 %v419, %v2187
      %v2341 = vmul.f32 %v420, %v2192
      %v2342 = vmul.f32 %v421, %v2197
      %v2343 = vmul.f32 %v422, %v2202
      %v2344 = vmul.f32 %v423, %v2207
      %v2345 = vmul.f32 %v424, %v2212
      %v2346 = vmul.f32 %v425, %v2217
      %v2347 = vpack.c.bf16 %v2220, %v2219
      %v2348 = vpack.c.bf16 %v2222, %v2221
      %v2349 = vpack.c.bf16 %v2224, %v2223
      %v2350 = vpack.c.bf16 %v2226, %v2225
      %v2351 = vpack.c.bf16 %v2228, %v2227
      %v2352 = vpack.c.bf16 %v2230, %v2229
      %v2353 = vpack.c.bf16 %v2232, %v2231
      %v2354 = vpack.c.bf16 %v2234, %v2233
      %v2355 = vpack.c.bf16 %v2236, %v2235
      %v2356 = vpack.c.bf16 %v2238, %v2237
      %v2357 = vpack.c.bf16 %v2240, %v2239
      %v2358 = vpack.c.bf16 %v2242, %v2241
      %v2359 = vpack.c.bf16 %v2244, %v2243
      %v2360 = vpack.c.bf16 %v2246, %v2245
      %v2361 = vpack.c.bf16 %v2248, %v2247
      %v2362 = vpack.c.bf16 %v2250, %v2249
      %v2363 = vpack.c.bf16 %v2252, %v2251
      %v2364 = vpack.c.bf16 %v2254, %v2253
      %v2365 = vpack.c.bf16 %v2256, %v2255
      %v2366 = vpack.c.bf16 %v2258, %v2257
      %v2367 = vpack.c.bf16 %v2260, %v2259
      %v2368 = vpack.c.bf16 %v2262, %v2261
      %v2369 = vpack.c.bf16 %v2264, %v2263
      %v2370 = vpack.c.bf16 %v2266, %v2265
      %v2371 = vpack.c.bf16 %v2268, %v2267
      %v2372 = vpack.c.bf16 %v2270, %v2269
      %v2373 = vpack.c.bf16 %v2272, %v2271
      %v2374 = vpack.c.bf16 %v2274, %v2273
      %v2375 = vpack.c.bf16 %v2276, %v2275
      %v2376 = vpack.c.bf16 %v2278, %v2277
      %v2377 = vpack.c.bf16 %v2280, %v2279
      %v2378 = vpack.c.bf16 %v2282, %v2281
      %v2379 = vpack.c.bf16 %v2284, %v2283
      %v2380 = vpack.c.bf16 %v2286, %v2285
      %v2381 = vpack.c.bf16 %v2288, %v2287
      %v2382 = vpack.c.bf16 %v2290, %v2289
      %v2383 = vpack.c.bf16 %v2292, %v2291
      %v2384 = vpack.c.bf16 %v2294, %v2293
      %v2385 = vpack.c.bf16 %v2296, %v2295
      %v2386 = vpack.c.bf16 %v2298, %v2297
      %v2387 = vpack.c.bf16 %v2300, %v2299
      %v2388 = vpack.c.bf16 %v2302, %v2301
      %v2389 = vpack.c.bf16 %v2304, %v2303
      %v2390 = vpack.c.bf16 %v2306, %v2305
      %v2391 = vpack.c.bf16 %v2308, %v2307
      %v2392 = vpack.c.bf16 %v2310, %v2309
      %v2393 = vpack.c.bf16 %v2312, %v2311
      %v2394 = vpack.c.bf16 %v2314, %v2313
      %v2395 = vpack.c.bf16 %v2316, %v2315
      %v2396 = vpack.c.bf16 %v2318, %v2317
      %v2397 = vpack.c.bf16 %v2320, %v2319
      %v2398 = vpack.c.bf16 %v2322, %v2321
      %v2399 = vpack.c.bf16 %v2324, %v2323
      %v2400 = vpack.c.bf16 %v2326, %v2325
      %v2401 = vpack.c.bf16 %v2328, %v2327
      %v2402 = vpack.c.bf16 %v2330, %v2329
      %v2403 = vpack.c.bf16 %v2332, %v2331
      %v2404 = vpack.c.bf16 %v2334, %v2333
      %v2405 = vpack.c.bf16 %v2336, %v2335
      %v2406 = vpack.c.bf16 %v2338, %v2337
      %v2407 = vpack.c.bf16 %v2340, %v2339
      %v2408 = vpack.c.bf16 %v2342, %v2341
      %v2409 = vpack.c.bf16 %v2344, %v2343
      %v2410 = vpack.c.bf16 %v2346, %v2345
      %v2411 = vld [vmem:[%s275] sm:$0xff]
      %v2412 = vld [vmem:[%s275 + $0x8] sm:$0xff]
      %v2413 = vld [vmem:[%s275 + $0x10] sm:$0xff]
      %v2414 = vld [vmem:[%s275 + $0x18] sm:$0xff]
      %v2415 = vld [vmem:[%s275 + $0x20] sm:$0x33]
      %v2421 = vunpack.c.l.b16 %v2411
      %v2422 = vunpack.c.h.b16 %v2411
      %v2423 = vunpack.c.l.b16 %v2412
      %v2424 = vunpack.c.h.b16 %v2412
      %v2425 = vunpack.c.l.b16 %v2413
      %v2426 = vunpack.c.h.b16 %v2413
      %v2427 = vunpack.c.l.b16 %v2414
      %v2428 = vunpack.c.h.b16 %v2414
      %v2429 = vunpack.c.l.b16 %v2415
      %v2430 = vunpack.c.h.b16 %v2415
      %v2431 = vpack.c.b16 %v2423, %v2421
      %v2432 = vpack.c.b16 %v2424, %v2422
      %v2433 = vpack.c.b16 %v2427, %v2425
      %v2434 = vpack.c.b16 %v2428, %v2426
      %v2435 = vpack.c.b16 %v2429, %v2429
      %v2436 = vpack.c.b16 %v2430, %v2430
      %v2442 = vsel %vm682, %v2347, 0
      %v2445 = vsel %vm682, %v2348, 0
      %v2448 = vsel %vm682, %v2349, 0
      %v2451 = vsel %vm682, %v2350, 0
      %v2454 = vsel %vm682, %v2351, 0
      %v2457 = vsel %vm682, %v2352, 0
      %v2460 = vsel %vm682, %v2353, 0
      %v2463 = vsel %vm682, %v2354, 0
      %v2466 = vsel %vm682, %v2355, 0
      %v2469 = vsel %vm682, %v2356, 0
      %v2472 = vsel %vm682, %v2357, 0
      %v2475 = vsel %vm682, %v2358, 0
      %v2478 = vsel %vm682, %v2359, 0
      %v2481 = vsel %vm682, %v2360, 0
      %v2484 = vsel %vm682, %v2361, 0
      %v2487 = vsel %vm682, %v2362, 0
      %v2490 = vsel %vm682, %v2363, 0
      %v2493 = vsel %vm682, %v2364, 0
      %v2496 = vsel %vm682, %v2365, 0
      %v2499 = vsel %vm682, %v2366, 0
      %v2502 = vsel %vm682, %v2367, 0
      %v2505 = vsel %vm682, %v2368, 0
      %v2508 = vsel %vm682, %v2369, 0
      %v2511 = vsel %vm682, %v2370, 0
      %v2514 = vsel %vm682, %v2371, 0
      %v2517 = vsel %vm682, %v2372, 0
      %v2520 = vsel %vm682, %v2373, 0
      %v2523 = vsel %vm682, %v2374, 0
      %v2526 = vsel %vm682, %v2375, 0
      %v2529 = vsel %vm682, %v2376, 0
      %v2532 = vsel %vm682, %v2377, 0
      %v2535 = vsel %vm682, %v2378, 0
      %v2538 = vsel %vm682, %v2379, 0
      %v2541 = vsel %vm682, %v2380, 0
      %v2544 = vsel %vm682, %v2381, 0
      %v2547 = vsel %vm682, %v2382, 0
      %v2550 = vsel %vm682, %v2383, 0
      %v2553 = vsel %vm682, %v2384, 0
      %v2556 = vsel %vm682, %v2385, 0
      %v2559 = vsel %vm682, %v2386, 0
      %v2562 = vsel %vm682, %v2387, 0
      %v2565 = vsel %vm682, %v2388, 0
      %v2568 = vsel %vm682, %v2389, 0
      %v2571 = vsel %vm682, %v2390, 0
      %v2574 = vsel %vm682, %v2391, 0
      %v2577 = vsel %vm682, %v2392, 0
      %v2580 = vsel %vm682, %v2393, 0
      %v2583 = vsel %vm682, %v2394, 0
      %v2586 = vsel %vm682, %v2395, 0
      %v2589 = vsel %vm682, %v2396, 0
      %v2592 = vsel %vm682, %v2397, 0
      %v2595 = vsel %vm682, %v2398, 0
      %v2598 = vsel %vm682, %v2399, 0
      %v2601 = vsel %vm682, %v2400, 0
      %v2604 = vsel %vm682, %v2401, 0
      %v2607 = vsel %vm682, %v2402, 0
      %v2610 = vsel %vm682, %v2403, 0
      %v2613 = vsel %vm682, %v2404, 0
      %v2616 = vsel %vm682, %v2405, 0
      %v2619 = vsel %vm682, %v2406, 0
      %v2622 = vsel %vm682, %v2407, 0
      %v2625 = vsel %vm682, %v2408, 0
      %v2628 = vsel %vm682, %v2409, 0
      %v2631 = vsel %vm682, %v2410, 0
      %vm2633 = vcmask 1041408
      %v2635 = vsel %vm2633, %v2435, 0
      %v2638 = vsel %vm2633, %v2436, 0
      %2640 = vmatprep.subr.bf16.mxu0 0
      %2641 = vmatpush1.bf16.msra.mxu0 0
      %2642 = vmatprep.subr.bf16.mxu0 0
      %2643 = vmatpush1.bf16.msra.mxu0 0
      %2644 = vmatprep.subr.bf16.mxu0 0
      %2645 = vmatpush1.bf16.msra.mxu0 0
      %2646 = vmatprep.subr.bf16.mxu0 0
      %2647 = vmatpush1.bf16.msra.mxu0 0
      %2648 = vmatprep.subr.bf16.mxu0 0
      %2649 = vmatpush1.bf16.msra.mxu0 0
      %2650 = vmatprep.subr.bf16.mxu0 %v2638
      %2651 = vmatpush1.bf16.msra.mxu0 %v2635
      %2652 = vmatprep.subr.bf16.mxu0 %v2434
      %2653 = vmatpush1.bf16.msra.mxu0 %v2433
      %2654 = vmatprep.subr.bf16.mxu0 %v2432
      %2655 = vmatpush1.bf16.msra.mxu0 %v2431
      %2656 = vmatprep.subr.bf16.mxu0 0
      %2657 = vmatpush2.bf16.msra.mxu0 0
      %2658 = vmatprep.subr.bf16.mxu0 0
      %2659 = vmatpush2.bf16.msra.mxu0 0
      %2660 = vmatprep.subr.bf16.mxu0 0
      %2661 = vmatpush2.bf16.msra.mxu0 0
      %2662 = vmatprep.subr.bf16.mxu0 0
      %2663 = vmatpush2.bf16.msra.mxu0 0
      %2664 = vmatprep.subr.bf16.mxu0 0
      %2665 = vmatpush2.bf16.msra.mxu0 0
      %2666 = vmatprep.subr.bf16.mxu0 0
      %2667 = vmatpush2.bf16.msra.mxu0 0
      %2668 = vmatprep.subr.bf16.mxu0 0
      %2669 = vmatpush2.bf16.msra.mxu0 0
      %2670 = vmatprep.subr.bf16.mxu0 0
      %2671 = vmatpush2.bf16.msra.mxu0 0
      %2672 = vmatprep.mubr.bf16.mxu0 0
      %2673 = vmatmul.mubr.bf16.gmra.mxu0 %v2442
      %v2674 = vpop.f32.mrf.mxu0
      %v2675 = vadd.f32 0.0, %v2674
      %v2676 = vpop.f32.mrf.mxu0
      %v2677 = vadd.f32 0.0, %v2676
      %v2678 = vpop.f32.mrf.mxu0
      %v2679 = vadd.f32 0.0, %v2678
      %v2680 = vpop.f32.mrf.mxu0
      %v2681 = vadd.f32 0.0, %v2680
      %2682 = vmatprep.mubr.bf16.mxu0 0
      %2683 = vmatmul.mubr.bf16.gmra.mxu0 %v2445
      %v2684 = vpop.f32.mrf.mxu0
      %v2685 = vadd.f32 0.0, %v2684
      %v2686 = vpop.f32.mrf.mxu0
      %v2687 = vadd.f32 0.0, %v2686
      %v2688 = vpop.f32.mrf.mxu0
      %v2689 = vadd.f32 0.0, %v2688
      %v2690 = vpop.f32.mrf.mxu0
      %v2691 = vadd.f32 0.0, %v2690
      %2692 = vmatprep.mubr.bf16.mxu0 0
      %2693 = vmatmul.mubr.bf16.gmra.mxu0 %v2448
      %v2694 = vpop.f32.mrf.mxu0
      %v2695 = vadd.f32 0.0, %v2694
      %v2696 = vpop.f32.mrf.mxu0
      %v2697 = vadd.f32 0.0, %v2696
      %v2698 = vpop.f32.mrf.mxu0
      %v2699 = vadd.f32 0.0, %v2698
      %v2700 = vpop.f32.mrf.mxu0
      %v2701 = vadd.f32 0.0, %v2700
      %2702 = vmatprep.mubr.bf16.mxu0 0
      %2703 = vmatmul.mubr.bf16.gmra.mxu0 %v2451
      %v2704 = vpop.f32.mrf.mxu0
      %v2705 = vadd.f32 0.0, %v2704
      %v2706 = vpop.f32.mrf.mxu0
      %v2707 = vadd.f32 0.0, %v2706
      %v2708 = vpop.f32.mrf.mxu0
      %v2709 = vadd.f32 0.0, %v2708
      %v2710 = vpop.f32.mrf.mxu0
      %v2711 = vadd.f32 0.0, %v2710
      %2712 = vmatprep.mubr.bf16.mxu0 0
      %2713 = vmatmul.mubr.bf16.gmra.mxu0 %v2454
      %v2714 = vpop.f32.mrf.mxu0
      %v2715 = vadd.f32 0.0, %v2714
      %v2716 = vpop.f32.mrf.mxu0
      %v2717 = vadd.f32 0.0, %v2716
      %v2718 = vpop.f32.mrf.mxu0
      %v2719 = vadd.f32 0.0, %v2718
      %v2720 = vpop.f32.mrf.mxu0
      %v2721 = vadd.f32 0.0, %v2720
      %2722 = vmatprep.mubr.bf16.mxu0 0
      %2723 = vmatmul.mubr.bf16.gmra.mxu0 %v2457
      %v2724 = vpop.f32.mrf.mxu0
      %v2725 = vadd.f32 0.0, %v2724
      %v2726 = vpop.f32.mrf.mxu0
      %v2727 = vadd.f32 0.0, %v2726
      %v2728 = vpop.f32.mrf.mxu0
      %v2729 = vadd.f32 0.0, %v2728
      %v2730 = vpop.f32.mrf.mxu0
      %v2731 = vadd.f32 0.0, %v2730
      %2732 = vmatprep.mubr.bf16.mxu0 0
      %2733 = vmatmul.mubr.bf16.gmra.mxu0 %v2460
      %v2734 = vpop.f32.mrf.mxu0
      %v2735 = vadd.f32 0.0, %v2734
      %v2736 = vpop.f32.mrf.mxu0
      %v2737 = vadd.f32 0.0, %v2736
      %v2738 = vpop.f32.mrf.mxu0
      %v2739 = vadd.f32 0.0, %v2738
      %v2740 = vpop.f32.mrf.mxu0
      %v2741 = vadd.f32 0.0, %v2740
      %2742 = vmatprep.mubr.bf16.mxu0 0
      %2743 = vmatmul.mubr.bf16.gmra.mxu0 %v2463
      %v2744 = vpop.f32.mrf.mxu0
      %v2745 = vadd.f32 0.0, %v2744
      %v2746 = vpop.f32.mrf.mxu0
      %v2747 = vadd.f32 0.0, %v2746
      %v2748 = vpop.f32.mrf.mxu0
      %v2749 = vadd.f32 0.0, %v2748
      %v2750 = vpop.f32.mrf.mxu0
      %v2751 = vadd.f32 0.0, %v2750
      %2752 = vmatprep.mubr.bf16.mxu0 0
      %2753 = vmatmul.mubr.bf16.gmra.mxu0 %v2466
      %v2754 = vpop.f32.mrf.mxu0
      %v2755 = vadd.f32 0.0, %v2754
      %v2756 = vpop.f32.mrf.mxu0
      %v2757 = vadd.f32 0.0, %v2756
      %v2758 = vpop.f32.mrf.mxu0
      %v2759 = vadd.f32 0.0, %v2758
      %v2760 = vpop.f32.mrf.mxu0
      %v2761 = vadd.f32 0.0, %v2760
      %2762 = vmatprep.mubr.bf16.mxu0 0
      %2763 = vmatmul.mubr.bf16.gmra.mxu0 %v2469
      %v2764 = vpop.f32.mrf.mxu0
      %v2765 = vadd.f32 0.0, %v2764
      %v2766 = vpop.f32.mrf.mxu0
      %v2767 = vadd.f32 0.0, %v2766
      %v2768 = vpop.f32.mrf.mxu0
      %v2769 = vadd.f32 0.0, %v2768
      %v2770 = vpop.f32.mrf.mxu0
      %v2771 = vadd.f32 0.0, %v2770
      %2772 = vmatprep.mubr.bf16.mxu0 0
      %2773 = vmatmul.mubr.bf16.gmra.mxu0 %v2472
      %v2774 = vpop.f32.mrf.mxu0
      %v2775 = vadd.f32 0.0, %v2774
      %v2776 = vpop.f32.mrf.mxu0
      %v2777 = vadd.f32 0.0, %v2776
      %v2778 = vpop.f32.mrf.mxu0
      %v2779 = vadd.f32 0.0, %v2778
      %v2780 = vpop.f32.mrf.mxu0
      %v2781 = vadd.f32 0.0, %v2780
      %2782 = vmatprep.mubr.bf16.mxu0 0
      %2783 = vmatmul.mubr.bf16.gmra.mxu0 %v2475
      %v2784 = vpop.f32.mrf.mxu0
      %v2785 = vadd.f32 0.0, %v2784
      %v2786 = vpop.f32.mrf.mxu0
      %v2787 = vadd.f32 0.0, %v2786
      %v2788 = vpop.f32.mrf.mxu0
      %v2789 = vadd.f32 0.0, %v2788
      %v2790 = vpop.f32.mrf.mxu0
      %v2791 = vadd.f32 0.0, %v2790
      %2792 = vmatprep.mubr.bf16.mxu0 0
      %2793 = vmatmul.mubr.bf16.gmra.mxu0 %v2478
      %v2794 = vpop.f32.mrf.mxu0
      %v2795 = vadd.f32 0.0, %v2794
      %v2796 = vpop.f32.mrf.mxu0
      %v2797 = vadd.f32 0.0, %v2796
      %v2798 = vpop.f32.mrf.mxu0
      %v2799 = vadd.f32 0.0, %v2798
      %v2800 = vpop.f32.mrf.mxu0
      %v2801 = vadd.f32 0.0, %v2800
      %2802 = vmatprep.mubr.bf16.mxu0 0
      %2803 = vmatmul.mubr.bf16.gmra.mxu0 %v2481
      %v2804 = vpop.f32.mrf.mxu0
      %v2805 = vadd.f32 0.0, %v2804
      %v2806 = vpop.f32.mrf.mxu0
      %v2807 = vadd.f32 0.0, %v2806
      %v2808 = vpop.f32.mrf.mxu0
      %v2809 = vadd.f32 0.0, %v2808
      %v2810 = vpop.f32.mrf.mxu0
      %v2811 = vadd.f32 0.0, %v2810
      %2812 = vmatprep.mubr.bf16.mxu0 0
      %2813 = vmatmul.mubr.bf16.gmra.mxu0 %v2484
      %v2814 = vpop.f32.mrf.mxu0
      %v2815 = vadd.f32 0.0, %v2814
      %v2816 = vpop.f32.mrf.mxu0
      %v2817 = vadd.f32 0.0, %v2816
      %v2818 = vpop.f32.mrf.mxu0
      %v2819 = vadd.f32 0.0, %v2818
      %v2820 = vpop.f32.mrf.mxu0
      %v2821 = vadd.f32 0.0, %v2820
      %2822 = vmatprep.mubr.bf16.mxu0 0
      %2823 = vmatmul.mubr.bf16.gmra.mxu0 %v2487
      %v2824 = vpop.f32.mrf.mxu0
      %v2825 = vadd.f32 0.0, %v2824
      %v2826 = vpop.f32.mrf.mxu0
      %v2827 = vadd.f32 0.0, %v2826
      %v2828 = vpop.f32.mrf.mxu0
      %v2829 = vadd.f32 0.0, %v2828
      %v2830 = vpop.f32.mrf.mxu0
      %v2831 = vadd.f32 0.0, %v2830
      %2832 = vmatprep.mubr.bf16.mxu0 0
      %2833 = vmatmul.mubr.bf16.gmra.mxu0 %v2490
      %v2834 = vpop.f32.mrf.mxu0
      %v2835 = vadd.f32 0.0, %v2834
      %v2836 = vpop.f32.mrf.mxu0
      %v2837 = vadd.f32 0.0, %v2836
      %v2838 = vpop.f32.mrf.mxu0
      %v2839 = vadd.f32 0.0, %v2838
      %v2840 = vpop.f32.mrf.mxu0
      %v2841 = vadd.f32 0.0, %v2840
      %2842 = vmatprep.mubr.bf16.mxu0 0
      %2843 = vmatmul.mubr.bf16.gmra.mxu0 %v2493
      %v2844 = vpop.f32.mrf.mxu0
      %v2845 = vadd.f32 0.0, %v2844
      %v2846 = vpop.f32.mrf.mxu0
      %v2847 = vadd.f32 0.0, %v2846
      %v2848 = vpop.f32.mrf.mxu0
      %v2849 = vadd.f32 0.0, %v2848
      %v2850 = vpop.f32.mrf.mxu0
      %v2851 = vadd.f32 0.0, %v2850
      %2852 = vmatprep.mubr.bf16.mxu0 0
      %2853 = vmatmul.mubr.bf16.gmra.mxu0 %v2496
      %v2854 = vpop.f32.mrf.mxu0
      %v2855 = vadd.f32 0.0, %v2854
      %v2856 = vpop.f32.mrf.mxu0
      %v2857 = vadd.f32 0.0, %v2856
      %v2858 = vpop.f32.mrf.mxu0
      %v2859 = vadd.f32 0.0, %v2858
      %v2860 = vpop.f32.mrf.mxu0
      %v2861 = vadd.f32 0.0, %v2860
      %2862 = vmatprep.mubr.bf16.mxu0 0
      %2863 = vmatmul.mubr.bf16.gmra.mxu0 %v2499
      %v2864 = vpop.f32.mrf.mxu0
      %v2865 = vadd.f32 0.0, %v2864
      %v2866 = vpop.f32.mrf.mxu0
      %v2867 = vadd.f32 0.0, %v2866
      %v2868 = vpop.f32.mrf.mxu0
      %v2869 = vadd.f32 0.0, %v2868
      %v2870 = vpop.f32.mrf.mxu0
      %v2871 = vadd.f32 0.0, %v2870
      %2872 = vmatprep.mubr.bf16.mxu0 0
      %2873 = vmatmul.mubr.bf16.gmra.mxu0 %v2502
      %v2874 = vpop.f32.mrf.mxu0
      %v2875 = vadd.f32 0.0, %v2874
      %v2876 = vpop.f32.mrf.mxu0
      %v2877 = vadd.f32 0.0, %v2876
      %v2878 = vpop.f32.mrf.mxu0
      %v2879 = vadd.f32 0.0, %v2878
      %v2880 = vpop.f32.mrf.mxu0
      %v2881 = vadd.f32 0.0, %v2880
      %2882 = vmatprep.mubr.bf16.mxu0 0
      %2883 = vmatmul.mubr.bf16.gmra.mxu0 %v2505
      %v2884 = vpop.f32.mrf.mxu0
      %v2885 = vadd.f32 0.0, %v2884
      %v2886 = vpop.f32.mrf.mxu0
      %v2887 = vadd.f32 0.0, %v2886
      %v2888 = vpop.f32.mrf.mxu0
      %v2889 = vadd.f32 0.0, %v2888
      %v2890 = vpop.f32.mrf.mxu0
      %v2891 = vadd.f32 0.0, %v2890
      %2892 = vmatprep.mubr.bf16.mxu0 0
      %2893 = vmatmul.mubr.bf16.gmra.mxu0 %v2508
      %v2894 = vpop.f32.mrf.mxu0
      %v2895 = vadd.f32 0.0, %v2894
      %v2896 = vpop.f32.mrf.mxu0
      %v2897 = vadd.f32 0.0, %v2896
      %v2898 = vpop.f32.mrf.mxu0
      %v2899 = vadd.f32 0.0, %v2898
      %v2900 = vpop.f32.mrf.mxu0
      %v2901 = vadd.f32 0.0, %v2900
      %2902 = vmatprep.mubr.bf16.mxu0 0
      %2903 = vmatmul.mubr.bf16.gmra.mxu0 %v2511
      %v2904 = vpop.f32.mrf.mxu0
      %v2905 = vadd.f32 0.0, %v2904
      %v2906 = vpop.f32.mrf.mxu0
      %v2907 = vadd.f32 0.0, %v2906
      %v2908 = vpop.f32.mrf.mxu0
      %v2909 = vadd.f32 0.0, %v2908
      %v2910 = vpop.f32.mrf.mxu0
      %v2911 = vadd.f32 0.0, %v2910
      %2912 = vmatprep.mubr.bf16.mxu0 0
      %2913 = vmatmul.mubr.bf16.gmra.mxu0 %v2514
      %v2914 = vpop.f32.mrf.mxu0
      %v2915 = vadd.f32 0.0, %v2914
      %v2916 = vpop.f32.mrf.mxu0
      %v2917 = vadd.f32 0.0, %v2916
      %v2918 = vpop.f32.mrf.mxu0
      %v2919 = vadd.f32 0.0, %v2918
      %v2920 = vpop.f32.mrf.mxu0
      %v2921 = vadd.f32 0.0, %v2920
      %2922 = vmatprep.mubr.bf16.mxu0 0
      %2923 = vmatmul.mubr.bf16.gmra.mxu0 %v2517
      %v2924 = vpop.f32.mrf.mxu0
      %v2925 = vadd.f32 0.0, %v2924
      %v2926 = vpop.f32.mrf.mxu0
      %v2927 = vadd.f32 0.0, %v2926
      %v2928 = vpop.f32.mrf.mxu0
      %v2929 = vadd.f32 0.0, %v2928
      %v2930 = vpop.f32.mrf.mxu0
      %v2931 = vadd.f32 0.0, %v2930
      %2932 = vmatprep.mubr.bf16.mxu0 0
      %2933 = vmatmul.mubr.bf16.gmra.mxu0 %v2520
      %v2934 = vpop.f32.mrf.mxu0
      %v2935 = vadd.f32 0.0, %v2934
      %v2936 = vpop.f32.mrf.mxu0
      %v2937 = vadd.f32 0.0, %v2936
      %v2938 = vpop.f32.mrf.mxu0
      %v2939 = vadd.f32 0.0, %v2938
      %v2940 = vpop.f32.mrf.mxu0
      %v2941 = vadd.f32 0.0, %v2940
      %2942 = vmatprep.mubr.bf16.mxu0 0
      %2943 = vmatmul.mubr.bf16.gmra.mxu0 %v2523
      %v2944 = vpop.f32.mrf.mxu0
      %v2945 = vadd.f32 0.0, %v2944
      %v2946 = vpop.f32.mrf.mxu0
      %v2947 = vadd.f32 0.0, %v2946
      %v2948 = vpop.f32.mrf.mxu0
      %v2949 = vadd.f32 0.0, %v2948
      %v2950 = vpop.f32.mrf.mxu0
      %v2951 = vadd.f32 0.0, %v2950
      %2952 = vmatprep.mubr.bf16.mxu0 0
      %2953 = vmatmul.mubr.bf16.gmra.mxu0 %v2526
      %v2954 = vpop.f32.mrf.mxu0
      %v2955 = vadd.f32 0.0, %v2954
      %v2956 = vpop.f32.mrf.mxu0
      %v2957 = vadd.f32 0.0, %v2956
      %v2958 = vpop.f32.mrf.mxu0
      %v2959 = vadd.f32 0.0, %v2958
      %v2960 = vpop.f32.mrf.mxu0
      %v2961 = vadd.f32 0.0, %v2960
      %2962 = vmatprep.mubr.bf16.mxu0 0
      %2963 = vmatmul.mubr.bf16.gmra.mxu0 %v2529
      %v2964 = vpop.f32.mrf.mxu0
      %v2965 = vadd.f32 0.0, %v2964
      %v2966 = vpop.f32.mrf.mxu0
      %v2967 = vadd.f32 0.0, %v2966
      %v2968 = vpop.f32.mrf.mxu0
      %v2969 = vadd.f32 0.0, %v2968
      %v2970 = vpop.f32.mrf.mxu0
      %v2971 = vadd.f32 0.0, %v2970
      %2972 = vmatprep.mubr.bf16.mxu0 0
      %2973 = vmatmul.mubr.bf16.gmra.mxu0 %v2532
      %v2974 = vpop.f32.mrf.mxu0
      %v2975 = vadd.f32 0.0, %v2974
      %v2976 = vpop.f32.mrf.mxu0
      %v2977 = vadd.f32 0.0, %v2976
      %v2978 = vpop.f32.mrf.mxu0
      %v2979 = vadd.f32 0.0, %v2978
      %v2980 = vpop.f32.mrf.mxu0
      %v2981 = vadd.f32 0.0, %v2980
      %2982 = vmatprep.mubr.bf16.mxu0 0
      %2983 = vmatmul.mubr.bf16.gmra.mxu0 %v2535
      %v2984 = vpop.f32.mrf.mxu0
      %v2985 = vadd.f32 0.0, %v2984
      %v2986 = vpop.f32.mrf.mxu0
      %v2987 = vadd.f32 0.0, %v2986
      %v2988 = vpop.f32.mrf.mxu0
      %v2989 = vadd.f32 0.0, %v2988
      %v2990 = vpop.f32.mrf.mxu0
      %v2991 = vadd.f32 0.0, %v2990
      %2992 = vmatprep.mubr.bf16.mxu0 0
      %2993 = vmatmul.mubr.bf16.gmra.mxu0 %v2538
      %v2994 = vpop.f32.mrf.mxu0
      %v2995 = vadd.f32 0.0, %v2994
      %v2996 = vpop.f32.mrf.mxu0
      %v2997 = vadd.f32 0.0, %v2996
      %v2998 = vpop.f32.mrf.mxu0
      %v2999 = vadd.f32 0.0, %v2998
      %v3000 = vpop.f32.mrf.mxu0
      %v3001 = vadd.f32 0.0, %v3000
      %3002 = vmatprep.mubr.bf16.mxu0 0
      %3003 = vmatmul.mubr.bf16.gmra.mxu0 %v2541
      %v3004 = vpop.f32.mrf.mxu0
      %v3005 = vadd.f32 0.0, %v3004
      %v3006 = vpop.f32.mrf.mxu0
      %v3007 = vadd.f32 0.0, %v3006
      %v3008 = vpop.f32.mrf.mxu0
      %v3009 = vadd.f32 0.0, %v3008
      %v3010 = vpop.f32.mrf.mxu0
      %v3011 = vadd.f32 0.0, %v3010
      %3012 = vmatprep.mubr.bf16.mxu0 0
      %3013 = vmatmul.mubr.bf16.gmra.mxu0 %v2544
      %v3014 = vpop.f32.mrf.mxu0
      %v3015 = vadd.f32 0.0, %v3014
      %v3016 = vpop.f32.mrf.mxu0
      %v3017 = vadd.f32 0.0, %v3016
      %v3018 = vpop.f32.mrf.mxu0
      %v3019 = vadd.f32 0.0, %v3018
      %v3020 = vpop.f32.mrf.mxu0
      %v3021 = vadd.f32 0.0, %v3020
      %3022 = vmatprep.mubr.bf16.mxu0 0
      %3023 = vmatmul.mubr.bf16.gmra.mxu0 %v2547
      %v3024 = vpop.f32.mrf.mxu0
      %v3025 = vadd.f32 0.0, %v3024
      %v3026 = vpop.f32.mrf.mxu0
      %v3027 = vadd.f32 0.0, %v3026
      %v3028 = vpop.f32.mrf.mxu0
      %v3029 = vadd.f32 0.0, %v3028
      %v3030 = vpop.f32.mrf.mxu0
      %v3031 = vadd.f32 0.0, %v3030
      %3032 = vmatprep.mubr.bf16.mxu0 0
      %3033 = vmatmul.mubr.bf16.gmra.mxu0 %v2550
      %v3034 = vpop.f32.mrf.mxu0
      %v3035 = vadd.f32 0.0, %v3034
      %v3036 = vpop.f32.mrf.mxu0
      %v3037 = vadd.f32 0.0, %v3036
      %v3038 = vpop.f32.mrf.mxu0
      %v3039 = vadd.f32 0.0, %v3038
      %v3040 = vpop.f32.mrf.mxu0
      %v3041 = vadd.f32 0.0, %v3040
      %3042 = vmatprep.mubr.bf16.mxu0 0
      %3043 = vmatmul.mubr.bf16.gmra.mxu0 %v2553
      %v3044 = vpop.f32.mrf.mxu0
      %v3045 = vadd.f32 0.0, %v3044
      %v3046 = vpop.f32.mrf.mxu0
      %v3047 = vadd.f32 0.0, %v3046
      %v3048 = vpop.f32.mrf.mxu0
      %v3049 = vadd.f32 0.0, %v3048
      %v3050 = vpop.f32.mrf.mxu0
      %v3051 = vadd.f32 0.0, %v3050
      %3052 = vmatprep.mubr.bf16.mxu0 0
      %3053 = vmatmul.mubr.bf16.gmra.mxu0 %v2556
      %v3054 = vpop.f32.mrf.mxu0
      %v3055 = vadd.f32 0.0, %v3054
      %v3056 = vpop.f32.mrf.mxu0
      %v3057 = vadd.f32 0.0, %v3056
      %v3058 = vpop.f32.mrf.mxu0
      %v3059 = vadd.f32 0.0, %v3058
      %v3060 = vpop.f32.mrf.mxu0
      %v3061 = vadd.f32 0.0, %v3060
      %3062 = vmatprep.mubr.bf16.mxu0 0
      %3063 = vmatmul.mubr.bf16.gmra.mxu0 %v2559
      %v3064 = vpop.f32.mrf.mxu0
      %v3065 = vadd.f32 0.0, %v3064
      %v3066 = vpop.f32.mrf.mxu0
      %v3067 = vadd.f32 0.0, %v3066
      %v3068 = vpop.f32.mrf.mxu0
      %v3069 = vadd.f32 0.0, %v3068
      %v3070 = vpop.f32.mrf.mxu0
      %v3071 = vadd.f32 0.0, %v3070
      %3072 = vmatprep.mubr.bf16.mxu0 0
      %3073 = vmatmul.mubr.bf16.gmra.mxu0 %v2562
      %v3074 = vpop.f32.mrf.mxu0
      %v3075 = vadd.f32 0.0, %v3074
      %v3076 = vpop.f32.mrf.mxu0
      %v3077 = vadd.f32 0.0, %v3076
      %v3078 = vpop.f32.mrf.mxu0
      %v3079 = vadd.f32 0.0, %v3078
      %v3080 = vpop.f32.mrf.mxu0
      %v3081 = vadd.f32 0.0, %v3080
      %3082 = vmatprep.mubr.bf16.mxu0 0
      %3083 = vmatmul.mubr.bf16.gmra.mxu0 %v2565
      %v3084 = vpop.f32.mrf.mxu0
      %v3085 = vadd.f32 0.0, %v3084
      %v3086 = vpop.f32.mrf.mxu0
      %v3087 = vadd.f32 0.0, %v3086
      %v3088 = vpop.f32.mrf.mxu0
      %v3089 = vadd.f32 0.0, %v3088
      %v3090 = vpop.f32.mrf.mxu0
      %v3091 = vadd.f32 0.0, %v3090
      %3092 = vmatprep.mubr.bf16.mxu0 0
      %3093 = vmatmul.mubr.bf16.gmra.mxu0 %v2568
      %v3094 = vpop.f32.mrf.mxu0
      %v3095 = vadd.f32 0.0, %v3094
      %v3096 = vpop.f32.mrf.mxu0
      %v3097 = vadd.f32 0.0, %v3096
      %v3098 = vpop.f32.mrf.mxu0
      %v3099 = vadd.f32 0.0, %v3098
      %v3100 = vpop.f32.mrf.mxu0
      %v3101 = vadd.f32 0.0, %v3100
      %3102 = vmatprep.mubr.bf16.mxu0 0
      %3103 = vmatmul.mubr.bf16.gmra.mxu0 %v2571
      %v3104 = vpop.f32.mrf.mxu0
      %v3105 = vadd.f32 0.0, %v3104
      %v3106 = vpop.f32.mrf.mxu0
      %v3107 = vadd.f32 0.0, %v3106
      %v3108 = vpop.f32.mrf.mxu0
      %v3109 = vadd.f32 0.0, %v3108
      %v3110 = vpop.f32.mrf.mxu0
      %v3111 = vadd.f32 0.0, %v3110
      %3112 = vmatprep.mubr.bf16.mxu0 0
      %3113 = vmatmul.mubr.bf16.gmra.mxu0 %v2574
      %v3114 = vpop.f32.mrf.mxu0
      %v3115 = vadd.f32 0.0, %v3114
      %v3116 = vpop.f32.mrf.mxu0
      %v3117 = vadd.f32 0.0, %v3116
      %v3118 = vpop.f32.mrf.mxu0
      %v3119 = vadd.f32 0.0, %v3118
      %v3120 = vpop.f32.mrf.mxu0
      %v3121 = vadd.f32 0.0, %v3120
      %3122 = vmatprep.mubr.bf16.mxu0 0
      %3123 = vmatmul.mubr.bf16.gmra.mxu0 %v2577
      %v3124 = vpop.f32.mrf.mxu0
      %v3125 = vadd.f32 0.0, %v3124
      %v3126 = vpop.f32.mrf.mxu0
      %v3127 = vadd.f32 0.0, %v3126
      %v3128 = vpop.f32.mrf.mxu0
      %v3129 = vadd.f32 0.0, %v3128
      %v3130 = vpop.f32.mrf.mxu0
      %v3131 = vadd.f32 0.0, %v3130
      %3132 = vmatprep.mubr.bf16.mxu0 0
      %3133 = vmatmul.mubr.bf16.gmra.mxu0 %v2580
      %v3134 = vpop.f32.mrf.mxu0
      %v3135 = vadd.f32 0.0, %v3134
      %v3136 = vpop.f32.mrf.mxu0
      %v3137 = vadd.f32 0.0, %v3136
      %v3138 = vpop.f32.mrf.mxu0
      %v3139 = vadd.f32 0.0, %v3138
      %v3140 = vpop.f32.mrf.mxu0
      %v3141 = vadd.f32 0.0, %v3140
      %3142 = vmatprep.mubr.bf16.mxu0 0
      %3143 = vmatmul.mubr.bf16.gmra.mxu0 %v2583
      %v3144 = vpop.f32.mrf.mxu0
      %v3145 = vadd.f32 0.0, %v3144
      %v3146 = vpop.f32.mrf.mxu0
      %v3147 = vadd.f32 0.0, %v3146
      %v3148 = vpop.f32.mrf.mxu0
      %v3149 = vadd.f32 0.0, %v3148
      %v3150 = vpop.f32.mrf.mxu0
      %v3151 = vadd.f32 0.0, %v3150
      %3152 = vmatprep.mubr.bf16.mxu0 0
      %3153 = vmatmul.mubr.bf16.gmra.mxu0 %v2586
      %v3154 = vpop.f32.mrf.mxu0
      %v3155 = vadd.f32 0.0, %v3154
      %v3156 = vpop.f32.mrf.mxu0
      %v3157 = vadd.f32 0.0, %v3156
      %v3158 = vpop.f32.mrf.mxu0
      %v3159 = vadd.f32 0.0, %v3158
      %v3160 = vpop.f32.mrf.mxu0
      %v3161 = vadd.f32 0.0, %v3160
      %3162 = vmatprep.mubr.bf16.mxu0 0
      %3163 = vmatmul.mubr.bf16.gmra.mxu0 %v2589
      %v3164 = vpop.f32.mrf.mxu0
      %v3165 = vadd.f32 0.0, %v3164
      %v3166 = vpop.f32.mrf.mxu0
      %v3167 = vadd.f32 0.0, %v3166
      %v3168 = vpop.f32.mrf.mxu0
      %v3169 = vadd.f32 0.0, %v3168
      %v3170 = vpop.f32.mrf.mxu0
      %v3171 = vadd.f32 0.0, %v3170
      %3172 = vmatprep.mubr.bf16.mxu0 0
      %3173 = vmatmul.mubr.bf16.gmra.mxu0 %v2592
      %v3174 = vpop.f32.mrf.mxu0
      %v3175 = vadd.f32 0.0, %v3174
      %v3176 = vpop.f32.mrf.mxu0
      %v3177 = vadd.f32 0.0, %v3176
      %v3178 = vpop.f32.mrf.mxu0
      %v3179 = vadd.f32 0.0, %v3178
      %v3180 = vpop.f32.mrf.mxu0
      %v3181 = vadd.f32 0.0, %v3180
      %3182 = vmatprep.mubr.bf16.mxu0 0
      %3183 = vmatmul.mubr.bf16.gmra.mxu0 %v2595
      %v3184 = vpop.f32.mrf.mxu0
      %v3185 = vadd.f32 0.0, %v3184
      %v3186 = vpop.f32.mrf.mxu0
      %v3187 = vadd.f32 0.0, %v3186
      %v3188 = vpop.f32.mrf.mxu0
      %v3189 = vadd.f32 0.0, %v3188
      %v3190 = vpop.f32.mrf.mxu0
      %v3191 = vadd.f32 0.0, %v3190
      %3192 = vmatprep.mubr.bf16.mxu0 0
      %3193 = vmatmul.mubr.bf16.gmra.mxu0 %v2598
      %v3194 = vpop.f32.mrf.mxu0
      %v3195 = vadd.f32 0.0, %v3194
      %v3196 = vpop.f32.mrf.mxu0
      %v3197 = vadd.f32 0.0, %v3196
      %v3198 = vpop.f32.mrf.mxu0
      %v3199 = vadd.f32 0.0, %v3198
      %v3200 = vpop.f32.mrf.mxu0
      %v3201 = vadd.f32 0.0, %v3200
      %3202 = vmatprep.mubr.bf16.mxu0 0
      %3203 = vmatmul.mubr.bf16.gmra.mxu0 %v2601
      %v3204 = vpop.f32.mrf.mxu0
      %v3205 = vadd.f32 0.0, %v3204
      %v3206 = vpop.f32.mrf.mxu0
      %v3207 = vadd.f32 0.0, %v3206
      %v3208 = vpop.f32.mrf.mxu0
      %v3209 = vadd.f32 0.0, %v3208
      %v3210 = vpop.f32.mrf.mxu0
      %v3211 = vadd.f32 0.0, %v3210
      %3212 = vmatprep.mubr.bf16.mxu0 0
      %3213 = vmatmul.mubr.bf16.gmra.mxu0 %v2604
      %v3214 = vpop.f32.mrf.mxu0
      %v3215 = vadd.f32 0.0, %v3214
      %v3216 = vpop.f32.mrf.mxu0
      %v3217 = vadd.f32 0.0, %v3216
      %v3218 = vpop.f32.mrf.mxu0
      %v3219 = vadd.f32 0.0, %v3218
      %v3220 = vpop.f32.mrf.mxu0
      %v3221 = vadd.f32 0.0, %v3220
      %3222 = vmatprep.mubr.bf16.mxu0 0
      %3223 = vmatmul.mubr.bf16.gmra.mxu0 %v2607
      %v3224 = vpop.f32.mrf.mxu0
      %v3225 = vadd.f32 0.0, %v3224
      %v3226 = vpop.f32.mrf.mxu0
      %v3227 = vadd.f32 0.0, %v3226
      %v3228 = vpop.f32.mrf.mxu0
      %v3229 = vadd.f32 0.0, %v3228
      %v3230 = vpop.f32.mrf.mxu0
      %v3231 = vadd.f32 0.0, %v3230
      %3232 = vmatprep.mubr.bf16.mxu0 0
      %3233 = vmatmul.mubr.bf16.gmra.mxu0 %v2610
      %v3234 = vpop.f32.mrf.mxu0
      %v3235 = vadd.f32 0.0, %v3234
      %v3236 = vpop.f32.mrf.mxu0
      %v3237 = vadd.f32 0.0, %v3236
      %v3238 = vpop.f32.mrf.mxu0
      %v3239 = vadd.f32 0.0, %v3238
      %v3240 = vpop.f32.mrf.mxu0
      %v3241 = vadd.f32 0.0, %v3240
      %3242 = vmatprep.mubr.bf16.mxu0 0
      %3243 = vmatmul.mubr.bf16.gmra.mxu0 %v2613
      %v3244 = vpop.f32.mrf.mxu0
      %v3245 = vadd.f32 0.0, %v3244
      %v3246 = vpop.f32.mrf.mxu0
      %v3247 = vadd.f32 0.0, %v3246
      %v3248 = vpop.f32.mrf.mxu0
      %v3249 = vadd.f32 0.0, %v3248
      %v3250 = vpop.f32.mrf.mxu0
      %v3251 = vadd.f32 0.0, %v3250
      %3252 = vmatprep.mubr.bf16.mxu0 0
      %3253 = vmatmul.mubr.bf16.gmra.mxu0 %v2616
      %v3254 = vpop.f32.mrf.mxu0
      %v3255 = vadd.f32 0.0, %v3254
      %v3256 = vpop.f32.mrf.mxu0
      %v3257 = vadd.f32 0.0, %v3256
      %v3258 = vpop.f32.mrf.mxu0
      %v3259 = vadd.f32 0.0, %v3258
      %v3260 = vpop.f32.mrf.mxu0
      %v3261 = vadd.f32 0.0, %v3260
      %3262 = vmatprep.mubr.bf16.mxu0 0
      %3263 = vmatmul.mubr.bf16.gmra.mxu0 %v2619
      %v3264 = vpop.f32.mrf.mxu0
      %v3265 = vadd.f32 0.0, %v3264
      %v3266 = vpop.f32.mrf.mxu0
      %v3267 = vadd.f32 0.0, %v3266
      %v3268 = vpop.f32.mrf.mxu0
      %v3269 = vadd.f32 0.0, %v3268
      %v3270 = vpop.f32.mrf.mxu0
      %v3271 = vadd.f32 0.0, %v3270
      %3272 = vmatprep.mubr.bf16.mxu0 0
      %3273 = vmatmul.mubr.bf16.gmra.mxu0 %v2622
      %v3274 = vpop.f32.mrf.mxu0
      %v3275 = vadd.f32 0.0, %v3274
      %v3276 = vpop.f32.mrf.mxu0
      %v3277 = vadd.f32 0.0, %v3276
      %v3278 = vpop.f32.mrf.mxu0
      %v3279 = vadd.f32 0.0, %v3278
      %v3280 = vpop.f32.mrf.mxu0
      %v3281 = vadd.f32 0.0, %v3280
      %3282 = vmatprep.mubr.bf16.mxu0 0
      %3283 = vmatmul.mubr.bf16.gmra.mxu0 %v2625
      %v3284 = vpop.f32.mrf.mxu0
      %v3285 = vadd.f32 0.0, %v3284
      %v3286 = vpop.f32.mrf.mxu0
      %v3287 = vadd.f32 0.0, %v3286
      %v3288 = vpop.f32.mrf.mxu0
      %v3289 = vadd.f32 0.0, %v3288
      %v3290 = vpop.f32.mrf.mxu0
      %v3291 = vadd.f32 0.0, %v3290
      %3292 = vmatprep.mubr.bf16.mxu0 0
      %3293 = vmatmul.mubr.bf16.gmra.mxu0 %v2628
      %v3294 = vpop.f32.mrf.mxu0
      %v3295 = vadd.f32 0.0, %v3294
      %v3296 = vpop.f32.mrf.mxu0
      %v3297 = vadd.f32 0.0, %v3296
      %v3298 = vpop.f32.mrf.mxu0
      %v3299 = vadd.f32 0.0, %v3298
      %v3300 = vpop.f32.mrf.mxu0
      %v3301 = vadd.f32 0.0, %v3300
      %3302 = vmatprep.mubr.bf16.mxu0 0
      %3303 = vmatmul.mubr.bf16.gmra.mxu0 %v2631
      %v3304 = vpop.f32.mrf.mxu0
      %v3305 = vadd.f32 0.0, %v3304
      %v3306 = vpop.f32.mrf.mxu0
      %v3307 = vadd.f32 0.0, %v3306
      %v3308 = vpop.f32.mrf.mxu0
      %v3309 = vadd.f32 0.0, %v3308
      %v3310 = vpop.f32.mrf.mxu0
      %v3311 = vadd.f32 0.0, %v3310
      %3312 = vdwg.mxu0
      %v3313 = vmax.f32 %v2675, %v2685
      %v3314 = vmax.f32 %v2679, %v2689
      %v3315 = vmax.f32 %v3313, %v2695
      %v3316 = vmax.f32 %v3314, %v2699
      %v3317 = vmax.f32 %v3315, %v2705
      %v3318 = vmax.f32 %v3316, %v2709
      %v3319 = vmax.f32 %v3317, %v2715
      %v3320 = vmax.f32 %v3318, %v2719
      %v3321 = vmax.f32 %v3319, %v2725
      %v3322 = vmax.f32 %v3320, %v2729
      %v3323 = vmax.f32 %v3321, %v2735
      %v3324 = vmax.f32 %v3322, %v2739
      %v3325 = vmax.f32 %v3323, %v2745
      %v3326 = vmax.f32 %v3324, %v2749
      %v3327 = vmax.f32 %v3325, %v2755
      %v3328 = vmax.f32 %v3326, %v2759
      %v3329 = vmax.f32 %v3327, %v2765
      %v3330 = vmax.f32 %v3328, %v2769
      %v3331 = vmax.f32 %v3329, %v2775
      %v3332 = vmax.f32 %v3330, %v2779
      %v3333 = vmax.f32 %v3331, %v2785
      %v3334 = vmax.f32 %v3332, %v2789
      %v3335 = vmax.f32 %v3333, %v2795
      %v3336 = vmax.f32 %v3334, %v2799
      %v3337 = vmax.f32 %v3335, %v2805
      %v3338 = vmax.f32 %v3336, %v2809
      %v3339 = vmax.f32 %v3337, %v2815
      %v3340 = vmax.f32 %v3338, %v2819
      %v3341 = vmax.f32 %v3339, %v2825
      %v3342 = vmax.f32 %v3340, %v2829
      %v3343 = vmax.f32 %v3341, %v2835
      %v3344 = vmax.f32 %v3342, %v2839
      %v3345 = vmax.f32 %v3343, %v2845
      %v3346 = vmax.f32 %v3344, %v2849
      %v3347 = vmax.f32 %v3345, %v2855
      %v3348 = vmax.f32 %v3346, %v2859
      %v3349 = vmax.f32 %v3347, %v2865
      %v3350 = vmax.f32 %v3348, %v2869
      %v3351 = vmax.f32 %v3349, %v2875
      %v3352 = vmax.f32 %v3350, %v2879
      %v3353 = vmax.f32 %v3351, %v2885
      %v3354 = vmax.f32 %v3352, %v2889
      %v3355 = vmax.f32 %v3353, %v2895
      %v3356 = vmax.f32 %v3354, %v2899
      %v3357 = vmax.f32 %v3355, %v2905
      %v3358 = vmax.f32 %v3356, %v2909
      %v3359 = vmax.f32 %v3357, %v2915
      %v3360 = vmax.f32 %v3358, %v2919
      %v3361 = vmax.f32 %v3359, %v2925
      %v3362 = vmax.f32 %v3360, %v2929
      %v3363 = vmax.f32 %v3361, %v2935
      %v3364 = vmax.f32 %v3362, %v2939
      %v3365 = vmax.f32 %v3363, %v2945
      %v3366 = vmax.f32 %v3364, %v2949
      %v3367 = vmax.f32 %v3365, %v2955
      %v3368 = vmax.f32 %v3366, %v2959
      %v3369 = vmax.f32 %v3367, %v2965
      %v3370 = vmax.f32 %v3368, %v2969
      %v3371 = vmax.f32 %v3369, %v2975
      %v3372 = vmax.f32 %v3370, %v2979
      %v3373 = vmax.f32 %v3371, %v2985
      %v3374 = vmax.f32 %v3372, %v2989
      %v3375 = vmax.f32 %v3373, %v2995
      %v3376 = vmax.f32 %v3374, %v2999
      %v3377 = vmax.f32 %v3375, %v3005
      %v3378 = vmax.f32 %v3376, %v3009
      %v3379 = vmax.f32 %v3377, %v3015
      %v3380 = vmax.f32 %v3378, %v3019
      %v3381 = vmax.f32 %v3379, %v3025
      %v3382 = vmax.f32 %v3380, %v3029
      %v3383 = vmax.f32 %v3381, %v3035
      %v3384 = vmax.f32 %v3382, %v3039
      %v3385 = vmax.f32 %v3383, %v3045
      %v3386 = vmax.f32 %v3384, %v3049
      %v3387 = vmax.f32 %v3385, %v3055
      %v3388 = vmax.f32 %v3386, %v3059
      %v3389 = vmax.f32 %v3387, %v3065
      %v3390 = vmax.f32 %v3388, %v3069
      %v3391 = vmax.f32 %v3389, %v3075
      %v3392 = vmax.f32 %v3390, %v3079
      %v3393 = vmax.f32 %v3391, %v3085
      %v3394 = vmax.f32 %v3392, %v3089
      %v3395 = vmax.f32 %v3393, %v3095
      %v3396 = vmax.f32 %v3394, %v3099
      %v3397 = vmax.f32 %v3395, %v3105
      %v3398 = vmax.f32 %v3396, %v3109
      %v3399 = vmax.f32 %v3397, %v3115
      %v3400 = vmax.f32 %v3398, %v3119
      %v3401 = vmax.f32 %v3399, %v3125
      %v3402 = vmax.f32 %v3400, %v3129
      %v3403 = vmax.f32 %v3401, %v3135
      %v3404 = vmax.f32 %v3402, %v3139
      %v3405 = vmax.f32 %v3403, %v3145
      %v3406 = vmax.f32 %v3404, %v3149
      %v3407 = vmax.f32 %v3405, %v3155
      %v3408 = vmax.f32 %v3406, %v3159
      %v3409 = vmax.f32 %v3407, %v3165
      %v3410 = vmax.f32 %v3408, %v3169
      %v3411 = vmax.f32 %v3409, %v3175
      %v3412 = vmax.f32 %v3410, %v3179
      %v3413 = vmax.f32 %v3411, %v3185
      %v3414 = vmax.f32 %v3412, %v3189
      %v3415 = vmax.f32 %v3413, %v3195
      %v3416 = vmax.f32 %v3414, %v3199
      %v3417 = vmax.f32 %v3415, %v3205
      %v3418 = vmax.f32 %v3416, %v3209
      %v3419 = vmax.f32 %v3417, %v3215
      %v3420 = vmax.f32 %v3418, %v3219
      %v3421 = vmax.f32 %v3419, %v3225
      %v3422 = vmax.f32 %v3420, %v3229
      %v3423 = vmax.f32 %v3421, %v3235
      %v3424 = vmax.f32 %v3422, %v3239
      %v3425 = vmax.f32 %v3423, %v3245
      %v3426 = vmax.f32 %v3424, %v3249
      %v3427 = vmax.f32 %v3425, %v3255
      %v3428 = vmax.f32 %v3426, %v3259
      %v3429 = vmax.f32 %v3427, %v3265
      %v3430 = vmax.f32 %v3428, %v3269
      %v3431 = vmax.f32 %v3429, %v3275
      %v3432 = vmax.f32 %v3430, %v3279
      %v3433 = vmax.f32 %v3431, %v3285
      %v3434 = vmax.f32 %v3432, %v3289
      %v3435 = vmax.f32 %v3433, %v3295
      %v3436 = vmax.f32 %v3434, %v3299
      %v3437 = vmax.f32 %v3435, %v3305
      %v3438 = vmax.f32 %v3436, %v3309
      %v3439 = vmax.f32 %v3437, %v3438
      %v3440 = vrot.slane %v3439, 4
      %v3441 = vmax.f32 %v3439, %v3440
      %v3442 = vrot.slane %v3441, 2
      %v3443 = vmax.f32 %v3441, %v3442
      %v3444 = vrot.slane %v3443, 1
      %v3445 = vmax.f32 %v3443, %v3444
      %v3446 = vmax.f32 %v2677, %v2687
      %v3447 = vmax.f32 %v2681, %v2691
      %v3448 = vmax.f32 %v3446, %v2697
      %v3449 = vmax.f32 %v3447, %v2701
      %v3450 = vmax.f32 %v3448, %v2707
      %v3451 = vmax.f32 %v3449, %v2711
      %v3452 = vmax.f32 %v3450, %v2717
      %v3453 = vmax.f32 %v3451, %v2721
      %v3454 = vmax.f32 %v3452, %v2727
      %v3455 = vmax.f32 %v3453, %v2731
      %v3456 = vmax.f32 %v3454, %v2737
      %v3457 = vmax.f32 %v3455, %v2741
      %v3458 = vmax.f32 %v3456, %v2747
      %v3459 = vmax.f32 %v3457, %v2751
      %v3460 = vmax.f32 %v3458, %v2757
      %v3461 = vmax.f32 %v3459, %v2761
      %v3462 = vmax.f32 %v3460, %v2767
      %v3463 = vmax.f32 %v3461, %v2771
      %v3464 = vmax.f32 %v3462, %v2777
      %v3465 = vmax.f32 %v3463, %v2781
      %v3466 = vmax.f32 %v3464, %v2787
      %v3467 = vmax.f32 %v3465, %v2791
      %v3468 = vmax.f32 %v3466, %v2797
      %v3469 = vmax.f32 %v3467, %v2801
      %v3470 = vmax.f32 %v3468, %v2807
      %v3471 = vmax.f32 %v3469, %v2811
      %v3472 = vmax.f32 %v3470, %v2817
      %v3473 = vmax.f32 %v3471, %v2821
      %v3474 = vmax.f32 %v3472, %v2827
      %v3475 = vmax.f32 %v3473, %v2831
      %v3476 = vmax.f32 %v3474, %v2837
      %v3477 = vmax.f32 %v3475, %v2841
      %v3478 = vmax.f32 %v3476, %v2847
      %v3479 = vmax.f32 %v3477, %v2851
      %v3480 = vmax.f32 %v3478, %v2857
      %v3481 = vmax.f32 %v3479, %v2861
      %v3482 = vmax.f32 %v3480, %v2867
      %v3483 = vmax.f32 %v3481, %v2871
      %v3484 = vmax.f32 %v3482, %v2877
      %v3485 = vmax.f32 %v3483, %v2881
      %v3486 = vmax.f32 %v3484, %v2887
      %v3487 = vmax.f32 %v3485, %v2891
      %v3488 = vmax.f32 %v3486, %v2897
      %v3489 = vmax.f32 %v3487, %v2901
      %v3490 = vmax.f32 %v3488, %v2907
      %v3491 = vmax.f32 %v3489, %v2911
      %v3492 = vmax.f32 %v3490, %v2917
      %v3493 = vmax.f32 %v3491, %v2921
      %v3494 = vmax.f32 %v3492, %v2927
      %v3495 = vmax.f32 %v3493, %v2931
      %v3496 = vmax.f32 %v3494, %v2937
      %v3497 = vmax.f32 %v3495, %v2941
      %v3498 = vmax.f32 %v3496, %v2947
      %v3499 = vmax.f32 %v3497, %v2951
      %v3500 = vmax.f32 %v3498, %v2957
      %v3501 = vmax.f32 %v3499, %v2961
      %v3502 = vmax.f32 %v3500, %v2967
      %v3503 = vmax.f32 %v3501, %v2971
      %v3504 = vmax.f32 %v3502, %v2977
      %v3505 = vmax.f32 %v3503, %v2981
      %v3506 = vmax.f32 %v3504, %v2987
      %v3507 = vmax.f32 %v3505, %v2991
      %v3508 = vmax.f32 %v3506, %v2997
      %v3509 = vmax.f32 %v3507, %v3001
      %v3510 = vmax.f32 %v3508, %v3007
      %v3511 = vmax.f32 %v3509, %v3011
      %v3512 = vmax.f32 %v3510, %v3017
      %v3513 = vmax.f32 %v3511, %v3021
      %v3514 = vmax.f32 %v3512, %v3027
      %v3515 = vmax.f32 %v3513, %v3031
      %v3516 = vmax.f32 %v3514, %v3037
      %v3517 = vmax.f32 %v3515, %v3041
      %v3518 = vmax.f32 %v3516, %v3047
      %v3519 = vmax.f32 %v3517, %v3051
      %v3520 = vmax.f32 %v3518, %v3057
      %v3521 = vmax.f32 %v3519, %v3061
      %v3522 = vmax.f32 %v3520, %v3067
      %v3523 = vmax.f32 %v3521, %v3071
      %v3524 = vmax.f32 %v3522, %v3077
      %v3525 = vmax.f32 %v3523, %v3081
      %v3526 = vmax.f32 %v3524, %v3087
      %v3527 = vmax.f32 %v3525, %v3091
      %v3528 = vmax.f32 %v3526, %v3097
      %v3529 = vmax.f32 %v3527, %v3101
      %v3530 = vmax.f32 %v3528, %v3107
      %v3531 = vmax.f32 %v3529, %v3111
      %v3532 = vmax.f32 %v3530, %v3117
      %v3533 = vmax.f32 %v3531, %v3121
      %v3534 = vmax.f32 %v3532, %v3127
      %v3535 = vmax.f32 %v3533, %v3131
      %v3536 = vmax.f32 %v3534, %v3137
      %v3537 = vmax.f32 %v3535, %v3141
      %v3538 = vmax.f32 %v3536, %v3147
      %v3539 = vmax.f32 %v3537, %v3151
      %v3540 = vmax.f32 %v3538, %v3157
      %v3541 = vmax.f32 %v3539, %v3161
      %v3542 = vmax.f32 %v3540, %v3167
      %v3543 = vmax.f32 %v3541, %v3171
      %v3544 = vmax.f32 %v3542, %v3177
      %v3545 = vmax.f32 %v3543, %v3181
      %v3546 = vmax.f32 %v3544, %v3187
      %v3547 = vmax.f32 %v3545, %v3191
      %v3548 = vmax.f32 %v3546, %v3197
      %v3549 = vmax.f32 %v3547, %v3201
      %v3550 = vmax.f32 %v3548, %v3207
      %v3551 = vmax.f32 %v3549, %v3211
      %v3552 = vmax.f32 %v3550, %v3217
      %v3553 = vmax.f32 %v3551, %v3221
      %v3554 = vmax.f32 %v3552, %v3227
      %v3555 = vmax.f32 %v3553, %v3231
      %v3556 = vmax.f32 %v3554, %v3237
      %v3557 = vmax.f32 %v3555, %v3241
      %v3558 = vmax.f32 %v3556, %v3247
      %v3559 = vmax.f32 %v3557, %v3251
      %v3560 = vmax.f32 %v3558, %v3257
      %v3561 = vmax.f32 %v3559, %v3261
      %v3562 = vmax.f32 %v3560, %v3267
      %v3563 = vmax.f32 %v3561, %v3271
      %v3564 = vmax.f32 %v3562, %v3277
      %v3565 = vmax.f32 %v3563, %v3281
      %v3566 = vmax.f32 %v3564, %v3287
      %v3567 = vmax.f32 %v3565, %v3291
      %v3568 = vmax.f32 %v3566, %v3297
      %v3569 = vmax.f32 %v3567, %v3301
      %v3570 = vmax.f32 %v3568, %v3307
      %v3571 = vmax.f32 %v3569, %v3311
      %v3572 = vmax.f32 %v3570, %v3571
      %v3573 = vrot.slane %v3572, 4
      %v3574 = vmax.f32 %v3572, %v3573
      %v3575 = vrot.slane %v3574, 2
      %v3576 = vmax.f32 %v3574, %v3575
      %v3577 = vrot.slane %v3576, 1
      %v3578 = vmax.f32 %v3576, %v3577
      %v3579 = vsub.f32 %v2675, %v3445
      %v3580 = vsub.f32 %v2677, %v3578
      %v3581 = vsub.f32 %v2679, %v3445
      %v3582 = vsub.f32 %v2681, %v3578
      %v3583 = vsub.f32 %v2685, %v3445
      %v3584 = vsub.f32 %v2687, %v3578
      %v3585 = vsub.f32 %v2689, %v3445
      %v3586 = vsub.f32 %v2691, %v3578
      %v3587 = vsub.f32 %v2695, %v3445
      %v3588 = vsub.f32 %v2697, %v3578
      %v3589 = vsub.f32 %v2699, %v3445
      %v3590 = vsub.f32 %v2701, %v3578
      %v3591 = vsub.f32 %v2705, %v3445
      %v3592 = vsub.f32 %v2707, %v3578
      %v3593 = vsub.f32 %v2709, %v3445
      %v3594 = vsub.f32 %v2711, %v3578
      %v3595 = vsub.f32 %v2715, %v3445
      %v3596 = vsub.f32 %v2717, %v3578
      %v3597 = vsub.f32 %v2719, %v3445
      %v3598 = vsub.f32 %v2721, %v3578
      %v3599 = vsub.f32 %v2725, %v3445
      %v3600 = vsub.f32 %v2727, %v3578
      %v3601 = vsub.f32 %v2729, %v3445
      %v3602 = vsub.f32 %v2731, %v3578
      %v3603 = vsub.f32 %v2735, %v3445
      %v3604 = vsub.f32 %v2737, %v3578
      %v3605 = vsub.f32 %v2739, %v3445
      %v3606 = vsub.f32 %v2741, %v3578
      %v3607 = vsub.f32 %v2745, %v3445
      %v3608 = vsub.f32 %v2747, %v3578
      %v3609 = vsub.f32 %v2749, %v3445
      %v3610 = vsub.f32 %v2751, %v3578
      %v3611 = vsub.f32 %v2755, %v3445
      %v3612 = vsub.f32 %v2757, %v3578
      %v3613 = vsub.f32 %v2759, %v3445
      %v3614 = vsub.f32 %v2761, %v3578
      %v3615 = vsub.f32 %v2765, %v3445
      %v3616 = vsub.f32 %v2767, %v3578
      %v3617 = vsub.f32 %v2769, %v3445
      %v3618 = vsub.f32 %v2771, %v3578
      %v3619 = vsub.f32 %v2775, %v3445
      %v3620 = vsub.f32 %v2777, %v3578
      %v3621 = vsub.f32 %v2779, %v3445
      %v3622 = vsub.f32 %v2781, %v3578
      %v3623 = vsub.f32 %v2785, %v3445
      %v3624 = vsub.f32 %v2787, %v3578
      %v3625 = vsub.f32 %v2789, %v3445
      %v3626 = vsub.f32 %v2791, %v3578
      %v3627 = vsub.f32 %v2795, %v3445
      %v3628 = vsub.f32 %v2797, %v3578
      %v3629 = vsub.f32 %v2799, %v3445
      %v3630 = vsub.f32 %v2801, %v3578
      %v3631 = vsub.f32 %v2805, %v3445
      %v3632 = vsub.f32 %v2807, %v3578
      %v3633 = vsub.f32 %v2809, %v3445
      %v3634 = vsub.f32 %v2811, %v3578
      %v3635 = vsub.f32 %v2815, %v3445
      %v3636 = vsub.f32 %v2817, %v3578
      %v3637 = vsub.f32 %v2819, %v3445
      %v3638 = vsub.f32 %v2821, %v3578
      %v3639 = vsub.f32 %v2825, %v3445
      %v3640 = vsub.f32 %v2827, %v3578
      %v3641 = vsub.f32 %v2829, %v3445
      %v3642 = vsub.f32 %v2831, %v3578
      %v3643 = vsub.f32 %v2835, %v3445
      %v3644 = vsub.f32 %v2837, %v3578
      %v3645 = vsub.f32 %v2839, %v3445
      %v3646 = vsub.f32 %v2841, %v3578
      %v3647 = vsub.f32 %v2845, %v3445
      %v3648 = vsub.f32 %v2847, %v3578
      %v3649 = vsub.f32 %v2849, %v3445
      %v3650 = vsub.f32 %v2851, %v3578
      %v3651 = vsub.f32 %v2855, %v3445
      %v3652 = vsub.f32 %v2857, %v3578
      %v3653 = vsub.f32 %v2859, %v3445
      %v3654 = vsub.f32 %v2861, %v3578
      %v3655 = vsub.f32 %v2865, %v3445
      %v3656 = vsub.f32 %v2867, %v3578
      %v3657 = vsub.f32 %v2869, %v3445
      %v3658 = vsub.f32 %v2871, %v3578
      %v3659 = vsub.f32 %v2875, %v3445
      %v3660 = vsub.f32 %v2877, %v3578
      %v3661 = vsub.f32 %v2879, %v3445
      %v3662 = vsub.f32 %v2881, %v3578
      %v3663 = vsub.f32 %v2885, %v3445
      %v3664 = vsub.f32 %v2887, %v3578
      %v3665 = vsub.f32 %v2889, %v3445
      %v3666 = vsub.f32 %v2891, %v3578
      %v3667 = vsub.f32 %v2895, %v3445
      %v3668 = vsub.f32 %v2897, %v3578
      %v3669 = vsub.f32 %v2899, %v3445
      %v3670 = vsub.f32 %v2901, %v3578
      %v3671 = vsub.f32 %v2905, %v3445
      %v3672 = vsub.f32 %v2907, %v3578
      %v3673 = vsub.f32 %v2909, %v3445
      %v3674 = vsub.f32 %v2911, %v3578
      %v3675 = vsub.f32 %v2915, %v3445
      %v3676 = vsub.f32 %v2917, %v3578
      %v3677 = vsub.f32 %v2919, %v3445
      %v3678 = vsub.f32 %v2921, %v3578
      %v3679 = vsub.f32 %v2925, %v3445
      %v3680 = vsub.f32 %v2927, %v3578
      %v3681 = vsub.f32 %v2929, %v3445
      %v3682 = vsub.f32 %v2931, %v3578
      %v3683 = vsub.f32 %v2935, %v3445
      %v3684 = vsub.f32 %v2937, %v3578
      %v3685 = vsub.f32 %v2939, %v3445
      %v3686 = vsub.f32 %v2941, %v3578
      %v3687 = vsub.f32 %v2945, %v3445
      %v3688 = vsub.f32 %v2947, %v3578
      %v3689 = vsub.f32 %v2949, %v3445
      %v3690 = vsub.f32 %v2951, %v3578
      %v3691 = vsub.f32 %v2955, %v3445
      %v3692 = vsub.f32 %v2957, %v3578
      %v3693 = vsub.f32 %v2959, %v3445
      %v3694 = vsub.f32 %v2961, %v3578
      %v3695 = vsub.f32 %v2965, %v3445
      %v3696 = vsub.f32 %v2967, %v3578
      %v3697 = vsub.f32 %v2969, %v3445
      %v3698 = vsub.f32 %v2971, %v3578
      %v3699 = vsub.f32 %v2975, %v3445
      %v3700 = vsub.f32 %v2977, %v3578
      %v3701 = vsub.f32 %v2979, %v3445
      %v3702 = vsub.f32 %v2981, %v3578
      %v3703 = vsub.f32 %v2985, %v3445
      %v3704 = vsub.f32 %v2987, %v3578
      %v3705 = vsub.f32 %v2989, %v3445
      %v3706 = vsub.f32 %v2991, %v3578
      %v3707 = vsub.f32 %v2995, %v3445
      %v3708 = vsub.f32 %v2997, %v3578
      %v3709 = vsub.f32 %v2999, %v3445
      %v3710 = vsub.f32 %v3001, %v3578
      %v3711 = vsub.f32 %v3005, %v3445
      %v3712 = vsub.f32 %v3007, %v3578
      %v3713 = vsub.f32 %v3009, %v3445
      %v3714 = vsub.f32 %v3011, %v3578
      %v3715 = vsub.f32 %v3015, %v3445
      %v3716 = vsub.f32 %v3017, %v3578
      %v3717 = vsub.f32 %v3019, %v3445
      %v3718 = vsub.f32 %v3021, %v3578
      %v3719 = vsub.f32 %v3025, %v3445
      %v3720 = vsub.f32 %v3027, %v3578
      %v3721 = vsub.f32 %v3029, %v3445
      %v3722 = vsub.f32 %v3031, %v3578
      %v3723 = vsub.f32 %v3035, %v3445
      %v3724 = vsub.f32 %v3037, %v3578
      %v3725 = vsub.f32 %v3039, %v3445
      %v3726 = vsub.f32 %v3041, %v3578
      %v3727 = vsub.f32 %v3045, %v3445
      %v3728 = vsub.f32 %v3047, %v3578
      %v3729 = vsub.f32 %v3049, %v3445
      %v3730 = vsub.f32 %v3051, %v3578
      %v3731 = vsub.f32 %v3055, %v3445
      %v3732 = vsub.f32 %v3057, %v3578
      %v3733 = vsub.f32 %v3059, %v3445
      %v3734 = vsub.f32 %v3061, %v3578
      %v3735 = vsub.f32 %v3065, %v3445
      %v3736 = vsub.f32 %v3067, %v3578
      %v3737 = vsub.f32 %v3069, %v3445
      %v3738 = vsub.f32 %v3071, %v3578
      %v3739 = vsub.f32 %v3075, %v3445
      %v3740 = vsub.f32 %v3077, %v3578
      %v3741 = vsub.f32 %v3079, %v3445
      %v3742 = vsub.f32 %v3081, %v3578
      %v3743 = vsub.f32 %v3085, %v3445
      %v3744 = vsub.f32 %v3087, %v3578
      %v3745 = vsub.f32 %v3089, %v3445
      %v3746 = vsub.f32 %v3091, %v3578
      %v3747 = vsub.f32 %v3095, %v3445
      %v3748 = vsub.f32 %v3097, %v3578
      %v3749 = vsub.f32 %v3099, %v3445
      %v3750 = vsub.f32 %v3101, %v3578
      %v3751 = vsub.f32 %v3105, %v3445
      %v3752 = vsub.f32 %v3107, %v3578
      %v3753 = vsub.f32 %v3109, %v3445
      %v3754 = vsub.f32 %v3111, %v3578
      %v3755 = vsub.f32 %v3115, %v3445
      %v3756 = vsub.f32 %v3117, %v3578
      %v3757 = vsub.f32 %v3119, %v3445
      %v3758 = vsub.f32 %v3121, %v3578
      %v3759 = vsub.f32 %v3125, %v3445
      %v3760 = vsub.f32 %v3127, %v3578
      %v3761 = vsub.f32 %v3129, %v3445
      %v3762 = vsub.f32 %v3131, %v3578
      %v3763 = vsub.f32 %v3135, %v3445
      %v3764 = vsub.f32 %v3137, %v3578
      %v3765 = vsub.f32 %v3139, %v3445
      %v3766 = vsub.f32 %v3141, %v3578
      %v3767 = vsub.f32 %v3145, %v3445
      %v3768 = vsub.f32 %v3147, %v3578
      %v3769 = vsub.f32 %v3149, %v3445
      %v3770 = vsub.f32 %v3151, %v3578
      %v3771 = vsub.f32 %v3155, %v3445
      %v3772 = vsub.f32 %v3157, %v3578
      %v3773 = vsub.f32 %v3159, %v3445
      %v3774 = vsub.f32 %v3161, %v3578
      %v3775 = vsub.f32 %v3165, %v3445
      %v3776 = vsub.f32 %v3167, %v3578
      %v3777 = vsub.f32 %v3169, %v3445
      %v3778 = vsub.f32 %v3171, %v3578
      %v3779 = vsub.f32 %v3175, %v3445
      %v3780 = vsub.f32 %v3177, %v3578
      %v3781 = vsub.f32 %v3179, %v3445
      %v3782 = vsub.f32 %v3181, %v3578
      %v3783 = vsub.f32 %v3185, %v3445
      %v3784 = vsub.f32 %v3187, %v3578
      %v3785 = vsub.f32 %v3189, %v3445
      %v3786 = vsub.f32 %v3191, %v3578
      %v3787 = vsub.f32 %v3195, %v3445
      %v3788 = vsub.f32 %v3197, %v3578
      %v3789 = vsub.f32 %v3199, %v3445
      %v3790 = vsub.f32 %v3201, %v3578
      %v3791 = vsub.f32 %v3205, %v3445
      %v3792 = vsub.f32 %v3207, %v3578
      %v3793 = vsub.f32 %v3209, %v3445
      %v3794 = vsub.f32 %v3211, %v3578
      %v3795 = vsub.f32 %v3215, %v3445
      %v3796 = vsub.f32 %v3217, %v3578
      %v3797 = vsub.f32 %v3219, %v3445
      %v3798 = vsub.f32 %v3221, %v3578
      %v3799 = vsub.f32 %v3225, %v3445
      %v3800 = vsub.f32 %v3227, %v3578
      %v3801 = vsub.f32 %v3229, %v3445
      %v3802 = vsub.f32 %v3231, %v3578
      %v3803 = vsub.f32 %v3235, %v3445
      %v3804 = vsub.f32 %v3237, %v3578
      %v3805 = vsub.f32 %v3239, %v3445
      %v3806 = vsub.f32 %v3241, %v3578
      %v3807 = vsub.f32 %v3245, %v3445
      %v3808 = vsub.f32 %v3247, %v3578
      %v3809 = vsub.f32 %v3249, %v3445
      %v3810 = vsub.f32 %v3251, %v3578
      %v3811 = vsub.f32 %v3255, %v3445
      %v3812 = vsub.f32 %v3257, %v3578
      %v3813 = vsub.f32 %v3259, %v3445
      %v3814 = vsub.f32 %v3261, %v3578
      %v3815 = vsub.f32 %v3265, %v3445
      %v3816 = vsub.f32 %v3267, %v3578
      %v3817 = vsub.f32 %v3269, %v3445
      %v3818 = vsub.f32 %v3271, %v3578
      %v3819 = vsub.f32 %v3275, %v3445
      %v3820 = vsub.f32 %v3277, %v3578
      %v3821 = vsub.f32 %v3279, %v3445
      %v3822 = vsub.f32 %v3281, %v3578
      %v3823 = vsub.f32 %v3285, %v3445
      %v3824 = vsub.f32 %v3287, %v3578
      %v3825 = vsub.f32 %v3289, %v3445
      %v3826 = vsub.f32 %v3291, %v3578
      %v3827 = vsub.f32 %v3295, %v3445
      %v3828 = vsub.f32 %v3297, %v3578
      %v3829 = vsub.f32 %v3299, %v3445
      %v3830 = vsub.f32 %v3301, %v3578
      %v3831 = vsub.f32 %v3305, %v3445
      %v3832 = vsub.f32 %v3307, %v3578
      %v3833 = vsub.f32 %v3309, %v3445
      %v3834 = vsub.f32 %v3311, %v3578
      %v3835 = vmul.f32 %v3579, 1.442695
      %v3836 = vpow.pop %v3835
      %v3837 = vmul.f32 %v3580, 1.442695
      %v3838 = vpow.pop %v3837
      %v3839 = vmul.f32 %v3581, 1.442695
      %v3840 = vpow.pop %v3839
      %v3841 = vmul.f32 %v3582, 1.442695
      %v3842 = vpow.pop %v3841
      %v3843 = vmul.f32 %v3583, 1.442695
      %v3844 = vpow.pop %v3843
      %v3845 = vmul.f32 %v3584, 1.442695
      %v3846 = vpow.pop %v3845
      %v3847 = vmul.f32 %v3585, 1.442695
      %v3848 = vpow.pop %v3847
      %v3849 = vmul.f32 %v3586, 1.442695
      %v3850 = vpow.pop %v3849
      %v3851 = vmul.f32 %v3587, 1.442695
      %v3852 = vpow.pop %v3851
      %v3853 = vmul.f32 %v3588, 1.442695
      %v3854 = vpow.pop %v3853
      %v3855 = vmul.f32 %v3589, 1.442695
      %v3856 = vpow.pop %v3855
      %v3857 = vmul.f32 %v3590, 1.442695
      %v3858 = vpow.pop %v3857
      %v3859 = vmul.f32 %v3591, 1.442695
      %v3860 = vpow.pop %v3859
      %v3861 = vmul.f32 %v3592, 1.442695
      %v3862 = vpow.pop %v3861
      %v3863 = vmul.f32 %v3593, 1.442695
      %v3864 = vpow.pop %v3863
      %v3865 = vmul.f32 %v3594, 1.442695
      %v3866 = vpow.pop %v3865
      %v3867 = vmul.f32 %v3595, 1.442695
      %v3868 = vpow.pop %v3867
      %v3869 = vmul.f32 %v3596, 1.442695
      %v3870 = vpow.pop %v3869
      %v3871 = vmul.f32 %v3597, 1.442695
      %v3872 = vpow.pop %v3871
      %v3873 = vmul.f32 %v3598, 1.442695
      %v3874 = vpow.pop %v3873
      %v3875 = vmul.f32 %v3599, 1.442695
      %v3876 = vpow.pop %v3875
      %v3877 = vmul.f32 %v3600, 1.442695
      %v3878 = vpow.pop %v3877
      %v3879 = vmul.f32 %v3601, 1.442695
      %v3880 = vpow.pop %v3879
      %v3881 = vmul.f32 %v3602, 1.442695
      %v3882 = vpow.pop %v3881
      %v3883 = vmul.f32 %v3603, 1.442695
      %v3884 = vpow.pop %v3883
      %v3885 = vmul.f32 %v3604, 1.442695
      %v3886 = vpow.pop %v3885
      %v3887 = vmul.f32 %v3605, 1.442695
      %v3888 = vpow.pop %v3887
      %v3889 = vmul.f32 %v3606, 1.442695
      %v3890 = vpow.pop %v3889
      %v3891 = vmul.f32 %v3607, 1.442695
      %v3892 = vpow.pop %v3891
      %v3893 = vmul.f32 %v3608, 1.442695
      %v3894 = vpow.pop %v3893
      %v3895 = vmul.f32 %v3609, 1.442695
      %v3896 = vpow.pop %v3895
      %v3897 = vmul.f32 %v3610, 1.442695
      %v3898 = vpow.pop %v3897
      %v3899 = vmul.f32 %v3611, 1.442695
      %v3900 = vpow.pop %v3899
      %v3901 = vmul.f32 %v3612, 1.442695
      %v3902 = vpow.pop %v3901
      %v3903 = vmul.f32 %v3613, 1.442695
      %v3904 = vpow.pop %v3903
      %v3905 = vmul.f32 %v3614, 1.442695
      %v3906 = vpow.pop %v3905
      %v3907 = vmul.f32 %v3615, 1.442695
      %v3908 = vpow.pop %v3907
      %v3909 = vmul.f32 %v3616, 1.442695
      %v3910 = vpow.pop %v3909
      %v3911 = vmul.f32 %v3617, 1.442695
      %v3912 = vpow.pop %v3911
      %v3913 = vmul.f32 %v3618, 1.442695
      %v3914 = vpow.pop %v3913
      %v3915 = vmul.f32 %v3619, 1.442695
      %v3916 = vpow.pop %v3915
      %v3917 = vmul.f32 %v3620, 1.442695
      %v3918 = vpow.pop %v3917
      %v3919 = vmul.f32 %v3621, 1.442695
      %v3920 = vpow.pop %v3919
      %v3921 = vmul.f32 %v3622, 1.442695
      %v3922 = vpow.pop %v3921
      %v3923 = vmul.f32 %v3623, 1.442695
      %v3924 = vpow.pop %v3923
      %v3925 = vmul.f32 %v3624, 1.442695
      %v3926 = vpow.pop %v3925
      %v3927 = vmul.f32 %v3625, 1.442695
      %v3928 = vpow.pop %v3927
      %v3929 = vmul.f32 %v3626, 1.442695
      %v3930 = vpow.pop %v3929
      %v3931 = vmul.f32 %v3627, 1.442695
      %v3932 = vpow.pop %v3931
      %v3933 = vmul.f32 %v3628, 1.442695
      %v3934 = vpow.pop %v3933
      %v3935 = vmul.f32 %v3629, 1.442695
      %v3936 = vpow.pop %v3935
      %v3937 = vmul.f32 %v3630, 1.442695
      %v3938 = vpow.pop %v3937
      %v3939 = vmul.f32 %v3631, 1.442695
      %v3940 = vpow.pop %v3939
      %v3941 = vmul.f32 %v3632, 1.442695
      %v3942 = vpow.pop %v3941
      %v3943 = vmul.f32 %v3633, 1.442695
      %v3944 = vpow.pop %v3943
      %v3945 = vmul.f32 %v3634, 1.442695
      %v3946 = vpow.pop %v3945
      %v3947 = vmul.f32 %v3635, 1.442695
      %v3948 = vpow.pop %v3947
      %v3949 = vmul.f32 %v3636, 1.442695
      %v3950 = vpow.pop %v3949
      %v3951 = vmul.f32 %v3637, 1.442695
      %v3952 = vpow.pop %v3951
      %v3953 = vmul.f32 %v3638, 1.442695
      %v3954 = vpow.pop %v3953
      %v3955 = vmul.f32 %v3639, 1.442695
      %v3956 = vpow.pop %v3955
      %v3957 = vmul.f32 %v3640, 1.442695
      %v3958 = vpow.pop %v3957
      %v3959 = vmul.f32 %v3641, 1.442695
      %v3960 = vpow.pop %v3959
      %v3961 = vmul.f32 %v3642, 1.442695
      %v3962 = vpow.pop %v3961
      %v3963 = vmul.f32 %v3643, 1.442695
      %v3964 = vpow.pop %v3963
      %v3965 = vmul.f32 %v3644, 1.442695
      %v3966 = vpow.pop %v3965
      %v3967 = vmul.f32 %v3645, 1.442695
      %v3968 = vpow.pop %v3967
      %v3969 = vmul.f32 %v3646, 1.442695
      %v3970 = vpow.pop %v3969
      %v3971 = vmul.f32 %v3647, 1.442695
      %v3972 = vpow.pop %v3971
      %v3973 = vmul.f32 %v3648, 1.442695
      %v3974 = vpow.pop %v3973
      %v3975 = vmul.f32 %v3649, 1.442695
      %v3976 = vpow.pop %v3975
      %v3977 = vmul.f32 %v3650, 1.442695
      %v3978 = vpow.pop %v3977
      %v3979 = vmul.f32 %v3651, 1.442695
      %v3980 = vpow.pop %v3979
      %v3981 = vmul.f32 %v3652, 1.442695
      %v3982 = vpow.pop %v3981
      %v3983 = vmul.f32 %v3653, 1.442695
      %v3984 = vpow.pop %v3983
      %v3985 = vmul.f32 %v3654, 1.442695
      %v3986 = vpow.pop %v3985
      %v3987 = vmul.f32 %v3655, 1.442695
      %v3988 = vpow.pop %v3987
      %v3989 = vmul.f32 %v3656, 1.442695
      %v3990 = vpow.pop %v3989
      %v3991 = vmul.f32 %v3657, 1.442695
      %v3992 = vpow.pop %v3991
      %v3993 = vmul.f32 %v3658, 1.442695
      %v3994 = vpow.pop %v3993
      %v3995 = vmul.f32 %v3659, 1.442695
      %v3996 = vpow.pop %v3995
      %v3997 = vmul.f32 %v3660, 1.442695
      %v3998 = vpow.pop %v3997
      %v3999 = vmul.f32 %v3661, 1.442695
      %v4000 = vpow.pop %v3999
      %v4001 = vmul.f32 %v3662, 1.442695
      %v4002 = vpow.pop %v4001
      %v4003 = vmul.f32 %v3663, 1.442695
      %v4004 = vpow.pop %v4003
      %v4005 = vmul.f32 %v3664, 1.442695
      %v4006 = vpow.pop %v4005
      %v4007 = vmul.f32 %v3665, 1.442695
      %v4008 = vpow.pop %v4007
      %v4009 = vmul.f32 %v3666, 1.442695
      %v4010 = vpow.pop %v4009
      %v4011 = vmul.f32 %v3667, 1.442695
      %v4012 = vpow.pop %v4011
      %v4013 = vmul.f32 %v3668, 1.442695
      %v4014 = vpow.pop %v4013
      %v4015 = vmul.f32 %v3669, 1.442695
      %v4016 = vpow.pop %v4015
      %v4017 = vmul.f32 %v3670, 1.442695
      %v4018 = vpow.pop %v4017
      %v4019 = vmul.f32 %v3671, 1.442695
      %v4020 = vpow.pop %v4019
      %v4021 = vmul.f32 %v3672, 1.442695
      %v4022 = vpow.pop %v4021
      %v4023 = vmul.f32 %v3673, 1.442695
      %v4024 = vpow.pop %v4023
      %v4025 = vmul.f32 %v3674, 1.442695
      %v4026 = vpow.pop %v4025
      %v4027 = vmul.f32 %v3675, 1.442695
      %v4028 = vpow.pop %v4027
      %v4029 = vmul.f32 %v3676, 1.442695
      %v4030 = vpow.pop %v4029
      %v4031 = vmul.f32 %v3677, 1.442695
      %v4032 = vpow.pop %v4031
      %v4033 = vmul.f32 %v3678, 1.442695
      %v4034 = vpow.pop %v4033
      %v4035 = vmul.f32 %v3679, 1.442695
      %v4036 = vpow.pop %v4035
      %v4037 = vmul.f32 %v3680, 1.442695
      %v4038 = vpow.pop %v4037
      %v4039 = vmul.f32 %v3681, 1.442695
      %v4040 = vpow.pop %v4039
      %v4041 = vmul.f32 %v3682, 1.442695
      %v4042 = vpow.pop %v4041
      %v4043 = vmul.f32 %v3683, 1.442695
      %v4044 = vpow.pop %v4043
      %v4045 = vmul.f32 %v3684, 1.442695
      %v4046 = vpow.pop %v4045
      %v4047 = vmul.f32 %v3685, 1.442695
      %v4048 = vpow.pop %v4047
      %v4049 = vmul.f32 %v3686, 1.442695
      %v4050 = vpow.pop %v4049
      %v4051 = vmul.f32 %v3687, 1.442695
      %v4052 = vpow.pop %v4051
      %v4053 = vmul.f32 %v3688, 1.442695
      %v4054 = vpow.pop %v4053
      %v4055 = vmul.f32 %v3689, 1.442695
      %v4056 = vpow.pop %v4055
      %v4057 = vmul.f32 %v3690, 1.442695
      %v4058 = vpow.pop %v4057
      %v4059 = vmul.f32 %v3691, 1.442695
      %v4060 = vpow.pop %v4059
      %v4061 = vmul.f32 %v3692, 1.442695
      %v4062 = vpow.pop %v4061
      %v4063 = vmul.f32 %v3693, 1.442695
      %v4064 = vpow.pop %v4063
      %v4065 = vmul.f32 %v3694, 1.442695
      %v4066 = vpow.pop %v4065
      %v4067 = vmul.f32 %v3695, 1.442695
      %v4068 = vpow.pop %v4067
      %v4069 = vmul.f32 %v3696, 1.442695
      %v4070 = vpow.pop %v4069
      %v4071 = vmul.f32 %v3697, 1.442695
      %v4072 = vpow.pop %v4071
      %v4073 = vmul.f32 %v3698, 1.442695
      %v4074 = vpow.pop %v4073
      %v4075 = vmul.f32 %v3699, 1.442695
      %v4076 = vpow.pop %v4075
      %v4077 = vmul.f32 %v3700, 1.442695
      %v4078 = vpow.pop %v4077
      %v4079 = vmul.f32 %v3701, 1.442695
      %v4080 = vpow.pop %v4079
      %v4081 = vmul.f32 %v3702, 1.442695
      %v4082 = vpow.pop %v4081
      %v4083 = vmul.f32 %v3703, 1.442695
      %v4084 = vpow.pop %v4083
      %v4085 = vmul.f32 %v3704, 1.442695
      %v4086 = vpow.pop %v4085
      %v4087 = vmul.f32 %v3705, 1.442695
      %v4088 = vpow.pop %v4087
      %v4089 = vmul.f32 %v3706, 1.442695
      %v4090 = vpow.pop %v4089
      %v4091 = vmul.f32 %v3707, 1.442695
      %v4092 = vpow.pop %v4091
      %v4093 = vmul.f32 %v3708, 1.442695
      %v4094 = vpow.pop %v4093
      %v4095 = vmul.f32 %v3709, 1.442695
      %v4096 = vpow.pop %v4095
      %v4097 = vmul.f32 %v3710, 1.442695
      %v4098 = vpow.pop %v4097
      %v4099 = vmul.f32 %v3711, 1.442695
      %v4100 = vpow.pop %v4099
      %v4101 = vmul.f32 %v3712, 1.442695
      %v4102 = vpow.pop %v4101
      %v4103 = vmul.f32 %v3713, 1.442695
      %v4104 = vpow.pop %v4103
      %v4105 = vmul.f32 %v3714, 1.442695
      %v4106 = vpow.pop %v4105
      %v4107 = vmul.f32 %v3715, 1.442695
      %v4108 = vpow.pop %v4107
      %v4109 = vmul.f32 %v3716, 1.442695
      %v4110 = vpow.pop %v4109
      %v4111 = vmul.f32 %v3717, 1.442695
      %v4112 = vpow.pop %v4111
      %v4113 = vmul.f32 %v3718, 1.442695
      %v4114 = vpow.pop %v4113
      %v4115 = vmul.f32 %v3719, 1.442695
      %v4116 = vpow.pop %v4115
      %v4117 = vmul.f32 %v3720, 1.442695
      %v4118 = vpow.pop %v4117
      %v4119 = vmul.f32 %v3721, 1.442695
      %v4120 = vpow.pop %v4119
      %v4121 = vmul.f32 %v3722, 1.442695
      %v4122 = vpow.pop %v4121
      %v4123 = vmul.f32 %v3723, 1.442695
      %v4124 = vpow.pop %v4123
      %v4125 = vmul.f32 %v3724, 1.442695
      %v4126 = vpow.pop %v4125
      %v4127 = vmul.f32 %v3725, 1.442695
      %v4128 = vpow.pop %v4127
      %v4129 = vmul.f32 %v3726, 1.442695
      %v4130 = vpow.pop %v4129
      %v4131 = vmul.f32 %v3727, 1.442695
      %v4132 = vpow.pop %v4131
      %v4133 = vmul.f32 %v3728, 1.442695
      %v4134 = vpow.pop %v4133
      %v4135 = vmul.f32 %v3729, 1.442695
      %v4136 = vpow.pop %v4135
      %v4137 = vmul.f32 %v3730, 1.442695
      %v4138 = vpow.pop %v4137
      %v4139 = vmul.f32 %v3731, 1.442695
      %v4140 = vpow.pop %v4139
      %v4141 = vmul.f32 %v3732, 1.442695
      %v4142 = vpow.pop %v4141
      %v4143 = vmul.f32 %v3733, 1.442695
      %v4144 = vpow.pop %v4143
      %v4145 = vmul.f32 %v3734, 1.442695
      %v4146 = vpow.pop %v4145
      %v4147 = vmul.f32 %v3735, 1.442695
      %v4148 = vpow.pop %v4147
      %v4149 = vmul.f32 %v3736, 1.442695
      %v4150 = vpow.pop %v4149
      %v4151 = vmul.f32 %v3737, 1.442695
      %v4152 = vpow.pop %v4151
      %v4153 = vmul.f32 %v3738, 1.442695
      %v4154 = vpow.pop %v4153
      %v4155 = vmul.f32 %v3739, 1.442695
      %v4156 = vpow.pop %v4155
      %v4157 = vmul.f32 %v3740, 1.442695
      %v4158 = vpow.pop %v4157
      %v4159 = vmul.f32 %v3741, 1.442695
      %v4160 = vpow.pop %v4159
      %v4161 = vmul.f32 %v3742, 1.442695
      %v4162 = vpow.pop %v4161
      %v4163 = vmul.f32 %v3743, 1.442695
      %v4164 = vpow.pop %v4163
      %v4165 = vmul.f32 %v3744, 1.442695
      %v4166 = vpow.pop %v4165
      %v4167 = vmul.f32 %v3745, 1.442695
      %v4168 = vpow.pop %v4167
      %v4169 = vmul.f32 %v3746, 1.442695
      %v4170 = vpow.pop %v4169
      %v4171 = vmul.f32 %v3747, 1.442695
      %v4172 = vpow.pop %v4171
      %v4173 = vmul.f32 %v3748, 1.442695
      %v4174 = vpow.pop %v4173
      %v4175 = vmul.f32 %v3749, 1.442695
      %v4176 = vpow.pop %v4175
      %v4177 = vmul.f32 %v3750, 1.442695
      %v4178 = vpow.pop %v4177
      %v4179 = vmul.f32 %v3751, 1.442695
      %v4180 = vpow.pop %v4179
      %v4181 = vmul.f32 %v3752, 1.442695
      %v4182 = vpow.pop %v4181
      %v4183 = vmul.f32 %v3753, 1.442695
      %v4184 = vpow.pop %v4183
      %v4185 = vmul.f32 %v3754, 1.442695
      %v4186 = vpow.pop %v4185
      %v4187 = vmul.f32 %v3755, 1.442695
      %v4188 = vpow.pop %v4187
      %v4189 = vmul.f32 %v3756, 1.442695
      %v4190 = vpow.pop %v4189
      %v4191 = vmul.f32 %v3757, 1.442695
      %v4192 = vpow.pop %v4191
      %v4193 = vmul.f32 %v3758, 1.442695
      %v4194 = vpow.pop %v4193
      %v4195 = vmul.f32 %v3759, 1.442695
      %v4196 = vpow.pop %v4195
      %v4197 = vmul.f32 %v3760, 1.442695
      %v4198 = vpow.pop %v4197
      %v4199 = vmul.f32 %v3761, 1.442695
      %v4200 = vpow.pop %v4199
      %v4201 = vmul.f32 %v3762, 1.442695
      %v4202 = vpow.pop %v4201
      %v4203 = vmul.f32 %v3763, 1.442695
      %v4204 = vpow.pop %v4203
      %v4205 = vmul.f32 %v3764, 1.442695
      %v4206 = vpow.pop %v4205
      %v4207 = vmul.f32 %v3765, 1.442695
      %v4208 = vpow.pop %v4207
      %v4209 = vmul.f32 %v3766, 1.442695
      %v4210 = vpow.pop %v4209
      %v4211 = vmul.f32 %v3767, 1.442695
      %v4212 = vpow.pop %v4211
      %v4213 = vmul.f32 %v3768, 1.442695
      %v4214 = vpow.pop %v4213
      %v4215 = vmul.f32 %v3769, 1.442695
      %v4216 = vpow.pop %v4215
      %v4217 = vmul.f32 %v3770, 1.442695
      %v4218 = vpow.pop %v4217
      %v4219 = vmul.f32 %v3771, 1.442695
      %v4220 = vpow.pop %v4219
      %v4221 = vmul.f32 %v3772, 1.442695
      %v4222 = vpow.pop %v4221
      %v4223 = vmul.f32 %v3773, 1.442695
      %v4224 = vpow.pop %v4223
      %v4225 = vmul.f32 %v3774, 1.442695
      %v4226 = vpow.pop %v4225
      %v4227 = vmul.f32 %v3775, 1.442695
      %v4228 = vpow.pop %v4227
      %v4229 = vmul.f32 %v3776, 1.442695
      %v4230 = vpow.pop %v4229
      %v4231 = vmul.f32 %v3777, 1.442695
      %v4232 = vpow.pop %v4231
      %v4233 = vmul.f32 %v3778, 1.442695
      %v4234 = vpow.pop %v4233
      %v4235 = vmul.f32 %v3779, 1.442695
      %v4236 = vpow.pop %v4235
      %v4237 = vmul.f32 %v3780, 1.442695
      %v4238 = vpow.pop %v4237
      %v4239 = vmul.f32 %v3781, 1.442695
      %v4240 = vpow.pop %v4239
      %v4241 = vmul.f32 %v3782, 1.442695
      %v4242 = vpow.pop %v4241
      %v4243 = vmul.f32 %v3783, 1.442695
      %v4244 = vpow.pop %v4243
      %v4245 = vmul.f32 %v3784, 1.442695
      %v4246 = vpow.pop %v4245
      %v4247 = vmul.f32 %v3785, 1.442695
      %v4248 = vpow.pop %v4247
      %v4249 = vmul.f32 %v3786, 1.442695
      %v4250 = vpow.pop %v4249
      %v4251 = vmul.f32 %v3787, 1.442695
      %v4252 = vpow.pop %v4251
      %v4253 = vmul.f32 %v3788, 1.442695
      %v4254 = vpow.pop %v4253
      %v4255 = vmul.f32 %v3789, 1.442695
      %v4256 = vpow.pop %v4255
      %v4257 = vmul.f32 %v3790, 1.442695
      %v4258 = vpow.pop %v4257
      %v4259 = vmul.f32 %v3791, 1.442695
      %v4260 = vpow.pop %v4259
      %v4261 = vmul.f32 %v3792, 1.442695
      %v4262 = vpow.pop %v4261
      %v4263 = vmul.f32 %v3793, 1.442695
      %v4264 = vpow.pop %v4263
      %v4265 = vmul.f32 %v3794, 1.442695
      %v4266 = vpow.pop %v4265
      %v4267 = vmul.f32 %v3795, 1.442695
      %v4268 = vpow.pop %v4267
      %v4269 = vmul.f32 %v3796, 1.442695
      %v4270 = vpow.pop %v4269
      %v4271 = vmul.f32 %v3797, 1.442695
      %v4272 = vpow.pop %v4271
      %v4273 = vmul.f32 %v3798, 1.442695
      %v4274 = vpow.pop %v4273
      %v4275 = vmul.f32 %v3799, 1.442695
      %v4276 = vpow.pop %v4275
      %v4277 = vmul.f32 %v3800, 1.442695
      %v4278 = vpow.pop %v4277
      %v4279 = vmul.f32 %v3801, 1.442695
      %v4280 = vpow.pop %v4279
      %v4281 = vmul.f32 %v3802, 1.442695
      %v4282 = vpow.pop %v4281
      %v4283 = vmul.f32 %v3803, 1.442695
      %v4284 = vpow.pop %v4283
      %v4285 = vmul.f32 %v3804, 1.442695
      %v4286 = vpow.pop %v4285
      %v4287 = vmul.f32 %v3805, 1.442695
      %v4288 = vpow.pop %v4287
      %v4289 = vmul.f32 %v3806, 1.442695
      %v4290 = vpow.pop %v4289
      %v4291 = vmul.f32 %v3807, 1.442695
      %v4292 = vpow.pop %v4291
      %v4293 = vmul.f32 %v3808, 1.442695
      %v4294 = vpow.pop %v4293
      %v4295 = vmul.f32 %v3809, 1.442695
      %v4296 = vpow.pop %v4295
      %v4297 = vmul.f32 %v3810, 1.442695
      %v4298 = vpow.pop %v4297
      %v4299 = vmul.f32 %v3811, 1.442695
      %v4300 = vpow.pop %v4299
      %v4301 = vmul.f32 %v3812, 1.442695
      %v4302 = vpow.pop %v4301
      %v4303 = vmul.f32 %v3813, 1.442695
      %v4304 = vpow.pop %v4303
      %v4305 = vmul.f32 %v3814, 1.442695
      %v4306 = vpow.pop %v4305
      %v4307 = vmul.f32 %v3815, 1.442695
      %v4308 = vpow.pop %v4307
      %v4309 = vmul.f32 %v3816, 1.442695
      %v4310 = vpow.pop %v4309
      %v4311 = vmul.f32 %v3817, 1.442695
      %v4312 = vpow.pop %v4311
      %v4313 = vmul.f32 %v3818, 1.442695
      %v4314 = vpow.pop %v4313
      %v4315 = vmul.f32 %v3819, 1.442695
      %v4316 = vpow.pop %v4315
      %v4317 = vmul.f32 %v3820, 1.442695
      %v4318 = vpow.pop %v4317
      %v4319 = vmul.f32 %v3821, 1.442695
      %v4320 = vpow.pop %v4319
      %v4321 = vmul.f32 %v3822, 1.442695
      %v4322 = vpow.pop %v4321
      %v4323 = vmul.f32 %v3823, 1.442695
      %v4324 = vpow.pop %v4323
      %v4325 = vmul.f32 %v3824, 1.442695
      %v4326 = vpow.pop %v4325
      %v4327 = vmul.f32 %v3825, 1.442695
      %v4328 = vpow.pop %v4327
      %v4329 = vmul.f32 %v3826, 1.442695
      %v4330 = vpow.pop %v4329
      %v4331 = vmul.f32 %v3827, 1.442695
      %v4332 = vpow.pop %v4331
      %v4333 = vmul.f32 %v3828, 1.442695
      %v4334 = vpow.pop %v4333
      %v4335 = vmul.f32 %v3829, 1.442695
      %v4336 = vpow.pop %v4335
      %v4337 = vmul.f32 %v3830, 1.442695
      %v4338 = vpow.pop %v4337
      %v4339 = vmul.f32 %v3831, 1.442695
      %v4340 = vpow.pop %v4339
      %v4341 = vmul.f32 %v3832, 1.442695
      %v4342 = vpow.pop %v4341
      %v4343 = vmul.f32 %v3833, 1.442695
      %v4344 = vpow.pop %v4343
      %v4345 = vmul.f32 %v3834, 1.442695
      %v4346 = vpow.pop %v4345
      %v4347 = vadd.f32 %v3836, %v3840
      %v4348 = vadd.f32 %v4347, %v3844
      %v4349 = vadd.f32 %v4348, %v3848
      %v4350 = vadd.f32 %v4349, %v3852
      %v4351 = vadd.f32 %v4350, %v3856
      %v4352 = vadd.f32 %v4351, %v3860
      %v4353 = vadd.f32 %v4352, %v3864
      %v4354 = vadd.f32 %v4353, %v3868
      %v4355 = vadd.f32 %v4354, %v3872
      %v4356 = vadd.f32 %v4355, %v3876
      %v4357 = vadd.f32 %v4356, %v3880
      %v4358 = vadd.f32 %v4357, %v3884
      %v4359 = vadd.f32 %v4358, %v3888
      %v4360 = vadd.f32 %v4359, %v3892
      %v4361 = vadd.f32 %v4360, %v3896
      %v4362 = vadd.f32 %v4361, %v3900
      %v4363 = vadd.f32 %v4362, %v3904
      %v4364 = vadd.f32 %v4363, %v3908
      %v4365 = vadd.f32 %v4364, %v3912
      %v4366 = vadd.f32 %v4365, %v3916
      %v4367 = vadd.f32 %v4366, %v3920
      %v4368 = vadd.f32 %v4367, %v3924
      %v4369 = vadd.f32 %v4368, %v3928
      %v4370 = vadd.f32 %v4369, %v3932
      %v4371 = vadd.f32 %v4370, %v3936
      %v4372 = vadd.f32 %v4371, %v3940
      %v4373 = vadd.f32 %v4372, %v3944
      %v4374 = vadd.f32 %v4373, %v3948
      %v4375 = vadd.f32 %v4374, %v3952
      %v4376 = vadd.f32 %v4375, %v3956
      %v4377 = vadd.f32 %v4376, %v3960
      %v4378 = vadd.f32 %v4377, %v3964
      %v4379 = vadd.f32 %v4378, %v3968
      %v4380 = vadd.f32 %v4379, %v3972
      %v4381 = vadd.f32 %v4380, %v3976
      %v4382 = vadd.f32 %v4381, %v3980
      %v4383 = vadd.f32 %v4382, %v3984
      %v4384 = vadd.f32 %v4383, %v3988
      %v4385 = vadd.f32 %v4384, %v3992
      %v4386 = vadd.f32 %v4385, %v3996
      %v4387 = vadd.f32 %v4386, %v4000
      %v4388 = vadd.f32 %v4387, %v4004
      %v4389 = vadd.f32 %v4388, %v4008
      %v4390 = vadd.f32 %v4389, %v4012
      %v4391 = vadd.f32 %v4390, %v4016
      %v4392 = vadd.f32 %v4391, %v4020
      %v4393 = vadd.f32 %v4392, %v4024
      %v4394 = vadd.f32 %v4393, %v4028
      %v4395 = vadd.f32 %v4394, %v4032
      %v4396 = vadd.f32 %v4395, %v4036
      %v4397 = vadd.f32 %v4396, %v4040
      %v4398 = vadd.f32 %v4397, %v4044
      %v4399 = vadd.f32 %v4398, %v4048
      %v4400 = vadd.f32 %v4399, %v4052
      %v4401 = vadd.f32 %v4400, %v4056
      %v4402 = vadd.f32 %v4401, %v4060
      %v4403 = vadd.f32 %v4402, %v4064
      %v4404 = vadd.f32 %v4403, %v4068
      %v4405 = vadd.f32 %v4404, %v4072
      %v4406 = vadd.f32 %v4405, %v4076
      %v4407 = vadd.f32 %v4406, %v4080
      %v4408 = vadd.f32 %v4407, %v4084
      %v4409 = vadd.f32 %v4408, %v4088
      %v4410 = vadd.f32 %v4409, %v4092
      %v4411 = vadd.f32 %v4410, %v4096
      %v4412 = vadd.f32 %v4411, %v4100
      %v4413 = vadd.f32 %v4412, %v4104
      %v4414 = vadd.f32 %v4413, %v4108
      %v4415 = vadd.f32 %v4414, %v4112
      %v4416 = vadd.f32 %v4415, %v4116
      %v4417 = vadd.f32 %v4416, %v4120
      %v4418 = vadd.f32 %v4417, %v4124
      %v4419 = vadd.f32 %v4418, %v4128
      %v4420 = vadd.f32 %v4419, %v4132
      %v4421 = vadd.f32 %v4420, %v4136
      %v4422 = vadd.f32 %v4421, %v4140
      %v4423 = vadd.f32 %v4422, %v4144
      %v4424 = vadd.f32 %v4423, %v4148
      %v4425 = vadd.f32 %v4424, %v4152
      %v4426 = vadd.f32 %v4425, %v4156
      %v4427 = vadd.f32 %v4426, %v4160
      %v4428 = vadd.f32 %v4427, %v4164
      %v4429 = vadd.f32 %v4428, %v4168
      %v4430 = vadd.f32 %v4429, %v4172
      %v4431 = vadd.f32 %v4430, %v4176
      %v4432 = vadd.f32 %v4431, %v4180
      %v4433 = vadd.f32 %v4432, %v4184
      %v4434 = vadd.f32 %v4433, %v4188
      %v4435 = vadd.f32 %v4434, %v4192
      %v4436 = vadd.f32 %v4435, %v4196
      %v4437 = vadd.f32 %v4436, %v4200
      %v4438 = vadd.f32 %v4437, %v4204
      %v4439 = vadd.f32 %v4438, %v4208
      %v4440 = vadd.f32 %v4439, %v4212
      %v4441 = vadd.f32 %v4440, %v4216
      %v4442 = vadd.f32 %v4441, %v4220
      %v4443 = vadd.f32 %v4442, %v4224
      %v4444 = vadd.f32 %v4443, %v4228
      %v4445 = vadd.f32 %v4444, %v4232
      %v4446 = vadd.f32 %v4445, %v4236
      %v4447 = vadd.f32 %v4446, %v4240
      %v4448 = vadd.f32 %v4447, %v4244
      %v4449 = vadd.f32 %v4448, %v4248
      %v4450 = vadd.f32 %v4449, %v4252
      %v4451 = vadd.f32 %v4450, %v4256
      %v4452 = vadd.f32 %v4451, %v4260
      %v4453 = vadd.f32 %v4452, %v4264
      %v4454 = vadd.f32 %v4453, %v4268
      %v4455 = vadd.f32 %v4454, %v4272
      %v4456 = vadd.f32 %v4455, %v4276
      %v4457 = vadd.f32 %v4456, %v4280
      %v4458 = vadd.f32 %v4457, %v4284
      %v4459 = vadd.f32 %v4458, %v4288
      %v4460 = vadd.f32 %v4459, %v4292
      %v4461 = vadd.f32 %v4460, %v4296
      %v4462 = vadd.f32 %v4461, %v4300
      %v4463 = vadd.f32 %v4462, %v4304
      %v4464 = vadd.f32 %v4463, %v4308
      %v4465 = vadd.f32 %v4464, %v4312
      %v4466 = vadd.f32 %v4465, %v4316
      %v4467 = vadd.f32 %v4466, %v4320
      %v4468 = vadd.f32 %v4467, %v4324
      %v4469 = vadd.f32 %v4468, %v4328
      %v4470 = vadd.f32 %v4469, %v4332
      %v4471 = vadd.f32 %v4470, %v4336
      %v4472 = vadd.f32 %v4471, %v4340
      %v4473 = vadd.f32 %v4472, %v4344
      %v4474 = vrot.slane %v4473, 4
      %v4475 = vadd.f32 %v4473, %v4474
      %v4476 = vrot.slane %v4475, 2
      %v4477 = vadd.f32 %v4475, %v4476
      %v4478 = vrot.slane %v4477, 1
      %v4479 = vadd.f32 %v4477, %v4478
      %v4480 = vadd.f32 %v3838, %v3842
      %v4481 = vadd.f32 %v4480, %v3846
      %v4482 = vadd.f32 %v4481, %v3850
      %v4483 = vadd.f32 %v4482, %v3854
      %v4484 = vadd.f32 %v4483, %v3858
      %v4485 = vadd.f32 %v4484, %v3862
      %v4486 = vadd.f32 %v4485, %v3866
      %v4487 = vadd.f32 %v4486, %v3870
      %v4488 = vadd.f32 %v4487, %v3874
      %v4489 = vadd.f32 %v4488, %v3878
      %v4490 = vadd.f32 %v4489, %v3882
      %v4491 = vadd.f32 %v4490, %v3886
      %v4492 = vadd.f32 %v4491, %v3890
      %v4493 = vadd.f32 %v4492, %v3894
      %v4494 = vadd.f32 %v4493, %v3898
      %v4495 = vadd.f32 %v4494, %v3902
      %v4496 = vadd.f32 %v4495, %v3906
      %v4497 = vadd.f32 %v4496, %v3910
      %v4498 = vadd.f32 %v4497, %v3914
      %v4499 = vadd.f32 %v4498, %v3918
      %v4500 = vadd.f32 %v4499, %v3922
      %v4501 = vadd.f32 %v4500, %v3926
      %v4502 = vadd.f32 %v4501, %v3930
      %v4503 = vadd.f32 %v4502, %v3934
      %v4504 = vadd.f32 %v4503, %v3938
      %v4505 = vadd.f32 %v4504, %v3942
      %v4506 = vadd.f32 %v4505, %v3946
      %v4507 = vadd.f32 %v4506, %v3950
      %v4508 = vadd.f32 %v4507, %v3954
      %v4509 = vadd.f32 %v4508, %v3958
      %v4510 = vadd.f32 %v4509, %v3962
      %v4511 = vadd.f32 %v4510, %v3966
      %v4512 = vadd.f32 %v4511, %v3970
      %v4513 = vadd.f32 %v4512, %v3974
      %v4514 = vadd.f32 %v4513, %v3978
      %v4515 = vadd.f32 %v4514, %v3982
      %v4516 = vadd.f32 %v4515, %v3986
      %v4517 = vadd.f32 %v4516, %v3990
      %v4518 = vadd.f32 %v4517, %v3994
      %v4519 = vadd.f32 %v4518, %v3998
      %v4520 = vadd.f32 %v4519, %v4002
      %v4521 = vadd.f32 %v4520, %v4006
      %v4522 = vadd.f32 %v4521, %v4010
      %v4523 = vadd.f32 %v4522, %v4014
      %v4524 = vadd.f32 %v4523, %v4018
      %v4525 = vadd.f32 %v4524, %v4022
      %v4526 = vadd.f32 %v4525, %v4026
      %v4527 = vadd.f32 %v4526, %v4030
      %v4528 = vadd.f32 %v4527, %v4034
      %v4529 = vadd.f32 %v4528, %v4038
      %v4530 = vadd.f32 %v4529, %v4042
      %v4531 = vadd.f32 %v4530, %v4046
      %v4532 = vadd.f32 %v4531, %v4050
      %v4533 = vadd.f32 %v4532, %v4054
      %v4534 = vadd.f32 %v4533, %v4058
      %v4535 = vadd.f32 %v4534, %v4062
      %v4536 = vadd.f32 %v4535, %v4066
      %v4537 = vadd.f32 %v4536, %v4070
      %v4538 = vadd.f32 %v4537, %v4074
      %v4539 = vadd.f32 %v4538, %v4078
      %v4540 = vadd.f32 %v4539, %v4082
      %v4541 = vadd.f32 %v4540, %v4086
      %v4542 = vadd.f32 %v4541, %v4090
      %v4543 = vadd.f32 %v4542, %v4094
      %v4544 = vadd.f32 %v4543, %v4098
      %v4545 = vadd.f32 %v4544, %v4102
      %v4546 = vadd.f32 %v4545, %v4106
      %v4547 = vadd.f32 %v4546, %v4110
      %v4548 = vadd.f32 %v4547, %v4114
      %v4549 = vadd.f32 %v4548, %v4118
      %v4550 = vadd.f32 %v4549, %v4122
      %v4551 = vadd.f32 %v4550, %v4126
      %v4552 = vadd.f32 %v4551, %v4130
      %v4553 = vadd.f32 %v4552, %v4134
      %v4554 = vadd.f32 %v4553, %v4138
      %v4555 = vadd.f32 %v4554, %v4142
      %v4556 = vadd.f32 %v4555, %v4146
      %v4557 = vadd.f32 %v4556, %v4150
      %v4558 = vadd.f32 %v4557, %v4154
      %v4559 = vadd.f32 %v4558, %v4158
      %v4560 = vadd.f32 %v4559, %v4162
      %v4561 = vadd.f32 %v4560, %v4166
      %v4562 = vadd.f32 %v4561, %v4170
      %v4563 = vadd.f32 %v4562, %v4174
      %v4564 = vadd.f32 %v4563, %v4178
      %v4565 = vadd.f32 %v4564, %v4182
      %v4566 = vadd.f32 %v4565, %v4186
      %v4567 = vadd.f32 %v4566, %v4190
      %v4568 = vadd.f32 %v4567, %v4194
      %v4569 = vadd.f32 %v4568, %v4198
      %v4570 = vadd.f32 %v4569, %v4202
      %v4571 = vadd.f32 %v4570, %v4206
      %v4572 = vadd.f32 %v4571, %v4210
      %v4573 = vadd.f32 %v4572, %v4214
      %v4574 = vadd.f32 %v4573, %v4218
      %v4575 = vadd.f32 %v4574, %v4222
      %v4576 = vadd.f32 %v4575, %v4226
      %v4577 = vadd.f32 %v4576, %v4230
      %v4578 = vadd.f32 %v4577, %v4234
      %v4579 = vadd.f32 %v4578, %v4238
      %v4580 = vadd.f32 %v4579, %v4242
      %v4581 = vadd.f32 %v4580, %v4246
      %v4582 = vadd.f32 %v4581, %v4250
      %v4583 = vadd.f32 %v4582, %v4254
      %v4584 = vadd.f32 %v4583, %v4258
      %v4585 = vadd.f32 %v4584, %v4262
      %v4586 = vadd.f32 %v4585, %v4266
      %v4587 = vadd.f32 %v4586, %v4270
      %v4588 = vadd.f32 %v4587, %v4274
      %v4589 = vadd.f32 %v4588, %v4278
      %v4590 = vadd.f32 %v4589, %v4282
      %v4591 = vadd.f32 %v4590, %v4286
      %v4592 = vadd.f32 %v4591, %v4290
      %v4593 = vadd.f32 %v4592, %v4294
      %v4594 = vadd.f32 %v4593, %v4298
      %v4595 = vadd.f32 %v4594, %v4302
      %v4596 = vadd.f32 %v4595, %v4306
      %v4597 = vadd.f32 %v4596, %v4310
      %v4598 = vadd.f32 %v4597, %v4314
      %v4599 = vadd.f32 %v4598, %v4318
      %v4600 = vadd.f32 %v4599, %v4322
      %v4601 = vadd.f32 %v4600, %v4326
      %v4602 = vadd.f32 %v4601, %v4330
      %v4603 = vadd.f32 %v4602, %v4334
      %v4604 = vadd.f32 %v4603, %v4338
      %v4605 = vadd.f32 %v4604, %v4342
      %v4606 = vadd.f32 %v4605, %v4346
      %v4607 = vrot.slane %v4606, 4
      %v4608 = vadd.f32 %v4606, %v4607
      %v4609 = vrot.slane %v4608, 2
      %v4610 = vadd.f32 %v4608, %v4609
      %v4611 = vrot.slane %v4610, 1
      %v4612 = vadd.f32 %v4610, %v4611
      %v4613 = vrcp.pop %v4479
      %v4614 = vrcp.pop %v4612
      %v4615 = vmul.f32 %v3836, %v4613
      %v4616 = vmul.f32 %v3838, %v4614
      %v4617 = vmul.f32 %v3840, %v4613
      %v4618 = vmul.f32 %v3842, %v4614
      %v4619 = vmul.f32 %v3844, %v4613
      %v4620 = vmul.f32 %v3846, %v4614
      %v4621 = vmul.f32 %v3848, %v4613
      %v4622 = vmul.f32 %v3850, %v4614
      %v4623 = vmul.f32 %v3852, %v4613
      %v4624 = vmul.f32 %v3854, %v4614
      %v4625 = vmul.f32 %v3856, %v4613
      %v4626 = vmul.f32 %v3858, %v4614
      %v4627 = vmul.f32 %v3860, %v4613
      %v4628 = vmul.f32 %v3862, %v4614
      %v4629 = vmul.f32 %v3864, %v4613
      %v4630 = vmul.f32 %v3866, %v4614
      %v4631 = vmul.f32 %v3868, %v4613
      %v4632 = vmul.f32 %v3870, %v4614
      %v4633 = vmul.f32 %v3872, %v4613
      %v4634 = vmul.f32 %v3874, %v4614
      %v4635 = vmul.f32 %v3876, %v4613
      %v4636 = vmul.f32 %v3878, %v4614
      %v4637 = vmul.f32 %v3880, %v4613
      %v4638 = vmul.f32 %v3882, %v4614
      %v4639 = vmul.f32 %v3884, %v4613
      %v4640 = vmul.f32 %v3886, %v4614
      %v4641 = vmul.f32 %v3888, %v4613
      %v4642 = vmul.f32 %v3890, %v4614
      %v4643 = vmul.f32 %v3892, %v4613
      %v4644 = vmul.f32 %v3894, %v4614
      %v4645 = vmul.f32 %v3896, %v4613
      %v4646 = vmul.f32 %v3898, %v4614
      %v4647 = vmul.f32 %v3900, %v4613
      %v4648 = vmul.f32 %v3902, %v4614
      %v4649 = vmul.f32 %v3904, %v4613
      %v4650 = vmul.f32 %v3906, %v4614
      %v4651 = vmul.f32 %v3908, %v4613
      %v4652 = vmul.f32 %v3910, %v4614
      %v4653 = vmul.f32 %v3912, %v4613
      %v4654 = vmul.f32 %v3914, %v4614
      %v4655 = vmul.f32 %v3916, %v4613
      %v4656 = vmul.f32 %v3918, %v4614
      %v4657 = vmul.f32 %v3920, %v4613
      %v4658 = vmul.f32 %v3922, %v4614
      %v4659 = vmul.f32 %v3924, %v4613
      %v4660 = vmul.f32 %v3926, %v4614
      %v4661 = vmul.f32 %v3928, %v4613
      %v4662 = vmul.f32 %v3930, %v4614
      %v4663 = vmul.f32 %v3932, %v4613
      %v4664 = vmul.f32 %v3934, %v4614
      %v4665 = vmul.f32 %v3936, %v4613
      %v4666 = vmul.f32 %v3938, %v4614
      %v4667 = vmul.f32 %v3940, %v4613
      %v4668 = vmul.f32 %v3942, %v4614
      %v4669 = vmul.f32 %v3944, %v4613
      %v4670 = vmul.f32 %v3946, %v4614
      %v4671 = vmul.f32 %v3948, %v4613
      %v4672 = vmul.f32 %v3950, %v4614
      %v4673 = vmul.f32 %v3952, %v4613
      %v4674 = vmul.f32 %v3954, %v4614
      %v4675 = vmul.f32 %v3956, %v4613
      %v4676 = vmul.f32 %v3958, %v4614
      %v4677 = vmul.f32 %v3960, %v4613
      %v4678 = vmul.f32 %v3962, %v4614
      %v4679 = vmul.f32 %v3964, %v4613
      %v4680 = vmul.f32 %v3966, %v4614
      %v4681 = vmul.f32 %v3968, %v4613
      %v4682 = vmul.f32 %v3970, %v4614
      %v4683 = vmul.f32 %v3972, %v4613
      %v4684 = vmul.f32 %v3974, %v4614
      %v4685 = vmul.f32 %v3976, %v4613
      %v4686 = vmul.f32 %v3978, %v4614
      %v4687 = vmul.f32 %v3980, %v4613
      %v4688 = vmul.f32 %v3982, %v4614
      %v4689 = vmul.f32 %v3984, %v4613
      %v4690 = vmul.f32 %v3986, %v4614
      %v4691 = vmul.f32 %v3988, %v4613
      %v4692 = vmul.f32 %v3990, %v4614
      %v4693 = vmul.f32 %v3992, %v4613
      %v4694 = vmul.f32 %v3994, %v4614
      %v4695 = vmul.f32 %v3996, %v4613
      %v4696 = vmul.f32 %v3998, %v4614
      %v4697 = vmul.f32 %v4000, %v4613
      %v4698 = vmul.f32 %v4002, %v4614
      %v4699 = vmul.f32 %v4004, %v4613
      %v4700 = vmul.f32 %v4006, %v4614
      %v4701 = vmul.f32 %v4008, %v4613
      %v4702 = vmul.f32 %v4010, %v4614
      %v4703 = vmul.f32 %v4012, %v4613
      %v4704 = vmul.f32 %v4014, %v4614
      %v4705 = vmul.f32 %v4016, %v4613
      %v4706 = vmul.f32 %v4018, %v4614
      %v4707 = vmul.f32 %v4020, %v4613
      %v4708 = vmul.f32 %v4022, %v4614
      %v4709 = vmul.f32 %v4024, %v4613
      %v4710 = vmul.f32 %v4026, %v4614
      %v4711 = vmul.f32 %v4028, %v4613
      %v4712 = vmul.f32 %v4030, %v4614
      %v4713 = vmul.f32 %v4032, %v4613
      %v4714 = vmul.f32 %v4034, %v4614
      %v4715 = vmul.f32 %v4036, %v4613
      %v4716 = vmul.f32 %v4038, %v4614
      %v4717 = vmul.f32 %v4040, %v4613
      %v4718 = vmul.f32 %v4042, %v4614
      %v4719 = vmul.f32 %v4044, %v4613
      %v4720 = vmul.f32 %v4046, %v4614
      %v4721 = vmul.f32 %v4048, %v4613
      %v4722 = vmul.f32 %v4050, %v4614
      %v4723 = vmul.f32 %v4052, %v4613
      %v4724 = vmul.f32 %v4054, %v4614
      %v4725 = vmul.f32 %v4056, %v4613
      %v4726 = vmul.f32 %v4058, %v4614
      %v4727 = vmul.f32 %v4060, %v4613
      %v4728 = vmul.f32 %v4062, %v4614
      %v4729 = vmul.f32 %v4064, %v4613
      %v4730 = vmul.f32 %v4066, %v4614
      %v4731 = vmul.f32 %v4068, %v4613
      %v4732 = vmul.f32 %v4070, %v4614
      %v4733 = vmul.f32 %v4072, %v4613
      %v4734 = vmul.f32 %v4074, %v4614
      %v4735 = vmul.f32 %v4076, %v4613
      %v4736 = vmul.f32 %v4078, %v4614
      %v4737 = vmul.f32 %v4080, %v4613
      %v4738 = vmul.f32 %v4082, %v4614
      %v4739 = vmul.f32 %v4084, %v4613
      %v4740 = vmul.f32 %v4086, %v4614
      %v4741 = vmul.f32 %v4088, %v4613
      %v4742 = vmul.f32 %v4090, %v4614
      %v4743 = vmul.f32 %v4092, %v4613
      %v4744 = vmul.f32 %v4094, %v4614
      %v4745 = vmul.f32 %v4096, %v4613
      %v4746 = vmul.f32 %v4098, %v4614
      %v4747 = vmul.f32 %v4100, %v4613
      %v4748 = vmul.f32 %v4102, %v4614
      %v4749 = vmul.f32 %v4104, %v4613
      %v4750 = vmul.f32 %v4106, %v4614
      %v4751 = vmul.f32 %v4108, %v4613
      %v4752 = vmul.f32 %v4110, %v4614
      %v4753 = vmul.f32 %v4112, %v4613
      %v4754 = vmul.f32 %v4114, %v4614
      %v4755 = vmul.f32 %v4116, %v4613
      %v4756 = vmul.f32 %v4118, %v4614
      %v4757 = vmul.f32 %v4120, %v4613
      %v4758 = vmul.f32 %v4122, %v4614
      %v4759 = vmul.f32 %v4124, %v4613
      %v4760 = vmul.f32 %v4126, %v4614
      %v4761 = vmul.f32 %v4128, %v4613
      %v4762 = vmul.f32 %v4130, %v4614
      %v4763 = vmul.f32 %v4132, %v4613
      %v4764 = vmul.f32 %v4134, %v4614
      %v4765 = vmul.f32 %v4136, %v4613
      %v4766 = vmul.f32 %v4138, %v4614
      %v4767 = vmul.f32 %v4140, %v4613
      %v4768 = vmul.f32 %v4142, %v4614
      %v4769 = vmul.f32 %v4144, %v4613
      %v4770 = vmul.f32 %v4146, %v4614
      %v4771 = vmul.f32 %v4148, %v4613
      %v4772 = vmul.f32 %v4150, %v4614
      %v4773 = vmul.f32 %v4152, %v4613
      %v4774 = vmul.f32 %v4154, %v4614
      %v4775 = vmul.f32 %v4156, %v4613
      %v4776 = vmul.f32 %v4158, %v4614
      %v4777 = vmul.f32 %v4160, %v4613
      %v4778 = vmul.f32 %v4162, %v4614
      %v4779 = vmul.f32 %v4164, %v4613
      %v4780 = vmul.f32 %v4166, %v4614
      %v4781 = vmul.f32 %v4168, %v4613
      %v4782 = vmul.f32 %v4170, %v4614
      %v4783 = vmul.f32 %v4172, %v4613
      %v4784 = vmul.f32 %v4174, %v4614
      %v4785 = vmul.f32 %v4176, %v4613
      %v4786 = vmul.f32 %v4178, %v4614
      %v4787 = vmul.f32 %v4180, %v4613
      %v4788 = vmul.f32 %v4182, %v4614
      %v4789 = vmul.f32 %v4184, %v4613
      %v4790 = vmul.f32 %v4186, %v4614
      %v4791 = vmul.f32 %v4188, %v4613
      %v4792 = vmul.f32 %v4190, %v4614
      %v4793 = vmul.f32 %v4192, %v4613
      %v4794 = vmul.f32 %v4194, %v4614
      %v4795 = vmul.f32 %v4196, %v4613
      %v4796 = vmul.f32 %v4198, %v4614
      %v4797 = vmul.f32 %v4200, %v4613
      %v4798 = vmul.f32 %v4202, %v4614
      %v4799 = vmul.f32 %v4204, %v4613
      %v4800 = vmul.f32 %v4206, %v4614
      %v4801 = vmul.f32 %v4208, %v4613
      %v4802 = vmul.f32 %v4210, %v4614
      %v4803 = vmul.f32 %v4212, %v4613
      %v4804 = vmul.f32 %v4214, %v4614
      %v4805 = vmul.f32 %v4216, %v4613
      %v4806 = vmul.f32 %v4218, %v4614
      %v4807 = vmul.f32 %v4220, %v4613
      %v4808 = vmul.f32 %v4222, %v4614
      %v4809 = vmul.f32 %v4224, %v4613
      %v4810 = vmul.f32 %v4226, %v4614
      %v4811 = vmul.f32 %v4228, %v4613
      %v4812 = vmul.f32 %v4230, %v4614
      %v4813 = vmul.f32 %v4232, %v4613
      %v4814 = vmul.f32 %v4234, %v4614
      %v4815 = vmul.f32 %v4236, %v4613
      %v4816 = vmul.f32 %v4238, %v4614
      %v4817 = vmul.f32 %v4240, %v4613
      %v4818 = vmul.f32 %v4242, %v4614
      %v4819 = vmul.f32 %v4244, %v4613
      %v4820 = vmul.f32 %v4246, %v4614
      %v4821 = vmul.f32 %v4248, %v4613
      %v4822 = vmul.f32 %v4250, %v4614
      %v4823 = vmul.f32 %v4252, %v4613
      %v4824 = vmul.f32 %v4254, %v4614
      %v4825 = vmul.f32 %v4256, %v4613
      %v4826 = vmul.f32 %v4258, %v4614
      %v4827 = vmul.f32 %v4260, %v4613
      %v4828 = vmul.f32 %v4262, %v4614
      %v4829 = vmul.f32 %v4264, %v4613
      %v4830 = vmul.f32 %v4266, %v4614
      %v4831 = vmul.f32 %v4268, %v4613
      %v4832 = vmul.f32 %v4270, %v4614
      %v4833 = vmul.f32 %v4272, %v4613
      %v4834 = vmul.f32 %v4274, %v4614
      %v4835 = vmul.f32 %v4276, %v4613
      %v4836 = vmul.f32 %v4278, %v4614
      %v4837 = vmul.f32 %v4280, %v4613
      %v4838 = vmul.f32 %v4282, %v4614
      %v4839 = vmul.f32 %v4284, %v4613
      %v4840 = vmul.f32 %v4286, %v4614
      %v4841 = vmul.f32 %v4288, %v4613
      %v4842 = vmul.f32 %v4290, %v4614
      %v4843 = vmul.f32 %v4292, %v4613
      %v4844 = vmul.f32 %v4294, %v4614
      %v4845 = vmul.f32 %v4296, %v4613
      %v4846 = vmul.f32 %v4298, %v4614
      %v4847 = vmul.f32 %v4300, %v4613
      %v4848 = vmul.f32 %v4302, %v4614
      %v4849 = vmul.f32 %v4304, %v4613
      %v4850 = vmul.f32 %v4306, %v4614
      %v4851 = vmul.f32 %v4308, %v4613
      %v4852 = vmul.f32 %v4310, %v4614
      %v4853 = vmul.f32 %v4312, %v4613
      %v4854 = vmul.f32 %v4314, %v4614
      %v4855 = vmul.f32 %v4316, %v4613
      %v4856 = vmul.f32 %v4318, %v4614
      %v4857 = vmul.f32 %v4320, %v4613
      %v4858 = vmul.f32 %v4322, %v4614
      %v4859 = vmul.f32 %v4324, %v4613
      %v4860 = vmul.f32 %v4326, %v4614
      %v4861 = vmul.f32 %v4328, %v4613
      %v4862 = vmul.f32 %v4330, %v4614
      %v4863 = vmul.f32 %v4332, %v4613
      %v4864 = vmul.f32 %v4334, %v4614
      %v4865 = vmul.f32 %v4336, %v4613
      %v4866 = vmul.f32 %v4338, %v4614
      %v4867 = vmul.f32 %v4340, %v4613
      %v4868 = vmul.f32 %v4342, %v4614
      %v4869 = vmul.f32 %v4344, %v4613
      %v4870 = vmul.f32 %v4346, %v4614
      %4872 = vset.pattern.permute.xlu0 0
      %4873 = vperm.xlu0 %4872, %v426
      %v4874 = vpop.permute.xlu0 %4873
      %4877 = vset.pattern.permute.xlu0 0
      %4878 = vperm.xlu0 %4877, %v427
      %v4879 = vpop.permute.xlu0 %4878
      %4882 = vset.pattern.permute.xlu0 0
      %4883 = vperm.xlu0 %4882, %v428
      %v4884 = vpop.permute.xlu0 %4883
      %4887 = vset.pattern.permute.xlu0 0
      %4888 = vperm.xlu0 %4887, %v429
      %v4889 = vpop.permute.xlu0 %4888
      %4892 = vset.pattern.permute.xlu0 0
      %4893 = vperm.xlu0 %4892, %v430
      %v4894 = vpop.permute.xlu0 %4893
      %4897 = vset.pattern.permute.xlu0 0
      %4898 = vperm.xlu0 %4897, %v431
      %v4899 = vpop.permute.xlu0 %4898
      %4902 = vset.pattern.permute.xlu0 0
      %4903 = vperm.xlu0 %4902, %v432
      %v4904 = vpop.permute.xlu0 %4903
      %4907 = vset.pattern.permute.xlu0 0
      %4908 = vperm.xlu0 %4907, %v433
      %v4909 = vpop.permute.xlu0 %4908
      %4912 = vset.pattern.permute.xlu0 0
      %4913 = vperm.xlu0 %4912, %v434
      %v4914 = vpop.permute.xlu0 %4913
      %4917 = vset.pattern.permute.xlu0 0
      %4918 = vperm.xlu0 %4917, %v435
      %v4919 = vpop.permute.xlu0 %4918
      %4922 = vset.pattern.permute.xlu0 0
      %4923 = vperm.xlu0 %4922, %v436
      %v4924 = vpop.permute.xlu0 %4923
      %4927 = vset.pattern.permute.xlu0 0
      %4928 = vperm.xlu0 %4927, %v437
      %v4929 = vpop.permute.xlu0 %4928
      %4932 = vset.pattern.permute.xlu0 0
      %4933 = vperm.xlu0 %4932, %v438
      %v4934 = vpop.permute.xlu0 %4933
      %4937 = vset.pattern.permute.xlu0 0
      %4938 = vperm.xlu0 %4937, %v439
      %v4939 = vpop.permute.xlu0 %4938
      %4942 = vset.pattern.permute.xlu0 0
      %4943 = vperm.xlu0 %4942, %v440
      %v4944 = vpop.permute.xlu0 %4943
      %4947 = vset.pattern.permute.xlu0 0
      %4948 = vperm.xlu0 %4947, %v441
      %v4949 = vpop.permute.xlu0 %4948
      %4952 = vset.pattern.permute.xlu0 0
      %4953 = vperm.xlu0 %4952, %v442
      %v4954 = vpop.permute.xlu0 %4953
      %4957 = vset.pattern.permute.xlu0 0
      %4958 = vperm.xlu0 %4957, %v443
      %v4959 = vpop.permute.xlu0 %4958
      %4962 = vset.pattern.permute.xlu0 0
      %4963 = vperm.xlu0 %4962, %v444
      %v4964 = vpop.permute.xlu0 %4963
      %4967 = vset.pattern.permute.xlu0 0
      %4968 = vperm.xlu0 %4967, %v445
      %v4969 = vpop.permute.xlu0 %4968
      %4972 = vset.pattern.permute.xlu0 0
      %4973 = vperm.xlu0 %4972, %v446
      %v4974 = vpop.permute.xlu0 %4973
      %4977 = vset.pattern.permute.xlu0 0
      %4978 = vperm.xlu0 %4977, %v447
      %v4979 = vpop.permute.xlu0 %4978
      %4982 = vset.pattern.permute.xlu0 0
      %4983 = vperm.xlu0 %4982, %v448
      %v4984 = vpop.permute.xlu0 %4983
      %4987 = vset.pattern.permute.xlu0 0
      %4988 = vperm.xlu0 %4987, %v449
      %v4989 = vpop.permute.xlu0 %4988
      %4992 = vset.pattern.permute.xlu0 0
      %4993 = vperm.xlu0 %4992, %v450
      %v4994 = vpop.permute.xlu0 %4993
      %4997 = vset.pattern.permute.xlu0 0
      %4998 = vperm.xlu0 %4997, %v451
      %v4999 = vpop.permute.xlu0 %4998
      %5002 = vset.pattern.permute.xlu0 0
      %5003 = vperm.xlu0 %5002, %v452
      %v5004 = vpop.permute.xlu0 %5003
      %5007 = vset.pattern.permute.xlu0 0
      %5008 = vperm.xlu0 %5007, %v453
      %v5009 = vpop.permute.xlu0 %5008
      %5012 = vset.pattern.permute.xlu0 0
      %5013 = vperm.xlu0 %5012, %v454
      %v5014 = vpop.permute.xlu0 %5013
      %5017 = vset.pattern.permute.xlu0 0
      %5018 = vperm.xlu0 %5017, %v455
      %v5019 = vpop.permute.xlu0 %5018
      %5022 = vset.pattern.permute.xlu0 0
      %5023 = vperm.xlu0 %5022, %v456
      %v5024 = vpop.permute.xlu0 %5023
      %5027 = vset.pattern.permute.xlu0 0
      %5028 = vperm.xlu0 %5027, %v457
      %v5029 = vpop.permute.xlu0 %5028
      %5032 = vset.pattern.permute.xlu0 0
      %5033 = vperm.xlu0 %5032, %v458
      %v5034 = vpop.permute.xlu0 %5033
      %5037 = vset.pattern.permute.xlu0 0
      %5038 = vperm.xlu0 %5037, %v459
      %v5039 = vpop.permute.xlu0 %5038
      %5042 = vset.pattern.permute.xlu0 0
      %5043 = vperm.xlu0 %5042, %v460
      %v5044 = vpop.permute.xlu0 %5043
      %5047 = vset.pattern.permute.xlu0 0
      %5048 = vperm.xlu0 %5047, %v461
      %v5049 = vpop.permute.xlu0 %5048
      %5052 = vset.pattern.permute.xlu0 0
      %5053 = vperm.xlu0 %5052, %v462
      %v5054 = vpop.permute.xlu0 %5053
      %5057 = vset.pattern.permute.xlu0 0
      %5058 = vperm.xlu0 %5057, %v463
      %v5059 = vpop.permute.xlu0 %5058
      %5062 = vset.pattern.permute.xlu0 0
      %5063 = vperm.xlu0 %5062, %v464
      %v5064 = vpop.permute.xlu0 %5063
      %5067 = vset.pattern.permute.xlu0 0
      %5068 = vperm.xlu0 %5067, %v465
      %v5069 = vpop.permute.xlu0 %5068
      %5072 = vset.pattern.permute.xlu0 0
      %5073 = vperm.xlu0 %5072, %v466
      %v5074 = vpop.permute.xlu0 %5073
      %5077 = vset.pattern.permute.xlu0 0
      %5078 = vperm.xlu0 %5077, %v467
      %v5079 = vpop.permute.xlu0 %5078
      %5082 = vset.pattern.permute.xlu0 0
      %5083 = vperm.xlu0 %5082, %v468
      %v5084 = vpop.permute.xlu0 %5083
      %5087 = vset.pattern.permute.xlu0 0
      %5088 = vperm.xlu0 %5087, %v469
      %v5089 = vpop.permute.xlu0 %5088
      %5092 = vset.pattern.permute.xlu0 0
      %5093 = vperm.xlu0 %5092, %v470
      %v5094 = vpop.permute.xlu0 %5093
      %5097 = vset.pattern.permute.xlu0 0
      %5098 = vperm.xlu0 %5097, %v471
      %v5099 = vpop.permute.xlu0 %5098
      %5102 = vset.pattern.permute.xlu0 0
      %5103 = vperm.xlu0 %5102, %v472
      %v5104 = vpop.permute.xlu0 %5103
      %5107 = vset.pattern.permute.xlu0 0
      %5108 = vperm.xlu0 %5107, %v473
      %v5109 = vpop.permute.xlu0 %5108
      %5112 = vset.pattern.permute.xlu0 0
      %5113 = vperm.xlu0 %5112, %v474
      %v5114 = vpop.permute.xlu0 %5113
      %5117 = vset.pattern.permute.xlu0 0
      %5118 = vperm.xlu0 %5117, %v475
      %v5119 = vpop.permute.xlu0 %5118
      %5122 = vset.pattern.permute.xlu0 0
      %5123 = vperm.xlu0 %5122, %v476
      %v5124 = vpop.permute.xlu0 %5123
      %5127 = vset.pattern.permute.xlu0 0
      %5128 = vperm.xlu0 %5127, %v477
      %v5129 = vpop.permute.xlu0 %5128
      %5132 = vset.pattern.permute.xlu0 0
      %5133 = vperm.xlu0 %5132, %v478
      %v5134 = vpop.permute.xlu0 %5133
      %5137 = vset.pattern.permute.xlu0 0
      %5138 = vperm.xlu0 %5137, %v479
      %v5139 = vpop.permute.xlu0 %5138
      %5142 = vset.pattern.permute.xlu0 0
      %5143 = vperm.xlu0 %5142, %v480
      %v5144 = vpop.permute.xlu0 %5143
      %5147 = vset.pattern.permute.xlu0 0
      %5148 = vperm.xlu0 %5147, %v481
      %v5149 = vpop.permute.xlu0 %5148
      %5152 = vset.pattern.permute.xlu0 0
      %5153 = vperm.xlu0 %5152, %v482
      %v5154 = vpop.permute.xlu0 %5153
      %5157 = vset.pattern.permute.xlu0 0
      %5158 = vperm.xlu0 %5157, %v483
      %v5159 = vpop.permute.xlu0 %5158
      %5162 = vset.pattern.permute.xlu0 0
      %5163 = vperm.xlu0 %5162, %v484
      %v5164 = vpop.permute.xlu0 %5163
      %5167 = vset.pattern.permute.xlu0 0
      %5168 = vperm.xlu0 %5167, %v485
      %v5169 = vpop.permute.xlu0 %5168
      %5172 = vset.pattern.permute.xlu0 0
      %5173 = vperm.xlu0 %5172, %v486
      %v5174 = vpop.permute.xlu0 %5173
      %5177 = vset.pattern.permute.xlu0 0
      %5178 = vperm.xlu0 %5177, %v487
      %v5179 = vpop.permute.xlu0 %5178
      %5182 = vset.pattern.permute.xlu0 0
      %5183 = vperm.xlu0 %5182, %v488
      %v5184 = vpop.permute.xlu0 %5183
      %5187 = vset.pattern.permute.xlu0 0
      %5188 = vperm.xlu0 %5187, %v489
      %v5189 = vpop.permute.xlu0 %5188
      %5192 = vset.pattern.permute.xlu0 0
      %5193 = vperm.xlu0 %5192, %v490
      %v5194 = vpop.permute.xlu0 %5193
      %5197 = vset.pattern.permute.xlu0 0
      %5198 = vperm.xlu0 %5197, %v491
      %v5199 = vpop.permute.xlu0 %5198
      %5202 = vset.pattern.permute.xlu0 0
      %5203 = vperm.xlu0 %5202, %v492
      %v5204 = vpop.permute.xlu0 %5203
      %5207 = vset.pattern.permute.xlu0 0
      %5208 = vperm.xlu0 %5207, %v493
      %v5209 = vpop.permute.xlu0 %5208
      %5212 = vset.pattern.permute.xlu0 0
      %5213 = vperm.xlu0 %5212, %v494
      %v5214 = vpop.permute.xlu0 %5213
      %5217 = vset.pattern.permute.xlu0 0
      %5218 = vperm.xlu0 %5217, %v495
      %v5219 = vpop.permute.xlu0 %5218
      %5222 = vset.pattern.permute.xlu0 0
      %5223 = vperm.xlu0 %5222, %v496
      %v5224 = vpop.permute.xlu0 %5223
      %5227 = vset.pattern.permute.xlu0 0
      %5228 = vperm.xlu0 %5227, %v497
      %v5229 = vpop.permute.xlu0 %5228
      %5232 = vset.pattern.permute.xlu0 0
      %5233 = vperm.xlu0 %5232, %v498
      %v5234 = vpop.permute.xlu0 %5233
      %5237 = vset.pattern.permute.xlu0 0
      %5238 = vperm.xlu0 %5237, %v499
      %v5239 = vpop.permute.xlu0 %5238
      %5242 = vset.pattern.permute.xlu0 0
      %5243 = vperm.xlu0 %5242, %v500
      %v5244 = vpop.permute.xlu0 %5243
      %5247 = vset.pattern.permute.xlu0 0
      %5248 = vperm.xlu0 %5247, %v501
      %v5249 = vpop.permute.xlu0 %5248
      %5252 = vset.pattern.permute.xlu0 0
      %5253 = vperm.xlu0 %5252, %v502
      %v5254 = vpop.permute.xlu0 %5253
      %5257 = vset.pattern.permute.xlu0 0
      %5258 = vperm.xlu0 %5257, %v503
      %v5259 = vpop.permute.xlu0 %5258
      %5262 = vset.pattern.permute.xlu0 0
      %5263 = vperm.xlu0 %5262, %v504
      %v5264 = vpop.permute.xlu0 %5263
      %5267 = vset.pattern.permute.xlu0 0
      %5268 = vperm.xlu0 %5267, %v505
      %v5269 = vpop.permute.xlu0 %5268
      %5272 = vset.pattern.permute.xlu0 0
      %5273 = vperm.xlu0 %5272, %v506
      %v5274 = vpop.permute.xlu0 %5273
      %5277 = vset.pattern.permute.xlu0 0
      %5278 = vperm.xlu0 %5277, %v507
      %v5279 = vpop.permute.xlu0 %5278
      %5282 = vset.pattern.permute.xlu0 0
      %5283 = vperm.xlu0 %5282, %v508
      %v5284 = vpop.permute.xlu0 %5283
      %5287 = vset.pattern.permute.xlu0 0
      %5288 = vperm.xlu0 %5287, %v509
      %v5289 = vpop.permute.xlu0 %5288
      %5292 = vset.pattern.permute.xlu0 0
      %5293 = vperm.xlu0 %5292, %v510
      %v5294 = vpop.permute.xlu0 %5293
      %5297 = vset.pattern.permute.xlu0 0
      %5298 = vperm.xlu0 %5297, %v511
      %v5299 = vpop.permute.xlu0 %5298
      %5302 = vset.pattern.permute.xlu0 0
      %5303 = vperm.xlu0 %5302, %v512
      %v5304 = vpop.permute.xlu0 %5303
      %5307 = vset.pattern.permute.xlu0 0
      %5308 = vperm.xlu0 %5307, %v513
      %v5309 = vpop.permute.xlu0 %5308
      %5312 = vset.pattern.permute.xlu0 0
      %5313 = vperm.xlu0 %5312, %v514
      %v5314 = vpop.permute.xlu0 %5313
      %5317 = vset.pattern.permute.xlu0 0
      %5318 = vperm.xlu0 %5317, %v515
      %v5319 = vpop.permute.xlu0 %5318
      %5322 = vset.pattern.permute.xlu0 0
      %5323 = vperm.xlu0 %5322, %v516
      %v5324 = vpop.permute.xlu0 %5323
      %5327 = vset.pattern.permute.xlu0 0
      %5328 = vperm.xlu0 %5327, %v517
      %v5329 = vpop.permute.xlu0 %5328
      %5332 = vset.pattern.permute.xlu0 0
      %5333 = vperm.xlu0 %5332, %v518
      %v5334 = vpop.permute.xlu0 %5333
      %5337 = vset.pattern.permute.xlu0 0
      %5338 = vperm.xlu0 %5337, %v519
      %v5339 = vpop.permute.xlu0 %5338
      %5342 = vset.pattern.permute.xlu0 0
      %5343 = vperm.xlu0 %5342, %v520
      %v5344 = vpop.permute.xlu0 %5343
      %5347 = vset.pattern.permute.xlu0 0
      %5348 = vperm.xlu0 %5347, %v521
      %v5349 = vpop.permute.xlu0 %5348
      %5352 = vset.pattern.permute.xlu0 0
      %5353 = vperm.xlu0 %5352, %v522
      %v5354 = vpop.permute.xlu0 %5353
      %5357 = vset.pattern.permute.xlu0 0
      %5358 = vperm.xlu0 %5357, %v523
      %v5359 = vpop.permute.xlu0 %5358
      %5362 = vset.pattern.permute.xlu0 0
      %5363 = vperm.xlu0 %5362, %v524
      %v5364 = vpop.permute.xlu0 %5363
      %5367 = vset.pattern.permute.xlu0 0
      %5368 = vperm.xlu0 %5367, %v525
      %v5369 = vpop.permute.xlu0 %5368
      %5372 = vset.pattern.permute.xlu0 0
      %5373 = vperm.xlu0 %5372, %v526
      %v5374 = vpop.permute.xlu0 %5373
      %5377 = vset.pattern.permute.xlu0 0
      %5378 = vperm.xlu0 %5377, %v527
      %v5379 = vpop.permute.xlu0 %5378
      %5382 = vset.pattern.permute.xlu0 0
      %5383 = vperm.xlu0 %5382, %v528
      %v5384 = vpop.permute.xlu0 %5383
      %5387 = vset.pattern.permute.xlu0 0
      %5388 = vperm.xlu0 %5387, %v529
      %v5389 = vpop.permute.xlu0 %5388
      %5392 = vset.pattern.permute.xlu0 0
      %5393 = vperm.xlu0 %5392, %v530
      %v5394 = vpop.permute.xlu0 %5393
      %5397 = vset.pattern.permute.xlu0 0
      %5398 = vperm.xlu0 %5397, %v531
      %v5399 = vpop.permute.xlu0 %5398
      %5402 = vset.pattern.permute.xlu0 0
      %5403 = vperm.xlu0 %5402, %v532
      %v5404 = vpop.permute.xlu0 %5403
      %5407 = vset.pattern.permute.xlu0 0
      %5408 = vperm.xlu0 %5407, %v533
      %v5409 = vpop.permute.xlu0 %5408
      %5412 = vset.pattern.permute.xlu0 0
      %5413 = vperm.xlu0 %5412, %v534
      %v5414 = vpop.permute.xlu0 %5413
      %5417 = vset.pattern.permute.xlu0 0
      %5418 = vperm.xlu0 %5417, %v535
      %v5419 = vpop.permute.xlu0 %5418
      %5422 = vset.pattern.permute.xlu0 0
      %5423 = vperm.xlu0 %5422, %v536
      %v5424 = vpop.permute.xlu0 %5423
      %5427 = vset.pattern.permute.xlu0 0
      %5428 = vperm.xlu0 %5427, %v537
      %v5429 = vpop.permute.xlu0 %5428
      %5432 = vset.pattern.permute.xlu0 0
      %5433 = vperm.xlu0 %5432, %v538
      %v5434 = vpop.permute.xlu0 %5433
      %5437 = vset.pattern.permute.xlu0 0
      %5438 = vperm.xlu0 %5437, %v539
      %v5439 = vpop.permute.xlu0 %5438
      %5442 = vset.pattern.permute.xlu0 0
      %5443 = vperm.xlu0 %5442, %v540
      %v5444 = vpop.permute.xlu0 %5443
      %5447 = vset.pattern.permute.xlu0 0
      %5448 = vperm.xlu0 %5447, %v541
      %v5449 = vpop.permute.xlu0 %5448
      %5452 = vset.pattern.permute.xlu0 0
      %5453 = vperm.xlu0 %5452, %v542
      %v5454 = vpop.permute.xlu0 %5453
      %5457 = vset.pattern.permute.xlu0 0
      %5458 = vperm.xlu0 %5457, %v543
      %v5459 = vpop.permute.xlu0 %5458
      %5462 = vset.pattern.permute.xlu0 0
      %5463 = vperm.xlu0 %5462, %v544
      %v5464 = vpop.permute.xlu0 %5463
      %5467 = vset.pattern.permute.xlu0 0
      %5468 = vperm.xlu0 %5467, %v545
      %v5469 = vpop.permute.xlu0 %5468
      %5472 = vset.pattern.permute.xlu0 0
      %5473 = vperm.xlu0 %5472, %v546
      %v5474 = vpop.permute.xlu0 %5473
      %5477 = vset.pattern.permute.xlu0 0
      %5478 = vperm.xlu0 %5477, %v547
      %v5479 = vpop.permute.xlu0 %5478
      %5482 = vset.pattern.permute.xlu0 0
      %5483 = vperm.xlu0 %5482, %v548
      %v5484 = vpop.permute.xlu0 %5483
      %5487 = vset.pattern.permute.xlu0 0
      %5488 = vperm.xlu0 %5487, %v549
      %v5489 = vpop.permute.xlu0 %5488
      %5492 = vset.pattern.permute.xlu0 0
      %5493 = vperm.xlu0 %5492, %v550
      %v5494 = vpop.permute.xlu0 %5493
      %5497 = vset.pattern.permute.xlu0 0
      %5498 = vperm.xlu0 %5497, %v551
      %v5499 = vpop.permute.xlu0 %5498
      %5502 = vset.pattern.permute.xlu0 0
      %5503 = vperm.xlu0 %5502, %v552
      %v5504 = vpop.permute.xlu0 %5503
      %5507 = vset.pattern.permute.xlu0 0
      %5508 = vperm.xlu0 %5507, %v553
      %v5509 = vpop.permute.xlu0 %5508
      %v5511 = vmul.f32 %v4615, %v4874
      %v5512 = vmul.f32 %v4616, %v4874
      %v5513 = vmul.f32 %v4617, %v4879
      %v5514 = vmul.f32 %v4618, %v4879
      %v5515 = vmul.f32 %v4619, %v4884
      %v5516 = vmul.f32 %v4620, %v4884
      %v5517 = vmul.f32 %v4621, %v4889
      %v5518 = vmul.f32 %v4622, %v4889
      %v5519 = vmul.f32 %v4623, %v4894
      %v5520 = vmul.f32 %v4624, %v4894
      %v5521 = vmul.f32 %v4625, %v4899
      %v5522 = vmul.f32 %v4626, %v4899
      %v5523 = vmul.f32 %v4627, %v4904
      %v5524 = vmul.f32 %v4628, %v4904
      %v5525 = vmul.f32 %v4629, %v4909
      %v5526 = vmul.f32 %v4630, %v4909
      %v5527 = vmul.f32 %v4631, %v4914
      %v5528 = vmul.f32 %v4632, %v4914
      %v5529 = vmul.f32 %v4633, %v4919
      %v5530 = vmul.f32 %v4634, %v4919
      %v5531 = vmul.f32 %v4635, %v4924
      %v5532 = vmul.f32 %v4636, %v4924
      %v5533 = vmul.f32 %v4637, %v4929
      %v5534 = vmul.f32 %v4638, %v4929
      %v5535 = vmul.f32 %v4639, %v4934
      %v5536 = vmul.f32 %v4640, %v4934
      %v5537 = vmul.f32 %v4641, %v4939
      %v5538 = vmul.f32 %v4642, %v4939
      %v5539 = vmul.f32 %v4643, %v4944
      %v5540 = vmul.f32 %v4644, %v4944
      %v5541 = vmul.f32 %v4645, %v4949
      %v5542 = vmul.f32 %v4646, %v4949
      %v5543 = vmul.f32 %v4647, %v4954
      %v5544 = vmul.f32 %v4648, %v4954
      %v5545 = vmul.f32 %v4649, %v4959
      %v5546 = vmul.f32 %v4650, %v4959
      %v5547 = vmul.f32 %v4651, %v4964
      %v5548 = vmul.f32 %v4652, %v4964
      %v5549 = vmul.f32 %v4653, %v4969
      %v5550 = vmul.f32 %v4654, %v4969
      %v5551 = vmul.f32 %v4655, %v4974
      %v5552 = vmul.f32 %v4656, %v4974
      %v5553 = vmul.f32 %v4657, %v4979
      %v5554 = vmul.f32 %v4658, %v4979
      %v5555 = vmul.f32 %v4659, %v4984
      %v5556 = vmul.f32 %v4660, %v4984
      %v5557 = vmul.f32 %v4661, %v4989
      %v5558 = vmul.f32 %v4662, %v4989
      %v5559 = vmul.f32 %v4663, %v4994
      %v5560 = vmul.f32 %v4664, %v4994
      %v5561 = vmul.f32 %v4665, %v4999
      %v5562 = vmul.f32 %v4666, %v4999
      %v5563 = vmul.f32 %v4667, %v5004
      %v5564 = vmul.f32 %v4668, %v5004
      %v5565 = vmul.f32 %v4669, %v5009
      %v5566 = vmul.f32 %v4670, %v5009
      %v5567 = vmul.f32 %v4671, %v5014
      %v5568 = vmul.f32 %v4672, %v5014
      %v5569 = vmul.f32 %v4673, %v5019
      %v5570 = vmul.f32 %v4674, %v5019
      %v5571 = vmul.f32 %v4675, %v5024
      %v5572 = vmul.f32 %v4676, %v5024
      %v5573 = vmul.f32 %v4677, %v5029
      %v5574 = vmul.f32 %v4678, %v5029
      %v5575 = vmul.f32 %v4679, %v5034
      %v5576 = vmul.f32 %v4680, %v5034
      %v5577 = vmul.f32 %v4681, %v5039
      %v5578 = vmul.f32 %v4682, %v5039
      %v5579 = vmul.f32 %v4683, %v5044
      %v5580 = vmul.f32 %v4684, %v5044
      %v5581 = vmul.f32 %v4685, %v5049
      %v5582 = vmul.f32 %v4686, %v5049
      %v5583 = vmul.f32 %v4687, %v5054
      %v5584 = vmul.f32 %v4688, %v5054
      %v5585 = vmul.f32 %v4689, %v5059
      %v5586 = vmul.f32 %v4690, %v5059
      %v5587 = vmul.f32 %v4691, %v5064
      %v5588 = vmul.f32 %v4692, %v5064
      %v5589 = vmul.f32 %v4693, %v5069
      %v5590 = vmul.f32 %v4694, %v5069
      %v5591 = vmul.f32 %v4695, %v5074
      %v5592 = vmul.f32 %v4696, %v5074
      %v5593 = vmul.f32 %v4697, %v5079
      %v5594 = vmul.f32 %v4698, %v5079
      %v5595 = vmul.f32 %v4699, %v5084
      %v5596 = vmul.f32 %v4700, %v5084
      %v5597 = vmul.f32 %v4701, %v5089
      %v5598 = vmul.f32 %v4702, %v5089
      %v5599 = vmul.f32 %v4703, %v5094
      %v5600 = vmul.f32 %v4704, %v5094
      %v5601 = vmul.f32 %v4705, %v5099
      %v5602 = vmul.f32 %v4706, %v5099
      %v5603 = vmul.f32 %v4707, %v5104
      %v5604 = vmul.f32 %v4708, %v5104
      %v5605 = vmul.f32 %v4709, %v5109
      %v5606 = vmul.f32 %v4710, %v5109
      %v5607 = vmul.f32 %v4711, %v5114
      %v5608 = vmul.f32 %v4712, %v5114
      %v5609 = vmul.f32 %v4713, %v5119
      %v5610 = vmul.f32 %v4714, %v5119
      %v5611 = vmul.f32 %v4715, %v5124
      %v5612 = vmul.f32 %v4716, %v5124
      %v5613 = vmul.f32 %v4717, %v5129
      %v5614 = vmul.f32 %v4718, %v5129
      %v5615 = vmul.f32 %v4719, %v5134
      %v5616 = vmul.f32 %v4720, %v5134
      %v5617 = vmul.f32 %v4721, %v5139
      %v5618 = vmul.f32 %v4722, %v5139
      %v5619 = vmul.f32 %v4723, %v5144
      %v5620 = vmul.f32 %v4724, %v5144
      %v5621 = vmul.f32 %v4725, %v5149
      %v5622 = vmul.f32 %v4726, %v5149
      %v5623 = vmul.f32 %v4727, %v5154
      %v5624 = vmul.f32 %v4728, %v5154
      %v5625 = vmul.f32 %v4729, %v5159
      %v5626 = vmul.f32 %v4730, %v5159
      %v5627 = vmul.f32 %v4731, %v5164
      %v5628 = vmul.f32 %v4732, %v5164
      %v5629 = vmul.f32 %v4733, %v5169
      %v5630 = vmul.f32 %v4734, %v5169
      %v5631 = vmul.f32 %v4735, %v5174
      %v5632 = vmul.f32 %v4736, %v5174
      %v5633 = vmul.f32 %v4737, %v5179
      %v5634 = vmul.f32 %v4738, %v5179
      %v5635 = vmul.f32 %v4739, %v5184
      %v5636 = vmul.f32 %v4740, %v5184
      %v5637 = vmul.f32 %v4741, %v5189
      %v5638 = vmul.f32 %v4742, %v5189
      %v5639 = vmul.f32 %v4743, %v5194
      %v5640 = vmul.f32 %v4744, %v5194
      %v5641 = vmul.f32 %v4745, %v5199
      %v5642 = vmul.f32 %v4746, %v5199
      %v5643 = vmul.f32 %v4747, %v5204
      %v5644 = vmul.f32 %v4748, %v5204
      %v5645 = vmul.f32 %v4749, %v5209
      %v5646 = vmul.f32 %v4750, %v5209
      %v5647 = vmul.f32 %v4751, %v5214
      %v5648 = vmul.f32 %v4752, %v5214
      %v5649 = vmul.f32 %v4753, %v5219
      %v5650 = vmul.f32 %v4754, %v5219
      %v5651 = vmul.f32 %v4755, %v5224
      %v5652 = vmul.f32 %v4756, %v5224
      %v5653 = vmul.f32 %v4757, %v5229
      %v5654 = vmul.f32 %v4758, %v5229
      %v5655 = vmul.f32 %v4759, %v5234
      %v5656 = vmul.f32 %v4760, %v5234
      %v5657 = vmul.f32 %v4761, %v5239
      %v5658 = vmul.f32 %v4762, %v5239
      %v5659 = vmul.f32 %v4763, %v5244
      %v5660 = vmul.f32 %v4764, %v5244
      %v5661 = vmul.f32 %v4765, %v5249
      %v5662 = vmul.f32 %v4766, %v5249
      %v5663 = vmul.f32 %v4767, %v5254
      %v5664 = vmul.f32 %v4768, %v5254
      %v5665 = vmul.f32 %v4769, %v5259
      %v5666 = vmul.f32 %v4770, %v5259
      %v5667 = vmul.f32 %v4771, %v5264
      %v5668 = vmul.f32 %v4772, %v5264
      %v5669 = vmul.f32 %v4773, %v5269
      %v5670 = vmul.f32 %v4774, %v5269
      %v5671 = vmul.f32 %v4775, %v5274
      %v5672 = vmul.f32 %v4776, %v5274
      %v5673 = vmul.f32 %v4777, %v5279
      %v5674 = vmul.f32 %v4778, %v5279
      %v5675 = vmul.f32 %v4779, %v5284
      %v5676 = vmul.f32 %v4780, %v5284
      %v5677 = vmul.f32 %v4781, %v5289
      %v5678 = vmul.f32 %v4782, %v5289
      %v5679 = vmul.f32 %v4783, %v5294
      %v5680 = vmul.f32 %v4784, %v5294
      %v5681 = vmul.f32 %v4785, %v5299
      %v5682 = vmul.f32 %v4786, %v5299
      %v5683 = vmul.f32 %v4787, %v5304
      %v5684 = vmul.f32 %v4788, %v5304
      %v5685 = vmul.f32 %v4789, %v5309
      %v5686 = vmul.f32 %v4790, %v5309
      %v5687 = vmul.f32 %v4791, %v5314
      %v5688 = vmul.f32 %v4792, %v5314
      %v5689 = vmul.f32 %v4793, %v5319
      %v5690 = vmul.f32 %v4794, %v5319
      %v5691 = vmul.f32 %v4795, %v5324
      %v5692 = vmul.f32 %v4796, %v5324
      %v5693 = vmul.f32 %v4797, %v5329
      %v5694 = vmul.f32 %v4798, %v5329
      %v5695 = vmul.f32 %v4799, %v5334
      %v5696 = vmul.f32 %v4800, %v5334
      %v5697 = vmul.f32 %v4801, %v5339
      %v5698 = vmul.f32 %v4802, %v5339
      %v5699 = vmul.f32 %v4803, %v5344
      %v5700 = vmul.f32 %v4804, %v5344
      %v5701 = vmul.f32 %v4805, %v5349
      %v5702 = vmul.f32 %v4806, %v5349
      %v5703 = vmul.f32 %v4807, %v5354
      %v5704 = vmul.f32 %v4808, %v5354
      %v5705 = vmul.f32 %v4809, %v5359
      %v5706 = vmul.f32 %v4810, %v5359
      %v5707 = vmul.f32 %v4811, %v5364
      %v5708 = vmul.f32 %v4812, %v5364
      %v5709 = vmul.f32 %v4813, %v5369
      %v5710 = vmul.f32 %v4814, %v5369
      %v5711 = vmul.f32 %v4815, %v5374
      %v5712 = vmul.f32 %v4816, %v5374
      %v5713 = vmul.f32 %v4817, %v5379
      %v5714 = vmul.f32 %v4818, %v5379
      %v5715 = vmul.f32 %v4819, %v5384
      %v5716 = vmul.f32 %v4820, %v5384
      %v5717 = vmul.f32 %v4821, %v5389
      %v5718 = vmul.f32 %v4822, %v5389
      %v5719 = vmul.f32 %v4823, %v5394
      %v5720 = vmul.f32 %v4824, %v5394
      %v5721 = vmul.f32 %v4825, %v5399
      %v5722 = vmul.f32 %v4826, %v5399
      %v5723 = vmul.f32 %v4827, %v5404
      %v5724 = vmul.f32 %v4828, %v5404
      %v5725 = vmul.f32 %v4829, %v5409
      %v5726 = vmul.f32 %v4830, %v5409
      %v5727 = vmul.f32 %v4831, %v5414
      %v5728 = vmul.f32 %v4832, %v5414
      %v5729 = vmul.f32 %v4833, %v5419
      %v5730 = vmul.f32 %v4834, %v5419
      %v5731 = vmul.f32 %v4835, %v5424
      %v5732 = vmul.f32 %v4836, %v5424
      %v5733 = vmul.f32 %v4837, %v5429
      %v5734 = vmul.f32 %v4838, %v5429
      %v5735 = vmul.f32 %v4839, %v5434
      %v5736 = vmul.f32 %v4840, %v5434
      %v5737 = vmul.f32 %v4841, %v5439
      %v5738 = vmul.f32 %v4842, %v5439
      %v5739 = vmul.f32 %v4843, %v5444
      %v5740 = vmul.f32 %v4844, %v5444
      %v5741 = vmul.f32 %v4845, %v5449
      %v5742 = vmul.f32 %v4846, %v5449
      %v5743 = vmul.f32 %v4847, %v5454
      %v5744 = vmul.f32 %v4848, %v5454
      %v5745 = vmul.f32 %v4849, %v5459
      %v5746 = vmul.f32 %v4850, %v5459
      %v5747 = vmul.f32 %v4851, %v5464
      %v5748 = vmul.f32 %v4852, %v5464
      %v5749 = vmul.f32 %v4853, %v5469
      %v5750 = vmul.f32 %v4854, %v5469
      %v5751 = vmul.f32 %v4855, %v5474
      %v5752 = vmul.f32 %v4856, %v5474
      %v5753 = vmul.f32 %v4857, %v5479
      %v5754 = vmul.f32 %v4858, %v5479
      %v5755 = vmul.f32 %v4859, %v5484
      %v5756 = vmul.f32 %v4860, %v5484
      %v5757 = vmul.f32 %v4861, %v5489
      %v5758 = vmul.f32 %v4862, %v5489
      %v5759 = vmul.f32 %v4863, %v5494
      %v5760 = vmul.f32 %v4864, %v5494
      %v5761 = vmul.f32 %v4865, %v5499
      %v5762 = vmul.f32 %v4866, %v5499
      %v5763 = vmul.f32 %v4867, %v5504
      %v5764 = vmul.f32 %v4868, %v5504
      %v5765 = vmul.f32 %v4869, %v5509
      %v5766 = vmul.f32 %v4870, %v5509
      %v5767 = vmax.f32 %v5511, 1e-08
      %v5768 = vmax.f32 %v5512, 1e-08
      %v5769 = vmax.f32 %v5513, 1e-08
      %v5770 = vmax.f32 %v5514, 1e-08
      %v5771 = vmax.f32 %v5515, 1e-08
      %v5772 = vmax.f32 %v5516, 1e-08
      %v5773 = vmax.f32 %v5517, 1e-08
      %v5774 = vmax.f32 %v5518, 1e-08
      %v5775 = vmax.f32 %v5519, 1e-08
      %v5776 = vmax.f32 %v5520, 1e-08
      %v5777 = vmax.f32 %v5521, 1e-08
      %v5778 = vmax.f32 %v5522, 1e-08
      %v5779 = vmax.f32 %v5523, 1e-08
      %v5780 = vmax.f32 %v5524, 1e-08
      %v5781 = vmax.f32 %v5525, 1e-08
      %v5782 = vmax.f32 %v5526, 1e-08
      %v5783 = vmax.f32 %v5527, 1e-08
      %v5784 = vmax.f32 %v5528, 1e-08
      %v5785 = vmax.f32 %v5529, 1e-08
      %v5786 = vmax.f32 %v5530, 1e-08
      %v5787 = vmax.f32 %v5531, 1e-08
      %v5788 = vmax.f32 %v5532, 1e-08
      %v5789 = vmax.f32 %v5533, 1e-08
      %v5790 = vmax.f32 %v5534, 1e-08
      %v5791 = vmax.f32 %v5535, 1e-08
      %v5792 = vmax.f32 %v5536, 1e-08
      %v5793 = vmax.f32 %v5537, 1e-08
      %v5794 = vmax.f32 %v5538, 1e-08
      %v5795 = vmax.f32 %v5539, 1e-08
      %v5796 = vmax.f32 %v5540, 1e-08
      %v5797 = vmax.f32 %v5541, 1e-08
      %v5798 = vmax.f32 %v5542, 1e-08
      %v5799 = vmax.f32 %v5543, 1e-08
      %v5800 = vmax.f32 %v5544, 1e-08
      %v5801 = vmax.f32 %v5545, 1e-08
      %v5802 = vmax.f32 %v5546, 1e-08
      %v5803 = vmax.f32 %v5547, 1e-08
      %v5804 = vmax.f32 %v5548, 1e-08
      %v5805 = vmax.f32 %v5549, 1e-08
      %v5806 = vmax.f32 %v5550, 1e-08
      %v5807 = vmax.f32 %v5551, 1e-08
      %v5808 = vmax.f32 %v5552, 1e-08
      %v5809 = vmax.f32 %v5553, 1e-08
      %v5810 = vmax.f32 %v5554, 1e-08
      %v5811 = vmax.f32 %v5555, 1e-08
      %v5812 = vmax.f32 %v5556, 1e-08
      %v5813 = vmax.f32 %v5557, 1e-08
      %v5814 = vmax.f32 %v5558, 1e-08
      %v5815 = vmax.f32 %v5559, 1e-08
      %v5816 = vmax.f32 %v5560, 1e-08
      %v5817 = vmax.f32 %v5561, 1e-08
      %v5818 = vmax.f32 %v5562, 1e-08
      %v5819 = vmax.f32 %v5563, 1e-08
      %v5820 = vmax.f32 %v5564, 1e-08
      %v5821 = vmax.f32 %v5565, 1e-08
      %v5822 = vmax.f32 %v5566, 1e-08
      %v5823 = vmax.f32 %v5567, 1e-08
      %v5824 = vmax.f32 %v5568, 1e-08
      %v5825 = vmax.f32 %v5569, 1e-08
      %v5826 = vmax.f32 %v5570, 1e-08
      %v5827 = vmax.f32 %v5571, 1e-08
      %v5828 = vmax.f32 %v5572, 1e-08
      %v5829 = vmax.f32 %v5573, 1e-08
      %v5830 = vmax.f32 %v5574, 1e-08
      %v5831 = vmax.f32 %v5575, 1e-08
      %v5832 = vmax.f32 %v5576, 1e-08
      %v5833 = vmax.f32 %v5577, 1e-08
      %v5834 = vmax.f32 %v5578, 1e-08
      %v5835 = vmax.f32 %v5579, 1e-08
      %v5836 = vmax.f32 %v5580, 1e-08
      %v5837 = vmax.f32 %v5581, 1e-08
      %v5838 = vmax.f32 %v5582, 1e-08
      %v5839 = vmax.f32 %v5583, 1e-08
      %v5840 = vmax.f32 %v5584, 1e-08
      %v5841 = vmax.f32 %v5585, 1e-08
      %v5842 = vmax.f32 %v5586, 1e-08
      %v5843 = vmax.f32 %v5587, 1e-08
      %v5844 = vmax.f32 %v5588, 1e-08
      %v5845 = vmax.f32 %v5589, 1e-08
      %v5846 = vmax.f32 %v5590, 1e-08
      %v5847 = vmax.f32 %v5591, 1e-08
      %v5848 = vmax.f32 %v5592, 1e-08
      %v5849 = vmax.f32 %v5593, 1e-08
      %v5850 = vmax.f32 %v5594, 1e-08
      %v5851 = vmax.f32 %v5595, 1e-08
      %v5852 = vmax.f32 %v5596, 1e-08
      %v5853 = vmax.f32 %v5597, 1e-08
      %v5854 = vmax.f32 %v5598, 1e-08
      %v5855 = vmax.f32 %v5599, 1e-08
      %v5856 = vmax.f32 %v5600, 1e-08
      %v5857 = vmax.f32 %v5601, 1e-08
      %v5858 = vmax.f32 %v5602, 1e-08
      %v5859 = vmax.f32 %v5603, 1e-08
      %v5860 = vmax.f32 %v5604, 1e-08
      %v5861 = vmax.f32 %v5605, 1e-08
      %v5862 = vmax.f32 %v5606, 1e-08
      %v5863 = vmax.f32 %v5607, 1e-08
      %v5864 = vmax.f32 %v5608, 1e-08
      %v5865 = vmax.f32 %v5609, 1e-08
      %v5866 = vmax.f32 %v5610, 1e-08
      %v5867 = vmax.f32 %v5611, 1e-08
      %v5868 = vmax.f32 %v5612, 1e-08
      %v5869 = vmax.f32 %v5613, 1e-08
      %v5870 = vmax.f32 %v5614, 1e-08
      %v5871 = vmax.f32 %v5615, 1e-08
      %v5872 = vmax.f32 %v5616, 1e-08
      %v5873 = vmax.f32 %v5617, 1e-08
      %v5874 = vmax.f32 %v5618, 1e-08
      %v5875 = vmax.f32 %v5619, 1e-08
      %v5876 = vmax.f32 %v5620, 1e-08
      %v5877 = vmax.f32 %v5621, 1e-08
      %v5878 = vmax.f32 %v5622, 1e-08
      %v5879 = vmax.f32 %v5623, 1e-08
      %v5880 = vmax.f32 %v5624, 1e-08
      %v5881 = vmax.f32 %v5625, 1e-08
      %v5882 = vmax.f32 %v5626, 1e-08
      %v5883 = vmax.f32 %v5627, 1e-08
      %v5884 = vmax.f32 %v5628, 1e-08
      %v5885 = vmax.f32 %v5629, 1e-08
      %v5886 = vmax.f32 %v5630, 1e-08
      %v5887 = vmax.f32 %v5631, 1e-08
      %v5888 = vmax.f32 %v5632, 1e-08
      %v5889 = vmax.f32 %v5633, 1e-08
      %v5890 = vmax.f32 %v5634, 1e-08
      %v5891 = vmax.f32 %v5635, 1e-08
      %v5892 = vmax.f32 %v5636, 1e-08
      %v5893 = vmax.f32 %v5637, 1e-08
      %v5894 = vmax.f32 %v5638, 1e-08
      %v5895 = vmax.f32 %v5639, 1e-08
      %v5896 = vmax.f32 %v5640, 1e-08
      %v5897 = vmax.f32 %v5641, 1e-08
      %v5898 = vmax.f32 %v5642, 1e-08
      %v5899 = vmax.f32 %v5643, 1e-08
      %v5900 = vmax.f32 %v5644, 1e-08
      %v5901 = vmax.f32 %v5645, 1e-08
      %v5902 = vmax.f32 %v5646, 1e-08
      %v5903 = vmax.f32 %v5647, 1e-08
      %v5904 = vmax.f32 %v5648, 1e-08
      %v5905 = vmax.f32 %v5649, 1e-08
      %v5906 = vmax.f32 %v5650, 1e-08
      %v5907 = vmax.f32 %v5651, 1e-08
      %v5908 = vmax.f32 %v5652, 1e-08
      %v5909 = vmax.f32 %v5653, 1e-08
      %v5910 = vmax.f32 %v5654, 1e-08
      %v5911 = vmax.f32 %v5655, 1e-08
      %v5912 = vmax.f32 %v5656, 1e-08
      %v5913 = vmax.f32 %v5657, 1e-08
      %v5914 = vmax.f32 %v5658, 1e-08
      %v5915 = vmax.f32 %v5659, 1e-08
      %v5916 = vmax.f32 %v5660, 1e-08
      %v5917 = vmax.f32 %v5661, 1e-08
      %v5918 = vmax.f32 %v5662, 1e-08
      %v5919 = vmax.f32 %v5663, 1e-08
      %v5920 = vmax.f32 %v5664, 1e-08
      %v5921 = vmax.f32 %v5665, 1e-08
      %v5922 = vmax.f32 %v5666, 1e-08
      %v5923 = vmax.f32 %v5667, 1e-08
      %v5924 = vmax.f32 %v5668, 1e-08
      %v5925 = vmax.f32 %v5669, 1e-08
      %v5926 = vmax.f32 %v5670, 1e-08
      %v5927 = vmax.f32 %v5671, 1e-08
      %v5928 = vmax.f32 %v5672, 1e-08
      %v5929 = vmax.f32 %v5673, 1e-08
      %v5930 = vmax.f32 %v5674, 1e-08
      %v5931 = vmax.f32 %v5675, 1e-08
      %v5932 = vmax.f32 %v5676, 1e-08
      %v5933 = vmax.f32 %v5677, 1e-08
      %v5934 = vmax.f32 %v5678, 1e-08
      %v5935 = vmax.f32 %v5679, 1e-08
      %v5936 = vmax.f32 %v5680, 1e-08
      %v5937 = vmax.f32 %v5681, 1e-08
      %v5938 = vmax.f32 %v5682, 1e-08
      %v5939 = vmax.f32 %v5683, 1e-08
      %v5940 = vmax.f32 %v5684, 1e-08
      %v5941 = vmax.f32 %v5685, 1e-08
      %v5942 = vmax.f32 %v5686, 1e-08
      %v5943 = vmax.f32 %v5687, 1e-08
      %v5944 = vmax.f32 %v5688, 1e-08
      %v5945 = vmax.f32 %v5689, 1e-08
      %v5946 = vmax.f32 %v5690, 1e-08
      %v5947 = vmax.f32 %v5691, 1e-08
      %v5948 = vmax.f32 %v5692, 1e-08
      %v5949 = vmax.f32 %v5693, 1e-08
      %v5950 = vmax.f32 %v5694, 1e-08
      %v5951 = vmax.f32 %v5695, 1e-08
      %v5952 = vmax.f32 %v5696, 1e-08
      %v5953 = vmax.f32 %v5697, 1e-08
      %v5954 = vmax.f32 %v5698, 1e-08
      %v5955 = vmax.f32 %v5699, 1e-08
      %v5956 = vmax.f32 %v5700, 1e-08
      %v5957 = vmax.f32 %v5701, 1e-08
      %v5958 = vmax.f32 %v5702, 1e-08
      %v5959 = vmax.f32 %v5703, 1e-08
      %v5960 = vmax.f32 %v5704, 1e-08
      %v5961 = vmax.f32 %v5705, 1e-08
      %v5962 = vmax.f32 %v5706, 1e-08
      %v5963 = vmax.f32 %v5707, 1e-08
      %v5964 = vmax.f32 %v5708, 1e-08
      %v5965 = vmax.f32 %v5709, 1e-08
      %v5966 = vmax.f32 %v5710, 1e-08
      %v5967 = vmax.f32 %v5711, 1e-08
      %v5968 = vmax.f32 %v5712, 1e-08
      %v5969 = vmax.f32 %v5713, 1e-08
      %v5970 = vmax.f32 %v5714, 1e-08
      %v5971 = vmax.f32 %v5715, 1e-08
      %v5972 = vmax.f32 %v5716, 1e-08
      %v5973 = vmax.f32 %v5717, 1e-08
      %v5974 = vmax.f32 %v5718, 1e-08
      %v5975 = vmax.f32 %v5719, 1e-08
      %v5976 = vmax.f32 %v5720, 1e-08
      %v5977 = vmax.f32 %v5721, 1e-08
      %v5978 = vmax.f32 %v5722, 1e-08
      %v5979 = vmax.f32 %v5723, 1e-08
      %v5980 = vmax.f32 %v5724, 1e-08
      %v5981 = vmax.f32 %v5725, 1e-08
      %v5982 = vmax.f32 %v5726, 1e-08
      %v5983 = vmax.f32 %v5727, 1e-08
      %v5984 = vmax.f32 %v5728, 1e-08
      %v5985 = vmax.f32 %v5729, 1e-08
      %v5986 = vmax.f32 %v5730, 1e-08
      %v5987 = vmax.f32 %v5731, 1e-08
      %v5988 = vmax.f32 %v5732, 1e-08
      %v5989 = vmax.f32 %v5733, 1e-08
      %v5990 = vmax.f32 %v5734, 1e-08
      %v5991 = vmax.f32 %v5735, 1e-08
      %v5992 = vmax.f32 %v5736, 1e-08
      %v5993 = vmax.f32 %v5737, 1e-08
      %v5994 = vmax.f32 %v5738, 1e-08
      %v5995 = vmax.f32 %v5739, 1e-08
      %v5996 = vmax.f32 %v5740, 1e-08
      %v5997 = vmax.f32 %v5741, 1e-08
      %v5998 = vmax.f32 %v5742, 1e-08
      %v5999 = vmax.f32 %v5743, 1e-08
      %v6000 = vmax.f32 %v5744, 1e-08
      %v6001 = vmax.f32 %v5745, 1e-08
      %v6002 = vmax.f32 %v5746, 1e-08
      %v6003 = vmax.f32 %v5747, 1e-08
      %v6004 = vmax.f32 %v5748, 1e-08
      %v6005 = vmax.f32 %v5749, 1e-08
      %v6006 = vmax.f32 %v5750, 1e-08
      %v6007 = vmax.f32 %v5751, 1e-08
      %v6008 = vmax.f32 %v5752, 1e-08
      %v6009 = vmax.f32 %v5753, 1e-08
      %v6010 = vmax.f32 %v5754, 1e-08
      %v6011 = vmax.f32 %v5755, 1e-08
      %v6012 = vmax.f32 %v5756, 1e-08
      %v6013 = vmax.f32 %v5757, 1e-08
      %v6014 = vmax.f32 %v5758, 1e-08
      %v6015 = vmax.f32 %v5759, 1e-08
      %v6016 = vmax.f32 %v5760, 1e-08
      %v6017 = vmax.f32 %v5761, 1e-08
      %v6018 = vmax.f32 %v5762, 1e-08
      %v6019 = vmax.f32 %v5763, 1e-08
      %v6020 = vmax.f32 %v5764, 1e-08
      %v6021 = vmax.f32 %v5765, 1e-08
      %v6022 = vmax.f32 %v5766, 1e-08
      %v6023 = vld [vmem:[%s286] sm:$0xff]
      %v6024 = vld [vmem:[%s286 + $0x8] sm:$0xff]
      %v6025 = vld [vmem:[%s286 + $0x10] sm:$0xff]
      %v6026 = vld [vmem:[%s286 + $0x18] sm:$0xff]
      %v6027 = vld [vmem:[%s286 + $0x20] sm:$0xff]
      %v6028 = vld [vmem:[%s286 + $0x28] sm:$0xff]
      %v6029 = vld [vmem:[%s286 + $0x30] sm:$0xff]
      %v6030 = vld [vmem:[%s286 + $0x38] sm:$0xff]
      %v6031 = vld [vmem:[%s286 + $0x40] sm:$0xff]
      %v6032 = vld [vmem:[%s286 + $0x48] sm:$0xff]
      %v6033 = vld [vmem:[%s286 + $0x50] sm:$0xff]
      %v6034 = vld [vmem:[%s286 + $0x58] sm:$0xff]
      %v6035 = vld [vmem:[%s286 + $0x60] sm:$0xff]
      %v6036 = vld [vmem:[%s286 + $0x68] sm:$0xff]
      %v6037 = vld [vmem:[%s286 + $0x70] sm:$0xff]
      %v6038 = vld [vmem:[%s286 + $0x78] sm:$0xff]
      %v6039 = vld [vmem:[%s286 + $0x80] sm:$0x33]
      %v6040 = vld [vmem:[%s286 + $0x88] sm:$0x33]
      %v6041 = vld [vmem:[%s286 + $0x90] sm:$0x33]
      %v6042 = vld [vmem:[%s286 + $0x98] sm:$0x33]
      %v6043 = vpack.c.bf16 %v5769, %v5767
      %v6044 = vpack.c.bf16 %v5770, %v5768
      %v6045 = vpack.c.bf16 %v5773, %v5771
      %v6046 = vpack.c.bf16 %v5774, %v5772
      %v6047 = vpack.c.bf16 %v5777, %v5775
      %v6048 = vpack.c.bf16 %v5778, %v5776
      %v6049 = vpack.c.bf16 %v5781, %v5779
      %v6050 = vpack.c.bf16 %v5782, %v5780
      %v6051 = vpack.c.bf16 %v5785, %v5783
      %v6052 = vpack.c.bf16 %v5786, %v5784
      %v6053 = vpack.c.bf16 %v5789, %v5787
      %v6054 = vpack.c.bf16 %v5790, %v5788
      %v6055 = vpack.c.bf16 %v5793, %v5791
      %v6056 = vpack.c.bf16 %v5794, %v5792
      %v6057 = vpack.c.bf16 %v5797, %v5795
      %v6058 = vpack.c.bf16 %v5798, %v5796
      %v6059 = vpack.c.bf16 %v5801, %v5799
      %v6060 = vpack.c.bf16 %v5802, %v5800
      %v6061 = vpack.c.bf16 %v5805, %v5803
      %v6062 = vpack.c.bf16 %v5806, %v5804
      %v6063 = vpack.c.bf16 %v5809, %v5807
      %v6064 = vpack.c.bf16 %v5810, %v5808
      %v6065 = vpack.c.bf16 %v5813, %v5811
      %v6066 = vpack.c.bf16 %v5814, %v5812
      %v6067 = vpack.c.bf16 %v5817, %v5815
      %v6068 = vpack.c.bf16 %v5818, %v5816
      %v6069 = vpack.c.bf16 %v5821, %v5819
      %v6070 = vpack.c.bf16 %v5822, %v5820
      %v6071 = vpack.c.bf16 %v5825, %v5823
      %v6072 = vpack.c.bf16 %v5826, %v5824
      %v6073 = vpack.c.bf16 %v5829, %v5827
      %v6074 = vpack.c.bf16 %v5830, %v5828
      %v6075 = vpack.c.bf16 %v5833, %v5831
      %v6076 = vpack.c.bf16 %v5834, %v5832
      %v6077 = vpack.c.bf16 %v5837, %v5835
      %v6078 = vpack.c.bf16 %v5838, %v5836
      %v6079 = vpack.c.bf16 %v5841, %v5839
      %v6080 = vpack.c.bf16 %v5842, %v5840
      %v6081 = vpack.c.bf16 %v5845, %v5843
      %v6082 = vpack.c.bf16 %v5846, %v5844
      %v6083 = vpack.c.bf16 %v5849, %v5847
      %v6084 = vpack.c.bf16 %v5850, %v5848
      %v6085 = vpack.c.bf16 %v5853, %v5851
      %v6086 = vpack.c.bf16 %v5854, %v5852
      %v6087 = vpack.c.bf16 %v5857, %v5855
      %v6088 = vpack.c.bf16 %v5858, %v5856
      %v6089 = vpack.c.bf16 %v5861, %v5859
      %v6090 = vpack.c.bf16 %v5862, %v5860
      %v6091 = vpack.c.bf16 %v5865, %v5863
      %v6092 = vpack.c.bf16 %v5866, %v5864
      %v6093 = vpack.c.bf16 %v5869, %v5867
      %v6094 = vpack.c.bf16 %v5870, %v5868
      %v6095 = vpack.c.bf16 %v5873, %v5871
      %v6096 = vpack.c.bf16 %v5874, %v5872
      %v6097 = vpack.c.bf16 %v5877, %v5875
      %v6098 = vpack.c.bf16 %v5878, %v5876
      %v6099 = vpack.c.bf16 %v5881, %v5879
      %v6100 = vpack.c.bf16 %v5882, %v5880
      %v6101 = vpack.c.bf16 %v5885, %v5883
      %v6102 = vpack.c.bf16 %v5886, %v5884
      %v6103 = vpack.c.bf16 %v5889, %v5887
      %v6104 = vpack.c.bf16 %v5890, %v5888
      %v6105 = vpack.c.bf16 %v5893, %v5891
      %v6106 = vpack.c.bf16 %v5894, %v5892
      %v6107 = vpack.c.bf16 %v5897, %v5895
      %v6108 = vpack.c.bf16 %v5898, %v5896
      %v6109 = vpack.c.bf16 %v5901, %v5899
      %v6110 = vpack.c.bf16 %v5902, %v5900
      %v6111 = vpack.c.bf16 %v5905, %v5903
      %v6112 = vpack.c.bf16 %v5906, %v5904
      %v6113 = vpack.c.bf16 %v5909, %v5907
      %v6114 = vpack.c.bf16 %v5910, %v5908
      %v6115 = vpack.c.bf16 %v5913, %v5911
      %v6116 = vpack.c.bf16 %v5914, %v5912
      %v6117 = vpack.c.bf16 %v5917, %v5915
      %v6118 = vpack.c.bf16 %v5918, %v5916
      %v6119 = vpack.c.bf16 %v5921, %v5919
      %v6120 = vpack.c.bf16 %v5922, %v5920
      %v6121 = vpack.c.bf16 %v5925, %v5923
      %v6122 = vpack.c.bf16 %v5926, %v5924
      %v6123 = vpack.c.bf16 %v5929, %v5927
      %v6124 = vpack.c.bf16 %v5930, %v5928
      %v6125 = vpack.c.bf16 %v5933, %v5931
      %v6126 = vpack.c.bf16 %v5934, %v5932
      %v6127 = vpack.c.bf16 %v5937, %v5935
      %v6128 = vpack.c.bf16 %v5938, %v5936
      %v6129 = vpack.c.bf16 %v5941, %v5939
      %v6130 = vpack.c.bf16 %v5942, %v5940
      %v6131 = vpack.c.bf16 %v5945, %v5943
      %v6132 = vpack.c.bf16 %v5946, %v5944
      %v6133 = vpack.c.bf16 %v5949, %v5947
      %v6134 = vpack.c.bf16 %v5950, %v5948
      %v6135 = vpack.c.bf16 %v5953, %v5951
      %v6136 = vpack.c.bf16 %v5954, %v5952
      %v6137 = vpack.c.bf16 %v5957, %v5955
      %v6138 = vpack.c.bf16 %v5958, %v5956
      %v6139 = vpack.c.bf16 %v5961, %v5959
      %v6140 = vpack.c.bf16 %v5962, %v5960
      %v6141 = vpack.c.bf16 %v5965, %v5963
      %v6142 = vpack.c.bf16 %v5966, %v5964
      %v6143 = vpack.c.bf16 %v5969, %v5967
      %v6144 = vpack.c.bf16 %v5970, %v5968
      %v6145 = vpack.c.bf16 %v5973, %v5971
      %v6146 = vpack.c.bf16 %v5974, %v5972
      %v6147 = vpack.c.bf16 %v5977, %v5975
      %v6148 = vpack.c.bf16 %v5978, %v5976
      %v6149 = vpack.c.bf16 %v5981, %v5979
      %v6150 = vpack.c.bf16 %v5982, %v5980
      %v6151 = vpack.c.bf16 %v5985, %v5983
      %v6152 = vpack.c.bf16 %v5986, %v5984
      %v6153 = vpack.c.bf16 %v5989, %v5987
      %v6154 = vpack.c.bf16 %v5990, %v5988
      %v6155 = vpack.c.bf16 %v5993, %v5991
      %v6156 = vpack.c.bf16 %v5994, %v5992
      %v6157 = vpack.c.bf16 %v5997, %v5995
      %v6158 = vpack.c.bf16 %v5998, %v5996
      %v6159 = vpack.c.bf16 %v6001, %v5999
      %v6160 = vpack.c.bf16 %v6002, %v6000
      %v6161 = vpack.c.bf16 %v6005, %v6003
      %v6162 = vpack.c.bf16 %v6006, %v6004
      %v6163 = vpack.c.bf16 %v6009, %v6007
      %v6164 = vpack.c.bf16 %v6010, %v6008
      %v6165 = vpack.c.bf16 %v6013, %v6011
      %v6166 = vpack.c.bf16 %v6014, %v6012
      %v6167 = vpack.c.bf16 %v6017, %v6015
      %v6168 = vpack.c.bf16 %v6018, %v6016
      %v6169 = vpack.c.bf16 %v6021, %v6019
      %v6170 = vpack.c.bf16 %v6022, %v6020
      %v6191 = vunpack.c.l.b16 %v6023
      %v6192 = vunpack.c.h.b16 %v6023
      %v6193 = vunpack.c.l.b16 %v6024
      %v6194 = vunpack.c.h.b16 %v6024
      %v6195 = vunpack.c.l.b16 %v6025
      %v6196 = vunpack.c.h.b16 %v6025
      %v6197 = vunpack.c.l.b16 %v6026
      %v6198 = vunpack.c.h.b16 %v6026
      %v6199 = vunpack.c.l.b16 %v6027
      %v6200 = vunpack.c.h.b16 %v6027
      %v6201 = vunpack.c.l.b16 %v6028
      %v6202 = vunpack.c.h.b16 %v6028
      %v6203 = vunpack.c.l.b16 %v6029
      %v6204 = vunpack.c.h.b16 %v6029
      %v6205 = vunpack.c.l.b16 %v6030
      %v6206 = vunpack.c.h.b16 %v6030
      %v6207 = vunpack.c.l.b16 %v6031
      %v6208 = vunpack.c.h.b16 %v6031
      %v6209 = vunpack.c.l.b16 %v6032
      %v6210 = vunpack.c.h.b16 %v6032
      %v6211 = vunpack.c.l.b16 %v6033
      %v6212 = vunpack.c.h.b16 %v6033
      %v6213 = vunpack.c.l.b16 %v6034
      %v6214 = vunpack.c.h.b16 %v6034
      %v6215 = vunpack.c.l.b16 %v6035
      %v6216 = vunpack.c.h.b16 %v6035
      %v6217 = vunpack.c.l.b16 %v6036
      %v6218 = vunpack.c.h.b16 %v6036
      %v6219 = vunpack.c.l.b16 %v6037
      %v6220 = vunpack.c.h.b16 %v6037
      %v6221 = vunpack.c.l.b16 %v6038
      %v6222 = vunpack.c.h.b16 %v6038
      %v6223 = vunpack.c.l.b16 %v6039
      %v6224 = vunpack.c.h.b16 %v6039
      %v6225 = vunpack.c.l.b16 %v6040
      %v6226 = vunpack.c.h.b16 %v6040
      %v6227 = vunpack.c.l.b16 %v6041
      %v6228 = vunpack.c.h.b16 %v6041
      %v6229 = vunpack.c.l.b16 %v6042
      %v6230 = vunpack.c.h.b16 %v6042
      %v6231 = vpack.c.b16 %v6199, %v6191
      %v6232 = vpack.c.b16 %v6200, %v6192
      %v6233 = vpack.c.b16 %v6201, %v6193
      %v6234 = vpack.c.b16 %v6202, %v6194
      %v6235 = vpack.c.b16 %v6203, %v6195
      %v6236 = vpack.c.b16 %v6204, %v6196
      %v6237 = vpack.c.b16 %v6205, %v6197
      %v6238 = vpack.c.b16 %v6206, %v6198
      %v6239 = vpack.c.b16 %v6215, %v6207
      %v6240 = vpack.c.b16 %v6216, %v6208
      %v6241 = vpack.c.b16 %v6217, %v6209
      %v6242 = vpack.c.b16 %v6218, %v6210
      %v6243 = vpack.c.b16 %v6219, %v6211
      %v6244 = vpack.c.b16 %v6220, %v6212
      %v6245 = vpack.c.b16 %v6221, %v6213
      %v6246 = vpack.c.b16 %v6222, %v6214
      %v6247 = vpack.c.b16 %v6223, %v6223
      %v6248 = vpack.c.b16 %v6224, %v6224
      %v6249 = vpack.c.b16 %v6225, %v6225
      %v6250 = vpack.c.b16 %v6226, %v6226
      %v6251 = vpack.c.b16 %v6227, %v6227
      %v6252 = vpack.c.b16 %v6228, %v6228
      %v6253 = vpack.c.b16 %v6229, %v6229
      %v6254 = vpack.c.b16 %v6230, %v6230
      %6279 = vmatprep.subr.bf16.mxu0 %v6058
      %6280 = vmatpush1.bf16.msra.mxu0 %v6057
      %6281 = vmatprep.subr.bf16.mxu0 %v6056
      %6282 = vmatpush1.bf16.msra.mxu0 %v6055
      %6283 = vmatprep.subr.bf16.mxu0 %v6054
      %6284 = vmatpush1.bf16.msra.mxu0 %v6053
      %6285 = vmatprep.subr.bf16.mxu0 %v6052
      %6286 = vmatpush1.bf16.msra.mxu0 %v6051
      %6287 = vmatprep.subr.bf16.mxu0 %v6050
      %6288 = vmatpush1.bf16.msra.mxu0 %v6049
      %6289 = vmatprep.subr.bf16.mxu0 %v6048
      %6290 = vmatpush1.bf16.msra.mxu0 %v6047
      %6291 = vmatprep.subr.bf16.mxu0 %v6046
      %6292 = vmatpush1.bf16.msra.mxu0 %v6045
      %6293 = vmatprep.subr.bf16.mxu0 %v6044
      %6294 = vmatpush1.bf16.msra.mxu0 %v6043
      %6295 = vmatprep.subr.bf16.mxu0 %v6074
      %6296 = vmatpush2.bf16.msra.mxu0 %v6073
      %6297 = vmatprep.subr.bf16.mxu0 %v6072
      %6298 = vmatpush2.bf16.msra.mxu0 %v6071
      %6299 = vmatprep.subr.bf16.mxu0 %v6070
      %6300 = vmatpush2.bf16.msra.mxu0 %v6069
      %6301 = vmatprep.subr.bf16.mxu0 %v6068
      %6302 = vmatpush2.bf16.msra.mxu0 %v6067
      %6303 = vmatprep.subr.bf16.mxu0 %v6066
      %6304 = vmatpush2.bf16.msra.mxu0 %v6065
      %6305 = vmatprep.subr.bf16.mxu0 %v6064
      %6306 = vmatpush2.bf16.msra.mxu0 %v6063
      %6307 = vmatprep.subr.bf16.mxu0 %v6062
      %6308 = vmatpush2.bf16.msra.mxu0 %v6061
      %6309 = vmatprep.subr.bf16.mxu0 %v6060
      %6310 = vmatpush2.bf16.msra.mxu0 %v6059
      %6311 = vmatprep.mubr.bf16.mxu0 %v6232
      %6312 = vmatmul.mubr.bf16.gmra.mxu0 %v6231
      %v6313 = vpop.f32.mrf.mxu0
      %v6314 = vadd.f32 0.0, %v6313
      %v6315 = vpop.f32.mrf.mxu0
      %v6316 = vadd.f32 0.0, %v6315
      %v6317 = vpop.f32.mrf.mxu0
      %v6318 = vadd.f32 0.0, %v6317
      %v6319 = vpop.f32.mrf.mxu0
      %v6320 = vadd.f32 0.0, %v6319
      %6321 = vmatprep.mubr.bf16.mxu0 %v6240
      %6322 = vmatmul.mubr.bf16.gmra.mxu0 %v6239
      %v6323 = vpop.f32.mrf.mxu0
      %v6324 = vadd.f32 0.0, %v6323
      %v6325 = vpop.f32.mrf.mxu0
      %v6326 = vadd.f32 0.0, %v6325
      %v6327 = vpop.f32.mrf.mxu0
      %v6328 = vadd.f32 0.0, %v6327
      %v6329 = vpop.f32.mrf.mxu0
      %v6330 = vadd.f32 0.0, %v6329
      %6331 = vmatprep.mubr.bf16.mxu0 %v6248
      %6332 = vmatmul.mubr.bf16.gmra.mxu0 %v6247
      %v6333 = vpop.f32.mrf.mxu0
      %v6334 = vadd.f32 0.0, %v6333
      %v6335 = vpop.f32.mrf.mxu0
      %v6336 = vadd.f32 0.0, %v6335
      %v6337 = vpop.f32.mrf.mxu0
      %v6338 = vpop.f32.mrf.mxu0
      %6339 = vdwg.mxu0
      %6340 = vmatprep.subr.bf16.mxu0 %v6090
      %6341 = vmatpush1.bf16.msra.mxu0 %v6089
      %6342 = vmatprep.subr.bf16.mxu0 %v6088
      %6343 = vmatpush1.bf16.msra.mxu0 %v6087
      %6344 = vmatprep.subr.bf16.mxu0 %v6086
      %6345 = vmatpush1.bf16.msra.mxu0 %v6085
      %6346 = vmatprep.subr.bf16.mxu0 %v6084
      %6347 = vmatpush1.bf16.msra.mxu0 %v6083
      %6348 = vmatprep.subr.bf16.mxu0 %v6082
      %6349 = vmatpush1.bf16.msra.mxu0 %v6081
      %6350 = vmatprep.subr.bf16.mxu0 %v6080
      %6351 = vmatpush1.bf16.msra.mxu0 %v6079
      %6352 = vmatprep.subr.bf16.mxu0 %v6078
      %6353 = vmatpush1.bf16.msra.mxu0 %v6077
      %6354 = vmatprep.subr.bf16.mxu0 %v6076
      %6355 = vmatpush1.bf16.msra.mxu0 %v6075
      %6356 = vmatprep.subr.bf16.mxu0 %v6106
      %6357 = vmatpush2.bf16.msra.mxu0 %v6105
      %6358 = vmatprep.subr.bf16.mxu0 %v6104
      %6359 = vmatpush2.bf16.msra.mxu0 %v6103
      %6360 = vmatprep.subr.bf16.mxu0 %v6102
      %6361 = vmatpush2.bf16.msra.mxu0 %v6101
      %6362 = vmatprep.subr.bf16.mxu0 %v6100
      %6363 = vmatpush2.bf16.msra.mxu0 %v6099
      %6364 = vmatprep.subr.bf16.mxu0 %v6098
      %6365 = vmatpush2.bf16.msra.mxu0 %v6097
      %6366 = vmatprep.subr.bf16.mxu0 %v6096
      %6367 = vmatpush2.bf16.msra.mxu0 %v6095
      %6368 = vmatprep.subr.bf16.mxu0 %v6094
      %6369 = vmatpush2.bf16.msra.mxu0 %v6093
      %6370 = vmatprep.subr.bf16.mxu0 %v6092
      %6371 = vmatpush2.bf16.msra.mxu0 %v6091
      %6372 = vmatprep.mubr.bf16.mxu0 %v6234
      %6373 = vmatmul.mubr.bf16.gmra.mxu0 %v6233
      %v6374 = vpop.f32.mrf.mxu0
      %v6375 = vadd.f32 %v6314, %v6374
      %v6376 = vpop.f32.mrf.mxu0
      %v6377 = vadd.f32 %v6316, %v6376
      %v6378 = vpop.f32.mrf.mxu0
      %v6379 = vadd.f32 %v6318, %v6378
      %v6380 = vpop.f32.mrf.mxu0
      %v6381 = vadd.f32 %v6320, %v6380
      %6382 = vmatprep.mubr.bf16.mxu0 %v6242
      %6383 = vmatmul.mubr.bf16.gmra.mxu0 %v6241
      %v6384 = vpop.f32.mrf.mxu0
      %v6385 = vadd.f32 %v6324, %v6384
      %v6386 = vpop.f32.mrf.mxu0
      %v6387 = vadd.f32 %v6326, %v6386
      %v6388 = vpop.f32.mrf.mxu0
      %v6389 = vadd.f32 %v6328, %v6388
      %v6390 = vpop.f32.mrf.mxu0
      %v6391 = vadd.f32 %v6330, %v6390
      %6392 = vmatprep.mubr.bf16.mxu0 %v6250
      %6393 = vmatmul.mubr.bf16.gmra.mxu0 %v6249
      %v6394 = vpop.f32.mrf.mxu0
      %v6395 = vadd.f32 %v6334, %v6394
      %v6396 = vpop.f32.mrf.mxu0
      %v6397 = vadd.f32 %v6336, %v6396
      %v6398 = vpop.f32.mrf.mxu0
      %v6399 = vpop.f32.mrf.mxu0
      %6400 = vdwg.mxu0
      %6401 = vmatprep.subr.bf16.mxu0 %v6122
      %6402 = vmatpush1.bf16.msra.mxu0 %v6121
      %6403 = vmatprep.subr.bf16.mxu0 %v6120
      %6404 = vmatpush1.bf16.msra.mxu0 %v6119
      %6405 = vmatprep.subr.bf16.mxu0 %v6118
      %6406 = vmatpush1.bf16.msra.mxu0 %v6117
      %6407 = vmatprep.subr.bf16.mxu0 %v6116
      %6408 = vmatpush1.bf16.msra.mxu0 %v6115
      %6409 = vmatprep.subr.bf16.mxu0 %v6114
      %6410 = vmatpush1.bf16.msra.mxu0 %v6113
      %6411 = vmatprep.subr.bf16.mxu0 %v6112
      %6412 = vmatpush1.bf16.msra.mxu0 %v6111
      %6413 = vmatprep.subr.bf16.mxu0 %v6110
      %6414 = vmatpush1.bf16.msra.mxu0 %v6109
      %6415 = vmatprep.subr.bf16.mxu0 %v6108
      %6416 = vmatpush1.bf16.msra.mxu0 %v6107
      %6417 = vmatprep.subr.bf16.mxu0 %v6138
      %6418 = vmatpush2.bf16.msra.mxu0 %v6137
      %6419 = vmatprep.subr.bf16.mxu0 %v6136
      %6420 = vmatpush2.bf16.msra.mxu0 %v6135
      %6421 = vmatprep.subr.bf16.mxu0 %v6134
      %6422 = vmatpush2.bf16.msra.mxu0 %v6133
      %6423 = vmatprep.subr.bf16.mxu0 %v6132
      %6424 = vmatpush2.bf16.msra.mxu0 %v6131
      %6425 = vmatprep.subr.bf16.mxu0 %v6130
      %6426 = vmatpush2.bf16.msra.mxu0 %v6129
      %6427 = vmatprep.subr.bf16.mxu0 %v6128
      %6428 = vmatpush2.bf16.msra.mxu0 %v6127
      %6429 = vmatprep.subr.bf16.mxu0 %v6126
      %6430 = vmatpush2.bf16.msra.mxu0 %v6125
      %6431 = vmatprep.subr.bf16.mxu0 %v6124
      %6432 = vmatpush2.bf16.msra.mxu0 %v6123
      %6433 = vmatprep.mubr.bf16.mxu0 %v6236
      %6434 = vmatmul.mubr.bf16.gmra.mxu0 %v6235
      %v6435 = vpop.f32.mrf.mxu0
      %v6436 = vadd.f32 %v6375, %v6435
      %v6437 = vpop.f32.mrf.mxu0
      %v6438 = vadd.f32 %v6377, %v6437
      %v6439 = vpop.f32.mrf.mxu0
      %v6440 = vadd.f32 %v6379, %v6439
      %v6441 = vpop.f32.mrf.mxu0
      %v6442 = vadd.f32 %v6381, %v6441
      %6443 = vmatprep.mubr.bf16.mxu0 %v6244
      %6444 = vmatmul.mubr.bf16.gmra.mxu0 %v6243
      %v6445 = vpop.f32.mrf.mxu0
      %v6446 = vadd.f32 %v6385, %v6445
      %v6447 = vpop.f32.mrf.mxu0
      %v6448 = vadd.f32 %v6387, %v6447
      %v6449 = vpop.f32.mrf.mxu0
      %v6450 = vadd.f32 %v6389, %v6449
      %v6451 = vpop.f32.mrf.mxu0
      %v6452 = vadd.f32 %v6391, %v6451
      %6453 = vmatprep.mubr.bf16.mxu0 %v6252
      %6454 = vmatmul.mubr.bf16.gmra.mxu0 %v6251
      %v6455 = vpop.f32.mrf.mxu0
      %v6456 = vadd.f32 %v6395, %v6455
      %v6457 = vpop.f32.mrf.mxu0
      %v6458 = vadd.f32 %v6397, %v6457
      %v6459 = vpop.f32.mrf.mxu0
      %v6460 = vpop.f32.mrf.mxu0
      %6461 = vdwg.mxu0
      %6462 = vmatprep.subr.bf16.mxu0 %v6154
      %6463 = vmatpush1.bf16.msra.mxu0 %v6153
      %6464 = vmatprep.subr.bf16.mxu0 %v6152
      %6465 = vmatpush1.bf16.msra.mxu0 %v6151
      %6466 = vmatprep.subr.bf16.mxu0 %v6150
      %6467 = vmatpush1.bf16.msra.mxu0 %v6149
      %6468 = vmatprep.subr.bf16.mxu0 %v6148
      %6469 = vmatpush1.bf16.msra.mxu0 %v6147
      %6470 = vmatprep.subr.bf16.mxu0 %v6146
      %6471 = vmatpush1.bf16.msra.mxu0 %v6145
      %6472 = vmatprep.subr.bf16.mxu0 %v6144
      %6473 = vmatpush1.bf16.msra.mxu0 %v6143
      %6474 = vmatprep.subr.bf16.mxu0 %v6142
      %6475 = vmatpush1.bf16.msra.mxu0 %v6141
      %6476 = vmatprep.subr.bf16.mxu0 %v6140
      %6477 = vmatpush1.bf16.msra.mxu0 %v6139
      %6478 = vmatprep.subr.bf16.mxu0 %v6170
      %6479 = vmatpush2.bf16.msra.mxu0 %v6169
      %6480 = vmatprep.subr.bf16.mxu0 %v6168
      %6481 = vmatpush2.bf16.msra.mxu0 %v6167
      %6482 = vmatprep.subr.bf16.mxu0 %v6166
      %6483 = vmatpush2.bf16.msra.mxu0 %v6165
      %6484 = vmatprep.subr.bf16.mxu0 %v6164
      %6485 = vmatpush2.bf16.msra.mxu0 %v6163
      %6486 = vmatprep.subr.bf16.mxu0 %v6162
      %6487 = vmatpush2.bf16.msra.mxu0 %v6161
      %6488 = vmatprep.subr.bf16.mxu0 %v6160
      %6489 = vmatpush2.bf16.msra.mxu0 %v6159
      %6490 = vmatprep.subr.bf16.mxu0 %v6158
      %6491 = vmatpush2.bf16.msra.mxu0 %v6157
      %6492 = vmatprep.subr.bf16.mxu0 %v6156
      %6493 = vmatpush2.bf16.msra.mxu0 %v6155
      %6494 = vmatprep.mubr.bf16.mxu0 %v6238
      %6495 = vmatmul.mubr.bf16.gmra.mxu0 %v6237
      %v6496 = vpop.f32.mrf.mxu0
      %v6497 = vadd.f32 %v6436, %v6496
      %v6498 = vpop.f32.mrf.mxu0
      %v6499 = vadd.f32 %v6438, %v6498
      %v6500 = vpop.f32.mrf.mxu0
      %v6501 = vadd.f32 %v6440, %v6500
      %v6502 = vpop.f32.mrf.mxu0
      %v6503 = vadd.f32 %v6442, %v6502
      %6504 = vmatprep.mubr.bf16.mxu0 %v6246
      %6505 = vmatmul.mubr.bf16.gmra.mxu0 %v6245
      %v6506 = vpop.f32.mrf.mxu0
      %v6507 = vadd.f32 %v6446, %v6506
      %v6508 = vpop.f32.mrf.mxu0
      %v6509 = vadd.f32 %v6448, %v6508
      %v6510 = vpop.f32.mrf.mxu0
      %v6511 = vadd.f32 %v6450, %v6510
      %v6512 = vpop.f32.mrf.mxu0
      %v6513 = vadd.f32 %v6452, %v6512
      %6514 = vmatprep.mubr.bf16.mxu0 %v6254
      %6515 = vmatmul.mubr.bf16.gmra.mxu0 %v6253
      %v6516 = vpop.f32.mrf.mxu0
      %v6517 = vadd.f32 %v6456, %v6516
      %v6518 = vpop.f32.mrf.mxu0
      %v6519 = vadd.f32 %v6458, %v6518
      %v6520 = vpop.f32.mrf.mxu0
      %v6521 = vpop.f32.mrf.mxu0
      %6522 = vdwg.mxu0
      %6523 = vst [vmem:[%s295] sm:$0xff] %v6497
      %6524 = vst [vmem:[%s295 + $0x8] sm:$0xff] %v6499
      %6525 = vst [vmem:[%s295 + $0x10] sm:$0xff] %v6501
      %6526 = vst [vmem:[%s295 + $0x18] sm:$0xff] %v6503
      %6527 = vst [vmem:[%s295 + $0x20] sm:$0xff] %v6507
      %6528 = vst [vmem:[%s295 + $0x28] sm:$0xff] %v6509
      %6529 = vst [vmem:[%s295 + $0x30] sm:$0xff] %v6511
      %6530 = vst [vmem:[%s295 + $0x38] sm:$0xff] %v6513
      %6531 = vst [vmem:[%s295 + $0x40] sm:$0xf] %v6517
      %6532 = vst [vmem:[%s295 + $0x48] sm:$0xf] %v6519
      %s6533 = smul.u32 2, %s20
      %p6534 = scmp.lt.s32.totalorder %s19, 1
      %s6535 = scalar_select %p6534, %s19, 1
      %p6536 = scmp.lt.s32.totalorder %s6533, 1
      %s6537 = scalar_select %p6536, %s6533, 1
      %s6538 = smul.addr %s6535, 10
      %s6539 = sadd.s32 %s6537, %s6538
      %s6540 = smul.addr %s6539, 8
      %s6541 = scalar_lea.vmem %s4, %s6540
      // Predicated region
      $region37: #{_lambda_.9} parent=35 // pred_check
        %p6542 = pneg %p153
      $region38: #{_lambda_.9} parent=35 // pred_check_branch
        %6544 = sbr.rel (%p6542) target = $region40
      $region39: #{_lambda_.9} parent=35 // pred_region
        %s6545 = smul.u32 2, %s20
      $region40: #{_lambda_.9} parent=35 // pred_fallthru
        _
    $region36: #{_lambda_.9} parent=5 // pred_fallthru
      _
    %p6546 = scmp.le.s32.totalorder 2, %s10
    // Predicated region
    $region41: #{_lambda_.9} parent=5 // pred_check
      %p6547 = pneg %p6546
    $region42: #{_lambda_.9} parent=5 // pred_check_branch
      %6549 = sbr.rel (%p6547) target = $region44
    $region43: #{_lambda_.9} parent=5 // pred_region
      %s6550 = ssub.s32 %s10, 2
      // Predicated region
      $region45: #{_lambda_.9} parent=43 // pred_check
        %p6551 = pneg %p159
      $region46: #{_lambda_.9} parent=43 // pred_check_branch
        %6553 = sbr.rel (%p6551) target = $region48
      $region47: #{_lambda_.9} parent=43 // pred_region
        %s6554 = smul.u32 2, %s22
        %p6555 = scmp.lt.s32.totalorder %s21, 1
        %s6556 = scalar_select %p6555, %s21, 1
        %p6557 = scmp.lt.s32.totalorder %s6554, 1
        %s6558 = scalar_select %p6557, %s6554, 1
        %s6559 = smul.addr %s6556, 10
        %s6560 = sadd.s32 %s6558, %s6559
        %s6561 = smul.addr %s6560, 8
        %s6562 = scalar_lea.vmem %s4, %s6561
      $region48: #{_lambda_.9} parent=43 // pred_fallthru
        _
    $region44: #{_lambda_.9} parent=5 // pred_fallthru
      _
  $region6: #{_lambda_.9} parent=0 // loop_footer
    %s14 = sadd.s32 1, %s10
  $region7: #{_lambda_.9} parent=0 // loop_footer_branch
    %9 = sbr.rel target = $region3
  $region8: #{_lambda_.9} parent=0 // loop_exit
    _

// kernel: _lambda_.10
$region0: #{_lambda_.10}
  #allocation0 [shape = 'u32[]', space=smem, size = 0x4, offset = 0x4, fixed_abs, tag = 'smem constant byte address 0x4 - core index']
  #allocation1 [shape = 'u32[144,128]{1,0:T(1,128)}', space=vmem, size = 0x12000, scoped, tag = 'internal scratch']
  %s0 = inlined_call_operand.vmem [shape: f32[2,256,36], index: 0, kind: input, shape index: {}]
  %s1 = inlined_call_operand.vmem [shape: bf16[2,36,256], index: 1, kind: input, shape index: {}]
  %s2 = inlined_call_operand.vmem [shape: f32[2,256,1], index: 2, kind: input, shape index: {}]
  %s3 = inlined_call_operand.vmem [shape: bf16[2,36,256], index: 3, kind: input, shape index: {}]
  %s4 = inlined_call_operand.vmem [shape: f32[2,36,256], index: 4, kind: output, shape index: {}]
  %s5 = sld [smem:[#allocation0]]
  $region49: #{_lambda_.10} parent=0
    _
  %s7 = ssub.s32 1, %s5
  %s8 = scalar_select 0, %s7, %s5
  loop: start=0, step=1, limit=4
  $region2: #{_lambda_.10} parent=0 // loop_pre_header
    _
  $region3: #{_lambda_.10} parent=0 // loop_header
    %s10 = sphi 0, %s14
    %p11 = scmp.ge.s32.totalorder %s10, 4
    %s17 = sphi 0, %s29
    %s18 = sphi 0, %s25
    %s19 = sphi 0, %s17
    %s20 = sphi 0, %s18
    %s21 = sphi 0, %s19
    %s22 = sphi 0, %s20
    %s32 = sphi 0, %s34
    %s35 = sphi 0, %s32
    %s36 = sphi 0, %s35
    %s52 = sphi 0, %s36
    %s60 = sphi 0, %s62
    %s63 = sphi 0, %s60
    %s64 = sphi 0, %s63
    %s80 = sphi 0, %s64
    %s86 = sphi 0, %s88
    %s89 = sphi 0, %s86
    %s90 = sphi 0, %s89
    %s106 = sphi 0, %s90
    %s112 = sphi 0, %s114
    %s115 = sphi 0, %s112
    %s116 = sphi 0, %s115
    %s132 = sphi 0, %s116
    %s140 = sphi 0, %s142
    %s143 = sphi 0, %s140
    %s144 = sphi 0, %s143
    %s160 = sphi 0, %s144
  $region4: #{_lambda_.10} parent=0 // loop_header_branch
    %13 = sbr.rel (%p11) target = $region8
  $region5: #{_lambda_.10} parent=0 // loop_body
    %s15 = ssub.s32 %s10, 1
    %s16 = ssub.s32 %s10, 2
    %s23 = sadd.s32 1, %s18
    %p24 = scmp.ge.s32.totalorder %s23, 1
    %s25 = scalar_select %p24, 0, %s23
    %s26 = sadd.s32 1, %s17
    %s27 = scalar_select %p24, %s26, %s17
    %p28 = scmp.ge.s32.totalorder %s27, 2
    %s29 = scalar_select %p28, 0, %s27
    %s30 = ssub.s32 %s17, %s29
    %p31 = scmp.eq.s32.totalorder %s30, 0
    %s33 = sadd.s32 %s32, 1
    %s34 = scalar_select %p31, %s32, %s33
    %p37 = pneg %p31
    %p38 = scmp.eq.s32.totalorder %s10, 1
    %p39 = por %p37, %p38
    %p40 = scmp.ne.s32.totalorder %s32, %s35
    %p41 = scmp.eq.s32.totalorder %s10, 0
    %p42 = por %p40, %p41
    %p43 = scmp.ne.s32.totalorder %s32, %s35
    %p44 = scmp.eq.s32.totalorder %s15, 1
    %p45 = por %p43, %p44
    %p46 = scmp.ne.s32.totalorder %s35, %s36
    %p47 = scmp.eq.s32.totalorder %s15, 0
    %p48 = por %p46, %p47
    %p49 = scmp.ne.s32.totalorder %s35, %s36
    %p50 = scmp.eq.s32.totalorder %s16, 1
    %p51 = por %p49, %p50
    %p53 = scmp.ne.s32.totalorder %s36, %s52
    %p54 = scmp.eq.s32.totalorder %s16, 0
    %p55 = por %p53, %p54
    %s56 = ssub.s32 %s17, %s29
    %s57 = ssub.s32 %s18, %s25
    %s58 = sor.u32 %s56, %s57
    %p59 = scmp.eq.s32.totalorder %s58, 0
    %s61 = sadd.s32 %s60, 1
    %s62 = scalar_select %p59, %s60, %s61
    %p65 = pneg %p59
    %p66 = scmp.eq.s32.totalorder %s10, 1
    %p67 = por %p65, %p66
    %p68 = scmp.ne.s32.totalorder %s60, %s63
    %p69 = scmp.eq.s32.totalorder %s10, 0
    %p70 = por %p68, %p69
    %p71 = scmp.ne.s32.totalorder %s60, %s63
    %p72 = scmp.eq.s32.totalorder %s15, 1
    %p73 = por %p71, %p72
    %p74 = scmp.ne.s32.totalorder %s63, %s64
    %p75 = scmp.eq.s32.totalorder %s15, 0
    %p76 = por %p74, %p75
    %p77 = scmp.ne.s32.totalorder %s63, %s64
    %p78 = scmp.eq.s32.totalorder %s16, 1
    %p79 = por %p77, %p78
    %p81 = scmp.ne.s32.totalorder %s64, %s80
    %p82 = scmp.eq.s32.totalorder %s16, 0
    %p83 = por %p81, %p82
    %s84 = ssub.s32 %s17, %s29
    %p85 = scmp.eq.s32.totalorder %s84, 0
    %s87 = sadd.s32 %s86, 1
    %s88 = scalar_select %p85, %s86, %s87
    %p91 = pneg %p85
    %p92 = scmp.eq.s32.totalorder %s10, 1
    %p93 = por %p91, %p92
    %p94 = scmp.ne.s32.totalorder %s86, %s89
    %p95 = scmp.eq.s32.totalorder %s10, 0
    %p96 = por %p94, %p95
    %p97 = scmp.ne.s32.totalorder %s86, %s89
    %p98 = scmp.eq.s32.totalorder %s15, 1
    %p99 = por %p97, %p98
    %p100 = scmp.ne.s32.totalorder %s89, %s90
    %p101 = scmp.eq.s32.totalorder %s15, 0
    %p102 = por %p100, %p101
    %p103 = scmp.ne.s32.totalorder %s89, %s90
    %p104 = scmp.eq.s32.totalorder %s16, 1
    %p105 = por %p103, %p104
    %p107 = scmp.ne.s32.totalorder %s90, %s106
    %p108 = scmp.eq.s32.totalorder %s16, 0
    %p109 = por %p107, %p108
    %s110 = ssub.s32 %s17, %s29
    %p111 = scmp.eq.s32.totalorder %s110, 0
    %s113 = sadd.s32 %s112, 1
    %s114 = scalar_select %p111, %s112, %s113
    %p117 = pneg %p111
    %p118 = scmp.eq.s32.totalorder %s10, 1
    %p119 = por %p117, %p118
    %p120 = scmp.ne.s32.totalorder %s112, %s115
    %p121 = scmp.eq.s32.totalorder %s10, 0
    %p122 = por %p120, %p121
    %p123 = scmp.ne.s32.totalorder %s112, %s115
    %p124 = scmp.eq.s32.totalorder %s15, 1
    %p125 = por %p123, %p124
    %p126 = scmp.ne.s32.totalorder %s115, %s116
    %p127 = scmp.eq.s32.totalorder %s15, 0
    %p128 = por %p126, %p127
    %p129 = scmp.ne.s32.totalorder %s115, %s116
    %p130 = scmp.eq.s32.totalorder %s16, 1
    %p131 = por %p129, %p130
    %p133 = scmp.ne.s32.totalorder %s116, %s132
    %p134 = scmp.eq.s32.totalorder %s16, 0
    %p135 = por %p133, %p134
    %s136 = ssub.s32 %s17, %s29
    %s137 = ssub.s32 %s18, %s25
    %s138 = sor.u32 %s136, %s137
    %p139 = scmp.eq.s32.totalorder %s138, 0
    %s141 = sadd.s32 %s140, 1
    %s142 = scalar_select %p139, %s140, %s141
    %p145 = pneg %p139
    %p146 = scmp.eq.s32.totalorder %s10, 1
    %p147 = por %p145, %p146
    %p148 = scmp.ne.s32.totalorder %s140, %s143
    %p149 = scmp.eq.s32.totalorder %s10, 0
    %p150 = por %p148, %p149
    %p151 = scmp.ne.s32.totalorder %s140, %s143
    %p152 = scmp.eq.s32.totalorder %s15, 1
    %p153 = por %p151, %p152
    %p154 = scmp.ne.s32.totalorder %s143, %s144
    %p155 = scmp.eq.s32.totalorder %s15, 0
    %p156 = por %p154, %p155
    %p157 = scmp.ne.s32.totalorder %s143, %s144
    %p158 = scmp.eq.s32.totalorder %s16, 1
    %p159 = por %p157, %p158
    %p161 = scmp.ne.s32.totalorder %s144, %s160
    %p162 = scmp.eq.s32.totalorder %s16, 0
    %p163 = por %p161, %p162
    %p164 = scmp.le.s32.totalorder 1, %s10
    %p165 = scmp.lt.s32.totalorder %s10, 3
    %p166 = pnand %p164, %p165
    %p167 = pneg %p166
    // Predicated region
    $region9: #{_lambda_.10} parent=5 // pred_check
      _
    $region10: #{_lambda_.10} parent=5 // pred_check_branch
      %169 = sbr.rel (%p166) target = $region12
    $region11: #{_lambda_.10} parent=5 // pred_region
      %s170 = ssub.s32 %s10, 1
    $region12: #{_lambda_.10} parent=5 // pred_fallthru
      _
    %p171 = scmp.lt.s32.totalorder %s10, 2
    // Predicated region
    $region13: #{_lambda_.10} parent=5 // pred_check
      %p172 = pneg %p171
    $region14: #{_lambda_.10} parent=5 // pred_check_branch
      %174 = sbr.rel (%p172) target = $region16
    $region15: #{_lambda_.10} parent=5 // pred_region
      // Predicated region
      $region17: #{_lambda_.10} parent=15 // pred_check
        %p175 = pneg %p42
      $region18: #{_lambda_.10} parent=15 // pred_check_branch
        %177 = sbr.rel (%p175) target = $region20
      $region19: #{_lambda_.10} parent=15 // pred_region
        %p178 = scmp.lt.s32.totalorder %s17, 1
        %s179 = scalar_select %p178, %s17, 1
        %s180 = smul.addr %s179, 32
        %s181 = smul.addr %s180, 8
        %s182 = scalar_lea.vmem %s0, %s181
      $region20: #{_lambda_.10} parent=15 // pred_fallthru
        _
      // Predicated region
      $region21: #{_lambda_.10} parent=15 // pred_check
        %p183 = pneg %p70
      $region22: #{_lambda_.10} parent=15 // pred_check_branch
        %185 = sbr.rel (%p183) target = $region24
      $region23: #{_lambda_.10} parent=15 // pred_region
        %s186 = smul.u32 2, %s18
        %p187 = scmp.lt.s32.totalorder %s17, 1
        %s188 = scalar_select %p187, %s17, 1
        %p189 = scmp.lt.s32.totalorder %s186, 1
        %s190 = scalar_select %p189, %s186, 1
        %s191 = smul.addr %s188, 10
        %s192 = sadd.s32 %s190, %s191
        %s193 = smul.addr %s192, 4
        %s194 = scalar_lea.vmem %s1, %s193
        %s195 = smul.u32 2, %s18
      $region24: #{_lambda_.10} parent=15 // pred_fallthru
        _
      // Predicated region
      $region25: #{_lambda_.10} parent=15 // pred_check
        %p196 = pneg %p96
      $region26: #{_lambda_.10} parent=15 // pred_check_branch
        %198 = sbr.rel (%p196) target = $region28
      $region27: #{_lambda_.10} parent=15 // pred_region
        %p199 = scmp.lt.s32.totalorder %s17, 1
        %s200 = scalar_select %p199, %s17, 1
        %s201 = smul.addr %s200, 32
        %s202 = smul.addr %s201, 8
        %s203 = scalar_lea.vmem %s2, %s202
      $region28: #{_lambda_.10} parent=15 // pred_fallthru
        _
      // Predicated region
      $region29: #{_lambda_.10} parent=15 // pred_check
        %p204 = pneg %p122
      $region30: #{_lambda_.10} parent=15 // pred_check_branch
        %206 = sbr.rel (%p204) target = $region32
      $region31: #{_lambda_.10} parent=15 // pred_region
        %p207 = scmp.lt.s32.totalorder %s17, 1
        %s208 = scalar_select %p207, %s17, 1
        %s209 = smul.addr %s208, 10
        %s210 = smul.addr %s209, 4
        %s211 = scalar_lea.vmem %s3, %s210
      $region32: #{_lambda_.10} parent=15 // pred_fallthru
        _
    $region16: #{_lambda_.10} parent=5 // pred_fallthru
      _
    %p212 = scmp.le.s32.totalorder 1, %s10
    %p213 = scmp.lt.s32.totalorder %s10, 3
    %p214 = pnand %p212, %p213
    %p215 = pneg %p214
    // Predicated region
    $region33: #{_lambda_.10} parent=5 // pred_check
      _
    $region34: #{_lambda_.10} parent=5 // pred_check_branch
      %217 = sbr.rel (%p214) target = $region36
    $region35: #{_lambda_.10} parent=5 // pred_region
      %s218 = ssub.s32 %s10, 1
      %p219 = scmp.lt.s32.totalorder %s19, 1
      %s220 = scalar_select %p219, %s19, 1
      %s221 = smul.addr %s220, 32
      %s222 = smul.addr %s221, 8
      %s223 = scalar_lea.vmem %s0, %s222
      %p224 = pneg %p48
      %p225 = pneg %p45
      %s226 = smul.u32 2, %s20
      %p227 = scmp.lt.s32.totalorder %s19, 1
      %s228 = scalar_select %p227, %s19, 1
      %p229 = scmp.lt.s32.totalorder %s226, 1
      %s230 = scalar_select %p229, %s226, 1
      %s231 = smul.addr %s228, 10
      %s232 = sadd.s32 %s230, %s231
      %s233 = smul.addr %s232, 4
      %s234 = scalar_lea.vmem %s1, %s233
      %p235 = pneg %p76
      %p236 = pneg %p73
      %p237 = scmp.lt.s32.totalorder %s19, 1
      %s238 = scalar_select %p237, %s19, 1
      %s239 = smul.addr %s238, 32
      %s240 = smul.addr %s239, 8
      %s241 = scalar_lea.vmem %s2, %s240
      %p242 = pneg %p102
      %p243 = pneg %p99
      %p244 = scmp.lt.s32.totalorder %s19, 1
      %s245 = scalar_select %p244, %s19, 1
      %s246 = smul.addr %s245, 10
      %s247 = smul.addr %s246, 4
      %s248 = scalar_lea.vmem %s3, %s247
      %p249 = pneg %p128
      %p250 = pneg %p125
      %p251 = pneg %p156
      %p252 = pneg %p153
      %s253 = smul.u32 2, %s20
      %p254 = scmp.lt.s32.totalorder %s19, 1
      %s255 = scalar_select %p254, %s19, 1
      %p256 = scmp.lt.s32.totalorder %s253, 1
      %s257 = scalar_select %p256, %s253, 1
      %s258 = smul.addr %s255, 10
      %s259 = sadd.s32 %s257, %s258
      %s260 = smul.addr %s259, 8
      %s261 = scalar_lea.vmem %s4, %s260
      %p262 = scmp.lt.s32.totalorder %s19, 1
      %s263 = scalar_select %p262, %s19, 1
      %s264 = smul.addr %s263, 32
      %s265 = smul.addr %s264, 8
      %s266 = scalar_lea.vmem %s0, %s265
      %s267 = smul.u32 2, %s20
      %p268 = scmp.lt.s32.totalorder %s19, 1
      %s269 = scalar_select %p268, %s19, 1
      %p270 = scmp.lt.s32.totalorder %s267, 1
      %s271 = scalar_select %p270, %s267, 1
      %s272 = smul.addr %s269, 10
      %s273 = sadd.s32 %s271, %s272
      %s274 = smul.addr %s273, 4
      %s275 = scalar_lea.vmem %s1, %s274
      %s276 = smul.u32 2, %s20
      %p277 = scmp.lt.s32.totalorder %s19, 1
      %s278 = scalar_select %p277, %s19, 1
      %s279 = smul.addr %s278, 32
      %s280 = smul.addr %s279, 8
      %s281 = scalar_lea.vmem %s2, %s280
      %p282 = scmp.lt.s32.totalorder %s19, 1
      %s283 = scalar_select %p282, %s19, 1
      %s284 = smul.addr %s283, 10
      %s285 = smul.addr %s284, 4
      %s286 = scalar_lea.vmem %s3, %s285
      %s287 = smul.u32 2, %s20
      %p288 = scmp.lt.s32.totalorder %s19, 1
      %s289 = scalar_select %p288, %s19, 1
      %p290 = scmp.lt.s32.totalorder %s287, 1
      %s291 = scalar_select %p290, %s287, 1
      %s292 = smul.addr %s289, 10
      %s293 = sadd.s32 %s291, %s292
      %s294 = smul.addr %s293, 8
      %s295 = scalar_lea.vmem %s4, %s294
      %s296 = smul.u32 2, %s20
      %v298 = vld [vmem:[%s266] sm:$0xff]
      %v299 = vld [vmem:[%s266 + $0x8] sm:$0xff]
      %v300 = vld [vmem:[%s266 + $0x10] sm:$0xff]
      %v301 = vld [vmem:[%s266 + $0x18] sm:$0xff]
      %v302 = vld [vmem:[%s266 + $0x20] sm:$0xff]
      %v303 = vld [vmem:[%s266 + $0x28] sm:$0xff]
      %v304 = vld [vmem:[%s266 + $0x30] sm:$0xff]
      %v305 = vld [vmem:[%s266 + $0x38] sm:$0xff]
      %v306 = vld [vmem:[%s266 + $0x40] sm:$0xff]
      %v307 = vld [vmem:[%s266 + $0x48] sm:$0xff]
      %v308 = vld [vmem:[%s266 + $0x50] sm:$0xff]
      %v309 = vld [vmem:[%s266 + $0x58] sm:$0xff]
      %v310 = vld [vmem:[%s266 + $0x60] sm:$0xff]
      %v311 = vld [vmem:[%s266 + $0x68] sm:$0xff]
      %v312 = vld [vmem:[%s266 + $0x70] sm:$0xff]
      %v313 = vld [vmem:[%s266 + $0x78] sm:$0xff]
      %v314 = vld [vmem:[%s266 + $0x80] sm:$0xff]
      %v315 = vld [vmem:[%s266 + $0x88] sm:$0xff]
      %v316 = vld [vmem:[%s266 + $0x90] sm:$0xff]
      %v317 = vld [vmem:[%s266 + $0x98] sm:$0xff]
      %v318 = vld [vmem:[%s266 + $0xa0] sm:$0xff]
      %v319 = vld [vmem:[%s266 + $0xa8] sm:$0xff]
      %v320 = vld [vmem:[%s266 + $0xb0] sm:$0xff]
      %v321 = vld [vmem:[%s266 + $0xb8] sm:$0xff]
      %v322 = vld [vmem:[%s266 + $0xc0] sm:$0xff]
      %v323 = vld [vmem:[%s266 + $0xc8] sm:$0xff]
      %v324 = vld [vmem:[%s266 + $0xd0] sm:$0xff]
      %v325 = vld [vmem:[%s266 + $0xd8] sm:$0xff]
      %v326 = vld [vmem:[%s266 + $0xe0] sm:$0xff]
      %v327 = vld [vmem:[%s266 + $0xe8] sm:$0xff]
      %v328 = vld [vmem:[%s266 + $0xf0] sm:$0xff]
      %v329 = vld [vmem:[%s266 + $0xf8] sm:$0xff]
      %v330 = vld [vmem:[%s281] sm:$0xff]
      %v331 = vld [vmem:[%s281 + $0x8] sm:$0xff]
      %v332 = vld [vmem:[%s281 + $0x10] sm:$0xff]
      %v333 = vld [vmem:[%s281 + $0x18] sm:$0xff]
      %v334 = vld [vmem:[%s281 + $0x20] sm:$0xff]
      %v335 = vld [vmem:[%s281 + $0x28] sm:$0xff]
      %v336 = vld [vmem:[%s281 + $0x30] sm:$0xff]
      %v337 = vld [vmem:[%s281 + $0x38] sm:$0xff]
      %v338 = vld [vmem:[%s281 + $0x40] sm:$0xff]
      %v339 = vld [vmem:[%s281 + $0x48] sm:$0xff]
      %v340 = vld [vmem:[%s281 + $0x50] sm:$0xff]
      %v341 = vld [vmem:[%s281 + $0x58] sm:$0xff]
      %v342 = vld [vmem:[%s281 + $0x60] sm:$0xff]
      %v343 = vld [vmem:[%s281 + $0x68] sm:$0xff]
      %v344 = vld [vmem:[%s281 + $0x70] sm:$0xff]
      %v345 = vld [vmem:[%s281 + $0x78] sm:$0xff]
      %v346 = vld [vmem:[%s281 + $0x80] sm:$0xff]
      %v347 = vld [vmem:[%s281 + $0x88] sm:$0xff]
      %v348 = vld [vmem:[%s281 + $0x90] sm:$0xff]
      %v349 = vld [vmem:[%s281 + $0x98] sm:$0xff]
      %v350 = vld [vmem:[%s281 + $0xa0] sm:$0xff]
      %v351 = vld [vmem:[%s281 + $0xa8] sm:$0xff]
      %v352 = vld [vmem:[%s281 + $0xb0] sm:$0xff]
      %v353 = vld [vmem:[%s281 + $0xb8] sm:$0xff]
      %v354 = vld [vmem:[%s281 + $0xc0] sm:$0xff]
      %v355 = vld [vmem:[%s281 + $0xc8] sm:$0xff]
      %v356 = vld [vmem:[%s281 + $0xd0] sm:$0xff]
      %v357 = vld [vmem:[%s281 + $0xd8] sm:$0xff]
      %v358 = vld [vmem:[%s281 + $0xe0] sm:$0xff]
      %v359 = vld [vmem:[%s281 + $0xe8] sm:$0xff]
      %v360 = vld [vmem:[%s281 + $0xf0] sm:$0xff]
      %v361 = vld [vmem:[%s281 + $0xf8] sm:$0xff]
      %v362 = vmul.f32 %v298, %v298
      %v363 = vmul.f32 %v299, %v299
      %v364 = vmul.f32 %v300, %v300
      %v365 = vmul.f32 %v301, %v301
      %v366 = vmul.f32 %v302, %v302
      %v367 = vmul.f32 %v303, %v303
      %v368 = vmul.f32 %v304, %v304
      %v369 = vmul.f32 %v305, %v305
      %v370 = vmul.f32 %v306, %v306
      %v371 = vmul.f32 %v307, %v307
      %v372 = vmul.f32 %v308, %v308
      %v373 = vmul.f32 %v309, %v309
      %v374 = vmul.f32 %v310, %v310
      %v375 = vmul.f32 %v311, %v311
      %v376 = vmul.f32 %v312, %v312
      %v377 = vmul.f32 %v313, %v313
      %v378 = vmul.f32 %v314, %v314
      %v379 = vmul.f32 %v315, %v315
      %v380 = vmul.f32 %v316, %v316
      %v381 = vmul.f32 %v317, %v317
      %v382 = vmul.f32 %v318, %v318
      %v383 = vmul.f32 %v319, %v319
      %v384 = vmul.f32 %v320, %v320
      %v385 = vmul.f32 %v321, %v321
      %v386 = vmul.f32 %v322, %v322
      %v387 = vmul.f32 %v323, %v323
      %v388 = vmul.f32 %v324, %v324
      %v389 = vmul.f32 %v325, %v325
      %v390 = vmul.f32 %v326, %v326
      %v391 = vmul.f32 %v327, %v327
      %v392 = vmul.f32 %v328, %v328
      %v393 = vmul.f32 %v329, %v329
      %vm394 = vcmask 293888
      %v395 = vsel %vm394, %v362, 0.0
      %396 = vadd.xlane.f32.xlu0 %v395
      %v397 = vpop.xlane.xlu0 %396
      %v398 = vsel %vm394, %v363, 0.0
      %399 = vadd.xlane.f32.xlu0 %v398
      %v400 = vpop.xlane.xlu0 %399
      %v401 = vsel %vm394, %v364, 0.0
      %402 = vadd.xlane.f32.xlu0 %v401
      %v403 = vpop.xlane.xlu0 %402
      %v404 = vsel %vm394, %v365, 0.0
      %405 = vadd.xlane.f32.xlu0 %v404
      %v406 = vpop.xlane.xlu0 %405
      %v407 = vsel %vm394, %v366, 0.0
      %408 = vadd.xlane.f32.xlu0 %v407
      %v409 = vpop.xlane.xlu0 %408
      %v410 = vsel %vm394, %v367, 0.0
      %411 = vadd.xlane.f32.xlu0 %v410
      %v412 = vpop.xlane.xlu0 %411
      %v413 = vsel %vm394, %v368, 0.0
      %414 = vadd.xlane.f32.xlu0 %v413
      %v415 = vpop.xlane.xlu0 %414
      %v416 = vsel %vm394, %v369, 0.0
      %417 = vadd.xlane.f32.xlu0 %v416
      %v418 = vpop.xlane.xlu0 %417
      %v419 = vsel %vm394, %v370, 0.0
      %420 = vadd.xlane.f32.xlu0 %v419
      %v421 = vpop.xlane.xlu0 %420
      %v422 = vsel %vm394, %v371, 0.0
      %423 = vadd.xlane.f32.xlu0 %v422
      %v424 = vpop.xlane.xlu0 %423
      %v425 = vsel %vm394, %v372, 0.0
      %426 = vadd.xlane.f32.xlu0 %v425
      %v427 = vpop.xlane.xlu0 %426
      %v428 = vsel %vm394, %v373, 0.0
      %429 = vadd.xlane.f32.xlu0 %v428
      %v430 = vpop.xlane.xlu0 %429
      %v431 = vsel %vm394, %v374, 0.0
      %432 = vadd.xlane.f32.xlu0 %v431
      %v433 = vpop.xlane.xlu0 %432
      %v434 = vsel %vm394, %v375, 0.0
      %435 = vadd.xlane.f32.xlu0 %v434
      %v436 = vpop.xlane.xlu0 %435
      %v437 = vsel %vm394, %v376, 0.0
      %438 = vadd.xlane.f32.xlu0 %v437
      %v439 = vpop.xlane.xlu0 %438
      %v440 = vsel %vm394, %v377, 0.0
      %441 = vadd.xlane.f32.xlu0 %v440
      %v442 = vpop.xlane.xlu0 %441
      %v443 = vsel %vm394, %v378, 0.0
      %444 = vadd.xlane.f32.xlu0 %v443
      %v445 = vpop.xlane.xlu0 %444
      %v446 = vsel %vm394, %v379, 0.0
      %447 = vadd.xlane.f32.xlu0 %v446
      %v448 = vpop.xlane.xlu0 %447
      %v449 = vsel %vm394, %v380, 0.0
      %450 = vadd.xlane.f32.xlu0 %v449
      %v451 = vpop.xlane.xlu0 %450
      %v452 = vsel %vm394, %v381, 0.0
      %453 = vadd.xlane.f32.xlu0 %v452
      %v454 = vpop.xlane.xlu0 %453
      %v455 = vsel %vm394, %v382, 0.0
      %456 = vadd.xlane.f32.xlu0 %v455
      %v457 = vpop.xlane.xlu0 %456
      %v458 = vsel %vm394, %v383, 0.0
      %459 = vadd.xlane.f32.xlu0 %v458
      %v460 = vpop.xlane.xlu0 %459
      %v461 = vsel %vm394, %v384, 0.0
      %462 = vadd.xlane.f32.xlu0 %v461
      %v463 = vpop.xlane.xlu0 %462
      %v464 = vsel %vm394, %v385, 0.0
      %465 = vadd.xlane.f32.xlu0 %v464
      %v466 = vpop.xlane.xlu0 %465
      %v467 = vsel %vm394, %v386, 0.0
      %468 = vadd.xlane.f32.xlu0 %v467
      %v469 = vpop.xlane.xlu0 %468
      %v470 = vsel %vm394, %v387, 0.0
      %471 = vadd.xlane.f32.xlu0 %v470
      %v472 = vpop.xlane.xlu0 %471
      %v473 = vsel %vm394, %v388, 0.0
      %474 = vadd.xlane.f32.xlu0 %v473
      %v475 = vpop.xlane.xlu0 %474
      %v476 = vsel %vm394, %v389, 0.0
      %477 = vadd.xlane.f32.xlu0 %v476
      %v478 = vpop.xlane.xlu0 %477
      %v479 = vsel %vm394, %v390, 0.0
      %480 = vadd.xlane.f32.xlu0 %v479
      %v481 = vpop.xlane.xlu0 %480
      %v482 = vsel %vm394, %v391, 0.0
      %483 = vadd.xlane.f32.xlu0 %v482
      %v484 = vpop.xlane.xlu0 %483
      %v485 = vsel %vm394, %v392, 0.0
      %486 = vadd.xlane.f32.xlu0 %v485
      %v487 = vpop.xlane.xlu0 %486
      %v488 = vsel %vm394, %v393, 0.0
      %489 = vadd.xlane.f32.xlu0 %v488
      %v490 = vpop.xlane.xlu0 %489
      %v491 = vmax.f32 %v397, 1e-08
      %v492 = vmax.f32 %v400, 1e-08
      %v493 = vmax.f32 %v403, 1e-08
      %v494 = vmax.f32 %v406, 1e-08
      %v495 = vmax.f32 %v409, 1e-08
      %v496 = vmax.f32 %v412, 1e-08
      %v497 = vmax.f32 %v415, 1e-08
      %v498 = vmax.f32 %v418, 1e-08
      %v499 = vmax.f32 %v421, 1e-08
      %v500 = vmax.f32 %v424, 1e-08
      %v501 = vmax.f32 %v427, 1e-08
      %v502 = vmax.f32 %v430, 1e-08
      %v503 = vmax.f32 %v433, 1e-08
      %v504 = vmax.f32 %v436, 1e-08
      %v505 = vmax.f32 %v439, 1e-08
      %v506 = vmax.f32 %v442, 1e-08
      %v507 = vmax.f32 %v445, 1e-08
      %v508 = vmax.f32 %v448, 1e-08
      %v509 = vmax.f32 %v451, 1e-08
      %v510 = vmax.f32 %v454, 1e-08
      %v511 = vmax.f32 %v457, 1e-08
      %v512 = vmax.f32 %v460, 1e-08
      %v513 = vmax.f32 %v463, 1e-08
      %v514 = vmax.f32 %v466, 1e-08
      %v515 = vmax.f32 %v469, 1e-08
      %v516 = vmax.f32 %v472, 1e-08
      %v517 = vmax.f32 %v475, 1e-08
      %v518 = vmax.f32 %v478, 1e-08
      %v519 = vmax.f32 %v481, 1e-08
      %v520 = vmax.f32 %v484, 1e-08
      %v521 = vmax.f32 %v487, 1e-08
      %v522 = vmax.f32 %v490, 1e-08
      %v523 = vrsqrt.pop %v491
      %v524 = vrsqrt.pop %v492
      %v525 = vrsqrt.pop %v493
      %v526 = vrsqrt.pop %v494
      %v527 = vrsqrt.pop %v495
      %v528 = vrsqrt.pop %v496
      %v529 = vrsqrt.pop %v497
      %v530 = vrsqrt.pop %v498
      %v531 = vrsqrt.pop %v499
      %v532 = vrsqrt.pop %v500
      %v533 = vrsqrt.pop %v501
      %v534 = vrsqrt.pop %v502
      %v535 = vrsqrt.pop %v503
      %v536 = vrsqrt.pop %v504
      %v537 = vrsqrt.pop %v505
      %v538 = vrsqrt.pop %v506
      %v539 = vrsqrt.pop %v507
      %v540 = vrsqrt.pop %v508
      %v541 = vrsqrt.pop %v509
      %v542 = vrsqrt.pop %v510
      %v543 = vrsqrt.pop %v511
      %v544 = vrsqrt.pop %v512
      %v545 = vrsqrt.pop %v513
      %v546 = vrsqrt.pop %v514
      %v547 = vrsqrt.pop %v515
      %v548 = vrsqrt.pop %v516
      %v549 = vrsqrt.pop %v517
      %v550 = vrsqrt.pop %v518
      %v551 = vrsqrt.pop %v519
      %v552 = vrsqrt.pop %v520
      %v553 = vrsqrt.pop %v521
      %v554 = vrsqrt.pop %v522
      %v555 = vmul.f32 %v330, 10.0
      %v556 = vmul.f32 %v331, 10.0
      %v557 = vmul.f32 %v332, 10.0
      %v558 = vmul.f32 %v333, 10.0
      %v559 = vmul.f32 %v334, 10.0
      %v560 = vmul.f32 %v335, 10.0
      %v561 = vmul.f32 %v336, 10.0
      %v562 = vmul.f32 %v337, 10.0
      %v563 = vmul.f32 %v338, 10.0
      %v564 = vmul.f32 %v339, 10.0
      %v565 = vmul.f32 %v340, 10.0
      %v566 = vmul.f32 %v341, 10.0
      %v567 = vmul.f32 %v342, 10.0
      %v568 = vmul.f32 %v343, 10.0
      %v569 = vmul.f32 %v344, 10.0
      %v570 = vmul.f32 %v345, 10.0
      %v571 = vmul.f32 %v346, 10.0
      %v572 = vmul.f32 %v347, 10.0
      %v573 = vmul.f32 %v348, 10.0
      %v574 = vmul.f32 %v349, 10.0
      %v575 = vmul.f32 %v350, 10.0
      %v576 = vmul.f32 %v351, 10.0
      %v577 = vmul.f32 %v352, 10.0
      %v578 = vmul.f32 %v353, 10.0
      %v579 = vmul.f32 %v354, 10.0
      %v580 = vmul.f32 %v355, 10.0
      %v581 = vmul.f32 %v356, 10.0
      %v582 = vmul.f32 %v357, 10.0
      %v583 = vmul.f32 %v358, 10.0
      %v584 = vmul.f32 %v359, 10.0
      %v585 = vmul.f32 %v360, 10.0
      %v586 = vmul.f32 %v361, 10.0
      %v587 = vmul.f32 %v523, %v555
      %v588 = vmul.f32 %v524, %v556
      %v589 = vmul.f32 %v525, %v557
      %v590 = vmul.f32 %v526, %v558
      %v591 = vmul.f32 %v527, %v559
      %v592 = vmul.f32 %v528, %v560
      %v593 = vmul.f32 %v529, %v561
      %v594 = vmul.f32 %v530, %v562
      %v595 = vmul.f32 %v531, %v563
      %v596 = vmul.f32 %v532, %v564
      %v597 = vmul.f32 %v533, %v565
      %v598 = vmul.f32 %v534, %v566
      %v599 = vmul.f32 %v535, %v567
      %v600 = vmul.f32 %v536, %v568
      %v601 = vmul.f32 %v537, %v569
      %v602 = vmul.f32 %v538, %v570
      %v603 = vmul.f32 %v539, %v571
      %v604 = vmul.f32 %v540, %v572
      %v605 = vmul.f32 %v541, %v573
      %v606 = vmul.f32 %v542, %v574
      %v607 = vmul.f32 %v543, %v575
      %v608 = vmul.f32 %v544, %v576
      %v609 = vmul.f32 %v545, %v577
      %v610 = vmul.f32 %v546, %v578
      %v611 = vmul.f32 %v547, %v579
      %v612 = vmul.f32 %v548, %v580
      %v613 = vmul.f32 %v549, %v581
      %v614 = vmul.f32 %v550, %v582
      %v615 = vmul.f32 %v551, %v583
      %v616 = vmul.f32 %v552, %v584
      %v617 = vmul.f32 %v553, %v585
      %v618 = vmul.f32 %v554, %v586
      %620 = vset.pattern.permute.xlu0 0
      %621 = vperm.xlu0 %620, %v587
      %v622 = vpop.permute.xlu0 %621
      %625 = vset.pattern.permute.xlu0 0
      %626 = vperm.xlu0 %625, %v588
      %v627 = vpop.permute.xlu0 %626
      %630 = vset.pattern.permute.xlu0 0
      %631 = vperm.xlu0 %630, %v589
      %v632 = vpop.permute.xlu0 %631
      %635 = vset.pattern.permute.xlu0 0
      %636 = vperm.xlu0 %635, %v590
      %v637 = vpop.permute.xlu0 %636
      %640 = vset.pattern.permute.xlu0 0
      %641 = vperm.xlu0 %640, %v591
      %v642 = vpop.permute.xlu0 %641
      %645 = vset.pattern.permute.xlu0 0
      %646 = vperm.xlu0 %645, %v592
      %v647 = vpop.permute.xlu0 %646
      %650 = vset.pattern.permute.xlu0 0
      %651 = vperm.xlu0 %650, %v593
      %v652 = vpop.permute.xlu0 %651
      %655 = vset.pattern.permute.xlu0 0
      %656 = vperm.xlu0 %655, %v594
      %v657 = vpop.permute.xlu0 %656
      %660 = vset.pattern.permute.xlu0 0
      %661 = vperm.xlu0 %660, %v595
      %v662 = vpop.permute.xlu0 %661
      %665 = vset.pattern.permute.xlu0 0
      %666 = vperm.xlu0 %665, %v596
      %v667 = vpop.permute.xlu0 %666
      %670 = vset.pattern.permute.xlu0 0
      %671 = vperm.xlu0 %670, %v597
      %v672 = vpop.permute.xlu0 %671
      %675 = vset.pattern.permute.xlu0 0
      %676 = vperm.xlu0 %675, %v598
      %v677 = vpop.permute.xlu0 %676
      %680 = vset.pattern.permute.xlu0 0
      %681 = vperm.xlu0 %680, %v599
      %v682 = vpop.permute.xlu0 %681
      %685 = vset.pattern.permute.xlu0 0
      %686 = vperm.xlu0 %685, %v600
      %v687 = vpop.permute.xlu0 %686
      %690 = vset.pattern.permute.xlu0 0
      %691 = vperm.xlu0 %690, %v601
      %v692 = vpop.permute.xlu0 %691
      %695 = vset.pattern.permute.xlu0 0
      %696 = vperm.xlu0 %695, %v602
      %v697 = vpop.permute.xlu0 %696
      %700 = vset.pattern.permute.xlu0 0
      %701 = vperm.xlu0 %700, %v603
      %v702 = vpop.permute.xlu0 %701
      %705 = vset.pattern.permute.xlu0 0
      %706 = vperm.xlu0 %705, %v604
      %v707 = vpop.permute.xlu0 %706
      %710 = vset.pattern.permute.xlu0 0
      %711 = vperm.xlu0 %710, %v605
      %v712 = vpop.permute.xlu0 %711
      %715 = vset.pattern.permute.xlu0 0
      %716 = vperm.xlu0 %715, %v606
      %v717 = vpop.permute.xlu0 %716
      %720 = vset.pattern.permute.xlu0 0
      %721 = vperm.xlu0 %720, %v607
      %v722 = vpop.permute.xlu0 %721
      %725 = vset.pattern.permute.xlu0 0
      %726 = vperm.xlu0 %725, %v608
      %v727 = vpop.permute.xlu0 %726
      %730 = vset.pattern.permute.xlu0 0
      %731 = vperm.xlu0 %730, %v609
      %v732 = vpop.permute.xlu0 %731
      %735 = vset.pattern.permute.xlu0 0
      %736 = vperm.xlu0 %735, %v610
      %v737 = vpop.permute.xlu0 %736
      %740 = vset.pattern.permute.xlu0 0
      %741 = vperm.xlu0 %740, %v611
      %v742 = vpop.permute.xlu0 %741
      %745 = vset.pattern.permute.xlu0 0
      %746 = vperm.xlu0 %745, %v612
      %v747 = vpop.permute.xlu0 %746
      %750 = vset.pattern.permute.xlu0 0
      %751 = vperm.xlu0 %750, %v613
      %v752 = vpop.permute.xlu0 %751
      %755 = vset.pattern.permute.xlu0 0
      %756 = vperm.xlu0 %755, %v614
      %v757 = vpop.permute.xlu0 %756
      %760 = vset.pattern.permute.xlu0 0
      %761 = vperm.xlu0 %760, %v615
      %v762 = vpop.permute.xlu0 %761
      %765 = vset.pattern.permute.xlu0 0
      %766 = vperm.xlu0 %765, %v616
      %v767 = vpop.permute.xlu0 %766
      %770 = vset.pattern.permute.xlu0 0
      %771 = vperm.xlu0 %770, %v617
      %v772 = vpop.permute.xlu0 %771
      %775 = vset.pattern.permute.xlu0 0
      %776 = vperm.xlu0 %775, %v618
      %v777 = vpop.permute.xlu0 %776
      %v779 = vmul.f32 %v298, %v622
      %v780 = vmul.f32 %v299, %v627
      %v781 = vmul.f32 %v300, %v632
      %v782 = vmul.f32 %v301, %v637
      %v783 = vmul.f32 %v302, %v642
      %v784 = vmul.f32 %v303, %v647
      %v785 = vmul.f32 %v304, %v652
      %v786 = vmul.f32 %v305, %v657
      %v787 = vmul.f32 %v306, %v662
      %v788 = vmul.f32 %v307, %v667
      %v789 = vmul.f32 %v308, %v672
      %v790 = vmul.f32 %v309, %v677
      %v791 = vmul.f32 %v310, %v682
      %v792 = vmul.f32 %v311, %v687
      %v793 = vmul.f32 %v312, %v692
      %v794 = vmul.f32 %v313, %v697
      %v795 = vmul.f32 %v314, %v702
      %v796 = vmul.f32 %v315, %v707
      %v797 = vmul.f32 %v316, %v712
      %v798 = vmul.f32 %v317, %v717
      %v799 = vmul.f32 %v318, %v722
      %v800 = vmul.f32 %v319, %v727
      %v801 = vmul.f32 %v320, %v732
      %v802 = vmul.f32 %v321, %v737
      %v803 = vmul.f32 %v322, %v742
      %v804 = vmul.f32 %v323, %v747
      %v805 = vmul.f32 %v324, %v752
      %v806 = vmul.f32 %v325, %v757
      %v807 = vmul.f32 %v326, %v762
      %v808 = vmul.f32 %v327, %v767
      %v809 = vmul.f32 %v328, %v772
      %v810 = vmul.f32 %v329, %v777
      %v811 = vpack.c.bf16 %v780, %v779
      %v812 = vpack.c.bf16 %v782, %v781
      %v813 = vpack.c.bf16 %v784, %v783
      %v814 = vpack.c.bf16 %v786, %v785
      %v815 = vpack.c.bf16 %v788, %v787
      %v816 = vpack.c.bf16 %v790, %v789
      %v817 = vpack.c.bf16 %v792, %v791
      %v818 = vpack.c.bf16 %v794, %v793
      %v819 = vpack.c.bf16 %v796, %v795
      %v820 = vpack.c.bf16 %v798, %v797
      %v821 = vpack.c.bf16 %v800, %v799
      %v822 = vpack.c.bf16 %v802, %v801
      %v823 = vpack.c.bf16 %v804, %v803
      %v824 = vpack.c.bf16 %v806, %v805
      %v825 = vpack.c.bf16 %v808, %v807
      %v826 = vpack.c.bf16 %v810, %v809
      %v827 = vld [vmem:[%s275] sm:$0xff]
      %v828 = vld [vmem:[%s275 + $0x8] sm:$0xff]
      %v829 = vld [vmem:[%s275 + $0x10] sm:$0xff]
      %v830 = vld [vmem:[%s275 + $0x18] sm:$0xff]
      %v831 = vld [vmem:[%s275 + $0x20] sm:$0x33]
      %v837 = vunpack.c.l.b16 %v827
      %v838 = vunpack.c.h.b16 %v827
      %v839 = vunpack.c.l.b16 %v828
      %v840 = vunpack.c.h.b16 %v828
      %v841 = vunpack.c.l.b16 %v829
      %v842 = vunpack.c.h.b16 %v829
      %v843 = vunpack.c.l.b16 %v830
      %v844 = vunpack.c.h.b16 %v830
      %v845 = vunpack.c.l.b16 %v831
      %v846 = vunpack.c.h.b16 %v831
      %v847 = vpack.c.b16 %v839, %v837
      %v848 = vpack.c.b16 %v840, %v838
      %v849 = vpack.c.b16 %v843, %v841
      %v850 = vpack.c.b16 %v844, %v842
      %v851 = vpack.c.b16 %v845, %v845
      %v852 = vpack.c.b16 %v846, %v846
      %v858 = vsel %vm394, %v811, 0
      %v861 = vsel %vm394, %v812, 0
      %v864 = vsel %vm394, %v813, 0
      %v867 = vsel %vm394, %v814, 0
      %v870 = vsel %vm394, %v815, 0
      %v873 = vsel %vm394, %v816, 0
      %v876 = vsel %vm394, %v817, 0
      %v879 = vsel %vm394, %v818, 0
      %v882 = vsel %vm394, %v819, 0
      %v885 = vsel %vm394, %v820, 0
      %v888 = vsel %vm394, %v821, 0
      %v891 = vsel %vm394, %v822, 0
      %v894 = vsel %vm394, %v823, 0
      %v897 = vsel %vm394, %v824, 0
      %v900 = vsel %vm394, %v825, 0
      %v903 = vsel %vm394, %v826, 0
      %vm905 = vcmask 1041408
      %v907 = vsel %vm905, %v851, 0
      %v910 = vsel %vm905, %v852, 0
      %912 = vmatprep.subr.bf16.mxu0 0
      %913 = vmatpush1.bf16.msra.mxu0 0
      %914 = vmatprep.subr.bf16.mxu0 0
      %915 = vmatpush1.bf16.msra.mxu0 0
      %916 = vmatprep.subr.bf16.mxu0 0
      %917 = vmatpush1.bf16.msra.mxu0 0
      %918 = vmatprep.subr.bf16.mxu0 0
      %919 = vmatpush1.bf16.msra.mxu0 0
      %920 = vmatprep.subr.bf16.mxu0 0
      %921 = vmatpush1.bf16.msra.mxu0 0
      %922 = vmatprep.subr.bf16.mxu0 %v910
      %923 = vmatpush1.bf16.msra.mxu0 %v907
      %924 = vmatprep.subr.bf16.mxu0 %v850
      %925 = vmatpush1.bf16.msra.mxu0 %v849
      %926 = vmatprep.subr.bf16.mxu0 %v848
      %927 = vmatpush1.bf16.msra.mxu0 %v847
      %928 = vmatprep.subr.bf16.mxu0 0
      %929 = vmatpush2.bf16.msra.mxu0 0
      %930 = vmatprep.subr.bf16.mxu0 0
      %931 = vmatpush2.bf16.msra.mxu0 0
      %932 = vmatprep.subr.bf16.mxu0 0
      %933 = vmatpush2.bf16.msra.mxu0 0
      %934 = vmatprep.subr.bf16.mxu0 0
      %935 = vmatpush2.bf16.msra.mxu0 0
      %936 = vmatprep.subr.bf16.mxu0 0
      %937 = vmatpush2.bf16.msra.mxu0 0
      %938 = vmatprep.subr.bf16.mxu0 0
      %939 = vmatpush2.bf16.msra.mxu0 0
      %940 = vmatprep.subr.bf16.mxu0 0
      %941 = vmatpush2.bf16.msra.mxu0 0
      %942 = vmatprep.subr.bf16.mxu0 0
      %943 = vmatpush2.bf16.msra.mxu0 0
      %944 = vmatprep.mubr.bf16.mxu0 0
      %945 = vmatmul.mubr.bf16.gmra.mxu0 %v858
      %v946 = vpop.f32.mrf.mxu0
      %v947 = vadd.f32 0.0, %v946
      %v948 = vpop.f32.mrf.mxu0
      %v949 = vadd.f32 0.0, %v948
      %v950 = vpop.f32.mrf.mxu0
      %v951 = vadd.f32 0.0, %v950
      %v952 = vpop.f32.mrf.mxu0
      %v953 = vadd.f32 0.0, %v952
      %954 = vmatprep.mubr.bf16.mxu0 0
      %955 = vmatmul.mubr.bf16.gmra.mxu0 %v861
      %v956 = vpop.f32.mrf.mxu0
      %v957 = vadd.f32 0.0, %v956
      %v958 = vpop.f32.mrf.mxu0
      %v959 = vadd.f32 0.0, %v958
      %v960 = vpop.f32.mrf.mxu0
      %v961 = vadd.f32 0.0, %v960
      %v962 = vpop.f32.mrf.mxu0
      %v963 = vadd.f32 0.0, %v962
      %964 = vmatprep.mubr.bf16.mxu0 0
      %965 = vmatmul.mubr.bf16.gmra.mxu0 %v864
      %v966 = vpop.f32.mrf.mxu0
      %v967 = vadd.f32 0.0, %v966
      %v968 = vpop.f32.mrf.mxu0
      %v969 = vadd.f32 0.0, %v968
      %v970 = vpop.f32.mrf.mxu0
      %v971 = vadd.f32 0.0, %v970
      %v972 = vpop.f32.mrf.mxu0
      %v973 = vadd.f32 0.0, %v972
      %974 = vmatprep.mubr.bf16.mxu0 0
      %975 = vmatmul.mubr.bf16.gmra.mxu0 %v867
      %v976 = vpop.f32.mrf.mxu0
      %v977 = vadd.f32 0.0, %v976
      %v978 = vpop.f32.mrf.mxu0
      %v979 = vadd.f32 0.0, %v978
      %v980 = vpop.f32.mrf.mxu0
      %v981 = vadd.f32 0.0, %v980
      %v982 = vpop.f32.mrf.mxu0
      %v983 = vadd.f32 0.0, %v982
      %984 = vmatprep.mubr.bf16.mxu0 0
      %985 = vmatmul.mubr.bf16.gmra.mxu0 %v870
      %v986 = vpop.f32.mrf.mxu0
      %v987 = vadd.f32 0.0, %v986
      %v988 = vpop.f32.mrf.mxu0
      %v989 = vadd.f32 0.0, %v988
      %v990 = vpop.f32.mrf.mxu0
      %v991 = vadd.f32 0.0, %v990
      %v992 = vpop.f32.mrf.mxu0
      %v993 = vadd.f32 0.0, %v992
      %994 = vmatprep.mubr.bf16.mxu0 0
      %995 = vmatmul.mubr.bf16.gmra.mxu0 %v873
      %v996 = vpop.f32.mrf.mxu0
      %v997 = vadd.f32 0.0, %v996
      %v998 = vpop.f32.mrf.mxu0
      %v999 = vadd.f32 0.0, %v998
      %v1000 = vpop.f32.mrf.mxu0
      %v1001 = vadd.f32 0.0, %v1000
      %v1002 = vpop.f32.mrf.mxu0
      %v1003 = vadd.f32 0.0, %v1002
      %1004 = vmatprep.mubr.bf16.mxu0 0
      %1005 = vmatmul.mubr.bf16.gmra.mxu0 %v876
      %v1006 = vpop.f32.mrf.mxu0
      %v1007 = vadd.f32 0.0, %v1006
      %v1008 = vpop.f32.mrf.mxu0
      %v1009 = vadd.f32 0.0, %v1008
      %v1010 = vpop.f32.mrf.mxu0
      %v1011 = vadd.f32 0.0, %v1010
      %v1012 = vpop.f32.mrf.mxu0
      %v1013 = vadd.f32 0.0, %v1012
      %1014 = vmatprep.mubr.bf16.mxu0 0
      %1015 = vmatmul.mubr.bf16.gmra.mxu0 %v879
      %v1016 = vpop.f32.mrf.mxu0
      %v1017 = vadd.f32 0.0, %v1016
      %v1018 = vpop.f32.mrf.mxu0
      %v1019 = vadd.f32 0.0, %v1018
      %v1020 = vpop.f32.mrf.mxu0
      %v1021 = vadd.f32 0.0, %v1020
      %v1022 = vpop.f32.mrf.mxu0
      %v1023 = vadd.f32 0.0, %v1022
      %1024 = vmatprep.mubr.bf16.mxu0 0
      %1025 = vmatmul.mubr.bf16.gmra.mxu0 %v882
      %v1026 = vpop.f32.mrf.mxu0
      %v1027 = vadd.f32 0.0, %v1026
      %v1028 = vpop.f32.mrf.mxu0
      %v1029 = vadd.f32 0.0, %v1028
      %v1030 = vpop.f32.mrf.mxu0
      %v1031 = vadd.f32 0.0, %v1030
      %v1032 = vpop.f32.mrf.mxu0
      %v1033 = vadd.f32 0.0, %v1032
      %1034 = vmatprep.mubr.bf16.mxu0 0
      %1035 = vmatmul.mubr.bf16.gmra.mxu0 %v885
      %v1036 = vpop.f32.mrf.mxu0
      %v1037 = vadd.f32 0.0, %v1036
      %v1038 = vpop.f32.mrf.mxu0
      %v1039 = vadd.f32 0.0, %v1038
      %v1040 = vpop.f32.mrf.mxu0
      %v1041 = vadd.f32 0.0, %v1040
      %v1042 = vpop.f32.mrf.mxu0
      %v1043 = vadd.f32 0.0, %v1042
      %1044 = vmatprep.mubr.bf16.mxu0 0
      %1045 = vmatmul.mubr.bf16.gmra.mxu0 %v888
      %v1046 = vpop.f32.mrf.mxu0
      %v1047 = vadd.f32 0.0, %v1046
      %v1048 = vpop.f32.mrf.mxu0
      %v1049 = vadd.f32 0.0, %v1048
      %v1050 = vpop.f32.mrf.mxu0
      %v1051 = vadd.f32 0.0, %v1050
      %v1052 = vpop.f32.mrf.mxu0
      %v1053 = vadd.f32 0.0, %v1052
      %1054 = vmatprep.mubr.bf16.mxu0 0
      %1055 = vmatmul.mubr.bf16.gmra.mxu0 %v891
      %v1056 = vpop.f32.mrf.mxu0
      %v1057 = vadd.f32 0.0, %v1056
      %v1058 = vpop.f32.mrf.mxu0
      %v1059 = vadd.f32 0.0, %v1058
      %v1060 = vpop.f32.mrf.mxu0
      %v1061 = vadd.f32 0.0, %v1060
      %v1062 = vpop.f32.mrf.mxu0
      %v1063 = vadd.f32 0.0, %v1062
      %1064 = vmatprep.mubr.bf16.mxu0 0
      %1065 = vmatmul.mubr.bf16.gmra.mxu0 %v894
      %v1066 = vpop.f32.mrf.mxu0
      %v1067 = vadd.f32 0.0, %v1066
      %v1068 = vpop.f32.mrf.mxu0
      %v1069 = vadd.f32 0.0, %v1068
      %v1070 = vpop.f32.mrf.mxu0
      %v1071 = vadd.f32 0.0, %v1070
      %v1072 = vpop.f32.mrf.mxu0
      %v1073 = vadd.f32 0.0, %v1072
      %1074 = vmatprep.mubr.bf16.mxu0 0
      %1075 = vmatmul.mubr.bf16.gmra.mxu0 %v897
      %v1076 = vpop.f32.mrf.mxu0
      %v1077 = vadd.f32 0.0, %v1076
      %v1078 = vpop.f32.mrf.mxu0
      %v1079 = vadd.f32 0.0, %v1078
      %v1080 = vpop.f32.mrf.mxu0
      %v1081 = vadd.f32 0.0, %v1080
      %v1082 = vpop.f32.mrf.mxu0
      %v1083 = vadd.f32 0.0, %v1082
      %1084 = vmatprep.mubr.bf16.mxu0 0
      %1085 = vmatmul.mubr.bf16.gmra.mxu0 %v900
      %v1086 = vpop.f32.mrf.mxu0
      %v1087 = vadd.f32 0.0, %v1086
      %v1088 = vpop.f32.mrf.mxu0
      %v1089 = vadd.f32 0.0, %v1088
      %v1090 = vpop.f32.mrf.mxu0
      %v1091 = vadd.f32 0.0, %v1090
      %v1092 = vpop.f32.mrf.mxu0
      %v1093 = vadd.f32 0.0, %v1092
      %1094 = vmatprep.mubr.bf16.mxu0 0
      %1095 = vmatmul.mubr.bf16.gmra.mxu0 %v903
      %v1096 = vpop.f32.mrf.mxu0
      %v1097 = vadd.f32 0.0, %v1096
      %v1098 = vpop.f32.mrf.mxu0
      %v1099 = vadd.f32 0.0, %v1098
      %v1100 = vpop.f32.mrf.mxu0
      %v1101 = vadd.f32 0.0, %v1100
      %v1102 = vpop.f32.mrf.mxu0
      %v1103 = vadd.f32 0.0, %v1102
      %1104 = vdwg.mxu0
      %v1105 = vmax.f32 %v947, %v957
      %v1106 = vmax.f32 %v951, %v961
      %v1107 = vmax.f32 %v1105, %v967
      %v1108 = vmax.f32 %v1106, %v971
      %v1109 = vmax.f32 %v1107, %v977
      %v1110 = vmax.f32 %v1108, %v981
      %v1111 = vmax.f32 %v1109, %v987
      %v1112 = vmax.f32 %v1110, %v991
      %v1113 = vmax.f32 %v1111, %v997
      %v1114 = vmax.f32 %v1112, %v1001
      %v1115 = vmax.f32 %v1113, %v1007
      %v1116 = vmax.f32 %v1114, %v1011
      %v1117 = vmax.f32 %v1115, %v1017
      %v1118 = vmax.f32 %v1116, %v1021
      %v1119 = vmax.f32 %v1117, %v1027
      %v1120 = vmax.f32 %v1118, %v1031
      %v1121 = vmax.f32 %v1119, %v1037
      %v1122 = vmax.f32 %v1120, %v1041
      %v1123 = vmax.f32 %v1121, %v1047
      %v1124 = vmax.f32 %v1122, %v1051
      %v1125 = vmax.f32 %v1123, %v1057
      %v1126 = vmax.f32 %v1124, %v1061
      %v1127 = vmax.f32 %v1125, %v1067
      %v1128 = vmax.f32 %v1126, %v1071
      %v1129 = vmax.f32 %v1127, %v1077
      %v1130 = vmax.f32 %v1128, %v1081
      %v1131 = vmax.f32 %v1129, %v1087
      %v1132 = vmax.f32 %v1130, %v1091
      %v1133 = vmax.f32 %v1131, %v1097
      %v1134 = vmax.f32 %v1132, %v1101
      %v1135 = vmax.f32 %v1133, %v1134
      %v1136 = vrot.slane %v1135, 4
      %v1137 = vmax.f32 %v1135, %v1136
      %v1138 = vrot.slane %v1137, 2
      %v1139 = vmax.f32 %v1137, %v1138
      %v1140 = vrot.slane %v1139, 1
      %v1141 = vmax.f32 %v1139, %v1140
      %v1142 = vmax.f32 %v949, %v959
      %v1143 = vmax.f32 %v953, %v963
      %v1144 = vmax.f32 %v1142, %v969
      %v1145 = vmax.f32 %v1143, %v973
      %v1146 = vmax.f32 %v1144, %v979
      %v1147 = vmax.f32 %v1145, %v983
      %v1148 = vmax.f32 %v1146, %v989
      %v1149 = vmax.f32 %v1147, %v993
      %v1150 = vmax.f32 %v1148, %v999
      %v1151 = vmax.f32 %v1149, %v1003
      %v1152 = vmax.f32 %v1150, %v1009
      %v1153 = vmax.f32 %v1151, %v1013
      %v1154 = vmax.f32 %v1152, %v1019
      %v1155 = vmax.f32 %v1153, %v1023
      %v1156 = vmax.f32 %v1154, %v1029
      %v1157 = vmax.f32 %v1155, %v1033
      %v1158 = vmax.f32 %v1156, %v1039
      %v1159 = vmax.f32 %v1157, %v1043
      %v1160 = vmax.f32 %v1158, %v1049
      %v1161 = vmax.f32 %v1159, %v1053
      %v1162 = vmax.f32 %v1160, %v1059
      %v1163 = vmax.f32 %v1161, %v1063
      %v1164 = vmax.f32 %v1162, %v1069
      %v1165 = vmax.f32 %v1163, %v1073
      %v1166 = vmax.f32 %v1164, %v1079
      %v1167 = vmax.f32 %v1165, %v1083
      %v1168 = vmax.f32 %v1166, %v1089
      %v1169 = vmax.f32 %v1167, %v1093
      %v1170 = vmax.f32 %v1168, %v1099
      %v1171 = vmax.f32 %v1169, %v1103
      %v1172 = vmax.f32 %v1170, %v1171
      %v1173 = vrot.slane %v1172, 4
      %v1174 = vmax.f32 %v1172, %v1173
      %v1175 = vrot.slane %v1174, 2
      %v1176 = vmax.f32 %v1174, %v1175
      %v1177 = vrot.slane %v1176, 1
      %v1178 = vmax.f32 %v1176, %v1177
      %v1179 = vsub.f32 %v947, %v1141
      %v1180 = vsub.f32 %v949, %v1178
      %v1181 = vsub.f32 %v951, %v1141
      %v1182 = vsub.f32 %v953, %v1178
      %v1183 = vsub.f32 %v957, %v1141
      %v1184 = vsub.f32 %v959, %v1178
      %v1185 = vsub.f32 %v961, %v1141
      %v1186 = vsub.f32 %v963, %v1178
      %v1187 = vsub.f32 %v967, %v1141
      %v1188 = vsub.f32 %v969, %v1178
      %v1189 = vsub.f32 %v971, %v1141
      %v1190 = vsub.f32 %v973, %v1178
      %v1191 = vsub.f32 %v977, %v1141
      %v1192 = vsub.f32 %v979, %v1178
      %v1193 = vsub.f32 %v981, %v1141
      %v1194 = vsub.f32 %v983, %v1178
      %v1195 = vsub.f32 %v987, %v1141
      %v1196 = vsub.f32 %v989, %v1178
      %v1197 = vsub.f32 %v991, %v1141
      %v1198 = vsub.f32 %v993, %v1178
      %v1199 = vsub.f32 %v997, %v1141
      %v1200 = vsub.f32 %v999, %v1178
      %v1201 = vsub.f32 %v1001, %v1141
      %v1202 = vsub.f32 %v1003, %v1178
      %v1203 = vsub.f32 %v1007, %v1141
      %v1204 = vsub.f32 %v1009, %v1178
      %v1205 = vsub.f32 %v1011, %v1141
      %v1206 = vsub.f32 %v1013, %v1178
      %v1207 = vsub.f32 %v1017, %v1141
      %v1208 = vsub.f32 %v1019, %v1178
      %v1209 = vsub.f32 %v1021, %v1141
      %v1210 = vsub.f32 %v1023, %v1178
      %v1211 = vsub.f32 %v1027, %v1141
      %v1212 = vsub.f32 %v1029, %v1178
      %v1213 = vsub.f32 %v1031, %v1141
      %v1214 = vsub.f32 %v1033, %v1178
      %v1215 = vsub.f32 %v1037, %v1141
      %v1216 = vsub.f32 %v1039, %v1178
      %v1217 = vsub.f32 %v1041, %v1141
      %v1218 = vsub.f32 %v1043, %v1178
      %v1219 = vsub.f32 %v1047, %v1141
      %v1220 = vsub.f32 %v1049, %v1178
      %v1221 = vsub.f32 %v1051, %v1141
      %v1222 = vsub.f32 %v1053, %v1178
      %v1223 = vsub.f32 %v1057, %v1141
      %v1224 = vsub.f32 %v1059, %v1178
      %v1225 = vsub.f32 %v1061, %v1141
      %v1226 = vsub.f32 %v1063, %v1178
      %v1227 = vsub.f32 %v1067, %v1141
      %v1228 = vsub.f32 %v1069, %v1178
      %v1229 = vsub.f32 %v1071, %v1141
      %v1230 = vsub.f32 %v1073, %v1178
      %v1231 = vsub.f32 %v1077, %v1141
      %v1232 = vsub.f32 %v1079, %v1178
      %v1233 = vsub.f32 %v1081, %v1141
      %v1234 = vsub.f32 %v1083, %v1178
      %v1235 = vsub.f32 %v1087, %v1141
      %v1236 = vsub.f32 %v1089, %v1178
      %v1237 = vsub.f32 %v1091, %v1141
      %v1238 = vsub.f32 %v1093, %v1178
      %v1239 = vsub.f32 %v1097, %v1141
      %v1240 = vsub.f32 %v1099, %v1178
      %v1241 = vsub.f32 %v1101, %v1141
      %v1242 = vsub.f32 %v1103, %v1178
      %v1243 = vmul.f32 %v1179, 1.442695
      %v1244 = vpow.pop %v1243
      %v1245 = vmul.f32 %v1180, 1.442695
      %v1246 = vpow.pop %v1245
      %v1247 = vmul.f32 %v1181, 1.442695
      %v1248 = vpow.pop %v1247
      %v1249 = vmul.f32 %v1182, 1.442695
      %v1250 = vpow.pop %v1249
      %v1251 = vmul.f32 %v1183, 1.442695
      %v1252 = vpow.pop %v1251
      %v1253 = vmul.f32 %v1184, 1.442695
      %v1254 = vpow.pop %v1253
      %v1255 = vmul.f32 %v1185, 1.442695
      %v1256 = vpow.pop %v1255
      %v1257 = vmul.f32 %v1186, 1.442695
      %v1258 = vpow.pop %v1257
      %v1259 = vmul.f32 %v1187, 1.442695
      %v1260 = vpow.pop %v1259
      %v1261 = vmul.f32 %v1188, 1.442695
      %v1262 = vpow.pop %v1261
      %v1263 = vmul.f32 %v1189, 1.442695
      %v1264 = vpow.pop %v1263
      %v1265 = vmul.f32 %v1190, 1.442695
      %v1266 = vpow.pop %v1265
      %v1267 = vmul.f32 %v1191, 1.442695
      %v1268 = vpow.pop %v1267
      %v1269 = vmul.f32 %v1192, 1.442695
      %v1270 = vpow.pop %v1269
      %v1271 = vmul.f32 %v1193, 1.442695
      %v1272 = vpow.pop %v1271
      %v1273 = vmul.f32 %v1194, 1.442695
      %v1274 = vpow.pop %v1273
      %v1275 = vmul.f32 %v1195, 1.442695
      %v1276 = vpow.pop %v1275
      %v1277 = vmul.f32 %v1196, 1.442695
      %v1278 = vpow.pop %v1277
      %v1279 = vmul.f32 %v1197, 1.442695
      %v1280 = vpow.pop %v1279
      %v1281 = vmul.f32 %v1198, 1.442695
      %v1282 = vpow.pop %v1281
      %v1283 = vmul.f32 %v1199, 1.442695
      %v1284 = vpow.pop %v1283
      %v1285 = vmul.f32 %v1200, 1.442695
      %v1286 = vpow.pop %v1285
      %v1287 = vmul.f32 %v1201, 1.442695
      %v1288 = vpow.pop %v1287
      %v1289 = vmul.f32 %v1202, 1.442695
      %v1290 = vpow.pop %v1289
      %v1291 = vmul.f32 %v1203, 1.442695
      %v1292 = vpow.pop %v1291
      %v1293 = vmul.f32 %v1204, 1.442695
      %v1294 = vpow.pop %v1293
      %v1295 = vmul.f32 %v1205, 1.442695
      %v1296 = vpow.pop %v1295
      %v1297 = vmul.f32 %v1206, 1.442695
      %v1298 = vpow.pop %v1297
      %v1299 = vmul.f32 %v1207, 1.442695
      %v1300 = vpow.pop %v1299
      %v1301 = vmul.f32 %v1208, 1.442695
      %v1302 = vpow.pop %v1301
      %v1303 = vmul.f32 %v1209, 1.442695
      %v1304 = vpow.pop %v1303
      %v1305 = vmul.f32 %v1210, 1.442695
      %v1306 = vpow.pop %v1305
      %v1307 = vmul.f32 %v1211, 1.442695
      %v1308 = vpow.pop %v1307
      %v1309 = vmul.f32 %v1212, 1.442695
      %v1310 = vpow.pop %v1309
      %v1311 = vmul.f32 %v1213, 1.442695
      %v1312 = vpow.pop %v1311
      %v1313 = vmul.f32 %v1214, 1.442695
      %v1314 = vpow.pop %v1313
      %v1315 = vmul.f32 %v1215, 1.442695
      %v1316 = vpow.pop %v1315
      %v1317 = vmul.f32 %v1216, 1.442695
      %v1318 = vpow.pop %v1317
      %v1319 = vmul.f32 %v1217, 1.442695
      %v1320 = vpow.pop %v1319
      %v1321 = vmul.f32 %v1218, 1.442695
      %v1322 = vpow.pop %v1321
      %v1323 = vmul.f32 %v1219, 1.442695
      %v1324 = vpow.pop %v1323
      %v1325 = vmul.f32 %v1220, 1.442695
      %v1326 = vpow.pop %v1325
      %v1327 = vmul.f32 %v1221, 1.442695
      %v1328 = vpow.pop %v1327
      %v1329 = vmul.f32 %v1222, 1.442695
      %v1330 = vpow.pop %v1329
      %v1331 = vmul.f32 %v1223, 1.442695
      %v1332 = vpow.pop %v1331
      %v1333 = vmul.f32 %v1224, 1.442695
      %v1334 = vpow.pop %v1333
      %v1335 = vmul.f32 %v1225, 1.442695
      %v1336 = vpow.pop %v1335
      %v1337 = vmul.f32 %v1226, 1.442695
      %v1338 = vpow.pop %v1337
      %v1339 = vmul.f32 %v1227, 1.442695
      %v1340 = vpow.pop %v1339
      %v1341 = vmul.f32 %v1228, 1.442695
      %v1342 = vpow.pop %v1341
      %v1343 = vmul.f32 %v1229, 1.442695
      %v1344 = vpow.pop %v1343
      %v1345 = vmul.f32 %v1230, 1.442695
      %v1346 = vpow.pop %v1345
      %v1347 = vmul.f32 %v1231, 1.442695
      %v1348 = vpow.pop %v1347
      %v1349 = vmul.f32 %v1232, 1.442695
      %v1350 = vpow.pop %v1349
      %v1351 = vmul.f32 %v1233, 1.442695
      %v1352 = vpow.pop %v1351
      %v1353 = vmul.f32 %v1234, 1.442695
      %v1354 = vpow.pop %v1353
      %v1355 = vmul.f32 %v1235, 1.442695
      %v1356 = vpow.pop %v1355
      %v1357 = vmul.f32 %v1236, 1.442695
      %v1358 = vpow.pop %v1357
      %v1359 = vmul.f32 %v1237, 1.442695
      %v1360 = vpow.pop %v1359
      %v1361 = vmul.f32 %v1238, 1.442695
      %v1362 = vpow.pop %v1361
      %v1363 = vmul.f32 %v1239, 1.442695
      %v1364 = vpow.pop %v1363
      %v1365 = vmul.f32 %v1240, 1.442695
      %v1366 = vpow.pop %v1365
      %v1367 = vmul.f32 %v1241, 1.442695
      %v1368 = vpow.pop %v1367
      %v1369 = vmul.f32 %v1242, 1.442695
      %v1370 = vpow.pop %v1369
      %v1371 = vadd.f32 %v1244, %v1248
      %v1372 = vadd.f32 %v1371, %v1252
      %v1373 = vadd.f32 %v1372, %v1256
      %v1374 = vadd.f32 %v1373, %v1260
      %v1375 = vadd.f32 %v1374, %v1264
      %v1376 = vadd.f32 %v1375, %v1268
      %v1377 = vadd.f32 %v1376, %v1272
      %v1378 = vadd.f32 %v1377, %v1276
      %v1379 = vadd.f32 %v1378, %v1280
      %v1380 = vadd.f32 %v1379, %v1284
      %v1381 = vadd.f32 %v1380, %v1288
      %v1382 = vadd.f32 %v1381, %v1292
      %v1383 = vadd.f32 %v1382, %v1296
      %v1384 = vadd.f32 %v1383, %v1300
      %v1385 = vadd.f32 %v1384, %v1304
      %v1386 = vadd.f32 %v1385, %v1308
      %v1387 = vadd.f32 %v1386, %v1312
      %v1388 = vadd.f32 %v1387, %v1316
      %v1389 = vadd.f32 %v1388, %v1320
      %v1390 = vadd.f32 %v1389, %v1324
      %v1391 = vadd.f32 %v1390, %v1328
      %v1392 = vadd.f32 %v1391, %v1332
      %v1393 = vadd.f32 %v1392, %v1336
      %v1394 = vadd.f32 %v1393, %v1340
      %v1395 = vadd.f32 %v1394, %v1344
      %v1396 = vadd.f32 %v1395, %v1348
      %v1397 = vadd.f32 %v1396, %v1352
      %v1398 = vadd.f32 %v1397, %v1356
      %v1399 = vadd.f32 %v1398, %v1360
      %v1400 = vadd.f32 %v1399, %v1364
      %v1401 = vadd.f32 %v1400, %v1368
      %v1402 = vrot.slane %v1401, 4
      %v1403 = vadd.f32 %v1401, %v1402
      %v1404 = vrot.slane %v1403, 2
      %v1405 = vadd.f32 %v1403, %v1404
      %v1406 = vrot.slane %v1405, 1
      %v1407 = vadd.f32 %v1405, %v1406
      %v1408 = vadd.f32 %v1246, %v1250
      %v1409 = vadd.f32 %v1408, %v1254
      %v1410 = vadd.f32 %v1409, %v1258
      %v1411 = vadd.f32 %v1410, %v1262
      %v1412 = vadd.f32 %v1411, %v1266
      %v1413 = vadd.f32 %v1412, %v1270
      %v1414 = vadd.f32 %v1413, %v1274
      %v1415 = vadd.f32 %v1414, %v1278
      %v1416 = vadd.f32 %v1415, %v1282
      %v1417 = vadd.f32 %v1416, %v1286
      %v1418 = vadd.f32 %v1417, %v1290
      %v1419 = vadd.f32 %v1418, %v1294
      %v1420 = vadd.f32 %v1419, %v1298
      %v1421 = vadd.f32 %v1420, %v1302
      %v1422 = vadd.f32 %v1421, %v1306
      %v1423 = vadd.f32 %v1422, %v1310
      %v1424 = vadd.f32 %v1423, %v1314
      %v1425 = vadd.f32 %v1424, %v1318
      %v1426 = vadd.f32 %v1425, %v1322
      %v1427 = vadd.f32 %v1426, %v1326
      %v1428 = vadd.f32 %v1427, %v1330
      %v1429 = vadd.f32 %v1428, %v1334
      %v1430 = vadd.f32 %v1429, %v1338
      %v1431 = vadd.f32 %v1430, %v1342
      %v1432 = vadd.f32 %v1431, %v1346
      %v1433 = vadd.f32 %v1432, %v1350
      %v1434 = vadd.f32 %v1433, %v1354
      %v1435 = vadd.f32 %v1434, %v1358
      %v1436 = vadd.f32 %v1435, %v1362
      %v1437 = vadd.f32 %v1436, %v1366
      %v1438 = vadd.f32 %v1437, %v1370
      %v1439 = vrot.slane %v1438, 4
      %v1440 = vadd.f32 %v1438, %v1439
      %v1441 = vrot.slane %v1440, 2
      %v1442 = vadd.f32 %v1440, %v1441
      %v1443 = vrot.slane %v1442, 1
      %v1444 = vadd.f32 %v1442, %v1443
      %v1445 = vrcp.pop %v1407
      %v1446 = vrcp.pop %v1444
      %v1447 = vmul.f32 %v1244, %v1445
      %v1448 = vmul.f32 %v1246, %v1446
      %v1449 = vmul.f32 %v1248, %v1445
      %v1450 = vmul.f32 %v1250, %v1446
      %v1451 = vmul.f32 %v1252, %v1445
      %v1452 = vmul.f32 %v1254, %v1446
      %v1453 = vmul.f32 %v1256, %v1445
      %v1454 = vmul.f32 %v1258, %v1446
      %v1455 = vmul.f32 %v1260, %v1445
      %v1456 = vmul.f32 %v1262, %v1446
      %v1457 = vmul.f32 %v1264, %v1445
      %v1458 = vmul.f32 %v1266, %v1446
      %v1459 = vmul.f32 %v1268, %v1445
      %v1460 = vmul.f32 %v1270, %v1446
      %v1461 = vmul.f32 %v1272, %v1445
      %v1462 = vmul.f32 %v1274, %v1446
      %v1463 = vmul.f32 %v1276, %v1445
      %v1464 = vmul.f32 %v1278, %v1446
      %v1465 = vmul.f32 %v1280, %v1445
      %v1466 = vmul.f32 %v1282, %v1446
      %v1467 = vmul.f32 %v1284, %v1445
      %v1468 = vmul.f32 %v1286, %v1446
      %v1469 = vmul.f32 %v1288, %v1445
      %v1470 = vmul.f32 %v1290, %v1446
      %v1471 = vmul.f32 %v1292, %v1445
      %v1472 = vmul.f32 %v1294, %v1446
      %v1473 = vmul.f32 %v1296, %v1445
      %v1474 = vmul.f32 %v1298, %v1446
      %v1475 = vmul.f32 %v1300, %v1445
      %v1476 = vmul.f32 %v1302, %v1446
      %v1477 = vmul.f32 %v1304, %v1445
      %v1478 = vmul.f32 %v1306, %v1446
      %v1479 = vmul.f32 %v1308, %v1445
      %v1480 = vmul.f32 %v1310, %v1446
      %v1481 = vmul.f32 %v1312, %v1445
      %v1482 = vmul.f32 %v1314, %v1446
      %v1483 = vmul.f32 %v1316, %v1445
      %v1484 = vmul.f32 %v1318, %v1446
      %v1485 = vmul.f32 %v1320, %v1445
      %v1486 = vmul.f32 %v1322, %v1446
      %v1487 = vmul.f32 %v1324, %v1445
      %v1488 = vmul.f32 %v1326, %v1446
      %v1489 = vmul.f32 %v1328, %v1445
      %v1490 = vmul.f32 %v1330, %v1446
      %v1491 = vmul.f32 %v1332, %v1445
      %v1492 = vmul.f32 %v1334, %v1446
      %v1493 = vmul.f32 %v1336, %v1445
      %v1494 = vmul.f32 %v1338, %v1446
      %v1495 = vmul.f32 %v1340, %v1445
      %v1496 = vmul.f32 %v1342, %v1446
      %v1497 = vmul.f32 %v1344, %v1445
      %v1498 = vmul.f32 %v1346, %v1446
      %v1499 = vmul.f32 %v1348, %v1445
      %v1500 = vmul.f32 %v1350, %v1446
      %v1501 = vmul.f32 %v1352, %v1445
      %v1502 = vmul.f32 %v1354, %v1446
      %v1503 = vmul.f32 %v1356, %v1445
      %v1504 = vmul.f32 %v1358, %v1446
      %v1505 = vmul.f32 %v1360, %v1445
      %v1506 = vmul.f32 %v1362, %v1446
      %v1507 = vmul.f32 %v1364, %v1445
      %v1508 = vmul.f32 %v1366, %v1446
      %v1509 = vmul.f32 %v1368, %v1445
      %v1510 = vmul.f32 %v1370, %v1446
      %1512 = vset.pattern.permute.xlu0 0
      %1513 = vperm.xlu0 %1512, %v330
      %v1514 = vpop.permute.xlu0 %1513
      %1517 = vset.pattern.permute.xlu0 0
      %1518 = vperm.xlu0 %1517, %v331
      %v1519 = vpop.permute.xlu0 %1518
      %1522 = vset.pattern.permute.xlu0 0
      %1523 = vperm.xlu0 %1522, %v332
      %v1524 = vpop.permute.xlu0 %1523
      %1527 = vset.pattern.permute.xlu0 0
      %1528 = vperm.xlu0 %1527, %v333
      %v1529 = vpop.permute.xlu0 %1528
      %1532 = vset.pattern.permute.xlu0 0
      %1533 = vperm.xlu0 %1532, %v334
      %v1534 = vpop.permute.xlu0 %1533
      %1537 = vset.pattern.permute.xlu0 0
      %1538 = vperm.xlu0 %1537, %v335
      %v1539 = vpop.permute.xlu0 %1538
      %1542 = vset.pattern.permute.xlu0 0
      %1543 = vperm.xlu0 %1542, %v336
      %v1544 = vpop.permute.xlu0 %1543
      %1547 = vset.pattern.permute.xlu0 0
      %1548 = vperm.xlu0 %1547, %v337
      %v1549 = vpop.permute.xlu0 %1548
      %1552 = vset.pattern.permute.xlu0 0
      %1553 = vperm.xlu0 %1552, %v338
      %v1554 = vpop.permute.xlu0 %1553
      %1557 = vset.pattern.permute.xlu0 0
      %1558 = vperm.xlu0 %1557, %v339
      %v1559 = vpop.permute.xlu0 %1558
      %1562 = vset.pattern.permute.xlu0 0
      %1563 = vperm.xlu0 %1562, %v340
      %v1564 = vpop.permute.xlu0 %1563
      %1567 = vset.pattern.permute.xlu0 0
      %1568 = vperm.xlu0 %1567, %v341
      %v1569 = vpop.permute.xlu0 %1568
      %1572 = vset.pattern.permute.xlu0 0
      %1573 = vperm.xlu0 %1572, %v342
      %v1574 = vpop.permute.xlu0 %1573
      %1577 = vset.pattern.permute.xlu0 0
      %1578 = vperm.xlu0 %1577, %v343
      %v1579 = vpop.permute.xlu0 %1578
      %1582 = vset.pattern.permute.xlu0 0
      %1583 = vperm.xlu0 %1582, %v344
      %v1584 = vpop.permute.xlu0 %1583
      %1587 = vset.pattern.permute.xlu0 0
      %1588 = vperm.xlu0 %1587, %v345
      %v1589 = vpop.permute.xlu0 %1588
      %1592 = vset.pattern.permute.xlu0 0
      %1593 = vperm.xlu0 %1592, %v346
      %v1594 = vpop.permute.xlu0 %1593
      %1597 = vset.pattern.permute.xlu0 0
      %1598 = vperm.xlu0 %1597, %v347
      %v1599 = vpop.permute.xlu0 %1598
      %1602 = vset.pattern.permute.xlu0 0
      %1603 = vperm.xlu0 %1602, %v348
      %v1604 = vpop.permute.xlu0 %1603
      %1607 = vset.pattern.permute.xlu0 0
      %1608 = vperm.xlu0 %1607, %v349
      %v1609 = vpop.permute.xlu0 %1608
      %1612 = vset.pattern.permute.xlu0 0
      %1613 = vperm.xlu0 %1612, %v350
      %v1614 = vpop.permute.xlu0 %1613
      %1617 = vset.pattern.permute.xlu0 0
      %1618 = vperm.xlu0 %1617, %v351
      %v1619 = vpop.permute.xlu0 %1618
      %1622 = vset.pattern.permute.xlu0 0
      %1623 = vperm.xlu0 %1622, %v352
      %v1624 = vpop.permute.xlu0 %1623
      %1627 = vset.pattern.permute.xlu0 0
      %1628 = vperm.xlu0 %1627, %v353
      %v1629 = vpop.permute.xlu0 %1628
      %1632 = vset.pattern.permute.xlu0 0
      %1633 = vperm.xlu0 %1632, %v354
      %v1634 = vpop.permute.xlu0 %1633
      %1637 = vset.pattern.permute.xlu0 0
      %1638 = vperm.xlu0 %1637, %v355
      %v1639 = vpop.permute.xlu0 %1638
      %1642 = vset.pattern.permute.xlu0 0
      %1643 = vperm.xlu0 %1642, %v356
      %v1644 = vpop.permute.xlu0 %1643
      %1647 = vset.pattern.permute.xlu0 0
      %1648 = vperm.xlu0 %1647, %v357
      %v1649 = vpop.permute.xlu0 %1648
      %1652 = vset.pattern.permute.xlu0 0
      %1653 = vperm.xlu0 %1652, %v358
      %v1654 = vpop.permute.xlu0 %1653
      %1657 = vset.pattern.permute.xlu0 0
      %1658 = vperm.xlu0 %1657, %v359
      %v1659 = vpop.permute.xlu0 %1658
      %1662 = vset.pattern.permute.xlu0 0
      %1663 = vperm.xlu0 %1662, %v360
      %v1664 = vpop.permute.xlu0 %1663
      %1667 = vset.pattern.permute.xlu0 0
      %1668 = vperm.xlu0 %1667, %v361
      %v1669 = vpop.permute.xlu0 %1668
      %v1671 = vmul.f32 %v1447, %v1514
      %v1672 = vmul.f32 %v1448, %v1514
      %v1673 = vmul.f32 %v1449, %v1519
      %v1674 = vmul.f32 %v1450, %v1519
      %v1675 = vmul.f32 %v1451, %v1524
      %v1676 = vmul.f32 %v1452, %v1524
      %v1677 = vmul.f32 %v1453, %v1529
      %v1678 = vmul.f32 %v1454, %v1529
      %v1679 = vmul.f32 %v1455, %v1534
      %v1680 = vmul.f32 %v1456, %v1534
      %v1681 = vmul.f32 %v1457, %v1539
      %v1682 = vmul.f32 %v1458, %v1539
      %v1683 = vmul.f32 %v1459, %v1544
      %v1684 = vmul.f32 %v1460, %v1544
      %v1685 = vmul.f32 %v1461, %v1549
      %v1686 = vmul.f32 %v1462, %v1549
      %v1687 = vmul.f32 %v1463, %v1554
      %v1688 = vmul.f32 %v1464, %v1554
      %v1689 = vmul.f32 %v1465, %v1559
      %v1690 = vmul.f32 %v1466, %v1559
      %v1691 = vmul.f32 %v1467, %v1564
      %v1692 = vmul.f32 %v1468, %v1564
      %v1693 = vmul.f32 %v1469, %v1569
      %v1694 = vmul.f32 %v1470, %v1569
      %v1695 = vmul.f32 %v1471, %v1574
      %v1696 = vmul.f32 %v1472, %v1574
      %v1697 = vmul.f32 %v1473, %v1579
      %v1698 = vmul.f32 %v1474, %v1579
      %v1699 = vmul.f32 %v1475, %v1584
      %v1700 = vmul.f32 %v1476, %v1584
      %v1701 = vmul.f32 %v1477, %v1589
      %v1702 = vmul.f32 %v1478, %v1589
      %v1703 = vmul.f32 %v1479, %v1594
      %v1704 = vmul.f32 %v1480, %v1594
      %v1705 = vmul.f32 %v1481, %v1599
      %v1706 = vmul.f32 %v1482, %v1599
      %v1707 = vmul.f32 %v1483, %v1604
      %v1708 = vmul.f32 %v1484, %v1604
      %v1709 = vmul.f32 %v1485, %v1609
      %v1710 = vmul.f32 %v1486, %v1609
      %v1711 = vmul.f32 %v1487, %v1614
      %v1712 = vmul.f32 %v1488, %v1614
      %v1713 = vmul.f32 %v1489, %v1619
      %v1714 = vmul.f32 %v1490, %v1619
      %v1715 = vmul.f32 %v1491, %v1624
      %v1716 = vmul.f32 %v1492, %v1624
      %v1717 = vmul.f32 %v1493, %v1629
      %v1718 = vmul.f32 %v1494, %v1629
      %v1719 = vmul.f32 %v1495, %v1634
      %v1720 = vmul.f32 %v1496, %v1634
      %v1721 = vmul.f32 %v1497, %v1639
      %v1722 = vmul.f32 %v1498, %v1639
      %v1723 = vmul.f32 %v1499, %v1644
      %v1724 = vmul.f32 %v1500, %v1644
      %v1725 = vmul.f32 %v1501, %v1649
      %v1726 = vmul.f32 %v1502, %v1649
      %v1727 = vmul.f32 %v1503, %v1654
      %v1728 = vmul.f32 %v1504, %v1654
      %v1729 = vmul.f32 %v1505, %v1659
      %v1730 = vmul.f32 %v1506, %v1659
      %v1731 = vmul.f32 %v1507, %v1664
      %v1732 = vmul.f32 %v1508, %v1664
      %v1733 = vmul.f32 %v1509, %v1669
      %v1734 = vmul.f32 %v1510, %v1669
      %v1735 = vmax.f32 %v1671, 1e-08
      %v1736 = vmax.f32 %v1672, 1e-08
      %v1737 = vmax.f32 %v1673, 1e-08
      %v1738 = vmax.f32 %v1674, 1e-08
      %v1739 = vmax.f32 %v1675, 1e-08
      %v1740 = vmax.f32 %v1676, 1e-08
      %v1741 = vmax.f32 %v1677, 1e-08
      %v1742 = vmax.f32 %v1678, 1e-08
      %v1743 = vmax.f32 %v1679, 1e-08
      %v1744 = vmax.f32 %v1680, 1e-08
      %v1745 = vmax.f32 %v1681, 1e-08
      %v1746 = vmax.f32 %v1682, 1e-08
      %v1747 = vmax.f32 %v1683, 1e-08
      %v1748 = vmax.f32 %v1684, 1e-08
      %v1749 = vmax.f32 %v1685, 1e-08
      %v1750 = vmax.f32 %v1686, 1e-08
      %v1751 = vmax.f32 %v1687, 1e-08
      %v1752 = vmax.f32 %v1688, 1e-08
      %v1753 = vmax.f32 %v1689, 1e-08
      %v1754 = vmax.f32 %v1690, 1e-08
      %v1755 = vmax.f32 %v1691, 1e-08
      %v1756 = vmax.f32 %v1692, 1e-08
      %v1757 = vmax.f32 %v1693, 1e-08
      %v1758 = vmax.f32 %v1694, 1e-08
      %v1759 = vmax.f32 %v1695, 1e-08
      %v1760 = vmax.f32 %v1696, 1e-08
      %v1761 = vmax.f32 %v1697, 1e-08
      %v1762 = vmax.f32 %v1698, 1e-08
      %v1763 = vmax.f32 %v1699, 1e-08
      %v1764 = vmax.f32 %v1700, 1e-08
      %v1765 = vmax.f32 %v1701, 1e-08
      %v1766 = vmax.f32 %v1702, 1e-08
      %v1767 = vmax.f32 %v1703, 1e-08
      %v1768 = vmax.f32 %v1704, 1e-08
      %v1769 = vmax.f32 %v1705, 1e-08
      %v1770 = vmax.f32 %v1706, 1e-08
      %v1771 = vmax.f32 %v1707, 1e-08
      %v1772 = vmax.f32 %v1708, 1e-08
      %v1773 = vmax.f32 %v1709, 1e-08
      %v1774 = vmax.f32 %v1710, 1e-08
      %v1775 = vmax.f32 %v1711, 1e-08
      %v1776 = vmax.f32 %v1712, 1e-08
      %v1777 = vmax.f32 %v1713, 1e-08
      %v1778 = vmax.f32 %v1714, 1e-08
      %v1779 = vmax.f32 %v1715, 1e-08
      %v1780 = vmax.f32 %v1716, 1e-08
      %v1781 = vmax.f32 %v1717, 1e-08
      %v1782 = vmax.f32 %v1718, 1e-08
      %v1783 = vmax.f32 %v1719, 1e-08
      %v1784 = vmax.f32 %v1720, 1e-08
      %v1785 = vmax.f32 %v1721, 1e-08
      %v1786 = vmax.f32 %v1722, 1e-08
      %v1787 = vmax.f32 %v1723, 1e-08
      %v1788 = vmax.f32 %v1724, 1e-08
      %v1789 = vmax.f32 %v1725, 1e-08
      %v1790 = vmax.f32 %v1726, 1e-08
      %v1791 = vmax.f32 %v1727, 1e-08
      %v1792 = vmax.f32 %v1728, 1e-08
      %v1793 = vmax.f32 %v1729, 1e-08
      %v1794 = vmax.f32 %v1730, 1e-08
      %v1795 = vmax.f32 %v1731, 1e-08
      %v1796 = vmax.f32 %v1732, 1e-08
      %v1797 = vmax.f32 %v1733, 1e-08
      %v1798 = vmax.f32 %v1734, 1e-08
      %v1799 = vld [vmem:[%s286] sm:$0xff]
      %v1800 = vld [vmem:[%s286 + $0x8] sm:$0xff]
      %v1801 = vld [vmem:[%s286 + $0x10] sm:$0xff]
      %v1802 = vld [vmem:[%s286 + $0x18] sm:$0xff]
      %v1803 = vld [vmem:[%s286 + $0x20] sm:$0x33]
      %v1804 = vpack.c.bf16 %v1737, %v1735
      %v1805 = vpack.c.bf16 %v1738, %v1736
      %v1806 = vpack.c.bf16 %v1741, %v1739
      %v1807 = vpack.c.bf16 %v1742, %v1740
      %v1808 = vpack.c.bf16 %v1745, %v1743
      %v1809 = vpack.c.bf16 %v1746, %v1744
      %v1810 = vpack.c.bf16 %v1749, %v1747
      %v1811 = vpack.c.bf16 %v1750, %v1748
      %v1812 = vpack.c.bf16 %v1753, %v1751
      %v1813 = vpack.c.bf16 %v1754, %v1752
      %v1814 = vpack.c.bf16 %v1757, %v1755
      %v1815 = vpack.c.bf16 %v1758, %v1756
      %v1816 = vpack.c.bf16 %v1761, %v1759
      %v1817 = vpack.c.bf16 %v1762, %v1760
      %v1818 = vpack.c.bf16 %v1765, %v1763
      %v1819 = vpack.c.bf16 %v1766, %v1764
      %v1820 = vpack.c.bf16 %v1769, %v1767
      %v1821 = vpack.c.bf16 %v1770, %v1768
      %v1822 = vpack.c.bf16 %v1773, %v1771
      %v1823 = vpack.c.bf16 %v1774, %v1772
      %v1824 = vpack.c.bf16 %v1777, %v1775
      %v1825 = vpack.c.bf16 %v1778, %v1776
      %v1826 = vpack.c.bf16 %v1781, %v1779
      %v1827 = vpack.c.bf16 %v1782, %v1780
      %v1828 = vpack.c.bf16 %v1785, %v1783
      %v1829 = vpack.c.bf16 %v1786, %v1784
      %v1830 = vpack.c.bf16 %v1789, %v1787
      %v1831 = vpack.c.bf16 %v1790, %v1788
      %v1832 = vpack.c.bf16 %v1793, %v1791
      %v1833 = vpack.c.bf16 %v1794, %v1792
      %v1834 = vpack.c.bf16 %v1797, %v1795
      %v1835 = vpack.c.bf16 %v1798, %v1796
      %v1841 = vunpack.c.l.b16 %v1799
      %v1842 = vunpack.c.h.b16 %v1799
      %v1843 = vunpack.c.l.b16 %v1800
      %v1844 = vunpack.c.h.b16 %v1800
      %v1845 = vunpack.c.l.b16 %v1801
      %v1846 = vunpack.c.h.b16 %v1801
      %v1847 = vunpack.c.l.b16 %v1802
      %v1848 = vunpack.c.h.b16 %v1802
      %v1849 = vunpack.c.l.b16 %v1803
      %v1850 = vunpack.c.h.b16 %v1803
      %v1851 = vpack.c.b16 %v1843, %v1841
      %v1852 = vpack.c.b16 %v1844, %v1842
      %v1853 = vpack.c.b16 %v1847, %v1845
      %v1854 = vpack.c.b16 %v1848, %v1846
      %v1855 = vpack.c.b16 %v1849, %v1849
      %v1856 = vpack.c.b16 %v1850, %v1850
      %1863 = vmatprep.subr.bf16.mxu0 %v1819
      %1864 = vmatpush1.bf16.msra.mxu0 %v1818
      %1865 = vmatprep.subr.bf16.mxu0 %v1817
      %1866 = vmatpush1.bf16.msra.mxu0 %v1816
      %1867 = vmatprep.subr.bf16.mxu0 %v1815
      %1868 = vmatpush1.bf16.msra.mxu0 %v1814
      %1869 = vmatprep.subr.bf16.mxu0 %v1813
      %1870 = vmatpush1.bf16.msra.mxu0 %v1812
      %1871 = vmatprep.subr.bf16.mxu0 %v1811
      %1872 = vmatpush1.bf16.msra.mxu0 %v1810
      %1873 = vmatprep.subr.bf16.mxu0 %v1809
      %1874 = vmatpush1.bf16.msra.mxu0 %v1808
      %1875 = vmatprep.subr.bf16.mxu0 %v1807
      %1876 = vmatpush1.bf16.msra.mxu0 %v1806
      %1877 = vmatprep.subr.bf16.mxu0 %v1805
      %1878 = vmatpush1.bf16.msra.mxu0 %v1804
      %1879 = vmatprep.subr.bf16.mxu0 %v1835
      %1880 = vmatpush2.bf16.msra.mxu0 %v1834
      %1881 = vmatprep.subr.bf16.mxu0 %v1833
      %1882 = vmatpush2.bf16.msra.mxu0 %v1832
      %1883 = vmatprep.subr.bf16.mxu0 %v1831
      %1884 = vmatpush2.bf16.msra.mxu0 %v1830
      %1885 = vmatprep.subr.bf16.mxu0 %v1829
      %1886 = vmatpush2.bf16.msra.mxu0 %v1828
      %1887 = vmatprep.subr.bf16.mxu0 %v1827
      %1888 = vmatpush2.bf16.msra.mxu0 %v1826
      %1889 = vmatprep.subr.bf16.mxu0 %v1825
      %1890 = vmatpush2.bf16.msra.mxu0 %v1824
      %1891 = vmatprep.subr.bf16.mxu0 %v1823
      %1892 = vmatpush2.bf16.msra.mxu0 %v1822
      %1893 = vmatprep.subr.bf16.mxu0 %v1821
      %1894 = vmatpush2.bf16.msra.mxu0 %v1820
      %1895 = vmatprep.mubr.bf16.mxu0 %v1852
      %1896 = vmatmul.mubr.bf16.gmra.mxu0 %v1851
      %v1897 = vpop.f32.mrf.mxu0
      %v1898 = vadd.f32 0.0, %v1897
      %v1899 = vpop.f32.mrf.mxu0
      %v1900 = vadd.f32 0.0, %v1899
      %v1901 = vpop.f32.mrf.mxu0
      %v1902 = vadd.f32 0.0, %v1901
      %v1903 = vpop.f32.mrf.mxu0
      %v1904 = vadd.f32 0.0, %v1903
      %1905 = vmatprep.mubr.bf16.mxu0 %v1854
      %1906 = vmatmul.mubr.bf16.gmra.mxu0 %v1853
      %v1907 = vpop.f32.mrf.mxu0
      %v1908 = vadd.f32 0.0, %v1907
      %v1909 = vpop.f32.mrf.mxu0
      %v1910 = vadd.f32 0.0, %v1909
      %v1911 = vpop.f32.mrf.mxu0
      %v1912 = vadd.f32 0.0, %v1911
      %v1913 = vpop.f32.mrf.mxu0
      %v1914 = vadd.f32 0.0, %v1913
      %1915 = vmatprep.mubr.bf16.mxu0 %v1856
      %1916 = vmatmul.mubr.bf16.gmra.mxu0 %v1855
      %v1917 = vpop.f32.mrf.mxu0
      %v1918 = vadd.f32 0.0, %v1917
      %v1919 = vpop.f32.mrf.mxu0
      %v1920 = vadd.f32 0.0, %v1919
      %v1921 = vpop.f32.mrf.mxu0
      %v1922 = vpop.f32.mrf.mxu0
      %1923 = vdwg.mxu0
      %1924 = vst [vmem:[%s295] sm:$0xff] %v1898
      %1925 = vst [vmem:[%s295 + $0x8] sm:$0xff] %v1900
      %1926 = vst [vmem:[%s295 + $0x10] sm:$0xff] %v1902
      %1927 = vst [vmem:[%s295 + $0x18] sm:$0xff] %v1904
      %1928 = vst [vmem:[%s295 + $0x20] sm:$0xff] %v1908
      %1929 = vst [vmem:[%s295 + $0x28] sm:$0xff] %v1910
      %1930 = vst [vmem:[%s295 + $0x30] sm:$0xff] %v1912
      %1931 = vst [vmem:[%s295 + $0x38] sm:$0xff] %v1914
      %1932 = vst [vmem:[%s295 + $0x40] sm:$0xf] %v1918
      %1933 = vst [vmem:[%s295 + $0x48] sm:$0xf] %v1920
      %s1934 = smul.u32 2, %s20
      %p1935 = scmp.lt.s32.totalorder %s19, 1
      %s1936 = scalar_select %p1935, %s19, 1
      %p1937 = scmp.lt.s32.totalorder %s1934, 1
      %s1938 = scalar_select %p1937, %s1934, 1
      %s1939 = smul.addr %s1936, 10
      %s1940 = sadd.s32 %s1938, %s1939
      %s1941 = smul.addr %s1940, 8
      %s1942 = scalar_lea.vmem %s4, %s1941
      // Predicated region
      $region37: #{_lambda_.10} parent=35 // pred_check
        %p1943 = pneg %p153
      $region38: #{_lambda_.10} parent=35 // pred_check_branch
        %1945 = sbr.rel (%p1943) target = $region40
      $region39: #{_lambda_.10} parent=35 // pred_region
        %s1946 = smul.u32 2, %s20
      $region40: #{_lambda_.10} parent=35 // pred_fallthru
        _
    $region36: #{_lambda_.10} parent=5 // pred_fallthru
      _
    %p1947 = scmp.le.s32.totalorder 2, %s10
    // Predicated region
    $region41: #{_lambda_.10} parent=5 // pred_check
      %p1948 = pneg %p1947
    $region42: #{_lambda_.10} parent=5 // pred_check_branch
      %1950 = sbr.rel (%p1948) target = $region44
    $region43: #{_lambda_.10} parent=5 // pred_region
      %s1951 = ssub.s32 %s10, 2
      // Predicated region
      $region45: #{_lambda_.10} parent=43 // pred_check
        %p1952 = pneg %p159
      $region46: #{_lambda_.10} parent=43 // pred_check_branch
        %1954 = sbr.rel (%p1952) target = $region48
      $region47: #{_lambda_.10} parent=43 // pred_region
        %s1955 = smul.u32 2, %s22
        %p1956 = scmp.lt.s32.totalorder %s21, 1
        %s1957 = scalar_select %p1956, %s21, 1
        %p1958 = scmp.lt.s32.totalorder %s1955, 1
        %s1959 = scalar_select %p1958, %s1955, 1
        %s1960 = smul.addr %s1957, 10
        %s1961 = sadd.s32 %s1959, %s1960
        %s1962 = smul.addr %s1961, 8
        %s1963 = scalar_lea.vmem %s4, %s1962
      $region48: #{_lambda_.10} parent=43 // pred_fallthru
        _
    $region44: #{_lambda_.10} parent=5 // pred_fallthru
      _
  $region6: #{_lambda_.10} parent=0 // loop_footer
    %s14 = sadd.s32 1, %s10
  $region7: #{_lambda_.10} parent=0 // loop_footer_branch
    %9 = sbr.rel target = $region3
  $region8: #{_lambda_.10} parent=0 // loop_exit
    _

// kernel: _lambda_.11
$region0: #{_lambda_.11}
  #allocation0 [shape = 'u32[]', space=smem, size = 0x4, offset = 0x4, fixed_abs, tag = 'smem constant byte address 0x4 - core index']
  #allocation1 [shape = 'u32[144,128]{1,0:T(1,128)}', space=vmem, size = 0x12000, scoped, tag = 'internal scratch']
  %s0 = inlined_call_operand.vmem [shape: f32[4,2,72], index: 0, kind: input, shape index: {}]
  %s1 = inlined_call_operand.vmem [shape: f32[4,2,1], index: 1, kind: input, shape index: {}]
  %s2 = inlined_call_operand.vmem [shape: bf16[4,72,512], index: 2, kind: input, shape index: {}]
  %s3 = inlined_call_operand.vmem [shape: f32[4,2,512], index: 3, kind: output, shape index: {}]
  %s4 = sld [smem:[#allocation0]]
  $region45: #{_lambda_.11} parent=0
    _
  %s6 = ssub.s32 1, %s4
  %s7 = scalar_select 0, %s6, %s4
  loop: start=0, step=1, limit=6
  $region2: #{_lambda_.11} parent=0 // loop_pre_header
    _
  $region3: #{_lambda_.11} parent=0 // loop_header
    %s9 = sphi 0, %s13
    %p10 = scmp.ge.s32.totalorder %s9, 6
    %s16 = sphi 0, %s28
    %s17 = sphi 0, %s24
    %s18 = sphi 0, %s16
    %s19 = sphi 0, %s17
    %s20 = sphi 0, %s18
    %s21 = sphi 0, %s19
    %s31 = sphi 0, %s33
    %s34 = sphi 0, %s31
    %s35 = sphi 0, %s34
    %s51 = sphi 0, %s35
    %s57 = sphi 0, %s59
    %s60 = sphi 0, %s57
    %s61 = sphi 0, %s60
    %s77 = sphi 0, %s61
    %s85 = sphi 0, %s87
    %s88 = sphi 0, %s85
    %s89 = sphi 0, %s88
    %s105 = sphi 0, %s89
    %s113 = sphi 0, %s115
    %s116 = sphi 0, %s113
    %s117 = sphi 0, %s116
    %s133 = sphi 0, %s117
  $region4: #{_lambda_.11} parent=0 // loop_header_branch
    %12 = sbr.rel (%p10) target = $region8
  $region5: #{_lambda_.11} parent=0 // loop_body
    %s14 = ssub.s32 %s9, 1
    %s15 = ssub.s32 %s9, 2
    %s22 = sadd.s32 1, %s17
    %p23 = scmp.ge.s32.totalorder %s22, 1
    %s24 = scalar_select %p23, 0, %s22
    %s25 = sadd.s32 1, %s16
    %s26 = scalar_select %p23, %s25, %s16
    %p27 = scmp.ge.s32.totalorder %s26, 4
    %s28 = scalar_select %p27, 0, %s26
    %s29 = ssub.s32 %s16, %s28
    %p30 = scmp.eq.s32.totalorder %s29, 0
    %s32 = sadd.s32 %s31, 1
    %s33 = scalar_select %p30, %s31, %s32
    %p36 = pneg %p30
    %p37 = scmp.eq.s32.totalorder %s9, 3
    %p38 = por %p36, %p37
    %p39 = scmp.ne.s32.totalorder %s31, %s34
    %p40 = scmp.eq.s32.totalorder %s9, 0
    %p41 = por %p39, %p40
    %p42 = scmp.ne.s32.totalorder %s31, %s34
    %p43 = scmp.eq.s32.totalorder %s14, 3
    %p44 = por %p42, %p43
    %p45 = scmp.ne.s32.totalorder %s34, %s35
    %p46 = scmp.eq.s32.totalorder %s14, 0
    %p47 = por %p45, %p46
    %p48 = scmp.ne.s32.totalorder %s34, %s35
    %p49 = scmp.eq.s32.totalorder %s15, 3
    %p50 = por %p48, %p49
    %p52 = scmp.ne.s32.totalorder %s35, %s51
    %p53 = scmp.eq.s32.totalorder %s15, 0
    %p54 = por %p52, %p53
    %s55 = ssub.s32 %s16, %s28
    %p56 = scmp.eq.s32.totalorder %s55, 0
    %s58 = sadd.s32 %s57, 1
    %s59 = scalar_select %p56, %s57, %s58
    %p62 = pneg %p56
    %p63 = scmp.eq.s32.totalorder %s9, 3
    %p64 = por %p62, %p63
    %p65 = scmp.ne.s32.totalorder %s57, %s60
    %p66 = scmp.eq.s32.totalorder %s9, 0
    %p67 = por %p65, %p66
    %p68 = scmp.ne.s32.totalorder %s57, %s60
    %p69 = scmp.eq.s32.totalorder %s14, 3
    %p70 = por %p68, %p69
    %p71 = scmp.ne.s32.totalorder %s60, %s61
    %p72 = scmp.eq.s32.totalorder %s14, 0
    %p73 = por %p71, %p72
    %p74 = scmp.ne.s32.totalorder %s60, %s61
    %p75 = scmp.eq.s32.totalorder %s15, 3
    %p76 = por %p74, %p75
    %p78 = scmp.ne.s32.totalorder %s61, %s77
    %p79 = scmp.eq.s32.totalorder %s15, 0
    %p80 = por %p78, %p79
    %s81 = ssub.s32 %s16, %s28
    %s82 = ssub.s32 %s17, %s24
    %s83 = sor.u32 %s81, %s82
    %p84 = scmp.eq.s32.totalorder %s83, 0
    %s86 = sadd.s32 %s85, 1
    %s87 = scalar_select %p84, %s85, %s86
    %p90 = pneg %p84
    %p91 = scmp.eq.s32.totalorder %s9, 3
    %p92 = por %p90, %p91
    %p93 = scmp.ne.s32.totalorder %s85, %s88
    %p94 = scmp.eq.s32.totalorder %s9, 0
    %p95 = por %p93, %p94
    %p96 = scmp.ne.s32.totalorder %s85, %s88
    %p97 = scmp.eq.s32.totalorder %s14, 3
    %p98 = por %p96, %p97
    %p99 = scmp.ne.s32.totalorder %s88, %s89
    %p100 = scmp.eq.s32.totalorder %s14, 0
    %p101 = por %p99, %p100
    %p102 = scmp.ne.s32.totalorder %s88, %s89
    %p103 = scmp.eq.s32.totalorder %s15, 3
    %p104 = por %p102, %p103
    %p106 = scmp.ne.s32.totalorder %s89, %s105
    %p107 = scmp.eq.s32.totalorder %s15, 0
    %p108 = por %p106, %p107
    %s109 = ssub.s32 %s16, %s28
    %s110 = ssub.s32 %s17, %s24
    %s111 = sor.u32 %s109, %s110
    %p112 = scmp.eq.s32.totalorder %s111, 0
    %s114 = sadd.s32 %s113, 1
    %s115 = scalar_select %p112, %s113, %s114
    %p118 = pneg %p112
    %p119 = scmp.eq.s32.totalorder %s9, 3
    %p120 = por %p118, %p119
    %p121 = scmp.ne.s32.totalorder %s113, %s116
    %p122 = scmp.eq.s32.totalorder %s9, 0
    %p123 = por %p121, %p122
    %p124 = scmp.ne.s32.totalorder %s113, %s116
    %p125 = scmp.eq.s32.totalorder %s14, 3
    %p126 = por %p124, %p125
    %p127 = scmp.ne.s32.totalorder %s116, %s117
    %p128 = scmp.eq.s32.totalorder %s14, 0
    %p129 = por %p127, %p128
    %p130 = scmp.ne.s32.totalorder %s116, %s117
    %p131 = scmp.eq.s32.totalorder %s15, 3
    %p132 = por %p130, %p131
    %p134 = scmp.ne.s32.totalorder %s117, %s133
    %p135 = scmp.eq.s32.totalorder %s15, 0
    %p136 = por %p134, %p135
    %p137 = scmp.le.s32.totalorder 1, %s9
    %p138 = scmp.lt.s32.totalorder %s9, 5
    %p139 = pnand %p137, %p138
    %p140 = pneg %p139
    // Predicated region
    $region9: #{_lambda_.11} parent=5 // pred_check
      _
    $region10: #{_lambda_.11} parent=5 // pred_check_branch
      %142 = sbr.rel (%p139) target = $region12
    $region11: #{_lambda_.11} parent=5 // pred_region
      %s143 = ssub.s32 %s9, 1
    $region12: #{_lambda_.11} parent=5 // pred_fallthru
      _
    %p144 = scmp.lt.s32.totalorder %s9, 4
    // Predicated region
    $region13: #{_lambda_.11} parent=5 // pred_check
      %p145 = pneg %p144
    $region14: #{_lambda_.11} parent=5 // pred_check_branch
      %147 = sbr.rel (%p145) target = $region16
    $region15: #{_lambda_.11} parent=5 // pred_region
      // Predicated region
      $region17: #{_lambda_.11} parent=15 // pred_check
        %p148 = pneg %p41
      $region18: #{_lambda_.11} parent=15 // pred_check_branch
        %150 = sbr.rel (%p148) target = $region20
      $region19: #{_lambda_.11} parent=15 // pred_region
        %p151 = scmp.lt.s32.totalorder %s16, 3
        %s152 = scalar_select %p151, %s16, 3
        %s153 = smul.addr %s152, 2
        %s154 = scalar_lea.vmem %s0, %s153
      $region20: #{_lambda_.11} parent=15 // pred_fallthru
        _
      // Predicated region
      $region21: #{_lambda_.11} parent=15 // pred_check
        %p155 = pneg %p67
      $region22: #{_lambda_.11} parent=15 // pred_check_branch
        %157 = sbr.rel (%p155) target = $region24
      $region23: #{_lambda_.11} parent=15 // pred_region
        %p158 = scmp.lt.s32.totalorder %s16, 3
        %s159 = scalar_select %p158, %s16, 3
        %s160 = smul.addr %s159, 2
        %s161 = scalar_lea.vmem %s1, %s160
      $region24: #{_lambda_.11} parent=15 // pred_fallthru
        _
      // Predicated region
      $region25: #{_lambda_.11} parent=15 // pred_check
        %p162 = pneg %p95
      $region26: #{_lambda_.11} parent=15 // pred_check_branch
        %164 = sbr.rel (%p162) target = $region28
      $region27: #{_lambda_.11} parent=15 // pred_region
        %s165 = smul.u32 4, %s17
        %p166 = scmp.lt.s32.totalorder %s16, 3
        %s167 = scalar_select %p166, %s16, 3
        %p168 = scmp.lt.s32.totalorder %s165, 3
        %s169 = scalar_select %p168, %s165, 3
        %s170 = smul.addr %s167, 36
        %s171 = sadd.s32 %s169, %s170
        %s172 = smul.addr %s171, 4
        %s173 = scalar_lea.vmem %s2, %s172
        %s174 = smul.u32 4, %s17
      $region28: #{_lambda_.11} parent=15 // pred_fallthru
        _
    $region16: #{_lambda_.11} parent=5 // pred_fallthru
      _
    %p175 = scmp.le.s32.totalorder 1, %s9
    %p176 = scmp.lt.s32.totalorder %s9, 5
    %p177 = pnand %p175, %p176
    %p178 = pneg %p177
    // Predicated region
    $region29: #{_lambda_.11} parent=5 // pred_check
      _
    $region30: #{_lambda_.11} parent=5 // pred_check_branch
      %180 = sbr.rel (%p177) target = $region32
    $region31: #{_lambda_.11} parent=5 // pred_region
      %s181 = ssub.s32 %s9, 1
      %p182 = scmp.lt.s32.totalorder %s18, 3
      %s183 = scalar_select %p182, %s18, 3
      %s184 = smul.addr %s183, 2
      %s185 = scalar_lea.vmem %s0, %s184
      %p186 = pneg %p47
      %p187 = pneg %p44
      %p188 = scmp.lt.s32.totalorder %s18, 3
      %s189 = scalar_select %p188, %s18, 3
      %s190 = smul.addr %s189, 2
      %s191 = scalar_lea.vmem %s1, %s190
      %p192 = pneg %p73
      %p193 = pneg %p70
      %s194 = smul.u32 4, %s19
      %p195 = scmp.lt.s32.totalorder %s18, 3
      %s196 = scalar_select %p195, %s18, 3
      %p197 = scmp.lt.s32.totalorder %s194, 3
      %s198 = scalar_select %p197, %s194, 3
      %s199 = smul.addr %s196, 36
      %s200 = sadd.s32 %s198, %s199
      %s201 = smul.addr %s200, 4
      %s202 = scalar_lea.vmem %s2, %s201
      %p203 = pneg %p101
      %p204 = pneg %p98
      %p205 = pneg %p129
      %p206 = pneg %p126
      %s207 = smul.u32 4, %s19
      %p208 = scmp.lt.s32.totalorder %s18, 3
      %s209 = scalar_select %p208, %s18, 3
      %p210 = scmp.lt.s32.totalorder %s207, 3
      %s211 = scalar_select %p210, %s207, 3
      %s212 = smul.addr %s209, 4
      %s213 = sadd.s32 %s211, %s212
      %s214 = smul.addr %s213, 2
      %s215 = scalar_lea.vmem %s3, %s214
      %p216 = scmp.lt.s32.totalorder %s18, 3
      %s217 = scalar_select %p216, %s18, 3
      %s218 = smul.addr %s217, 2
      %s219 = scalar_lea.vmem %s0, %s218
      %p220 = scmp.lt.s32.totalorder %s18, 3
      %s221 = scalar_select %p220, %s18, 3
      %s222 = smul.addr %s221, 2
      %s223 = scalar_lea.vmem %s1, %s222
      %s224 = smul.u32 4, %s19
      %p225 = scmp.lt.s32.totalorder %s18, 3
      %s226 = scalar_select %p225, %s18, 3
      %p227 = scmp.lt.s32.totalorder %s224, 3
      %s228 = scalar_select %p227, %s224, 3
      %s229 = smul.addr %s226, 36
      %s230 = sadd.s32 %s228, %s229
      %s231 = smul.addr %s230, 4
      %s232 = scalar_lea.vmem %s2, %s231
      %s233 = smul.u32 4, %s19
      %s234 = smul.u32 4, %s19
      %p235 = scmp.lt.s32.totalorder %s18, 3
      %s236 = scalar_select %p235, %s18, 3
      %p237 = scmp.lt.s32.totalorder %s234, 3
      %s238 = scalar_select %p237, %s234, 3
      %s239 = smul.addr %s236, 4
      %s240 = sadd.s32 %s238, %s239
      %s241 = smul.addr %s240, 2
      %s242 = scalar_lea.vmem %s3, %s241
      %s243 = smul.u32 4, %s19
      %v245 = vld [vmem:[%s219] sm:$0x3]
      %v246 = vpack.c.bf16 %v245, %v245
      %v247 = vld [vmem:[%s232] sm:$0xff]
      %v248 = vld [vmem:[%s232 + $0x8] sm:$0xff]
      %v249 = vld [vmem:[%s232 + $0x10] sm:$0xff]
      %v250 = vld [vmem:[%s232 + $0x18] sm:$0xff]
      %v251 = vld [vmem:[%s232 + $0x20] sm:$0xff]
      %v252 = vld [vmem:[%s232 + $0x28] sm:$0xff]
      %v253 = vld [vmem:[%s232 + $0x30] sm:$0xff]
      %v254 = vld [vmem:[%s232 + $0x38] sm:$0xff]
      %v255 = vld [vmem:[%s232 + $0x40] sm:$0xff]
      %v256 = vld [vmem:[%s232 + $0x48] sm:$0xff]
      %v257 = vld [vmem:[%s232 + $0x50] sm:$0xff]
      %v258 = vld [vmem:[%s232 + $0x58] sm:$0xff]
      %v259 = vld [vmem:[%s232 + $0x60] sm:$0xff]
      %v260 = vld [vmem:[%s232 + $0x68] sm:$0xff]
      %v261 = vld [vmem:[%s232 + $0x70] sm:$0xff]
      %v262 = vld [vmem:[%s232 + $0x78] sm:$0xff]
      %v263 = vld [vmem:[%s232 + $0x80] sm:$0xff]
      %v264 = vld [vmem:[%s232 + $0x88] sm:$0xff]
      %v265 = vld [vmem:[%s223] sm:$0x3]
      %267 = vset.pattern.permute.xlu0 0
      %268 = vperm.xlu0 %267, %v265
      %v269 = vpop.permute.xlu0 %268
      %v289 = vunpack.c.l.b16 %v247
      %v290 = vunpack.c.h.b16 %v247
      %v291 = vunpack.c.l.b16 %v248
      %v292 = vunpack.c.h.b16 %v248
      %v293 = vunpack.c.l.b16 %v249
      %v294 = vunpack.c.h.b16 %v249
      %v295 = vunpack.c.l.b16 %v250
      %v296 = vunpack.c.h.b16 %v250
      %v297 = vunpack.c.l.b16 %v251
      %v298 = vunpack.c.h.b16 %v251
      %v299 = vunpack.c.l.b16 %v252
      %v300 = vunpack.c.h.b16 %v252
      %v301 = vunpack.c.l.b16 %v253
      %v302 = vunpack.c.h.b16 %v253
      %v303 = vunpack.c.l.b16 %v254
      %v304 = vunpack.c.h.b16 %v254
      %v305 = vunpack.c.l.b16 %v255
      %v306 = vunpack.c.h.b16 %v255
      %v307 = vunpack.c.l.b16 %v256
      %v308 = vunpack.c.h.b16 %v256
      %v309 = vunpack.c.l.b16 %v257
      %v310 = vunpack.c.h.b16 %v257
      %v311 = vunpack.c.l.b16 %v258
      %v312 = vunpack.c.h.b16 %v258
      %v313 = vunpack.c.l.b16 %v259
      %v314 = vunpack.c.h.b16 %v259
      %v315 = vunpack.c.l.b16 %v260
      %v316 = vunpack.c.h.b16 %v260
      %v317 = vunpack.c.l.b16 %v261
      %v318 = vunpack.c.h.b16 %v261
      %v319 = vunpack.c.l.b16 %v262
      %v320 = vunpack.c.h.b16 %v262
      %v321 = vunpack.c.l.b16 %v263
      %v322 = vunpack.c.h.b16 %v263
      %v323 = vunpack.c.l.b16 %v264
      %v324 = vunpack.c.h.b16 %v264
      %v325 = vpack.c.b16 %v293, %v289
      %v326 = vpack.c.b16 %v294, %v290
      %v327 = vpack.c.b16 %v295, %v291
      %v328 = vpack.c.b16 %v296, %v292
      %v329 = vpack.c.b16 %v301, %v297
      %v330 = vpack.c.b16 %v302, %v298
      %v331 = vpack.c.b16 %v303, %v299
      %v332 = vpack.c.b16 %v304, %v300
      %v333 = vpack.c.b16 %v309, %v305
      %v334 = vpack.c.b16 %v310, %v306
      %v335 = vpack.c.b16 %v311, %v307
      %v336 = vpack.c.b16 %v312, %v308
      %v337 = vpack.c.b16 %v317, %v313
      %v338 = vpack.c.b16 %v318, %v314
      %v339 = vpack.c.b16 %v319, %v315
      %v340 = vpack.c.b16 %v320, %v316
      %v341 = vpack.c.b16 %v321, %v321
      %v342 = vpack.c.b16 %v322, %v322
      %v343 = vpack.c.b16 %v323, %v323
      %v344 = vpack.c.b16 %v324, %v324
      %vm361 = vcmask 588800
      %v363 = vsel %vm361, %v246, 0
      %vm365 = vcmask 1043456
      %v367 = vsel %vm365, %v341, 0
      %v370 = vsel %vm365, %v342, 0
      %v373 = vsel %vm365, %v343, 0
      %v376 = vsel %vm365, %v344, 0
      %378 = vmatprep.subr.bf16.mxu0 0
      %379 = vmatpush1.bf16.msra.mxu0 0
      %380 = vmatprep.subr.bf16.mxu0 0
      %381 = vmatpush1.bf16.msra.mxu0 0
      %382 = vmatprep.subr.bf16.mxu0 0
      %383 = vmatpush1.bf16.msra.mxu0 0
      %384 = vmatprep.subr.bf16.mxu0 %v370
      %385 = vmatpush1.bf16.msra.mxu0 %v367
      %386 = vmatprep.subr.bf16.mxu0 %v338
      %387 = vmatpush1.bf16.msra.mxu0 %v337
      %388 = vmatprep.subr.bf16.mxu0 %v334
      %389 = vmatpush1.bf16.msra.mxu0 %v333
      %390 = vmatprep.subr.bf16.mxu0 %v330
      %391 = vmatpush1.bf16.msra.mxu0 %v329
      %392 = vmatprep.subr.bf16.mxu0 %v326
      %393 = vmatpush1.bf16.msra.mxu0 %v325
      %394 = vmatprep.subr.bf16.mxu0 0
      %395 = vmatpush2.bf16.msra.mxu0 0
      %396 = vmatprep.subr.bf16.mxu0 0
      %397 = vmatpush2.bf16.msra.mxu0 0
      %398 = vmatprep.subr.bf16.mxu0 0
      %399 = vmatpush2.bf16.msra.mxu0 0
      %400 = vmatprep.subr.bf16.mxu0 0
      %401 = vmatpush2.bf16.msra.mxu0 0
      %402 = vmatprep.subr.bf16.mxu0 0
      %403 = vmatpush2.bf16.msra.mxu0 0
      %404 = vmatprep.subr.bf16.mxu0 0
      %405 = vmatpush2.bf16.msra.mxu0 0
      %406 = vmatprep.subr.bf16.mxu0 0
      %407 = vmatpush2.bf16.msra.mxu0 0
      %408 = vmatprep.subr.bf16.mxu0 0
      %409 = vmatpush2.bf16.msra.mxu0 0
      %410 = vmatprep.mubr.bf16.mxu0 0
      %411 = vmatmul.mubr.bf16.gmra.mxu0 %v363
      %v412 = vpop.f32.mrf.mxu0
      %v413 = vadd.f32 %v269, %v412
      %v414 = vpop.f32.mrf.mxu0
      %v415 = vadd.f32 %v269, %v414
      %v416 = vpop.f32.mrf.mxu0
      %v417 = vpop.f32.mrf.mxu0
      %418 = vdwg.mxu0
      %419 = vmatprep.subr.bf16.mxu0 0
      %420 = vmatpush1.bf16.msra.mxu0 0
      %421 = vmatprep.subr.bf16.mxu0 0
      %422 = vmatpush1.bf16.msra.mxu0 0
      %423 = vmatprep.subr.bf16.mxu0 0
      %424 = vmatpush1.bf16.msra.mxu0 0
      %425 = vmatprep.subr.bf16.mxu0 %v376
      %426 = vmatpush1.bf16.msra.mxu0 %v373
      %427 = vmatprep.subr.bf16.mxu0 %v340
      %428 = vmatpush1.bf16.msra.mxu0 %v339
      %429 = vmatprep.subr.bf16.mxu0 %v336
      %430 = vmatpush1.bf16.msra.mxu0 %v335
      %431 = vmatprep.subr.bf16.mxu0 %v332
      %432 = vmatpush1.bf16.msra.mxu0 %v331
      %433 = vmatprep.subr.bf16.mxu0 %v328
      %434 = vmatpush1.bf16.msra.mxu0 %v327
      %435 = vmatprep.subr.bf16.mxu0 0
      %436 = vmatpush2.bf16.msra.mxu0 0
      %437 = vmatprep.subr.bf16.mxu0 0
      %438 = vmatpush2.bf16.msra.mxu0 0
      %439 = vmatprep.subr.bf16.mxu0 0
      %440 = vmatpush2.bf16.msra.mxu0 0
      %441 = vmatprep.subr.bf16.mxu0 0
      %442 = vmatpush2.bf16.msra.mxu0 0
      %443 = vmatprep.subr.bf16.mxu0 0
      %444 = vmatpush2.bf16.msra.mxu0 0
      %445 = vmatprep.subr.bf16.mxu0 0
      %446 = vmatpush2.bf16.msra.mxu0 0
      %447 = vmatprep.subr.bf16.mxu0 0
      %448 = vmatpush2.bf16.msra.mxu0 0
      %449 = vmatprep.subr.bf16.mxu0 0
      %450 = vmatpush2.bf16.msra.mxu0 0
      %451 = vmatprep.mubr.bf16.mxu0 0
      %452 = vmatmul.mubr.bf16.gmra.mxu0 %v363
      %v453 = vpop.f32.mrf.mxu0
      %v454 = vadd.f32 %v269, %v453
      %v455 = vpop.f32.mrf.mxu0
      %v456 = vadd.f32 %v269, %v455
      %v457 = vpop.f32.mrf.mxu0
      %v458 = vpop.f32.mrf.mxu0
      %459 = vdwg.mxu0
      %vm460 = vcmp.ge.f32.partialorder %v413, 0.0
      %vm461 = vcmp.ge.f32.partialorder %v415, 0.0
      %vm462 = vcmp.ge.f32.partialorder %v454, 0.0
      %vm463 = vcmp.ge.f32.partialorder %v456, 0.0
      %v464 = vmul.f32 %v413, 0.2
      %v465 = vmul.f32 %v415, 0.2
      %v466 = vmul.f32 %v454, 0.2
      %v467 = vmul.f32 %v456, 0.2
      %v468 = vsel %vm460, %v413, %v464
      %v469 = vsel %vm461, %v415, %v465
      %v470 = vsel %vm462, %v454, %v466
      %v471 = vsel %vm463, %v456, %v467
      %v476 = vcombine.low %v468, %v469
      %v477 = vcombine.low %v470, %v471
      %v479 = vunpack.c.l.s4 1983009808
      %v480 = vunpack.c.0.s8 %v479
      %v481 = vlaneseq
      %v482 = vshrl.u32 %v481, 7
      %v483 = vsub.s32 %v480, %v482
      %v484 = vrot.slane %v476, %v483
      %v486 = vunpack.c.l.s4 1983009808
      %v487 = vunpack.c.0.s8 %v486
      %v488 = vlaneseq
      %v489 = vshrl.u32 %v488, 7
      %v490 = vsub.s32 %v487, %v489
      %v491 = vrot.slane %v477, %v490
      %v492 = vcombine.low %v484, %v491
      %494 = vst [vmem:[%s242] sm:$0xff] %v492
      %s495 = smul.u32 4, %s19
      %p496 = scmp.lt.s32.totalorder %s18, 3
      %s497 = scalar_select %p496, %s18, 3
      %p498 = scmp.lt.s32.totalorder %s495, 3
      %s499 = scalar_select %p498, %s495, 3
      %s500 = smul.addr %s497, 4
      %s501 = sadd.s32 %s499, %s500
      %s502 = smul.addr %s501, 2
      %s503 = scalar_lea.vmem %s3, %s502
      // Predicated region
      $region33: #{_lambda_.11} parent=31 // pred_check
        %p504 = pneg %p126
      $region34: #{_lambda_.11} parent=31 // pred_check_branch
        %506 = sbr.rel (%p504) target = $region36
      $region35: #{_lambda_.11} parent=31 // pred_region
        %s507 = smul.u32 4, %s19
      $region36: #{_lambda_.11} parent=31 // pred_fallthru
        _
    $region32: #{_lambda_.11} parent=5 // pred_fallthru
      _
    %p508 = scmp.le.s32.totalorder 2, %s9
    // Predicated region
    $region37: #{_lambda_.11} parent=5 // pred_check
      %p509 = pneg %p508
    $region38: #{_lambda_.11} parent=5 // pred_check_branch
      %511 = sbr.rel (%p509) target = $region40
    $region39: #{_lambda_.11} parent=5 // pred_region
      %s512 = ssub.s32 %s9, 2
      // Predicated region
      $region41: #{_lambda_.11} parent=39 // pred_check
        %p513 = pneg %p132
      $region42: #{_lambda_.11} parent=39 // pred_check_branch
        %515 = sbr.rel (%p513) target = $region44
      $region43: #{_lambda_.11} parent=39 // pred_region
        %s516 = smul.u32 4, %s21
        %p517 = scmp.lt.s32.totalorder %s20, 3
        %s518 = scalar_select %p517, %s20, 3
        %p519 = scmp.lt.s32.totalorder %s516, 3
        %s520 = scalar_select %p519, %s516, 3
        %s521 = smul.addr %s518, 4
        %s522 = sadd.s32 %s520, %s521
        %s523 = smul.addr %s522, 2
        %s524 = scalar_lea.vmem %s3, %s523
      $region44: #{_lambda_.11} parent=39 // pred_fallthru
        _
    $region40: #{_lambda_.11} parent=5 // pred_fallthru
      _
  $region6: #{_lambda_.11} parent=0 // loop_footer
    %s13 = sadd.s32 1, %s9
  $region7: #{_lambda_.11} parent=0 // loop_footer_branch
    %8 = sbr.rel target = $region3
  $region8: #{_lambda_.11} parent=0 // loop_exit
    _

</llo_original>
